<compile_context>
chip_gen: v7x
topology: tpu7x:2x2x1
jax: 0.10.0
libtpu: 0.0.40
codegen_flags: <defaults>
</compile_context>

<pallas_src>
import functools

import jax
import jax.numpy as jnp
from jax.experimental import pallas as pl
from jax.experimental.pallas import tpu as pltpu


# ----------------------------- in-kernel helpers ---------------------------

def _softplus(y):
    # torch.nn.Softplus(beta=1, threshold=20)
    return jnp.where(y > 20.0, y, jnp.log(1.0 + jnp.exp(jnp.minimum(y, 20.0))))


def _layernorm(x, g, b, eps=1e-5):
    # TODO(synk): torch LayerNorm subclass casts to fp16 internally then back;
    # normalization here is done in fp32 (precision-only difference).
    mu = jnp.mean(x, axis=-1, keepdims=True)
    xc = x - mu
    var = jnp.mean(xc * xc, axis=-1, keepdims=True)
    return xc * jax.lax.rsqrt(var + eps) * g + b


# ------------------------- fused ViT forward kernel -------------------------

def _vit_kernel(patches_ref, wp_ref, poscls_ref,
                g_pre_ref, b_pre_ref, g1_ref, b1_ref,
                w_in_ref, b_in_ref, w_out_ref, b_out_ref,
                g2_ref, b2_ref, w_fc_ref, b_fc_ref, w_cp_ref, b_cp_ref,
                g_post_ref, b_post_ref, w_proj_ref, o_ref, *, n_head):
    f32 = jnp.float32
    wp = wp_ref[...]
    E = wp.shape[1]
    H = n_head                                   # head_dim == 2 (E == 2*H)

    # patch embedding + [cls] + positional embedding (cls pre-folded into row 0)
    tok = jnp.dot(patches_ref[0], wp, preferred_element_type=f32)        # (25, E)
    seq = jnp.concatenate([jnp.zeros((1, E), f32), tok], axis=0) + poscls_ref[...]
    h = _layernorm(seq, g_pre_ref[...], b_pre_ref[...])                  # (26, E)

    # ---- residual attention block: attention branch (VPU, no MXU for D=2) ----
    x1 = _layernorm(h, g1_ref[...], b1_ref[...])
    qkv = jnp.dot(x1, w_in_ref[...], preferred_element_type=f32) + b_in_ref[...]
    q0, q1 = qkv[:, 0:H], qkv[:, H:E]            # (L, H): per-head dim0 / dim1
    k0, k1 = qkv[:, E:E + H], qkv[:, E + H:2 * E]
    v0, v1 = qkv[:, 2 * E:2 * E + H], qkv[:, 2 * E + H:3 * E]
    # scores s[key j, query i, head]; 1/sqrt(D) already folded into the q weights
    s = q0[None, :, :] * k0[:, None, :] + q1[None, :, :] * k1[:, None, :]
    s = s - jnp.max(s, axis=0, keepdims=True)
    e = jnp.exp(s)
    prob = e * pl.reciprocal(jnp.sum(e, axis=0, keepdims=True), approx=True)
    o0 = jnp.sum(prob * v0[:, None, :], axis=0)                          # (L, H)
    o1 = jnp.sum(prob * v1[:, None, :], axis=0)
    attn = jnp.concatenate([o0, o1], axis=1)                             # permuted head layout
    attn = jnp.dot(attn, w_out_ref[...], preferred_element_type=f32) + b_out_ref[...]
    h = h + attn

    # ---- residual MLP branch ----
    x2 = _layernorm(h, g2_ref[...], b2_ref[...])
    y = jnp.dot(x2, w_fc_ref[...], preferred_element_type=f32) + b_fc_ref[...]
    y = y * pl.reciprocal(1.0 + jnp.exp(-1.702 * y), approx=True)        # QuickGELU
    y = jnp.dot(y, w_cp_ref[...], preferred_element_type=f32) + b_cp_ref[...]
    h = h + y

    # ---- ln_post on the cls token, projection, softplus ----
    cls = _layernorm(h[0:1, :], g_post_ref[...], b_post_ref[...])        # (1, E)
    out = jnp.dot(cls, w_proj_ref[...], preferred_element_type=f32)
    o_ref[0] = _softplus(out).astype(o_ref.dtype)


def vit_forward(p, x, n_head=32):
    B = x.shape[0]
    assert x.shape[1:] == (1, 8, 200)
    E = p["positional_embedding"].shape[1]                 # 64
    H = n_head
    D = E // H
    assert D == 2 and H * D == E                           # layout trick assumes head_dim == 2
    classes = p["proj"].shape[1]

    # patch embedding operands
    patches = x.reshape(B, 1, 8, 25, 8).transpose(0, 3, 1, 2, 4).reshape(B, 25, E)
    wp = p["conv1_w"].reshape(E, E).T                      # (in=64, out=64)
    poscls = p["positional_embedding"].at[0].add(p["class_embedding"])   # (26, E)

    # permute head-interleaved qkv columns into [dim0-heads | dim1-heads] slabs
    # and fold the 1/sqrt(D) score scale into the q projection.
    idx = jnp.concatenate([jnp.arange(H) * 2, jnp.arange(H) * 2 + 1])
    scale = float(D) ** -0.5
    w_in_t = p["in_proj_w"].T                              # (E, 3E) cols = [q | k | v]
    b_in = p["in_proj_b"]
    w_in = jnp.concatenate(
        [w_in_t[:, 0:E][:, idx] * scale,
         w_in_t[:, E:2 * E][:, idx],
         w_in_t[:, 2 * E:3 * E][:, idx]], axis=1)
    b_inp = jnp.concatenate(
        [b_in[0:E][idx] * scale, b_in[E:2 * E][idx], b_in[2 * E:3 * E][idx]]
    ).reshape(1, 3 * E)
    w_out = p["out_proj_w"].T[idx, :]                      # rows permuted to match
    b_out = p["out_proj_b"].reshape(1, E)

    w_fc = p["fc_w"].T
    b_fc = p["fc_b"].reshape(1, 4 * E)
    w_cp = p["cproj_w"].T
    b_cp = p["cproj_b"].reshape(1, E)

    r1 = lambda v: v.reshape(1, E)
    args = (patches, wp, poscls,
            r1(p["ln_pre_g"]), r1(p["ln_pre_b"]),
            r1(p["ln1_g"]), r1(p["ln1_b"]),
            w_in, b_inp, w_out, b_out,
            r1(p["ln2_g"]), r1(p["ln2_b"]),
            w_fc, b_fc, w_cp, b_cp,
            r1(p["ln_post_g"]), r1(p["ln_post_b"]),
            p["proj"])

    def const2(a):
        return pl.BlockSpec(a.shape, lambda b: (0, 0))     # loaded once, no re-DMA

    in_specs = [pl.BlockSpec((1, 25, E), lambda b: (b, 0, 0))] + [const2(a) for a in args[1:]]

    out = pl.pallas_call(
        functools.partial(_vit_kernel, n_head=H),
        grid=(B,),
        in_specs=in_specs,
        out_specs=pl.BlockSpec((1, 1, classes), lambda b: (b, 0, 0)),
        out_shape=jax.ShapeDtypeStruct((B, 1, classes), jnp.float32),
        compiler_params=pltpu.CompilerParams(dimension_semantics=("parallel",)),
    )(*args)
    return out[:, 0, :]


# ------------------------- fused CNN forward kernel -------------------------

def _cnn_kernel(cols1_ref, w1_ref, b1_ref, w2_ref, b2_ref,
                wl1_ref, bl1_ref, wl2_ref, bl2_ref, o_ref):
    f32 = jnp.float32
    # conv1 as matmul on pre-built patches (K padded to 64) + ReLU, fused with pool1
    y = jnp.dot(cols1_ref[0], w1_ref[...], preferred_element_type=f32) + b1_ref[...]
    y = jnp.maximum(y, 0.0)                                  # (1600, 32)
    # rows are ordered (h, w_in_window, w_out): pool1 reduces a leading axis.
    y = jnp.max(y.reshape(8, 10, 20, 32), axis=1)            # (8, 20, 32) = (h, w, c)

    # conv2: build the 3x3 im2col in VMEM from shifted slices of the padded map
    zr = jnp.zeros((1, 20, 32), f32)
    zc = jnp.zeros((10, 1, 32), f32)
    yp = jnp.concatenate([zr, y, zr], axis=0)                # (10, 20, 32)
    yp = jnp.concatenate([zc, yp, zc], axis=1)               # (10, 22, 32)
    cols2 = jnp.concatenate(
        [yp[di:di + 8, dj:dj + 20, :] for di in range(3) for dj in range(3)], axis=2)
    y2 = jnp.dot(cols2.reshape(160, 288), w2_ref[...],
                 preferred_element_type=f32) + b2_ref[...]
    y2 = jnp.maximum(y2, 0.0).reshape(8, 20, 32)

    # pool2 (4,4)/(4,4): both window axes reduced without touching the lane dim
    y2 = jnp.max(y2.reshape(8, 5, 4, 32), axis=2)            # (8, 5, 32)
    y2 = jnp.max(y2.reshape(2, 4, 5, 32), axis=1)            # (2, 5, 32) = (ph, pw, c)

    fm = y2.reshape(10, 32)
    feat = jnp.concatenate([fm[r:r + 1, :] for r in range(10)], axis=1)  # (1, 320)
    # TODO(synk): nn.Dropout treated as identity (inference semantics).
    f1 = jnp.dot(feat, wl1_ref[...], preferred_element_type=f32) + bl1_ref[...]
    f1 = jnp.maximum(f1, 0.0)                                # (1, 64)
    logits = jnp.dot(f1, wl2_ref[...], preferred_element_type=f32) + bl2_ref[...]
    o_ref[0] = _softplus(logits).astype(o_ref.dtype)


def _conv1_im2col(x):
    """x:(B,1,8,200) -> (B,1600,64).  Rows ordered (h, w_in_window, w_out) so the
    pool1 window becomes a leading axis after the conv matmul; K padded 57->64."""
    B = x.shape[0]
    xp = jnp.pad(x, ((0, 0), (0, 0), (1, 1), (9, 9)))        # (B,1,10,218)
    cols = [xp[:, 0, i:i + 8, j:j + 200] for i in range(3) for j in range(19)]
    cols = jnp.stack(cols, axis=-1)                          # (B,8,200,57)
    cols = jnp.pad(cols, ((0, 0), (0, 0), (0, 0), (0, 7)))   # (B,8,200,64)
    cols = cols.reshape(B, 8, 20, 10, 64).transpose(0, 1, 3, 2, 4)
    return cols.reshape(B, 1600, 64)


def cnn_forward(p, x):
    B = x.shape[0]
    assert x.shape[1:] == (1, 8, 200)
    classes = p["lin2_b"].shape[0]

    # TODO(synk): conv1 im2col (57x expansion of a 6.4 KB input) is still built in
    # XLA glue; everything downstream is fused into a single Pallas kernel.
    cols1 = _conv1_im2col(x)
    w1 = jnp.concatenate([p["conv1_w"].reshape(32, 57).T,
                          jnp.zeros((7, 32), jnp.float32)], axis=0)      # (64, 32)
    b1 = p["conv1_b"].reshape(1, 32)
    w2 = p["conv2_w"].transpose(2, 3, 1, 0).reshape(288, 32)             # (di,dj,cin) -> cout
    b2 = p["conv2_b"].reshape(1, 32)
    # linear1 weight rows permuted to the kernel's (ph, pw, c) flatten order
    wl1 = p["lin1_w"].reshape(64, 32, 2, 5).transpose(2, 3, 1, 0).reshape(320, 64)
    bl1 = p["lin1_b"].reshape(1, 64)
    wl2 = p["lin2_w"].T                                                   # (64, classes)
    bl2 = p["lin2_b"].reshape(1, classes)

    args = (cols1, w1, b1, w2, b2, wl1, bl1, wl2, bl2)

    def const2(a):
        return pl.BlockSpec(a.shape, lambda b: (0, 0))

    in_specs = [pl.BlockSpec((1, 1600, 64), lambda b: (b, 0, 0))] + [const2(a) for a in args[1:]]

    out = pl.pallas_call(
        _cnn_kernel,
        grid=(B,),
        in_specs=in_specs,
        out_specs=pl.BlockSpec((1, 1, classes), lambda b: (b, 0, 0)),
        out_shape=jax.ShapeDtypeStruct((B, 1, classes), jnp.float32),
        compiler_params=pltpu.CompilerParams(dimension_semantics=("parallel",)),
    )(*args)
    return out[:, 0, :]


# ------------------------------- ensemble ----------------------------------

def vc_ensemble_forward(params, x):
    x1 = vit_forward(params["vit"], x)
    x2 = cnn_forward(params["cnn"], x)
    # 2-element softmax + weighted sum of (B, classes): plain jnp, no kernel launch.
    w = jax.nn.softmax(params["ensemble_weights"])
    return w[0] * x1 + w[1] * x2


# --------------------------- parameter init --------------------------------

def init_params(key, classes=10, width=64):
    keys = iter(jax.random.split(key, 32))

    def nrm(shape, scale=0.02):
        return scale * jax.random.normal(next(keys), shape, dtype=jnp.float32)

    cnn = dict(
        conv1_w=nrm((32, 1, 3, 19)), conv1_b=nrm((32,)),
        conv2_w=nrm((32, 32, 3, 3)), conv2_b=nrm((32,)),
        lin1_w=nrm((64, 320)), lin1_b=nrm((64,)),
        lin2_w=nrm((classes, 64)), lin2_b=nrm((classes,)),
    )
    scale = width ** (-0.5)
    vit = dict(
        conv1_w=nrm((width, 1, 8, 8)),
        class_embedding=scale * jax.random.normal(next(keys), (width,), jnp.float32),
        positional_embedding=scale * jax.random.normal(next(keys), (26, width), jnp.float32),
        ln_pre_g=jnp.ones((width,), jnp.float32), ln_pre_b=jnp.zeros((width,), jnp.float32),
        ln1_g=jnp.ones((width,), jnp.float32), ln1_b=jnp.zeros((width,), jnp.float32),
        ln2_g=jnp.ones((width,), jnp.float32), ln2_b=jnp.zeros((width,), jnp.float32),
        in_proj_w=nrm((3 * width, width)), in_proj_b=nrm((3 * width,)),
        out_proj_w=nrm((width, width)), out_proj_b=nrm((width,)),
        fc_w=nrm((4 * width, width)), fc_b=nrm((4 * width,)),
        cproj_w=nrm((width, 4 * width)), cproj_b=nrm((width,)),
        ln_post_g=jnp.ones((width,), jnp.float32), ln_post_b=jnp.zeros((width,), jnp.float32),
        proj=scale * jax.random.normal(next(keys), (width, classes), jnp.float32),
    )
    ew = jax.random.uniform(next(keys), (2,), dtype=jnp.float32)
    return dict(cnn=cnn, vit=vit, ensemble_weights=ew)


if __name__ == "__main__":
    key = jax.random.PRNGKey(0)
    pkey, xkey = jax.random.split(key)
    params = init_params(pkey, classes=10)
    # CNN docstring fixes the input shape to (B, 1, 8, 200); use B=2.
    x = jax.random.normal(xkey, (2, 1, 8, 200), dtype=jnp.float32)
    fwd = jax.jit(vc_ensemble_forward)
    out = fwd(params, x)
    jax.block_until_ready(out)
    assert out.shape == (2, 10) and out.dtype == jnp.float32
    print("KERNEL_OK")
</pallas_src>

<mosaic_0001>
module attributes {stable_mosaic.version = 11 : i64} {
  func.func @_cnn_kernel(%arg0: i32, %arg1: memref<1x1600x64xf32, #tpu.memory_space<vmem>>, %arg2: memref<64x32xf32, #tpu.memory_space<vmem>>, %arg3: memref<1x32xf32, #tpu.memory_space<vmem>>, %arg4: memref<288x32xf32, #tpu.memory_space<vmem>>, %arg5: memref<1x32xf32, #tpu.memory_space<vmem>>, %arg6: memref<320x64xf32, #tpu.memory_space<vmem>>, %arg7: memref<1x64xf32, #tpu.memory_space<vmem>>, %arg8: memref<64x10xf32, #tpu.memory_space<vmem>>, %arg9: memref<1x10xf32, #tpu.memory_space<vmem>>, %arg10: memref<1x1x10xf32, #tpu.memory_space<vmem>>) attributes {dimension_semantics = [#tpu.dimension_semantics<parallel>], iteration_bounds = array<i64: 2>, scalar_prefetch = 0 : i64, scratch_operands = 0 : i64, tpu.core_type = #tpu.core_type<tc>, window_params = [{transform_indices = @transform_0, window_bounds = array<i64: 1, 1600, 64>}, {pipeline_mode = #tpu.pipeline_mode<synchronous>, transform_indices = @transform_1, window_bounds = array<i64: 64, 32>}, {pipeline_mode = #tpu.pipeline_mode<synchronous>, transform_indices = @transform_2, window_bounds = array<i64: 1, 32>}, {pipeline_mode = #tpu.pipeline_mode<synchronous>, transform_indices = @transform_3, window_bounds = array<i64: 288, 32>}, {pipeline_mode = #tpu.pipeline_mode<synchronous>, transform_indices = @transform_4, window_bounds = array<i64: 1, 32>}, {pipeline_mode = #tpu.pipeline_mode<synchronous>, transform_indices = @transform_5, window_bounds = array<i64: 320, 64>}, {pipeline_mode = #tpu.pipeline_mode<synchronous>, transform_indices = @transform_6, window_bounds = array<i64: 1, 64>}, {pipeline_mode = #tpu.pipeline_mode<synchronous>, transform_indices = @transform_7, window_bounds = array<i64: 64, 10>}, {pipeline_mode = #tpu.pipeline_mode<synchronous>, transform_indices = @transform_8, window_bounds = array<i64: 1, 10>}, {transform_indices = @transform_9, window_bounds = array<i64: 1, 1, 10>}]} {
    %c0 = arith.constant 0 : index
    %c0_0 = arith.constant 0 : index
    %c0_1 = arith.constant 0 : index
    %0 = vector.load %arg1[%c0, %c0_0, %c0_1] : memref<1x1600x64xf32, #tpu.memory_space<vmem>>, vector<1x1600x64xf32>
    %1 = vector.shape_cast %0 : vector<1x1600x64xf32> to vector<1600x64xf32>
    %c0_2 = arith.constant 0 : index
    %c0_3 = arith.constant 0 : index
    %2 = vector.load %arg2[%c0_2, %c0_3] : memref<64x32xf32, #tpu.memory_space<vmem>>, vector<64x32xf32>
    %cst = arith.constant dense<0.000000e+00> : vector<1600x32xf32>
    %3 = tpu.matmul %1, %2, %cst {dimension_numbers = #tpu.dot_dimension_numbers<[1], [0], [0], [1], [0, 0, 1, 1], [], []>} : vector<1600x64xf32>, vector<64x32xf32>, vector<1600x32xf32> -> vector<1600x32xf32>
    %c0_4 = arith.constant 0 : index
    %c0_5 = arith.constant 0 : index
    %4 = vector.load %arg3[%c0_4, %c0_5] : memref<1x32xf32, #tpu.memory_space<vmem>>, vector<1x32xf32>
    %5 = vector.broadcast %4 : vector<1x32xf32> to vector<1600x32xf32>
    %6 = arith.addf %3, %5 : vector<1600x32xf32>
    %cst_6 = arith.constant 0.000000e+00 : f32
    %7 = vector.broadcast %cst_6 : f32 to vector<1600x32xf32>
    %8 = arith.maximumf %6, %7 : vector<1600x32xf32>
    %9 = vector.shape_cast %8 : vector<1600x32xf32> to vector<8x10x20x32xf32>
    %cst_7 = arith.constant dense<0xFF800000> : vector<8x20x32xf32>
    %10 = vector.multi_reduction <maximumf>, %9, %cst_7 [1] : vector<8x10x20x32xf32> to vector<8x20x32xf32>
    %cst_8 = arith.constant 0.000000e+00 : f32
    %11 = vector.broadcast %cst_8 : f32 to vector<1x20x32xf32>
    %cst_9 = arith.constant 0.000000e+00 : f32
    %12 = vector.broadcast %cst_9 : f32 to vector<10x1x32xf32>
    %13 = tpu.concatenate %11, %10, %11 in 0 : vector<1x20x32xf32>, vector<8x20x32xf32>, vector<1x20x32xf32> -> vector<10x20x32xf32>
    %14 = tpu.concatenate %12, %13, %12 in 1 : vector<10x1x32xf32>, vector<10x20x32xf32>, vector<10x1x32xf32> -> vector<10x22x32xf32>
    %15 = vector.extract_strided_slice %14 {offsets = [0, 0, 0], sizes = [8, 20, 32], strides = [1, 1, 1]} : vector<10x22x32xf32> to vector<8x20x32xf32>
    %16 = vector.extract_strided_slice %14 {offsets = [0, 1, 0], sizes = [8, 20, 32], strides = [1, 1, 1]} : vector<10x22x32xf32> to vector<8x20x32xf32>
    %17 = vector.extract_strided_slice %14 {offsets = [0, 2, 0], sizes = [8, 20, 32], strides = [1, 1, 1]} : vector<10x22x32xf32> to vector<8x20x32xf32>
    %18 = vector.extract_strided_slice %14 {offsets = [1, 0, 0], sizes = [8, 20, 32], strides = [1, 1, 1]} : vector<10x22x32xf32> to vector<8x20x32xf32>
    %19 = vector.extract_strided_slice %14 {offsets = [1, 1, 0], sizes = [8, 20, 32], strides = [1, 1, 1]} : vector<10x22x32xf32> to vector<8x20x32xf32>
    %20 = vector.extract_strided_slice %14 {offsets = [1, 2, 0], sizes = [8, 20, 32], strides = [1, 1, 1]} : vector<10x22x32xf32> to vector<8x20x32xf32>
    %21 = vector.extract_strided_slice %14 {offsets = [2, 0, 0], sizes = [8, 20, 32], strides = [1, 1, 1]} : vector<10x22x32xf32> to vector<8x20x32xf32>
    %22 = vector.extract_strided_slice %14 {offsets = [2, 1, 0], sizes = [8, 20, 32], strides = [1, 1, 1]} : vector<10x22x32xf32> to vector<8x20x32xf32>
    %23 = vector.extract_strided_slice %14 {offsets = [2, 2, 0], sizes = [8, 20, 32], strides = [1, 1, 1]} : vector<10x22x32xf32> to vector<8x20x32xf32>
    %24 = tpu.concatenate %15, %16, %17, %18, %19, %20, %21, %22, %23 in 2 : vector<8x20x32xf32>, vector<8x20x32xf32>, vector<8x20x32xf32>, vector<8x20x32xf32>, vector<8x20x32xf32>, vector<8x20x32xf32>, vector<8x20x32xf32>, vector<8x20x32xf32>, vector<8x20x32xf32> -> vector<8x20x288xf32>
    %25 = vector.shape_cast %24 : vector<8x20x288xf32> to vector<160x288xf32>
    %c0_10 = arith.constant 0 : index
    %c0_11 = arith.constant 0 : index
    %26 = vector.load %arg4[%c0_10, %c0_11] : memref<288x32xf32, #tpu.memory_space<vmem>>, vector<288x32xf32>
    %cst_12 = arith.constant dense<0.000000e+00> : vector<160x32xf32>
    %27 = tpu.matmul %25, %26, %cst_12 {dimension_numbers = #tpu.dot_dimension_numbers<[1], [0], [0], [1], [0, 0, 1, 1], [], []>} : vector<160x288xf32>, vector<288x32xf32>, vector<160x32xf32> -> vector<160x32xf32>
    %c0_13 = arith.constant 0 : index
    %c0_14 = arith.constant 0 : index
    %28 = vector.load %arg5[%c0_13, %c0_14] : memref<1x32xf32, #tpu.memory_space<vmem>>, vector<1x32xf32>
    %29 = vector.broadcast %28 : vector<1x32xf32> to vector<160x32xf32>
    %30 = arith.addf %27, %29 : vector<160x32xf32>
    %cst_15 = arith.constant 0.000000e+00 : f32
    %31 = vector.broadcast %cst_15 : f32 to vector<160x32xf32>
    %32 = arith.maximumf %30, %31 : vector<160x32xf32>
    %33 = vector.shape_cast %32 : vector<160x32xf32> to vector<8x20x32xf32>
    %34 = vector.shape_cast %33 : vector<8x20x32xf32> to vector<8x5x4x32xf32>
    %cst_16 = arith.constant dense<0xFF800000> : vector<8x5x32xf32>
    %35 = vector.multi_reduction <maximumf>, %34, %cst_16 [2] : vector<8x5x4x32xf32> to vector<8x5x32xf32>
    %36 = vector.shape_cast %35 : vector<8x5x32xf32> to vector<2x4x5x32xf32>
    %cst_17 = arith.constant dense<0xFF800000> : vector<2x5x32xf32>
    %37 = vector.multi_reduction <maximumf>, %36, %cst_17 [1] : vector<2x4x5x32xf32> to vector<2x5x32xf32>
    %38 = vector.shape_cast %37 : vector<2x5x32xf32> to vector<10x32xf32>
    %39 = vector.extract_strided_slice %38 {offsets = [0, 0], sizes = [1, 32], strides = [1, 1]} : vector<10x32xf32> to vector<1x32xf32>
    %40 = vector.extract_strided_slice %38 {offsets = [1, 0], sizes = [1, 32], strides = [1, 1]} : vector<10x32xf32> to vector<1x32xf32>
    %41 = vector.extract_strided_slice %38 {offsets = [2, 0], sizes = [1, 32], strides = [1, 1]} : vector<10x32xf32> to vector<1x32xf32>
    %42 = vector.extract_strided_slice %38 {offsets = [3, 0], sizes = [1, 32], strides = [1, 1]} : vector<10x32xf32> to vector<1x32xf32>
    %43 = vector.extract_strided_slice %38 {offsets = [4, 0], sizes = [1, 32], strides = [1, 1]} : vector<10x32xf32> to vector<1x32xf32>
    %44 = vector.extract_strided_slice %38 {offsets = [5, 0], sizes = [1, 32], strides = [1, 1]} : vector<10x32xf32> to vector<1x32xf32>
    %45 = vector.extract_strided_slice %38 {offsets = [6, 0], sizes = [1, 32], strides = [1, 1]} : vector<10x32xf32> to vector<1x32xf32>
    %46 = vector.extract_strided_slice %38 {offsets = [7, 0], sizes = [1, 32], strides = [1, 1]} : vector<10x32xf32> to vector<1x32xf32>
    %47 = vector.extract_strided_slice %38 {offsets = [8, 0], sizes = [1, 32], strides = [1, 1]} : vector<10x32xf32> to vector<1x32xf32>
    %48 = vector.extract_strided_slice %38 {offsets = [9, 0], sizes = [1, 32], strides = [1, 1]} : vector<10x32xf32> to vector<1x32xf32>
    %49 = tpu.concatenate %39, %40, %41, %42, %43, %44, %45, %46, %47, %48 in 1 : vector<1x32xf32>, vector<1x32xf32>, vector<1x32xf32>, vector<1x32xf32>, vector<1x32xf32>, vector<1x32xf32>, vector<1x32xf32>, vector<1x32xf32>, vector<1x32xf32>, vector<1x32xf32> -> vector<1x320xf32>
    %c0_18 = arith.constant 0 : index
    %c0_19 = arith.constant 0 : index
    %50 = vector.load %arg6[%c0_18, %c0_19] : memref<320x64xf32, #tpu.memory_space<vmem>>, vector<320x64xf32>
    %cst_20 = arith.constant dense<0.000000e+00> : vector<1x64xf32>
    %51 = tpu.matmul %49, %50, %cst_20 {dimension_numbers = #tpu.dot_dimension_numbers<[1], [0], [0], [1], [0, 0, 1, 1], [], []>} : vector<1x320xf32>, vector<320x64xf32>, vector<1x64xf32> -> vector<1x64xf32>
    %c0_21 = arith.constant 0 : index
    %c0_22 = arith.constant 0 : index
    %52 = vector.load %arg7[%c0_21, %c0_22] : memref<1x64xf32, #tpu.memory_space<vmem>>, vector<1x64xf32>
    %53 = arith.addf %51, %52 : vector<1x64xf32>
    %cst_23 = arith.constant 0.000000e+00 : f32
    %54 = vector.broadcast %cst_23 : f32 to vector<1x64xf32>
    %55 = arith.maximumf %53, %54 : vector<1x64xf32>
    %c0_24 = arith.constant 0 : index
    %c0_25 = arith.constant 0 : index
    %56 = vector.load %arg8[%c0_24, %c0_25] : memref<64x10xf32, #tpu.memory_space<vmem>>, vector<64x10xf32>
    %cst_26 = arith.constant dense<0.000000e+00> : vector<1x10xf32>
    %57 = tpu.matmul %55, %56, %cst_26 {dimension_numbers = #tpu.dot_dimension_numbers<[1], [0], [0], [1], [0, 0, 1, 1], [], []>} : vector<1x64xf32>, vector<64x10xf32>, vector<1x10xf32> -> vector<1x10xf32>
    %c0_27 = arith.constant 0 : index
    %c0_28 = arith.constant 0 : index
    %58 = vector.load %arg9[%c0_27, %c0_28] : memref<1x10xf32, #tpu.memory_space<vmem>>, vector<1x10xf32>
    %59 = arith.addf %57, %58 : vector<1x10xf32>
    %cst_29 = arith.constant 2.000000e+01 : f32
    %60 = vector.broadcast %cst_29 : f32 to vector<1x10xf32>
    %61 = arith.cmpf ogt, %59, %60 : vector<1x10xf32>
    %cst_30 = arith.constant 2.000000e+01 : f32
    %62 = vector.broadcast %cst_30 : f32 to vector<1x10xf32>
    %63 = arith.minimumf %59, %62 : vector<1x10xf32>
    %64 = math.exp %63 : vector<1x10xf32>
    %cst_31 = arith.constant 1.000000e+00 : f32
    %65 = vector.broadcast %cst_31 : f32 to vector<1x10xf32>
    %66 = arith.addf %65, %64 : vector<1x10xf32>
    %67 = math.log %66 : vector<1x10xf32>
    %68 = arith.select %61, %59, %67 : vector<1x10xi1>, vector<1x10xf32>
    %c0_32 = arith.constant 0 : index
    %c0_33 = arith.constant 0 : index
    %c0_34 = arith.constant 0 : index
    %69 = vector.load %arg10[%c0_32, %c0_33, %c0_34] : memref<1x1x10xf32, #tpu.memory_space<vmem>>, vector<1x1x10xf32>
    %70 = vector.shape_cast %69 : vector<1x1x10xf32> to vector<1x10xf32>
    %71 = vector.shape_cast %68 : vector<1x10xf32> to vector<1x1x10xf32>
    tpu.vector_store %arg10[%c0_32, %c0_33, %c0_34], %71 {strides = array<i32>} : memref<1x1x10xf32, #tpu.memory_space<vmem>>, vector<1x1x10xf32>,
    return
  }
  func.func @transform_0(%arg0: i32) -> (i32, i32, i32) {
    %c0_i32 = arith.constant 0 : i32
    %c0_i32_0 = arith.constant 0 : i32
    %c0_i32_1 = arith.constant 0 : i32
    return %arg0, %c0_i32, %c0_i32_0 : i32, i32, i32
  }
  func.func @transform_1(%arg0: i32) -> (i32, i32) {
    %c0_i32 = arith.constant 0 : i32
    %c0_i32_0 = arith.constant 0 : i32
    %c0_i32_1 = arith.constant 0 : i32
    return %c0_i32, %c0_i32_0 : i32, i32
  }
  func.func @transform_2(%arg0: i32) -> (i32, i32) {
    %c0_i32 = arith.constant 0 : i32
    %c0_i32_0 = arith.constant 0 : i32
    %c0_i32_1 = arith.constant 0 : i32
    return %c0_i32, %c0_i32_0 : i32, i32
  }
  func.func @transform_3(%arg0: i32) -> (i32, i32) {
    %c0_i32 = arith.constant 0 : i32
    %c0_i32_0 = arith.constant 0 : i32
    %c0_i32_1 = arith.constant 0 : i32
    return %c0_i32, %c0_i32_0 : i32, i32
  }
  func.func @transform_4(%arg0: i32) -> (i32, i32) {
    %c0_i32 = arith.constant 0 : i32
    %c0_i32_0 = arith.constant 0 : i32
    %c0_i32_1 = arith.constant 0 : i32
    return %c0_i32, %c0_i32_0 : i32, i32
  }
  func.func @transform_5(%arg0: i32) -> (i32, i32) {
    %c0_i32 = arith.constant 0 : i32
    %c0_i32_0 = arith.constant 0 : i32
    %c0_i32_1 = arith.constant 0 : i32
    return %c0_i32, %c0_i32_0 : i32, i32
  }
  func.func @transform_6(%arg0: i32) -> (i32, i32) {
    %c0_i32 = arith.constant 0 : i32
    %c0_i32_0 = arith.constant 0 : i32
    %c0_i32_1 = arith.constant 0 : i32
    return %c0_i32, %c0_i32_0 : i32, i32
  }
  func.func @transform_7(%arg0: i32) -> (i32, i32) {
    %c0_i32 = arith.constant 0 : i32
    %c0_i32_0 = arith.constant 0 : i32
    %c0_i32_1 = arith.constant 0 : i32
    return %c0_i32, %c0_i32_0 : i32, i32
  }
  func.func @transform_8(%arg0: i32) -> (i32, i32) {
    %c0_i32 = arith.constant 0 : i32
    %c0_i32_0 = arith.constant 0 : i32
    %c0_i32_1 = arith.constant 0 : i32
    return %c0_i32, %c0_i32_0 : i32, i32
  }
  func.func @transform_9(%arg0: i32) -> (i32, i32, i32) {
    %c0_i32 = arith.constant 0 : i32
    %c0_i32_0 = arith.constant 0 : i32
    %c0_i32_1 = arith.constant 0 : i32
    return %arg0, %c0_i32, %c0_i32_0 : i32, i32, i32
  }
}

module attributes {stable_mosaic.version = 11 : i64} {
  func.func @_vit_kernel(%arg0: i32, %arg1: memref<1x25x64xf32, #tpu.memory_space<vmem>>, %arg2: memref<64x64xf32, #tpu.memory_space<vmem>>, %arg3: memref<26x64xf32, #tpu.memory_space<vmem>>, %arg4: memref<1x64xf32, #tpu.memory_space<vmem>>, %arg5: memref<1x64xf32, #tpu.memory_space<vmem>>, %arg6: memref<1x64xf32, #tpu.memory_space<vmem>>, %arg7: memref<1x64xf32, #tpu.memory_space<vmem>>, %arg8: memref<64x192xf32, #tpu.memory_space<vmem>>, %arg9: memref<1x192xf32, #tpu.memory_space<vmem>>, %arg10: memref<64x64xf32, #tpu.memory_space<vmem>>, %arg11: memref<1x64xf32, #tpu.memory_space<vmem>>, %arg12: memref<1x64xf32, #tpu.memory_space<vmem>>, %arg13: memref<1x64xf32, #tpu.memory_space<vmem>>, %arg14: memref<64x256xf32, #tpu.memory_space<vmem>>, %arg15: memref<1x256xf32, #tpu.memory_space<vmem>>, %arg16: memref<256x64xf32, #tpu.memory_space<vmem>>, %arg17: memref<1x64xf32, #tpu.memory_space<vmem>>, %arg18: memref<1x64xf32, #tpu.memory_space<vmem>>, %arg19: memref<1x64xf32, #tpu.memory_space<vmem>>, %arg20: memref<64x10xf32, #tpu.memory_space<vmem>>, %arg21: memref<1x1x10xf32, #tpu.memory_space<vmem>>) attributes {dimension_semantics = [#tpu.dimension_semantics<parallel>], iteration_bounds = array<i64: 2>, scalar_prefetch = 0 : i64, scratch_operands = 0 : i64, tpu.core_type = #tpu.core_type<tc>, window_params = [{transform_indices = @transform_0, window_bounds = array<i64: 1, 25, 64>}, {pipeline_mode = #tpu.pipeline_mode<synchronous>, transform_indices = @transform_1, window_bounds = array<i64: 64, 64>}, {pipeline_mode = #tpu.pipeline_mode<synchronous>, transform_indices = @transform_2, window_bounds = array<i64: 26, 64>}, {pipeline_mode = #tpu.pipeline_mode<synchronous>, transform_indices = @transform_3, window_bounds = array<i64: 1, 64>}, {pipeline_mode = #tpu.pipeline_mode<synchronous>, transform_indices = @transform_4, window_bounds = array<i64: 1, 64>}, {pipeline_mode = #tpu.pipeline_mode<synchronous>, transform_indices = @transform_5, window_bounds = array<i64: 1, 64>}, {pipeline_mode = #tpu.pipeline_mode<synchronous>, transform_indices = @transform_6, window_bounds = array<i64: 1, 64>}, {pipeline_mode = #tpu.pipeline_mode<synchronous>, transform_indices = @transform_7, window_bounds = array<i64: 64, 192>}, {pipeline_mode = #tpu.pipeline_mode<synchronous>, transform_indices = @transform_8, window_bounds = array<i64: 1, 192>}, {pipeline_mode = #tpu.pipeline_mode<synchronous>, transform_indices = @transform_9, window_bounds = array<i64: 64, 64>}, {pipeline_mode = #tpu.pipeline_mode<synchronous>, transform_indices = @transform_10, window_bounds = array<i64: 1, 64>}, {pipeline_mode = #tpu.pipeline_mode<synchronous>, transform_indices = @transform_11, window_bounds = array<i64: 1, 64>}, {pipeline_mode = #tpu.pipeline_mode<synchronous>, transform_indices = @transform_12, window_bounds = array<i64: 1, 64>}, {pipeline_mode = #tpu.pipeline_mode<synchronous>, transform_indices = @transform_13, window_bounds = array<i64: 64, 256>}, {pipeline_mode = #tpu.pipeline_mode<synchronous>, transform_indices = @transform_14, window_bounds = array<i64: 1, 256>}, {pipeline_mode = #tpu.pipeline_mode<synchronous>, transform_indices = @transform_15, window_bounds = array<i64: 256, 64>}, {pipeline_mode = #tpu.pipeline_mode<synchronous>, transform_indices = @transform_16, window_bounds = array<i64: 1, 64>}, {pipeline_mode = #tpu.pipeline_mode<synchronous>, transform_indices = @transform_17, window_bounds = array<i64: 1, 64>}, {pipeline_mode = #tpu.pipeline_mode<synchronous>, transform_indices = @transform_18, window_bounds = array<i64: 1, 64>}, {pipeline_mode = #tpu.pipeline_mode<synchronous>, transform_indices = @transform_19, window_bounds = array<i64: 64, 10>}, {transform_indices = @transform_20, window_bounds = array<i64: 1, 1, 10>}]} {
    %c0 = arith.constant 0 : index
    %c0_0 = arith.constant 0 : index
    %0 = vector.load %arg2[%c0, %c0_0] : memref<64x64xf32, #tpu.memory_space<vmem>>, vector<64x64xf32>
    %c0_1 = arith.constant 0 : index
    %c0_2 = arith.constant 0 : index
    %c0_3 = arith.constant 0 : index
    %1 = vector.load %arg1[%c0_1, %c0_2, %c0_3] : memref<1x25x64xf32, #tpu.memory_space<vmem>>, vector<1x25x64xf32>
    %2 = vector.shape_cast %1 : vector<1x25x64xf32> to vector<25x64xf32>
    %cst = arith.constant dense<0.000000e+00> : vector<25x64xf32>
    %3 = tpu.matmul %2, %0, %cst {dimension_numbers = #tpu.dot_dimension_numbers<[1], [0], [0], [1], [0, 0, 1, 1], [], []>} : vector<25x64xf32>, vector<64x64xf32>, vector<25x64xf32> -> vector<25x64xf32>
    %cst_4 = arith.constant 0.000000e+00 : f32
    %4 = vector.broadcast %cst_4 : f32 to vector<1x64xf32>
    %5 = tpu.concatenate %4, %3 in 0 : vector<1x64xf32>, vector<25x64xf32> -> vector<26x64xf32>
    %c0_5 = arith.constant 0 : index
    %c0_6 = arith.constant 0 : index
    %6 = vector.load %arg3[%c0_5, %c0_6] : memref<26x64xf32, #tpu.memory_space<vmem>>, vector<26x64xf32>
    %7 = arith.addf %5, %6 : vector<26x64xf32>
    %c0_7 = arith.constant 0 : index
    %c0_8 = arith.constant 0 : index
    %8 = vector.load %arg4[%c0_7, %c0_8] : memref<1x64xf32, #tpu.memory_space<vmem>>, vector<1x64xf32>
    %c0_9 = arith.constant 0 : index
    %c0_10 = arith.constant 0 : index
    %9 = vector.load %arg5[%c0_9, %c0_10] : memref<1x64xf32, #tpu.memory_space<vmem>>, vector<1x64xf32>
    %cst_11 = arith.constant dense<0.000000e+00> : vector<26xf32>
    %10 = vector.multi_reduction <add>, %7, %cst_11 [1] : vector<26x64xf32> to vector<26xf32>
    %11 = vector.shape_cast %10 : vector<26xf32> to vector<26x1xf32>
    %cst_12 = arith.constant 6.400000e+01 : f32
    %12 = vector.broadcast %cst_12 : f32 to vector<26x1xf32>
    %13 = arith.divf %11, %12 : vector<26x1xf32>
    %14 = vector.broadcast %13 : vector<26x1xf32> to vector<26x64xf32>
    %15 = arith.subf %7, %14 : vector<26x64xf32>
    %16 = arith.mulf %15, %15 : vector<26x64xf32>
    %cst_13 = arith.constant dense<0.000000e+00> : vector<26xf32>
    %17 = vector.multi_reduction <add>, %16, %cst_13 [1] : vector<26x64xf32> to vector<26xf32>
    %18 = vector.shape_cast %17 : vector<26xf32> to vector<26x1xf32>
    %cst_14 = arith.constant 6.400000e+01 : f32
    %19 = vector.broadcast %cst_14 : f32 to vector<26x1xf32>
    %20 = arith.divf %18, %19 : vector<26x1xf32>
    %cst_15 = arith.constant 9.99999974E-6 : f32
    %21 = vector.broadcast %cst_15 : f32 to vector<26x1xf32>
    %22 = arith.addf %20, %21 : vector<26x1xf32>
    %23 = math.rsqrt %22 : vector<26x1xf32>
    %24 = vector.broadcast %23 : vector<26x1xf32> to vector<26x64xf32>
    %25 = arith.mulf %15, %24 : vector<26x64xf32>
    %26 = vector.broadcast %8 : vector<1x64xf32> to vector<26x64xf32>
    %27 = arith.mulf %25, %26 : vector<26x64xf32>
    %28 = vector.broadcast %9 : vector<1x64xf32> to vector<26x64xf32>
    %29 = arith.addf %27, %28 : vector<26x64xf32>
    %c0_16 = arith.constant 0 : index
    %c0_17 = arith.constant 0 : index
    %30 = vector.load %arg6[%c0_16, %c0_17] : memref<1x64xf32, #tpu.memory_space<vmem>>, vector<1x64xf32>
    %c0_18 = arith.constant 0 : index
    %c0_19 = arith.constant 0 : index
    %31 = vector.load %arg7[%c0_18, %c0_19] : memref<1x64xf32, #tpu.memory_space<vmem>>, vector<1x64xf32>
    %cst_20 = arith.constant dense<0.000000e+00> : vector<26xf32>
    %32 = vector.multi_reduction <add>, %29, %cst_20 [1] : vector<26x64xf32> to vector<26xf32>
    %33 = vector.shape_cast %32 : vector<26xf32> to vector<26x1xf32>
    %cst_21 = arith.constant 6.400000e+01 : f32
    %34 = vector.broadcast %cst_21 : f32 to vector<26x1xf32>
    %35 = arith.divf %33, %34 : vector<26x1xf32>
    %36 = vector.broadcast %35 : vector<26x1xf32> to vector<26x64xf32>
    %37 = arith.subf %29, %36 : vector<26x64xf32>
    %38 = arith.mulf %37, %37 : vector<26x64xf32>
    %cst_22 = arith.constant dense<0.000000e+00> : vector<26xf32>
    %39 = vector.multi_reduction <add>, %38, %cst_22 [1] : vector<26x64xf32> to vector<26xf32>
    %40 = vector.shape_cast %39 : vector<26xf32> to vector<26x1xf32>
    %cst_23 = arith.constant 6.400000e+01 : f32
    %41 = vector.broadcast %cst_23 : f32 to vector<26x1xf32>
    %42 = arith.divf %40, %41 : vector<26x1xf32>
    %cst_24 = arith.constant 9.99999974E-6 : f32
    %43 = vector.broadcast %cst_24 : f32 to vector<26x1xf32>
    %44 = arith.addf %42, %43 : vector<26x1xf32>
    %45 = math.rsqrt %44 : vector<26x1xf32>
    %46 = vector.broadcast %45 : vector<26x1xf32> to vector<26x64xf32>
    %47 = arith.mulf %37, %46 : vector<26x64xf32>
    %48 = vector.broadcast %30 : vector<1x64xf32> to vector<26x64xf32>
    %49 = arith.mulf %47, %48 : vector<26x64xf32>
    %50 = vector.broadcast %31 : vector<1x64xf32> to vector<26x64xf32>
    %51 = arith.addf %49, %50 : vector<26x64xf32>
    %c0_25 = arith.constant 0 : index
    %c0_26 = arith.constant 0 : index
    %52 = vector.load %arg8[%c0_25, %c0_26] : memref<64x192xf32, #tpu.memory_space<vmem>>, vector<64x192xf32>
    %cst_27 = arith.constant dense<0.000000e+00> : vector<26x192xf32>
    %53 = tpu.matmul %51, %52, %cst_27 {dimension_numbers = #tpu.dot_dimension_numbers<[1], [0], [0], [1], [0, 0, 1, 1], [], []>} : vector<26x64xf32>, vector<64x192xf32>, vector<26x192xf32> -> vector<26x192xf32>
    %c0_28 = arith.constant 0 : index
    %c0_29 = arith.constant 0 : index
    %54 = vector.load %arg9[%c0_28, %c0_29] : memref<1x192xf32, #tpu.memory_space<vmem>>, vector<1x192xf32>
    %55 = vector.broadcast %54 : vector<1x192xf32> to vector<26x192xf32>
    %56 = arith.addf %53, %55 : vector<26x192xf32>
    %57 = vector.extract_strided_slice %56 {offsets = [0, 0], sizes = [26, 32], strides = [1, 1]} : vector<26x192xf32> to vector<26x32xf32>
    %58 = vector.extract_strided_slice %56 {offsets = [0, 32], sizes = [26, 32], strides = [1, 1]} : vector<26x192xf32> to vector<26x32xf32>
    %59 = vector.extract_strided_slice %56 {offsets = [0, 64], sizes = [26, 32], strides = [1, 1]} : vector<26x192xf32> to vector<26x32xf32>
    %60 = vector.extract_strided_slice %56 {offsets = [0, 96], sizes = [26, 32], strides = [1, 1]} : vector<26x192xf32> to vector<26x32xf32>
    %61 = vector.extract_strided_slice %56 {offsets = [0, 128], sizes = [26, 32], strides = [1, 1]} : vector<26x192xf32> to vector<26x32xf32>
    %62 = vector.extract_strided_slice %56 {offsets = [0, 160], sizes = [26, 32], strides = [1, 1]} : vector<26x192xf32> to vector<26x32xf32>
    %63 = vector.shape_cast %57 : vector<26x32xf32> to vector<1x26x32xf32>
    %64 = vector.shape_cast %59 : vector<26x32xf32> to vector<26x1x32xf32>
    %65 = vector.broadcast %63 : vector<1x26x32xf32> to vector<26x26x32xf32>
    %66 = vector.broadcast %64 : vector<26x1x32xf32> to vector<26x26x32xf32>
    %67 = arith.mulf %65, %66 : vector<26x26x32xf32>
    %68 = vector.shape_cast %58 : vector<26x32xf32> to vector<1x26x32xf32>
    %69 = vector.shape_cast %60 : vector<26x32xf32> to vector<26x1x32xf32>
    %70 = vector.broadcast %68 : vector<1x26x32xf32> to vector<26x26x32xf32>
    %71 = vector.broadcast %69 : vector<26x1x32xf32> to vector<26x26x32xf32>
    %72 = arith.mulf %70, %71 : vector<26x26x32xf32>
    %73 = arith.addf %67, %72 : vector<26x26x32xf32>
    %cst_30 = arith.constant dense<0xFF800000> : vector<26x32xf32>
    %74 = vector.multi_reduction <maximumf>, %73, %cst_30 [0] : vector<26x26x32xf32> to vector<26x32xf32>
    %75 = vector.shape_cast %74 : vector<26x32xf32> to vector<1x26x32xf32>
    %76 = vector.broadcast %75 : vector<1x26x32xf32> to vector<26x26x32xf32>
    %77 = arith.subf %73, %76 : vector<26x26x32xf32>
    %78 = math.exp %77 : vector<26x26x32xf32>
    %cst_31 = arith.constant dense<0.000000e+00> : vector<26x32xf32>
    %79 = vector.multi_reduction <add>, %78, %cst_31 [0] : vector<26x26x32xf32> to vector<26x32xf32>
    %80 = vector.shape_cast %79 : vector<26x32xf32> to vector<1x26x32xf32>
    %81 = tpu.reciprocal %80 {approx = true} : vector<1x26x32xf32> -> vector<1x26x32xf32>
    %82 = vector.broadcast %81 : vector<1x26x32xf32> to vector<26x26x32xf32>
    %83 = arith.mulf %78, %82 : vector<26x26x32xf32>
    %84 = vector.shape_cast %61 : vector<26x32xf32> to vector<26x1x32xf32>
    %85 = vector.broadcast %84 : vector<26x1x32xf32> to vector<26x26x32xf32>
    %86 = arith.mulf %83, %85 : vector<26x26x32xf32>
    %cst_32 = arith.constant dense<0.000000e+00> : vector<26x32xf32>
    %87 = vector.multi_reduction <add>, %86, %cst_32 [0] : vector<26x26x32xf32> to vector<26x32xf32>
    %88 = vector.shape_cast %62 : vector<26x32xf32> to vector<26x1x32xf32>
    %89 = vector.broadcast %88 : vector<26x1x32xf32> to vector<26x26x32xf32>
    %90 = arith.mulf %83, %89 : vector<26x26x32xf32>
    %cst_33 = arith.constant dense<0.000000e+00> : vector<26x32xf32>
    %91 = vector.multi_reduction <add>, %90, %cst_33 [0] : vector<26x26x32xf32> to vector<26x32xf32>
    %92 = tpu.concatenate %87, %91 in 1 : vector<26x32xf32>, vector<26x32xf32> -> vector<26x64xf32>
    %c0_34 = arith.constant 0 : index
    %c0_35 = arith.constant 0 : index
    %93 = vector.load %arg10[%c0_34, %c0_35] : memref<64x64xf32, #tpu.memory_space<vmem>>, vector<64x64xf32>
    %cst_36 = arith.constant dense<0.000000e+00> : vector<26x64xf32>
    %94 = tpu.matmul %92, %93, %cst_36 {dimension_numbers = #tpu.dot_dimension_numbers<[1], [0], [0], [1], [0, 0, 1, 1], [], []>} : vector<26x64xf32>, vector<64x64xf32>, vector<26x64xf32> -> vector<26x64xf32>
    %c0_37 = arith.constant 0 : index
    %c0_38 = arith.constant 0 : index
    %95 = vector.load %arg11[%c0_37, %c0_38] : memref<1x64xf32, #tpu.memory_space<vmem>>, vector<1x64xf32>
    %96 = vector.broadcast %95 : vector<1x64xf32> to vector<26x64xf32>
    %97 = arith.addf %94, %96 : vector<26x64xf32>
    %98 = arith.addf %29, %97 : vector<26x64xf32>
    %c0_39 = arith.constant 0 : index
    %c0_40 = arith.constant 0 : index
    %99 = vector.load %arg12[%c0_39, %c0_40] : memref<1x64xf32, #tpu.memory_space<vmem>>, vector<1x64xf32>
    %c0_41 = arith.constant 0 : index
    %c0_42 = arith.constant 0 : index
    %100 = vector.load %arg13[%c0_41, %c0_42] : memref<1x64xf32, #tpu.memory_space<vmem>>, vector<1x64xf32>
    %cst_43 = arith.constant dense<0.000000e+00> : vector<26xf32>
    %101 = vector.multi_reduction <add>, %98, %cst_43 [1] : vector<26x64xf32> to vector<26xf32>
    %102 = vector.shape_cast %101 : vector<26xf32> to vector<26x1xf32>
    %cst_44 = arith.constant 6.400000e+01 : f32
    %103 = vector.broadcast %cst_44 : f32 to vector<26x1xf32>
    %104 = arith.divf %102, %103 : vector<26x1xf32>
    %105 = vector.broadcast %104 : vector<26x1xf32> to vector<26x64xf32>
    %106 = arith.subf %98, %105 : vector<26x64xf32>
    %107 = arith.mulf %106, %106 : vector<26x64xf32>
    %cst_45 = arith.constant dense<0.000000e+00> : vector<26xf32>
    %108 = vector.multi_reduction <add>, %107, %cst_45 [1] : vector<26x64xf32> to vector<26xf32>
    %109 = vector.shape_cast %108 : vector<26xf32> to vector<26x1xf32>
    %cst_46 = arith.constant 6.400000e+01 : f32
    %110 = vector.broadcast %cst_46 : f32 to vector<26x1xf32>
    %111 = arith.divf %109, %110 : vector<26x1xf32>
    %cst_47 = arith.constant 9.99999974E-6 : f32
    %112 = vector.broadcast %cst_47 : f32 to vector<26x1xf32>
    %113 = arith.addf %111, %112 : vector<26x1xf32>
    %114 = math.rsqrt %113 : vector<26x1xf32>
    %115 = vector.broadcast %114 : vector<26x1xf32> to vector<26x64xf32>
    %116 = arith.mulf %106, %115 : vector<26x64xf32>
    %117 = vector.broadcast %99 : vector<1x64xf32> to vector<26x64xf32>
    %118 = arith.mulf %116, %117 : vector<26x64xf32>
    %119 = vector.broadcast %100 : vector<1x64xf32> to vector<26x64xf32>
    %120 = arith.addf %118, %119 : vector<26x64xf32>
    %c0_48 = arith.constant 0 : index
    %c0_49 = arith.constant 0 : index
    %121 = vector.load %arg14[%c0_48, %c0_49] : memref<64x256xf32, #tpu.memory_space<vmem>>, vector<64x256xf32>
    %cst_50 = arith.constant dense<0.000000e+00> : vector<26x256xf32>
    %122 = tpu.matmul %120, %121, %cst_50 {dimension_numbers = #tpu.dot_dimension_numbers<[1], [0], [0], [1], [0, 0, 1, 1], [], []>} : vector<26x64xf32>, vector<64x256xf32>, vector<26x256xf32> -> vector<26x256xf32>
    %c0_51 = arith.constant 0 : index
    %c0_52 = arith.constant 0 : index
    %123 = vector.load %arg15[%c0_51, %c0_52] : memref<1x256xf32, #tpu.memory_space<vmem>>, vector<1x256xf32>
    %124 = vector.broadcast %123 : vector<1x256xf32> to vector<26x256xf32>
    %125 = arith.addf %122, %124 : vector<26x256xf32>
    %cst_53 = arith.constant -1.702000e+00 : f32
    %126 = vector.broadcast %cst_53 : f32 to vector<26x256xf32>
    %127 = arith.mulf %126, %125 : vector<26x256xf32>
    %128 = math.exp %127 : vector<26x256xf32>
    %cst_54 = arith.constant 1.000000e+00 : f32
    %129 = vector.broadcast %cst_54 : f32 to vector<26x256xf32>
    %130 = arith.addf %129, %128 : vector<26x256xf32>
    %131 = tpu.reciprocal %130 {approx = true} : vector<26x256xf32> -> vector<26x256xf32>
    %132 = arith.mulf %125, %131 : vector<26x256xf32>
    %c0_55 = arith.constant 0 : index
    %c0_56 = arith.constant 0 : index
    %133 = vector.load %arg16[%c0_55, %c0_56] : memref<256x64xf32, #tpu.memory_space<vmem>>, vector<256x64xf32>
    %cst_57 = arith.constant dense<0.000000e+00> : vector<26x64xf32>
    %134 = tpu.matmul %132, %133, %cst_57 {dimension_numbers = #tpu.dot_dimension_numbers<[1], [0], [0], [1], [0, 0, 1, 1], [], []>} : vector<26x256xf32>, vector<256x64xf32>, vector<26x64xf32> -> vector<26x64xf32>
    %c0_58 = arith.constant 0 : index
    %c0_59 = arith.constant 0 : index
    %135 = vector.load %arg17[%c0_58, %c0_59] : memref<1x64xf32, #tpu.memory_space<vmem>>, vector<1x64xf32>
    %136 = vector.broadcast %135 : vector<1x64xf32> to vector<26x64xf32>
    %137 = arith.addf %134, %136 : vector<26x64xf32>
    %138 = arith.addf %98, %137 : vector<26x64xf32>
    %139 = vector.extract_strided_slice %138 {offsets = [0, 0], sizes = [1, 64], strides = [1, 1]} : vector<26x64xf32> to vector<1x64xf32>
    %c0_60 = arith.constant 0 : index
    %c0_61 = arith.constant 0 : index
    %140 = vector.load %arg18[%c0_60, %c0_61] : memref<1x64xf32, #tpu.memory_space<vmem>>, vector<1x64xf32>
    %c0_62 = arith.constant 0 : index
    %c0_63 = arith.constant 0 : index
    %141 = vector.load %arg19[%c0_62, %c0_63] : memref<1x64xf32, #tpu.memory_space<vmem>>, vector<1x64xf32>
    %cst_64 = arith.constant dense<0.000000e+00> : vector<1xf32>
    %142 = vector.multi_reduction <add>, %139, %cst_64 [1] : vector<1x64xf32> to vector<1xf32>
    %143 = vector.shape_cast %142 : vector<1xf32> to vector<1x1xf32>
    %cst_65 = arith.constant 6.400000e+01 : f32
    %144 = vector.broadcast %cst_65 : f32 to vector<1x1xf32>
    %145 = arith.divf %143, %144 : vector<1x1xf32>
    %146 = vector.broadcast %145 : vector<1x1xf32> to vector<1x64xf32>
    %147 = arith.subf %139, %146 : vector<1x64xf32>
    %148 = arith.mulf %147, %147 : vector<1x64xf32>
    %cst_66 = arith.constant dense<0.000000e+00> : vector<1xf32>
    %149 = vector.multi_reduction <add>, %148, %cst_66 [1] : vector<1x64xf32> to vector<1xf32>
    %150 = vector.shape_cast %149 : vector<1xf32> to vector<1x1xf32>
    %cst_67 = arith.constant 6.400000e+01 : f32
    %151 = vector.broadcast %cst_67 : f32 to vector<1x1xf32>
    %152 = arith.divf %150, %151 : vector<1x1xf32>
    %cst_68 = arith.constant 9.99999974E-6 : f32
    %153 = vector.broadcast %cst_68 : f32 to vector<1x1xf32>
    %154 = arith.addf %152, %153 : vector<1x1xf32>
    %155 = math.rsqrt %154 : vector<1x1xf32>
    %156 = vector.broadcast %155 : vector<1x1xf32> to vector<1x64xf32>
    %157 = arith.mulf %147, %156 : vector<1x64xf32>
    %158 = arith.mulf %157, %140 : vector<1x64xf32>
    %159 = arith.addf %158, %141 : vector<1x64xf32>
    %c0_69 = arith.constant 0 : index
    %c0_70 = arith.constant 0 : index
    %160 = vector.load %arg20[%c0_69, %c0_70] : memref<64x10xf32, #tpu.memory_space<vmem>>, vector<64x10xf32>
    %cst_71 = arith.constant dense<0.000000e+00> : vector<1x10xf32>
    %161 = tpu.matmul %159, %160, %cst_71 {dimension_numbers = #tpu.dot_dimension_numbers<[1], [0], [0], [1], [0, 0, 1, 1], [], []>} : vector<1x64xf32>, vector<64x10xf32>, vector<1x10xf32> -> vector<1x10xf32>
    %cst_72 = arith.constant 2.000000e+01 : f32
    %162 = vector.broadcast %cst_72 : f32 to vector<1x10xf32>
    %163 = arith.cmpf ogt, %161, %162 : vector<1x10xf32>
    %cst_73 = arith.constant 2.000000e+01 : f32
    %164 = vector.broadcast %cst_73 : f32 to vector<1x10xf32>
    %165 = arith.minimumf %161, %164 : vector<1x10xf32>
    %166 = math.exp %165 : vector<1x10xf32>
    %cst_74 = arith.constant 1.000000e+00 : f32
    %167 = vector.broadcast %cst_74 : f32 to vector<1x10xf32>
    %168 = arith.addf %167, %166 : vector<1x10xf32>
    %169 = math.log %168 : vector<1x10xf32>
    %170 = arith.select %163, %161, %169 : vector<1x10xi1>, vector<1x10xf32>
    %c0_75 = arith.constant 0 : index
    %c0_76 = arith.constant 0 : index
    %c0_77 = arith.constant 0 : index
    %171 = vector.load %arg21[%c0_75, %c0_76, %c0_77] : memref<1x1x10xf32, #tpu.memory_space<vmem>>, vector<1x1x10xf32>
    %172 = vector.shape_cast %171 : vector<1x1x10xf32> to vector<1x10xf32>
    %173 = vector.shape_cast %170 : vector<1x10xf32> to vector<1x1x10xf32>
    tpu.vector_store %arg21[%c0_75, %c0_76, %c0_77], %173 {strides = array<i32>} : memref<1x1x10xf32, #tpu.memory_space<vmem>>, vector<1x1x10xf32>,
    return
  }
  func.func @transform_0(%arg0: i32) -> (i32, i32, i32) {
    %c0_i32 = arith.constant 0 : i32
    %c0_i32_0 = arith.constant 0 : i32
    %c0_i32_1 = arith.constant 0 : i32
    return %arg0, %c0_i32, %c0_i32_0 : i32, i32, i32
  }
  func.func @transform_1(%arg0: i32) -> (i32, i32) {
    %c0_i32 = arith.constant 0 : i32
    %c0_i32_0 = arith.constant 0 : i32
    %c0_i32_1 = arith.constant 0 : i32
    return %c0_i32, %c0_i32_0 : i32, i32
  }
  func.func @transform_2(%arg0: i32) -> (i32, i32) {
    %c0_i32 = arith.constant 0 : i32
    %c0_i32_0 = arith.constant 0 : i32
    %c0_i32_1 = arith.constant 0 : i32
    return %c0_i32, %c0_i32_0 : i32, i32
  }
  func.func @transform_3(%arg0: i32) -> (i32, i32) {
    %c0_i32 = arith.constant 0 : i32
    %c0_i32_0 = arith.constant 0 : i32
    %c0_i32_1 = arith.constant 0 : i32
    return %c0_i32, %c0_i32_0 : i32, i32
  }
  func.func @transform_4(%arg0: i32) -> (i32, i32) {
    %c0_i32 = arith.constant 0 : i32
    %c0_i32_0 = arith.constant 0 : i32
    %c0_i32_1 = arith.constant 0 : i32
    return %c0_i32, %c0_i32_0 : i32, i32
  }
  func.func @transform_5(%arg0: i32) -> (i32, i32) {
    %c0_i32 = arith.constant 0 : i32
    %c0_i32_0 = arith.constant 0 : i32
    %c0_i32_1 = arith.constant 0 : i32
    return %c0_i32, %c0_i32_0 : i32, i32
  }
  func.func @transform_6(%arg0: i32) -> (i32, i32) {
    %c0_i32 = arith.constant 0 : i32
    %c0_i32_0 = arith.constant 0 : i32
    %c0_i32_1 = arith.constant 0 : i32
    return %c0_i32, %c0_i32_0 : i32, i32
  }
  func.func @transform_7(%arg0: i32) -> (i32, i32) {
    %c0_i32 = arith.constant 0 : i32
    %c0_i32_0 = arith.constant 0 : i32
    %c0_i32_1 = arith.constant 0 : i32
    return %c0_i32, %c0_i32_0 : i32, i32
  }
  func.func @transform_8(%arg0: i32) -> (i32, i32) {
    %c0_i32 = arith.constant 0 : i32
    %c0_i32_0 = arith.constant 0 : i32
    %c0_i32_1 = arith.constant 0 : i32
    return %c0_i32, %c0_i32_0 : i32, i32
  }
  func.func @transform_9(%arg0: i32) -> (i32, i32) {
    %c0_i32 = arith.constant 0 : i32
    %c0_i32_0 = arith.constant 0 : i32
    %c0_i32_1 = arith.constant 0 : i32
    return %c0_i32, %c0_i32_0 : i32, i32
  }
  func.func @transform_10(%arg0: i32) -> (i32, i32) {
    %c0_i32 = arith.constant 0 : i32
    %c0_i32_0 = arith.constant 0 : i32
    %c0_i32_1 = arith.constant 0 : i32
    return %c0_i32, %c0_i32_0 : i32, i32
  }
  func.func @transform_11(%arg0: i32) -> (i32, i32) {
    %c0_i32 = arith.constant 0 : i32
    %c0_i32_0 = arith.constant 0 : i32
    %c0_i32_1 = arith.constant 0 : i32
    return %c0_i32, %c0_i32_0 : i32, i32
  }
  func.func @transform_12(%arg0: i32) -> (i32, i32) {
    %c0_i32 = arith.constant 0 : i32
    %c0_i32_0 = arith.constant 0 : i32
    %c0_i32_1 = arith.constant 0 : i32
    return %c0_i32, %c0_i32_0 : i32, i32
  }
  func.func @transform_13(%arg0: i32) -> (i32, i32) {
    %c0_i32 = arith.constant 0 : i32
    %c0_i32_0 = arith.constant 0 : i32
    %c0_i32_1 = arith.constant 0 : i32
    return %c0_i32, %c0_i32_0 : i32, i32
  }
  func.func @transform_14(%arg0: i32) -> (i32, i32) {
    %c0_i32 = arith.constant 0 : i32
    %c0_i32_0 = arith.constant 0 : i32
    %c0_i32_1 = arith.constant 0 : i32
    return %c0_i32, %c0_i32_0 : i32, i32
  }
  func.func @transform_15(%arg0: i32) -> (i32, i32) {
    %c0_i32 = arith.constant 0 : i32
    %c0_i32_0 = arith.constant 0 : i32
    %c0_i32_1 = arith.constant 0 : i32
    return %c0_i32, %c0_i32_0 : i32, i32
  }
  func.func @transform_16(%arg0: i32) -> (i32, i32) {
    %c0_i32 = arith.constant 0 : i32
    %c0_i32_0 = arith.constant 0 : i32
    %c0_i32_1 = arith.constant 0 : i32
    return %c0_i32, %c0_i32_0 : i32, i32
  }
  func.func @transform_17(%arg0: i32) -> (i32, i32) {
    %c0_i32 = arith.constant 0 : i32
    %c0_i32_0 = arith.constant 0 : i32
    %c0_i32_1 = arith.constant 0 : i32
    return %c0_i32, %c0_i32_0 : i32, i32
  }
  func.func @transform_18(%arg0: i32) -> (i32, i32) {
    %c0_i32 = arith.constant 0 : i32
    %c0_i32_0 = arith.constant 0 : i32
    %c0_i32_1 = arith.constant 0 : i32
    return %c0_i32, %c0_i32_0 : i32, i32
  }
  func.func @transform_19(%arg0: i32) -> (i32, i32) {
    %c0_i32 = arith.constant 0 : i32
    %c0_i32_0 = arith.constant 0 : i32
    %c0_i32_1 = arith.constant 0 : i32
    return %c0_i32, %c0_i32_0 : i32, i32
  }
  func.func @transform_20(%arg0: i32) -> (i32, i32, i32) {
    %c0_i32 = arith.constant 0 : i32
    %c0_i32_0 = arith.constant 0 : i32
    %c0_i32_1 = arith.constant 0 : i32
    return %arg0, %c0_i32, %c0_i32_0 : i32, i32, i32
  }
}

</mosaic_0001>

<llo_original>
// kernel: vc_ensemble_forward.3
$region0: #{vc_ensemble_forward.3}
  #allocation0 [shape = 'u32[]', space=smem, size = 0x4, offset = 0x4, fixed_abs, tag = 'smem constant byte address 0x4 - core index']
  #allocation1 [shape = 'u32[144,128]{1,0:T(1,128)}', space=vmem, size = 0x12000, scoped, tag = 'internal scratch']
  %s0 = inlined_call_operand.vmem [shape: f32[2,1600,64], index: 0, kind: input, shape index: {}]
  %s1 = inlined_call_operand.vmem [shape: f32[64,32], index: 1, kind: input, shape index: {}]
  %s2 = inlined_call_operand.vmem [shape: f32[1,32], index: 2, kind: input, shape index: {}]
  %s3 = inlined_call_operand.vmem [shape: f32[288,32], index: 3, kind: input, shape index: {}]
  %s4 = inlined_call_operand.vmem [shape: f32[1,32], index: 4, kind: input, shape index: {}]
  %s5 = inlined_call_operand.vmem [shape: f32[320,64], index: 5, kind: input, shape index: {}]
  %s6 = inlined_call_operand.vmem [shape: f32[1,64], index: 6, kind: input, shape index: {}]
  %s7 = inlined_call_operand.vmem [shape: f32[64,10], index: 7, kind: input, shape index: {}]
  %s8 = inlined_call_operand.vmem [shape: f32[1,10], index: 8, kind: input, shape index: {}]
  %s9 = inlined_call_operand.vmem [shape: f32[2,1,10], index: 9, kind: output, shape index: {}]
  %s10 = sld [smem:[#allocation0]]
  $region69: #{vc_ensemble_forward.3} parent=0
    _
  %s12 = ssub.s32 1, %s10
  %s13 = scalar_select 0, %s12, %s10
  loop: start=0, step=1, limit=4
  $region2: #{vc_ensemble_forward.3} parent=0 // loop_pre_header
    _
  $region3: #{vc_ensemble_forward.3} parent=0 // loop_header
    %s15 = sphi 0, %s19
    %p16 = scmp.ge.s32.totalorder %s15, 4
    %s25 = sphi 0, %s27
    %s28 = sphi 0, %s25
    %s29 = sphi 0, %s28
    %s45 = sphi 0, %s29
    %s49 = sphi 0, %s49
    %s51 = sphi 0, %s49
    %s52 = sphi 0, %s51
    %s66 = sphi 0, %s52
    %s70 = sphi 0, %s70
    %s72 = sphi 0, %s70
    %s73 = sphi 0, %s72
    %s87 = sphi 0, %s73
    %s91 = sphi 0, %s91
    %s93 = sphi 0, %s91
    %s94 = sphi 0, %s93
    %s108 = sphi 0, %s94
    %s112 = sphi 0, %s112
    %s114 = sphi 0, %s112
    %s115 = sphi 0, %s114
    %s129 = sphi 0, %s115
    %s133 = sphi 0, %s133
    %s135 = sphi 0, %s133
    %s136 = sphi 0, %s135
    %s150 = sphi 0, %s136
    %s154 = sphi 0, %s154
    %s156 = sphi 0, %s154
    %s157 = sphi 0, %s156
    %s171 = sphi 0, %s157
    %s175 = sphi 0, %s175
    %s177 = sphi 0, %s175
    %s178 = sphi 0, %s177
    %s192 = sphi 0, %s178
    %s196 = sphi 0, %s196
    %s198 = sphi 0, %s196
    %s199 = sphi 0, %s198
    %s213 = sphi 0, %s199
    %s219 = sphi 0, %s221
    %s222 = sphi 0, %s219
    %s223 = sphi 0, %s222
    %s239 = sphi 0, %s223
  $region4: #{vc_ensemble_forward.3} parent=0 // loop_header_branch
    %18 = sbr.rel (%p16) target = $region8
  $region5: #{vc_ensemble_forward.3} parent=0 // loop_body
    %s20 = ssub.s32 %s15, 1
    %s21 = ssub.s32 %s15, 2
    %s22 = sadd.s32 %s15, 1
    %s23 = ssub.s32 %s15, %s22
    %p24 = scmp.eq.s32.totalorder %s23, 0
    %s26 = sadd.s32 %s25, 1
    %s27 = scalar_select %p24, %s25, %s26
    %p30 = pneg %p24
    %p31 = scmp.eq.s32.totalorder %s15, 1
    %p32 = por %p30, %p31
    %p33 = scmp.ne.s32.totalorder %s25, %s28
    %p34 = scmp.eq.s32.totalorder %s15, 0
    %p35 = por %p33, %p34
    %p36 = scmp.ne.s32.totalorder %s25, %s28
    %p37 = scmp.eq.s32.totalorder %s20, 1
    %p38 = por %p36, %p37
    %p39 = scmp.ne.s32.totalorder %s28, %s29
    %p40 = scmp.eq.s32.totalorder %s20, 0
    %p41 = por %p39, %p40
    %p42 = scmp.ne.s32.totalorder %s28, %s29
    %p43 = scmp.eq.s32.totalorder %s21, 1
    %p44 = por %p42, %p43
    %p46 = scmp.ne.s32.totalorder %s29, %s45
    %p47 = scmp.eq.s32.totalorder %s21, 0
    %p48 = por %p46, %p47
    %s50 = sadd.s32 %s49, 1
    %p53 = scmp.eq.s32.totalorder %s15, 1
    %p54 = scmp.ne.s32.totalorder %s49, %s51
    %p55 = scmp.eq.s32.totalorder %s15, 0
    %p56 = por %p54, %p55
    %p57 = scmp.ne.s32.totalorder %s49, %s51
    %p58 = scmp.eq.s32.totalorder %s20, 1
    %p59 = por %p57, %p58
    %p60 = scmp.ne.s32.totalorder %s51, %s52
    %p61 = scmp.eq.s32.totalorder %s20, 0
    %p62 = por %p60, %p61
    %p63 = scmp.ne.s32.totalorder %s51, %s52
    %p64 = scmp.eq.s32.totalorder %s21, 1
    %p65 = por %p63, %p64
    %p67 = scmp.ne.s32.totalorder %s52, %s66
    %p68 = scmp.eq.s32.totalorder %s21, 0
    %p69 = por %p67, %p68
    %s71 = sadd.s32 %s70, 1
    %p74 = scmp.eq.s32.totalorder %s15, 1
    %p75 = scmp.ne.s32.totalorder %s70, %s72
    %p76 = scmp.eq.s32.totalorder %s15, 0
    %p77 = por %p75, %p76
    %p78 = scmp.ne.s32.totalorder %s70, %s72
    %p79 = scmp.eq.s32.totalorder %s20, 1
    %p80 = por %p78, %p79
    %p81 = scmp.ne.s32.totalorder %s72, %s73
    %p82 = scmp.eq.s32.totalorder %s20, 0
    %p83 = por %p81, %p82
    %p84 = scmp.ne.s32.totalorder %s72, %s73
    %p85 = scmp.eq.s32.totalorder %s21, 1
    %p86 = por %p84, %p85
    %p88 = scmp.ne.s32.totalorder %s73, %s87
    %p89 = scmp.eq.s32.totalorder %s21, 0
    %p90 = por %p88, %p89
    %s92 = sadd.s32 %s91, 1
    %p95 = scmp.eq.s32.totalorder %s15, 1
    %p96 = scmp.ne.s32.totalorder %s91, %s93
    %p97 = scmp.eq.s32.totalorder %s15, 0
    %p98 = por %p96, %p97
    %p99 = scmp.ne.s32.totalorder %s91, %s93
    %p100 = scmp.eq.s32.totalorder %s20, 1
    %p101 = por %p99, %p100
    %p102 = scmp.ne.s32.totalorder %s93, %s94
    %p103 = scmp.eq.s32.totalorder %s20, 0
    %p104 = por %p102, %p103
    %p105 = scmp.ne.s32.totalorder %s93, %s94
    %p106 = scmp.eq.s32.totalorder %s21, 1
    %p107 = por %p105, %p106
    %p109 = scmp.ne.s32.totalorder %s94, %s108
    %p110 = scmp.eq.s32.totalorder %s21, 0
    %p111 = por %p109, %p110
    %s113 = sadd.s32 %s112, 1
    %p116 = scmp.eq.s32.totalorder %s15, 1
    %p117 = scmp.ne.s32.totalorder %s112, %s114
    %p118 = scmp.eq.s32.totalorder %s15, 0
    %p119 = por %p117, %p118
    %p120 = scmp.ne.s32.totalorder %s112, %s114
    %p121 = scmp.eq.s32.totalorder %s20, 1
    %p122 = por %p120, %p121
    %p123 = scmp.ne.s32.totalorder %s114, %s115
    %p124 = scmp.eq.s32.totalorder %s20, 0
    %p125 = por %p123, %p124
    %p126 = scmp.ne.s32.totalorder %s114, %s115
    %p127 = scmp.eq.s32.totalorder %s21, 1
    %p128 = por %p126, %p127
    %p130 = scmp.ne.s32.totalorder %s115, %s129
    %p131 = scmp.eq.s32.totalorder %s21, 0
    %p132 = por %p130, %p131
    %s134 = sadd.s32 %s133, 1
    %p137 = scmp.eq.s32.totalorder %s15, 1
    %p138 = scmp.ne.s32.totalorder %s133, %s135
    %p139 = scmp.eq.s32.totalorder %s15, 0
    %p140 = por %p138, %p139
    %p141 = scmp.ne.s32.totalorder %s133, %s135
    %p142 = scmp.eq.s32.totalorder %s20, 1
    %p143 = por %p141, %p142
    %p144 = scmp.ne.s32.totalorder %s135, %s136
    %p145 = scmp.eq.s32.totalorder %s20, 0
    %p146 = por %p144, %p145
    %p147 = scmp.ne.s32.totalorder %s135, %s136
    %p148 = scmp.eq.s32.totalorder %s21, 1
    %p149 = por %p147, %p148
    %p151 = scmp.ne.s32.totalorder %s136, %s150
    %p152 = scmp.eq.s32.totalorder %s21, 0
    %p153 = por %p151, %p152
    %s155 = sadd.s32 %s154, 1
    %p158 = scmp.eq.s32.totalorder %s15, 1
    %p159 = scmp.ne.s32.totalorder %s154, %s156
    %p160 = scmp.eq.s32.totalorder %s15, 0
    %p161 = por %p159, %p160
    %p162 = scmp.ne.s32.totalorder %s154, %s156
    %p163 = scmp.eq.s32.totalorder %s20, 1
    %p164 = por %p162, %p163
    %p165 = scmp.ne.s32.totalorder %s156, %s157
    %p166 = scmp.eq.s32.totalorder %s20, 0
    %p167 = por %p165, %p166
    %p168 = scmp.ne.s32.totalorder %s156, %s157
    %p169 = scmp.eq.s32.totalorder %s21, 1
    %p170 = por %p168, %p169
    %p172 = scmp.ne.s32.totalorder %s157, %s171
    %p173 = scmp.eq.s32.totalorder %s21, 0
    %p174 = por %p172, %p173
    %s176 = sadd.s32 %s175, 1
    %p179 = scmp.eq.s32.totalorder %s15, 1
    %p180 = scmp.ne.s32.totalorder %s175, %s177
    %p181 = scmp.eq.s32.totalorder %s15, 0
    %p182 = por %p180, %p181
    %p183 = scmp.ne.s32.totalorder %s175, %s177
    %p184 = scmp.eq.s32.totalorder %s20, 1
    %p185 = por %p183, %p184
    %p186 = scmp.ne.s32.totalorder %s177, %s178
    %p187 = scmp.eq.s32.totalorder %s20, 0
    %p188 = por %p186, %p187
    %p189 = scmp.ne.s32.totalorder %s177, %s178
    %p190 = scmp.eq.s32.totalorder %s21, 1
    %p191 = por %p189, %p190
    %p193 = scmp.ne.s32.totalorder %s178, %s192
    %p194 = scmp.eq.s32.totalorder %s21, 0
    %p195 = por %p193, %p194
    %s197 = sadd.s32 %s196, 1
    %p200 = scmp.eq.s32.totalorder %s15, 1
    %p201 = scmp.ne.s32.totalorder %s196, %s198
    %p202 = scmp.eq.s32.totalorder %s15, 0
    %p203 = por %p201, %p202
    %p204 = scmp.ne.s32.totalorder %s196, %s198
    %p205 = scmp.eq.s32.totalorder %s20, 1
    %p206 = por %p204, %p205
    %p207 = scmp.ne.s32.totalorder %s198, %s199
    %p208 = scmp.eq.s32.totalorder %s20, 0
    %p209 = por %p207, %p208
    %p210 = scmp.ne.s32.totalorder %s198, %s199
    %p211 = scmp.eq.s32.totalorder %s21, 1
    %p212 = por %p210, %p211
    %p214 = scmp.ne.s32.totalorder %s199, %s213
    %p215 = scmp.eq.s32.totalorder %s21, 0
    %p216 = por %p214, %p215
    %s217 = ssub.s32 %s15, %s22
    %p218 = scmp.eq.s32.totalorder %s217, 0
    %s220 = sadd.s32 %s219, 1
    %s221 = scalar_select %p218, %s219, %s220
    %p224 = pneg %p218
    %p225 = scmp.eq.s32.totalorder %s15, 1
    %p226 = por %p224, %p225
    %p227 = scmp.ne.s32.totalorder %s219, %s222
    %p228 = scmp.eq.s32.totalorder %s15, 0
    %p229 = por %p227, %p228
    %p230 = scmp.ne.s32.totalorder %s219, %s222
    %p231 = scmp.eq.s32.totalorder %s20, 1
    %p232 = por %p230, %p231
    %p233 = scmp.ne.s32.totalorder %s222, %s223
    %p234 = scmp.eq.s32.totalorder %s20, 0
    %p235 = por %p233, %p234
    %p236 = scmp.ne.s32.totalorder %s222, %s223
    %p237 = scmp.eq.s32.totalorder %s21, 1
    %p238 = por %p236, %p237
    %p240 = scmp.ne.s32.totalorder %s223, %s239
    %p241 = scmp.eq.s32.totalorder %s21, 0
    %p242 = por %p240, %p241
    %p243 = scmp.le.s32.totalorder 1, %s15
    %p244 = scmp.lt.s32.totalorder %s15, 3
    %p245 = pnand %p243, %p244
    %p246 = pneg %p245
    // Predicated region
    $region9: #{vc_ensemble_forward.3} parent=5 // pred_check
      _
    $region10: #{vc_ensemble_forward.3} parent=5 // pred_check_branch
      %248 = sbr.rel (%p245) target = $region12
    $region11: #{vc_ensemble_forward.3} parent=5 // pred_region
      %s249 = ssub.s32 %s15, 1
      // Predicated region
      $region13: #{vc_ensemble_forward.3} parent=11 // pred_check
        %p250 = pneg %p62
      $region14: #{vc_ensemble_forward.3} parent=11 // pred_check_branch
        %252 = sbr.rel (%p250) target = $region16
      $region15: #{vc_ensemble_forward.3} parent=11 // pred_region
        _
      $region16: #{vc_ensemble_forward.3} parent=11 // pred_fallthru
        _
      // Predicated region
      $region17: #{vc_ensemble_forward.3} parent=11 // pred_check
        %p253 = pneg %p83
      $region18: #{vc_ensemble_forward.3} parent=11 // pred_check_branch
        %255 = sbr.rel (%p253) target = $region20
      $region19: #{vc_ensemble_forward.3} parent=11 // pred_region
        _
      $region20: #{vc_ensemble_forward.3} parent=11 // pred_fallthru
        _
      // Predicated region
      $region21: #{vc_ensemble_forward.3} parent=11 // pred_check
        %p256 = pneg %p104
      $region22: #{vc_ensemble_forward.3} parent=11 // pred_check_branch
        %258 = sbr.rel (%p256) target = $region24
      $region23: #{vc_ensemble_forward.3} parent=11 // pred_region
        _
      $region24: #{vc_ensemble_forward.3} parent=11 // pred_fallthru
        _
      // Predicated region
      $region25: #{vc_ensemble_forward.3} parent=11 // pred_check
        %p259 = pneg %p125
      $region26: #{vc_ensemble_forward.3} parent=11 // pred_check_branch
        %261 = sbr.rel (%p259) target = $region28
      $region27: #{vc_ensemble_forward.3} parent=11 // pred_region
        _
      $region28: #{vc_ensemble_forward.3} parent=11 // pred_fallthru
        _
      // Predicated region
      $region29: #{vc_ensemble_forward.3} parent=11 // pred_check
        %p262 = pneg %p146
      $region30: #{vc_ensemble_forward.3} parent=11 // pred_check_branch
        %264 = sbr.rel (%p262) target = $region32
      $region31: #{vc_ensemble_forward.3} parent=11 // pred_region
        _
      $region32: #{vc_ensemble_forward.3} parent=11 // pred_fallthru
        _
      // Predicated region
      $region33: #{vc_ensemble_forward.3} parent=11 // pred_check
        %p265 = pneg %p167
      $region34: #{vc_ensemble_forward.3} parent=11 // pred_check_branch
        %267 = sbr.rel (%p265) target = $region36
      $region35: #{vc_ensemble_forward.3} parent=11 // pred_region
        _
      $region36: #{vc_ensemble_forward.3} parent=11 // pred_fallthru
        _
      // Predicated region
      $region37: #{vc_ensemble_forward.3} parent=11 // pred_check
        %p268 = pneg %p188
      $region38: #{vc_ensemble_forward.3} parent=11 // pred_check_branch
        %270 = sbr.rel (%p268) target = $region40
      $region39: #{vc_ensemble_forward.3} parent=11 // pred_region
        _
      $region40: #{vc_ensemble_forward.3} parent=11 // pred_fallthru
        _
      // Predicated region
      $region41: #{vc_ensemble_forward.3} parent=11 // pred_check
        %p271 = pneg %p209
      $region42: #{vc_ensemble_forward.3} parent=11 // pred_check_branch
        %273 = sbr.rel (%p271) target = $region44
      $region43: #{vc_ensemble_forward.3} parent=11 // pred_region
        _
      $region44: #{vc_ensemble_forward.3} parent=11 // pred_fallthru
        _
    $region12: #{vc_ensemble_forward.3} parent=5 // pred_fallthru
      _
    %p274 = scmp.lt.s32.totalorder %s15, 2
    // Predicated region
    $region45: #{vc_ensemble_forward.3} parent=5 // pred_check
      %p275 = pneg %p274
    $region46: #{vc_ensemble_forward.3} parent=5 // pred_check_branch
      %277 = sbr.rel (%p275) target = $region48
    $region47: #{vc_ensemble_forward.3} parent=5 // pred_region
      // Predicated region
      $region49: #{vc_ensemble_forward.3} parent=47 // pred_check
        %p278 = pneg %p35
      $region50: #{vc_ensemble_forward.3} parent=47 // pred_check_branch
        %280 = sbr.rel (%p278) target = $region52
      $region51: #{vc_ensemble_forward.3} parent=47 // pred_region
        %p281 = scmp.lt.s32.totalorder %s15, 1
        %s282 = scalar_select %p281, %s15, 1
        %s283 = smul.addr %s282, 200
        %s284 = smul.addr %s283, 8
        %s285 = scalar_lea.vmem %s0, %s284
      $region52: #{vc_ensemble_forward.3} parent=47 // pred_fallthru
        _
    $region48: #{vc_ensemble_forward.3} parent=5 // pred_fallthru
      _
    %p286 = scmp.le.s32.totalorder 1, %s15
    %p287 = scmp.lt.s32.totalorder %s15, 3
    %p288 = pnand %p286, %p287
    %p289 = pneg %p288
    // Predicated region
    $region53: #{vc_ensemble_forward.3} parent=5 // pred_check
      _
    $region54: #{vc_ensemble_forward.3} parent=5 // pred_check_branch
      %291 = sbr.rel (%p288) target = $region56
    $region55: #{vc_ensemble_forward.3} parent=5 // pred_region
      %s292 = ssub.s32 %s15, 1
      %p293 = scmp.lt.s32.totalorder %s20, 1
      %s294 = scalar_select %p293, %s20, 1
      %s295 = smul.addr %s294, 200
      %s296 = smul.addr %s295, 8
      %s297 = scalar_lea.vmem %s0, %s296
      %p298 = pneg %p41
      %p299 = pneg %p38
      %p300 = pneg %p62
      %p301 = pneg %p59
      %p302 = pneg %p83
      %p303 = pneg %p80
      %p304 = pneg %p104
      %p305 = pneg %p101
      %p306 = pneg %p125
      %p307 = pneg %p122
      %p308 = pneg %p146
      %p309 = pneg %p143
      %p310 = pneg %p167
      %p311 = pneg %p164
      %p312 = pneg %p188
      %p313 = pneg %p185
      %p314 = pneg %p209
      %p315 = pneg %p206
      %p316 = pneg %p235
      %p317 = pneg %p232
      %p318 = scmp.lt.s32.totalorder %s20, 1
      %s319 = scalar_select %p318, %s20, 1
      %s320 = scalar_lea.vmem %s9, %s319
      %p321 = scmp.lt.s32.totalorder %s20, 1
      %s322 = scalar_select %p321, %s20, 1
      %s323 = smul.addr %s322, 200
      %s324 = smul.addr %s323, 8
      %s325 = scalar_lea.vmem %s0, %s324
      %p326 = scmp.lt.s32.totalorder %s20, 1
      %s327 = scalar_select %p326, %s20, 1
      %s328 = scalar_lea.vmem %s9, %s327
      %v329 = vld [vmem:[%s325] sm:$0xff]
      %v330 = vld [vmem:[%s325 + $0x8] sm:$0xff]
      %v331 = vld [vmem:[%s325 + $0x10] sm:$0xff]
      %v332 = vld [vmem:[%s325 + $0x18] sm:$0xff]
      %v333 = vld [vmem:[%s325 + $0x20] sm:$0xff]
      %v334 = vld [vmem:[%s325 + $0x28] sm:$0xff]
      %v335 = vld [vmem:[%s325 + $0x30] sm:$0xff]
      %v336 = vld [vmem:[%s325 + $0x38] sm:$0xff]
      %v337 = vld [vmem:[%s325 + $0x40] sm:$0xff]
      %v338 = vld [vmem:[%s325 + $0x48] sm:$0xff]
      %v339 = vld [vmem:[%s325 + $0x50] sm:$0xff]
      %v340 = vld [vmem:[%s325 + $0x58] sm:$0xff]
      %v341 = vld [vmem:[%s325 + $0x60] sm:$0xff]
      %v342 = vld [vmem:[%s325 + $0x68] sm:$0xff]
      %v343 = vld [vmem:[%s325 + $0x70] sm:$0xff]
      %v344 = vld [vmem:[%s325 + $0x78] sm:$0xff]
      %v345 = vld [vmem:[%s325 + $0x80] sm:$0xff]
      %v346 = vld [vmem:[%s325 + $0x88] sm:$0xff]
      %v347 = vld [vmem:[%s325 + $0x90] sm:$0xff]
      %v348 = vld [vmem:[%s325 + $0x98] sm:$0xff]
      %v349 = vld [vmem:[%s325 + $0xa0] sm:$0xff]
      %v350 = vld [vmem:[%s325 + $0xa8] sm:$0xff]
      %v351 = vld [vmem:[%s325 + $0xb0] sm:$0xff]
      %v352 = vld [vmem:[%s325 + $0xb8] sm:$0xff]
      %v353 = vld [vmem:[%s325 + $0xc0] sm:$0xff]
      %v354 = vld [vmem:[%s325 + $0xc8] sm:$0xff]
      %v355 = vld [vmem:[%s325 + $0xd0] sm:$0xff]
      %v356 = vld [vmem:[%s325 + $0xd8] sm:$0xff]
      %v357 = vld [vmem:[%s325 + $0xe0] sm:$0xff]
      %v358 = vld [vmem:[%s325 + $0xe8] sm:$0xff]
      %v359 = vld [vmem:[%s325 + $0xf0] sm:$0xff]
      %v360 = vld [vmem:[%s325 + $0xf8] sm:$0xff]
      %v361 = vld [vmem:[%s325 + $0x100] sm:$0xff]
      %v362 = vld [vmem:[%s325 + $0x108] sm:$0xff]
      %v363 = vld [vmem:[%s325 + $0x110] sm:$0xff]
      %v364 = vld [vmem:[%s325 + $0x118] sm:$0xff]
      %v365 = vld [vmem:[%s325 + $0x120] sm:$0xff]
      %v366 = vld [vmem:[%s325 + $0x128] sm:$0xff]
      %v367 = vld [vmem:[%s325 + $0x130] sm:$0xff]
      %v368 = vld [vmem:[%s325 + $0x138] sm:$0xff]
      %v369 = vld [vmem:[%s325 + $0x140] sm:$0xff]
      %v370 = vld [vmem:[%s325 + $0x148] sm:$0xff]
      %v371 = vld [vmem:[%s325 + $0x150] sm:$0xff]
      %v372 = vld [vmem:[%s325 + $0x158] sm:$0xff]
      %v373 = vld [vmem:[%s325 + $0x160] sm:$0xff]
      %v374 = vld [vmem:[%s325 + $0x168] sm:$0xff]
      %v375 = vld [vmem:[%s325 + $0x170] sm:$0xff]
      %v376 = vld [vmem:[%s325 + $0x178] sm:$0xff]
      %v377 = vld [vmem:[%s325 + $0x180] sm:$0xff]
      %v378 = vld [vmem:[%s325 + $0x188] sm:$0xff]
      %v379 = vld [vmem:[%s325 + $0x190] sm:$0xff]
      %v380 = vld [vmem:[%s325 + $0x198] sm:$0xff]
      %v381 = vld [vmem:[%s325 + $0x1a0] sm:$0xff]
      %v382 = vld [vmem:[%s325 + $0x1a8] sm:$0xff]
      %v383 = vld [vmem:[%s325 + $0x1b0] sm:$0xff]
      %v384 = vld [vmem:[%s325 + $0x1b8] sm:$0xff]
      %v385 = vld [vmem:[%s325 + $0x1c0] sm:$0xff]
      %v386 = vld [vmem:[%s325 + $0x1c8] sm:$0xff]
      %v387 = vld [vmem:[%s325 + $0x1d0] sm:$0xff]
      %v388 = vld [vmem:[%s325 + $0x1d8] sm:$0xff]
      %v389 = vld [vmem:[%s325 + $0x1e0] sm:$0xff]
      %v390 = vld [vmem:[%s325 + $0x1e8] sm:$0xff]
      %v391 = vld [vmem:[%s325 + $0x1f0] sm:$0xff]
      %v392 = vld [vmem:[%s325 + $0x1f8] sm:$0xff]
      %v393 = vld [vmem:[%s325 + $0x200] sm:$0xff]
      %v394 = vld [vmem:[%s325 + $0x208] sm:$0xff]
      %v395 = vld [vmem:[%s325 + $0x210] sm:$0xff]
      %v396 = vld [vmem:[%s325 + $0x218] sm:$0xff]
      %v397 = vld [vmem:[%s325 + $0x220] sm:$0xff]
      %v398 = vld [vmem:[%s325 + $0x228] sm:$0xff]
      %v399 = vld [vmem:[%s325 + $0x230] sm:$0xff]
      %v400 = vld [vmem:[%s325 + $0x238] sm:$0xff]
      %v401 = vld [vmem:[%s325 + $0x240] sm:$0xff]
      %v402 = vld [vmem:[%s325 + $0x248] sm:$0xff]
      %v403 = vld [vmem:[%s325 + $0x250] sm:$0xff]
      %v404 = vld [vmem:[%s325 + $0x258] sm:$0xff]
      %v405 = vld [vmem:[%s325 + $0x260] sm:$0xff]
      %v406 = vld [vmem:[%s325 + $0x268] sm:$0xff]
      %v407 = vld [vmem:[%s325 + $0x270] sm:$0xff]
      %v408 = vld [vmem:[%s325 + $0x278] sm:$0xff]
      %v409 = vld [vmem:[%s325 + $0x280] sm:$0xff]
      %v410 = vld [vmem:[%s325 + $0x288] sm:$0xff]
      %v411 = vld [vmem:[%s325 + $0x290] sm:$0xff]
      %v412 = vld [vmem:[%s325 + $0x298] sm:$0xff]
      %v413 = vld [vmem:[%s325 + $0x2a0] sm:$0xff]
      %v414 = vld [vmem:[%s325 + $0x2a8] sm:$0xff]
      %v415 = vld [vmem:[%s325 + $0x2b0] sm:$0xff]
      %v416 = vld [vmem:[%s325 + $0x2b8] sm:$0xff]
      %v417 = vld [vmem:[%s325 + $0x2c0] sm:$0xff]
      %v418 = vld [vmem:[%s325 + $0x2c8] sm:$0xff]
      %v419 = vld [vmem:[%s325 + $0x2d0] sm:$0xff]
      %v420 = vld [vmem:[%s325 + $0x2d8] sm:$0xff]
      %v421 = vld [vmem:[%s325 + $0x2e0] sm:$0xff]
      %v422 = vld [vmem:[%s325 + $0x2e8] sm:$0xff]
      %v423 = vld [vmem:[%s325 + $0x2f0] sm:$0xff]
      %v424 = vld [vmem:[%s325 + $0x2f8] sm:$0xff]
      %v425 = vld [vmem:[%s325 + $0x300] sm:$0xff]
      %v426 = vld [vmem:[%s325 + $0x308] sm:$0xff]
      %v427 = vld [vmem:[%s325 + $0x310] sm:$0xff]
      %v428 = vld [vmem:[%s325 + $0x318] sm:$0xff]
      %v429 = vld [vmem:[%s325 + $0x320] sm:$0xff]
      %v430 = vld [vmem:[%s325 + $0x328] sm:$0xff]
      %v431 = vld [vmem:[%s325 + $0x330] sm:$0xff]
      %v432 = vld [vmem:[%s325 + $0x338] sm:$0xff]
      %v433 = vld [vmem:[%s325 + $0x340] sm:$0xff]
      %v434 = vld [vmem:[%s325 + $0x348] sm:$0xff]
      %v435 = vld [vmem:[%s325 + $0x350] sm:$0xff]
      %v436 = vld [vmem:[%s325 + $0x358] sm:$0xff]
      %v437 = vld [vmem:[%s325 + $0x360] sm:$0xff]
      %v438 = vld [vmem:[%s325 + $0x368] sm:$0xff]
      %v439 = vld [vmem:[%s325 + $0x370] sm:$0xff]
      %v440 = vld [vmem:[%s325 + $0x378] sm:$0xff]
      %v441 = vld [vmem:[%s325 + $0x380] sm:$0xff]
      %v442 = vld [vmem:[%s325 + $0x388] sm:$0xff]
      %v443 = vld [vmem:[%s325 + $0x390] sm:$0xff]
      %v444 = vld [vmem:[%s325 + $0x398] sm:$0xff]
      %v445 = vld [vmem:[%s325 + $0x3a0] sm:$0xff]
      %v446 = vld [vmem:[%s325 + $0x3a8] sm:$0xff]
      %v447 = vld [vmem:[%s325 + $0x3b0] sm:$0xff]
      %v448 = vld [vmem:[%s325 + $0x3b8] sm:$0xff]
      %v449 = vld [vmem:[%s325 + $0x3c0] sm:$0xff]
      %v450 = vld [vmem:[%s325 + $0x3c8] sm:$0xff]
      %v451 = vld [vmem:[%s325 + $0x3d0] sm:$0xff]
      %v452 = vld [vmem:[%s325 + $0x3d8] sm:$0xff]
      %v453 = vld [vmem:[%s325 + $0x3e0] sm:$0xff]
      %v454 = vld [vmem:[%s325 + $0x3e8] sm:$0xff]
      %v455 = vld [vmem:[%s325 + $0x3f0] sm:$0xff]
      %v456 = vld [vmem:[%s325 + $0x3f8] sm:$0xff]
      %v457 = vld [vmem:[%s325 + $0x400] sm:$0xff]
      %v458 = vld [vmem:[%s325 + $0x408] sm:$0xff]
      %v459 = vld [vmem:[%s325 + $0x410] sm:$0xff]
      %v460 = vld [vmem:[%s325 + $0x418] sm:$0xff]
      %v461 = vld [vmem:[%s325 + $0x420] sm:$0xff]
      %v462 = vld [vmem:[%s325 + $0x428] sm:$0xff]
      %v463 = vld [vmem:[%s325 + $0x430] sm:$0xff]
      %v464 = vld [vmem:[%s325 + $0x438] sm:$0xff]
      %v465 = vld [vmem:[%s325 + $0x440] sm:$0xff]
      %v466 = vld [vmem:[%s325 + $0x448] sm:$0xff]
      %v467 = vld [vmem:[%s325 + $0x450] sm:$0xff]
      %v468 = vld [vmem:[%s325 + $0x458] sm:$0xff]
      %v469 = vld [vmem:[%s325 + $0x460] sm:$0xff]
      %v470 = vld [vmem:[%s325 + $0x468] sm:$0xff]
      %v471 = vld [vmem:[%s325 + $0x470] sm:$0xff]
      %v472 = vld [vmem:[%s325 + $0x478] sm:$0xff]
      %v473 = vld [vmem:[%s325 + $0x480] sm:$0xff]
      %v474 = vld [vmem:[%s325 + $0x488] sm:$0xff]
      %v475 = vld [vmem:[%s325 + $0x490] sm:$0xff]
      %v476 = vld [vmem:[%s325 + $0x498] sm:$0xff]
      %v477 = vld [vmem:[%s325 + $0x4a0] sm:$0xff]
      %v478 = vld [vmem:[%s325 + $0x4a8] sm:$0xff]
      %v479 = vld [vmem:[%s325 + $0x4b0] sm:$0xff]
      %v480 = vld [vmem:[%s325 + $0x4b8] sm:$0xff]
      %v481 = vld [vmem:[%s325 + $0x4c0] sm:$0xff]
      %v482 = vld [vmem:[%s325 + $0x4c8] sm:$0xff]
      %v483 = vld [vmem:[%s325 + $0x4d0] sm:$0xff]
      %v484 = vld [vmem:[%s325 + $0x4d8] sm:$0xff]
      %v485 = vld [vmem:[%s325 + $0x4e0] sm:$0xff]
      %v486 = vld [vmem:[%s325 + $0x4e8] sm:$0xff]
      %v487 = vld [vmem:[%s325 + $0x4f0] sm:$0xff]
      %v488 = vld [vmem:[%s325 + $0x4f8] sm:$0xff]
      %v489 = vld [vmem:[%s325 + $0x500] sm:$0xff]
      %v490 = vld [vmem:[%s325 + $0x508] sm:$0xff]
      %v491 = vld [vmem:[%s325 + $0x510] sm:$0xff]
      %v492 = vld [vmem:[%s325 + $0x518] sm:$0xff]
      %v493 = vld [vmem:[%s325 + $0x520] sm:$0xff]
      %v494 = vld [vmem:[%s325 + $0x528] sm:$0xff]
      %v495 = vld [vmem:[%s325 + $0x530] sm:$0xff]
      %v496 = vld [vmem:[%s325 + $0x538] sm:$0xff]
      %v497 = vld [vmem:[%s325 + $0x540] sm:$0xff]
      %v498 = vld [vmem:[%s325 + $0x548] sm:$0xff]
      %v499 = vld [vmem:[%s325 + $0x550] sm:$0xff]
      %v500 = vld [vmem:[%s325 + $0x558] sm:$0xff]
      %v501 = vld [vmem:[%s325 + $0x560] sm:$0xff]
      %v502 = vld [vmem:[%s325 + $0x568] sm:$0xff]
      %v503 = vld [vmem:[%s325 + $0x570] sm:$0xff]
      %v504 = vld [vmem:[%s325 + $0x578] sm:$0xff]
      %v505 = vld [vmem:[%s325 + $0x580] sm:$0xff]
      %v506 = vld [vmem:[%s325 + $0x588] sm:$0xff]
      %v507 = vld [vmem:[%s325 + $0x590] sm:$0xff]
      %v508 = vld [vmem:[%s325 + $0x598] sm:$0xff]
      %v509 = vld [vmem:[%s325 + $0x5a0] sm:$0xff]
      %v510 = vld [vmem:[%s325 + $0x5a8] sm:$0xff]
      %v511 = vld [vmem:[%s325 + $0x5b0] sm:$0xff]
      %v512 = vld [vmem:[%s325 + $0x5b8] sm:$0xff]
      %v513 = vld [vmem:[%s325 + $0x5c0] sm:$0xff]
      %v514 = vld [vmem:[%s325 + $0x5c8] sm:$0xff]
      %v515 = vld [vmem:[%s325 + $0x5d0] sm:$0xff]
      %v516 = vld [vmem:[%s325 + $0x5d8] sm:$0xff]
      %v517 = vld [vmem:[%s325 + $0x5e0] sm:$0xff]
      %v518 = vld [vmem:[%s325 + $0x5e8] sm:$0xff]
      %v519 = vld [vmem:[%s325 + $0x5f0] sm:$0xff]
      %v520 = vld [vmem:[%s325 + $0x5f8] sm:$0xff]
      %v521 = vld [vmem:[%s325 + $0x600] sm:$0xff]
      %v522 = vld [vmem:[%s325 + $0x608] sm:$0xff]
      %v523 = vld [vmem:[%s325 + $0x610] sm:$0xff]
      %v524 = vld [vmem:[%s325 + $0x618] sm:$0xff]
      %v525 = vld [vmem:[%s325 + $0x620] sm:$0xff]
      %v526 = vld [vmem:[%s325 + $0x628] sm:$0xff]
      %v527 = vld [vmem:[%s325 + $0x630] sm:$0xff]
      %v528 = vld [vmem:[%s325 + $0x638] sm:$0xff]
      %v529 = vld [vmem:[%s1] sm:$0xff]
      %v530 = vld [vmem:[%s1 + $0x8] sm:$0xff]
      %v531 = vld [vmem:[%s1 + $0x10] sm:$0xff]
      %v532 = vld [vmem:[%s1 + $0x18] sm:$0xff]
      %v533 = vld [vmem:[%s1 + $0x20] sm:$0xff]
      %v534 = vld [vmem:[%s1 + $0x28] sm:$0xff]
      %v535 = vld [vmem:[%s1 + $0x30] sm:$0xff]
      %v536 = vld [vmem:[%s1 + $0x38] sm:$0xff]
      %v537 = vld [vmem:[%s2] sm:$0x1]
      %v539 = vlaneseq
      %v540 = vshrl.u32 %v539, 7
      %v541 = vsub.s32 0, %v540
      %v542 = vrot.slane %v537, %v541
      %vm544 = vcmask 523264
      %v546 = vsel %vm544, %v329, 0
      %v549 = vsel %vm544, %v330, 0
      %v552 = vsel %vm544, %v331, 0
      %v555 = vsel %vm544, %v332, 0
      %v558 = vsel %vm544, %v333, 0
      %v561 = vsel %vm544, %v334, 0
      %v564 = vsel %vm544, %v335, 0
      %v567 = vsel %vm544, %v336, 0
      %v570 = vsel %vm544, %v337, 0
      %v573 = vsel %vm544, %v338, 0
      %v576 = vsel %vm544, %v339, 0
      %v579 = vsel %vm544, %v340, 0
      %v582 = vsel %vm544, %v341, 0
      %v585 = vsel %vm544, %v342, 0
      %v588 = vsel %vm544, %v343, 0
      %v591 = vsel %vm544, %v344, 0
      %v594 = vsel %vm544, %v345, 0
      %v597 = vsel %vm544, %v346, 0
      %v600 = vsel %vm544, %v347, 0
      %v603 = vsel %vm544, %v348, 0
      %v606 = vsel %vm544, %v349, 0
      %v609 = vsel %vm544, %v350, 0
      %v612 = vsel %vm544, %v351, 0
      %v615 = vsel %vm544, %v352, 0
      %v618 = vsel %vm544, %v353, 0
      %v621 = vsel %vm544, %v354, 0
      %v624 = vsel %vm544, %v355, 0
      %v627 = vsel %vm544, %v356, 0
      %v630 = vsel %vm544, %v357, 0
      %v633 = vsel %vm544, %v358, 0
      %v636 = vsel %vm544, %v359, 0
      %v639 = vsel %vm544, %v360, 0
      %v642 = vsel %vm544, %v361, 0
      %v645 = vsel %vm544, %v362, 0
      %v648 = vsel %vm544, %v363, 0
      %v651 = vsel %vm544, %v364, 0
      %v654 = vsel %vm544, %v365, 0
      %v657 = vsel %vm544, %v366, 0
      %v660 = vsel %vm544, %v367, 0
      %v663 = vsel %vm544, %v368, 0
      %v666 = vsel %vm544, %v369, 0
      %v669 = vsel %vm544, %v370, 0
      %v672 = vsel %vm544, %v371, 0
      %v675 = vsel %vm544, %v372, 0
      %v678 = vsel %vm544, %v373, 0
      %v681 = vsel %vm544, %v374, 0
      %v684 = vsel %vm544, %v375, 0
      %v687 = vsel %vm544, %v376, 0
      %v690 = vsel %vm544, %v377, 0
      %v693 = vsel %vm544, %v378, 0
      %v696 = vsel %vm544, %v379, 0
      %v699 = vsel %vm544, %v380, 0
      %v702 = vsel %vm544, %v381, 0
      %v705 = vsel %vm544, %v382, 0
      %v708 = vsel %vm544, %v383, 0
      %v711 = vsel %vm544, %v384, 0
      %v714 = vsel %vm544, %v385, 0
      %v717 = vsel %vm544, %v386, 0
      %v720 = vsel %vm544, %v387, 0
      %v723 = vsel %vm544, %v388, 0
      %v726 = vsel %vm544, %v389, 0
      %v729 = vsel %vm544, %v390, 0
      %v732 = vsel %vm544, %v391, 0
      %v735 = vsel %vm544, %v392, 0
      %v738 = vsel %vm544, %v393, 0
      %v741 = vsel %vm544, %v394, 0
      %v744 = vsel %vm544, %v395, 0
      %v747 = vsel %vm544, %v396, 0
      %v750 = vsel %vm544, %v397, 0
      %v753 = vsel %vm544, %v398, 0
      %v756 = vsel %vm544, %v399, 0
      %v759 = vsel %vm544, %v400, 0
      %v762 = vsel %vm544, %v401, 0
      %v765 = vsel %vm544, %v402, 0
      %v768 = vsel %vm544, %v403, 0
      %v771 = vsel %vm544, %v404, 0
      %v774 = vsel %vm544, %v405, 0
      %v777 = vsel %vm544, %v406, 0
      %v780 = vsel %vm544, %v407, 0
      %v783 = vsel %vm544, %v408, 0
      %v786 = vsel %vm544, %v409, 0
      %v789 = vsel %vm544, %v410, 0
      %v792 = vsel %vm544, %v411, 0
      %v795 = vsel %vm544, %v412, 0
      %v798 = vsel %vm544, %v413, 0
      %v801 = vsel %vm544, %v414, 0
      %v804 = vsel %vm544, %v415, 0
      %v807 = vsel %vm544, %v416, 0
      %v810 = vsel %vm544, %v417, 0
      %v813 = vsel %vm544, %v418, 0
      %v816 = vsel %vm544, %v419, 0
      %v819 = vsel %vm544, %v420, 0
      %v822 = vsel %vm544, %v421, 0
      %v825 = vsel %vm544, %v422, 0
      %v828 = vsel %vm544, %v423, 0
      %v831 = vsel %vm544, %v424, 0
      %v834 = vsel %vm544, %v425, 0
      %v837 = vsel %vm544, %v426, 0
      %v840 = vsel %vm544, %v427, 0
      %v843 = vsel %vm544, %v428, 0
      %v846 = vsel %vm544, %v429, 0
      %v849 = vsel %vm544, %v430, 0
      %v852 = vsel %vm544, %v431, 0
      %v855 = vsel %vm544, %v432, 0
      %v858 = vsel %vm544, %v433, 0
      %v861 = vsel %vm544, %v434, 0
      %v864 = vsel %vm544, %v435, 0
      %v867 = vsel %vm544, %v436, 0
      %v870 = vsel %vm544, %v437, 0
      %v873 = vsel %vm544, %v438, 0
      %v876 = vsel %vm544, %v439, 0
      %v879 = vsel %vm544, %v440, 0
      %v882 = vsel %vm544, %v441, 0
      %v885 = vsel %vm544, %v442, 0
      %v888 = vsel %vm544, %v443, 0
      %v891 = vsel %vm544, %v444, 0
      %v894 = vsel %vm544, %v445, 0
      %v897 = vsel %vm544, %v446, 0
      %v900 = vsel %vm544, %v447, 0
      %v903 = vsel %vm544, %v448, 0
      %v906 = vsel %vm544, %v449, 0
      %v909 = vsel %vm544, %v450, 0
      %v912 = vsel %vm544, %v451, 0
      %v915 = vsel %vm544, %v452, 0
      %v918 = vsel %vm544, %v453, 0
      %v921 = vsel %vm544, %v454, 0
      %v924 = vsel %vm544, %v455, 0
      %v927 = vsel %vm544, %v456, 0
      %v930 = vsel %vm544, %v457, 0
      %v933 = vsel %vm544, %v458, 0
      %v936 = vsel %vm544, %v459, 0
      %v939 = vsel %vm544, %v460, 0
      %v942 = vsel %vm544, %v461, 0
      %v945 = vsel %vm544, %v462, 0
      %v948 = vsel %vm544, %v463, 0
      %v951 = vsel %vm544, %v464, 0
      %v954 = vsel %vm544, %v465, 0
      %v957 = vsel %vm544, %v466, 0
      %v960 = vsel %vm544, %v467, 0
      %v963 = vsel %vm544, %v468, 0
      %v966 = vsel %vm544, %v469, 0
      %v969 = vsel %vm544, %v470, 0
      %v972 = vsel %vm544, %v471, 0
      %v975 = vsel %vm544, %v472, 0
      %v978 = vsel %vm544, %v473, 0
      %v981 = vsel %vm544, %v474, 0
      %v984 = vsel %vm544, %v475, 0
      %v987 = vsel %vm544, %v476, 0
      %v990 = vsel %vm544, %v477, 0
      %v993 = vsel %vm544, %v478, 0
      %v996 = vsel %vm544, %v479, 0
      %v999 = vsel %vm544, %v480, 0
      %v1002 = vsel %vm544, %v481, 0
      %v1005 = vsel %vm544, %v482, 0
      %v1008 = vsel %vm544, %v483, 0
      %v1011 = vsel %vm544, %v484, 0
      %v1014 = vsel %vm544, %v485, 0
      %v1017 = vsel %vm544, %v486, 0
      %v1020 = vsel %vm544, %v487, 0
      %v1023 = vsel %vm544, %v488, 0
      %v1026 = vsel %vm544, %v489, 0
      %v1029 = vsel %vm544, %v490, 0
      %v1032 = vsel %vm544, %v491, 0
      %v1035 = vsel %vm544, %v492, 0
      %v1038 = vsel %vm544, %v493, 0
      %v1041 = vsel %vm544, %v494, 0
      %v1044 = vsel %vm544, %v495, 0
      %v1047 = vsel %vm544, %v496, 0
      %v1050 = vsel %vm544, %v497, 0
      %v1053 = vsel %vm544, %v498, 0
      %v1056 = vsel %vm544, %v499, 0
      %v1059 = vsel %vm544, %v500, 0
      %v1062 = vsel %vm544, %v501, 0
      %v1065 = vsel %vm544, %v502, 0
      %v1068 = vsel %vm544, %v503, 0
      %v1071 = vsel %vm544, %v504, 0
      %v1074 = vsel %vm544, %v505, 0
      %v1077 = vsel %vm544, %v506, 0
      %v1080 = vsel %vm544, %v507, 0
      %v1083 = vsel %vm544, %v508, 0
      %v1086 = vsel %vm544, %v509, 0
      %v1089 = vsel %vm544, %v510, 0
      %v1092 = vsel %vm544, %v511, 0
      %v1095 = vsel %vm544, %v512, 0
      %v1098 = vsel %vm544, %v513, 0
      %v1101 = vsel %vm544, %v514, 0
      %v1104 = vsel %vm544, %v515, 0
      %v1107 = vsel %vm544, %v516, 0
      %v1110 = vsel %vm544, %v517, 0
      %v1113 = vsel %vm544, %v518, 0
      %v1116 = vsel %vm544, %v519, 0
      %v1119 = vsel %vm544, %v520, 0
      %v1122 = vsel %vm544, %v521, 0
      %v1125 = vsel %vm544, %v522, 0
      %v1128 = vsel %vm544, %v523, 0
      %v1131 = vsel %vm544, %v524, 0
      %v1134 = vsel %vm544, %v525, 0
      %v1137 = vsel %vm544, %v526, 0
      %v1140 = vsel %vm544, %v527, 0
      %v1143 = vsel %vm544, %v528, 0
      %1145 = vmatprep.subr.mxu0 0.0
      %1146 = vmatpush1.msra.mxu0 %v529
      %1147 = vmatprep.subr.mxu0 0.0
      %1148 = vmatpush1.msra.mxu0 %v530
      %1149 = vmatprep.subr.mxu0 0.0
      %1150 = vmatpush1.msra.mxu0 %v531
      %1151 = vmatprep.subr.mxu0 0.0
      %1152 = vmatpush1.msra.mxu0 %v532
      %1153 = vmatprep.subr.mxu0 0.0
      %1154 = vmatpush1.msra.mxu0 %v533
      %1155 = vmatprep.subr.mxu0 0.0
      %1156 = vmatpush1.msra.mxu0 %v534
      %1157 = vmatprep.subr.mxu0 0.0
      %1158 = vmatpush1.msra.mxu0 %v535
      %1159 = vmatprep.subr.mxu0 0.0
      %1160 = vmatpush1.msra.mxu0 %v536
      %1161 = vmatprep.subr.mxu0 0.0
      %1162 = vmatpush1.msra.mxu0 0.0
      %1163 = vmatprep.subr.mxu0 0.0
      %1164 = vmatpush1.msra.mxu0 0.0
      %1165 = vmatprep.subr.mxu0 0.0
      %1166 = vmatpush1.msra.mxu0 0.0
      %1167 = vmatprep.subr.mxu0 0.0
      %1168 = vmatpush1.msra.mxu0 0.0
      %1169 = vmatprep.subr.mxu0 0.0
      %1170 = vmatpush1.msra.mxu0 0.0
      %1171 = vmatprep.subr.mxu0 0.0
      %1172 = vmatpush1.msra.mxu0 0.0
      %1173 = vmatprep.subr.mxu0 0.0
      %1174 = vmatpush1.msra.mxu0 0.0
      %1175 = vmatprep.subr.mxu0 0.0
      %1176 = vmatpush1.msra.mxu0 0.0
      %1177 = vmatprep.subr.mxu0 0.0
      %1178 = vmatpush1.msra.mxu0 0.0
      %1179 = vmatprep.subr.mxu0 0.0
      %1180 = vmatpush1.msra.mxu0 0.0
      %1181 = vmatprep.subr.mxu0 0.0
      %1182 = vmatpush1.msra.mxu0 0.0
      %1183 = vmatprep.subr.mxu0 0.0
      %1184 = vmatpush1.msra.mxu0 0.0
      %1185 = vmatprep.subr.mxu0 0.0
      %1186 = vmatpush1.msra.mxu0 0.0
      %1187 = vmatprep.subr.mxu0 0.0
      %1188 = vmatpush1.msra.mxu0 0.0
      %1189 = vmatprep.subr.mxu0 0.0
      %1190 = vmatpush1.msra.mxu0 0.0
      %1191 = vmatprep.subr.mxu0 0.0
      %1192 = vmatpush1.msra.mxu0 0.0
      %1193 = vmatprep.subr.mxu0 0.0
      %1194 = vmatpush1.msra.mxu0 0.0
      %1195 = vmatprep.subr.mxu0 0.0
      %1196 = vmatpush1.msra.mxu0 0.0
      %1197 = vmatprep.subr.mxu0 0.0
      %1198 = vmatpush1.msra.mxu0 0.0
      %1199 = vmatprep.subr.mxu0 0.0
      %1200 = vmatpush1.msra.mxu0 0.0
      %1201 = vmatprep.subr.mxu0 0.0
      %1202 = vmatpush1.msra.mxu0 0.0
      %1203 = vmatprep.subr.mxu0 0.0
      %1204 = vmatpush1.msra.mxu0 0.0
      %1205 = vmatprep.subr.mxu0 0.0
      %1206 = vmatpush1.msra.mxu0 0.0
      %1207 = vmatprep.subr.mxu0 0.0
      %1208 = vmatpush1.msra.mxu0 0.0
      %1209 = vmatprep.mubr.f32.mxu0 0.0
      %1210 = vmatmul.mubr.f32.gmra.mrb[0].mxu0 %v546
      %v1211 = vpop.f32.mrb[0].mxu0
      %v1212 = vadd.f32 %v542, %v1211
      %v1213 = vpop.f32.mrb[0].mxu0
      %1214 = vmatprep.mubr.f32.mxu0 0.0
      %1215 = vmatmul.mubr.f32.gmra.mrb[0].mxu0 %v549
      %v1216 = vpop.f32.mrb[0].mxu0
      %v1217 = vadd.f32 %v542, %v1216
      %v1218 = vpop.f32.mrb[0].mxu0
      %1219 = vmatprep.mubr.f32.mxu0 0.0
      %1220 = vmatmul.mubr.f32.gmra.mrb[0].mxu0 %v552
      %v1221 = vpop.f32.mrb[0].mxu0
      %v1222 = vadd.f32 %v542, %v1221
      %v1223 = vpop.f32.mrb[0].mxu0
      %1224 = vmatprep.mubr.f32.mxu0 0.0
      %1225 = vmatmul.mubr.f32.gmra.mrb[0].mxu0 %v555
      %v1226 = vpop.f32.mrb[0].mxu0
      %v1227 = vadd.f32 %v542, %v1226
      %v1228 = vpop.f32.mrb[0].mxu0
      %1229 = vmatprep.mubr.f32.mxu0 0.0
      %1230 = vmatmul.mubr.f32.gmra.mrb[0].mxu0 %v558
      %v1231 = vpop.f32.mrb[0].mxu0
      %v1232 = vadd.f32 %v542, %v1231
      %v1233 = vpop.f32.mrb[0].mxu0
      %1234 = vmatprep.mubr.f32.mxu0 0.0
      %1235 = vmatmul.mubr.f32.gmra.mrb[0].mxu0 %v561
      %v1236 = vpop.f32.mrb[0].mxu0
      %v1237 = vadd.f32 %v542, %v1236
      %v1238 = vpop.f32.mrb[0].mxu0
      %1239 = vmatprep.mubr.f32.mxu0 0.0
      %1240 = vmatmul.mubr.f32.gmra.mrb[0].mxu0 %v564
      %v1241 = vpop.f32.mrb[0].mxu0
      %v1242 = vadd.f32 %v542, %v1241
      %v1243 = vpop.f32.mrb[0].mxu0
      %1244 = vmatprep.mubr.f32.mxu0 0.0
      %1245 = vmatmul.mubr.f32.gmra.mrb[0].mxu0 %v567
      %v1246 = vpop.f32.mrb[0].mxu0
      %v1247 = vadd.f32 %v542, %v1246
      %v1248 = vpop.f32.mrb[0].mxu0
      %1249 = vmatprep.mubr.f32.mxu0 0.0
      %1250 = vmatmul.mubr.f32.gmra.mrb[0].mxu0 %v570
      %v1251 = vpop.f32.mrb[0].mxu0
      %v1252 = vadd.f32 %v542, %v1251
      %v1253 = vpop.f32.mrb[0].mxu0
      %1254 = vmatprep.mubr.f32.mxu0 0.0
      %1255 = vmatmul.mubr.f32.gmra.mrb[0].mxu0 %v573
      %v1256 = vpop.f32.mrb[0].mxu0
      %v1257 = vadd.f32 %v542, %v1256
      %v1258 = vpop.f32.mrb[0].mxu0
      %1259 = vmatprep.mubr.f32.mxu0 0.0
      %1260 = vmatmul.mubr.f32.gmra.mrb[0].mxu0 %v576
      %v1261 = vpop.f32.mrb[0].mxu0
      %v1262 = vadd.f32 %v542, %v1261
      %v1263 = vpop.f32.mrb[0].mxu0
      %1264 = vmatprep.mubr.f32.mxu0 0.0
      %1265 = vmatmul.mubr.f32.gmra.mrb[0].mxu0 %v579
      %v1266 = vpop.f32.mrb[0].mxu0
      %v1267 = vadd.f32 %v542, %v1266
      %v1268 = vpop.f32.mrb[0].mxu0
      %1269 = vmatprep.mubr.f32.mxu0 0.0
      %1270 = vmatmul.mubr.f32.gmra.mrb[0].mxu0 %v582
      %v1271 = vpop.f32.mrb[0].mxu0
      %v1272 = vadd.f32 %v542, %v1271
      %v1273 = vpop.f32.mrb[0].mxu0
      %1274 = vmatprep.mubr.f32.mxu0 0.0
      %1275 = vmatmul.mubr.f32.gmra.mrb[0].mxu0 %v585
      %v1276 = vpop.f32.mrb[0].mxu0
      %v1277 = vadd.f32 %v542, %v1276
      %v1278 = vpop.f32.mrb[0].mxu0
      %1279 = vmatprep.mubr.f32.mxu0 0.0
      %1280 = vmatmul.mubr.f32.gmra.mrb[0].mxu0 %v588
      %v1281 = vpop.f32.mrb[0].mxu0
      %v1282 = vadd.f32 %v542, %v1281
      %v1283 = vpop.f32.mrb[0].mxu0
      %1284 = vmatprep.mubr.f32.mxu0 0.0
      %1285 = vmatmul.mubr.f32.gmra.mrb[0].mxu0 %v591
      %v1286 = vpop.f32.mrb[0].mxu0
      %v1287 = vadd.f32 %v542, %v1286
      %v1288 = vpop.f32.mrb[0].mxu0
      %1289 = vmatprep.mubr.f32.mxu0 0.0
      %1290 = vmatmul.mubr.f32.gmra.mrb[0].mxu0 %v594
      %v1291 = vpop.f32.mrb[0].mxu0
      %v1292 = vadd.f32 %v542, %v1291
      %v1293 = vpop.f32.mrb[0].mxu0
      %1294 = vmatprep.mubr.f32.mxu0 0.0
      %1295 = vmatmul.mubr.f32.gmra.mrb[0].mxu0 %v597
      %v1296 = vpop.f32.mrb[0].mxu0
      %v1297 = vadd.f32 %v542, %v1296
      %v1298 = vpop.f32.mrb[0].mxu0
      %1299 = vmatprep.mubr.f32.mxu0 0.0
      %1300 = vmatmul.mubr.f32.gmra.mrb[0].mxu0 %v600
      %v1301 = vpop.f32.mrb[0].mxu0
      %v1302 = vadd.f32 %v542, %v1301
      %v1303 = vpop.f32.mrb[0].mxu0
      %1304 = vmatprep.mubr.f32.mxu0 0.0
      %1305 = vmatmul.mubr.f32.gmra.mrb[0].mxu0 %v603
      %v1306 = vpop.f32.mrb[0].mxu0
      %v1307 = vadd.f32 %v542, %v1306
      %v1308 = vpop.f32.mrb[0].mxu0
      %1309 = vmatprep.mubr.f32.mxu0 0.0
      %1310 = vmatmul.mubr.f32.gmra.mrb[0].mxu0 %v606
      %v1311 = vpop.f32.mrb[0].mxu0
      %v1312 = vadd.f32 %v542, %v1311
      %v1313 = vpop.f32.mrb[0].mxu0
      %1314 = vmatprep.mubr.f32.mxu0 0.0
      %1315 = vmatmul.mubr.f32.gmra.mrb[0].mxu0 %v609
      %v1316 = vpop.f32.mrb[0].mxu0
      %v1317 = vadd.f32 %v542, %v1316
      %v1318 = vpop.f32.mrb[0].mxu0
      %1319 = vmatprep.mubr.f32.mxu0 0.0
      %1320 = vmatmul.mubr.f32.gmra.mrb[0].mxu0 %v612
      %v1321 = vpop.f32.mrb[0].mxu0
      %v1322 = vadd.f32 %v542, %v1321
      %v1323 = vpop.f32.mrb[0].mxu0
      %1324 = vmatprep.mubr.f32.mxu0 0.0
      %1325 = vmatmul.mubr.f32.gmra.mrb[0].mxu0 %v615
      %v1326 = vpop.f32.mrb[0].mxu0
      %v1327 = vadd.f32 %v542, %v1326
      %v1328 = vpop.f32.mrb[0].mxu0
      %1329 = vmatprep.mubr.f32.mxu0 0.0
      %1330 = vmatmul.mubr.f32.gmra.mrb[0].mxu0 %v618
      %v1331 = vpop.f32.mrb[0].mxu0
      %v1332 = vadd.f32 %v542, %v1331
      %v1333 = vpop.f32.mrb[0].mxu0
      %1334 = vmatprep.mubr.f32.mxu0 0.0
      %1335 = vmatmul.mubr.f32.gmra.mrb[0].mxu0 %v621
      %v1336 = vpop.f32.mrb[0].mxu0
      %v1337 = vadd.f32 %v542, %v1336
      %v1338 = vpop.f32.mrb[0].mxu0
      %1339 = vmatprep.mubr.f32.mxu0 0.0
      %1340 = vmatmul.mubr.f32.gmra.mrb[0].mxu0 %v624
      %v1341 = vpop.f32.mrb[0].mxu0
      %v1342 = vadd.f32 %v542, %v1341
      %v1343 = vpop.f32.mrb[0].mxu0
      %1344 = vmatprep.mubr.f32.mxu0 0.0
      %1345 = vmatmul.mubr.f32.gmra.mrb[0].mxu0 %v627
      %v1346 = vpop.f32.mrb[0].mxu0
      %v1347 = vadd.f32 %v542, %v1346
      %v1348 = vpop.f32.mrb[0].mxu0
      %1349 = vmatprep.mubr.f32.mxu0 0.0
      %1350 = vmatmul.mubr.f32.gmra.mrb[0].mxu0 %v630
      %v1351 = vpop.f32.mrb[0].mxu0
      %v1352 = vadd.f32 %v542, %v1351
      %v1353 = vpop.f32.mrb[0].mxu0
      %1354 = vmatprep.mubr.f32.mxu0 0.0
      %1355 = vmatmul.mubr.f32.gmra.mrb[0].mxu0 %v633
      %v1356 = vpop.f32.mrb[0].mxu0
      %v1357 = vadd.f32 %v542, %v1356
      %v1358 = vpop.f32.mrb[0].mxu0
      %1359 = vmatprep.mubr.f32.mxu0 0.0
      %1360 = vmatmul.mubr.f32.gmra.mrb[0].mxu0 %v636
      %v1361 = vpop.f32.mrb[0].mxu0
      %v1362 = vadd.f32 %v542, %v1361
      %v1363 = vpop.f32.mrb[0].mxu0
      %1364 = vmatprep.mubr.f32.mxu0 0.0
      %1365 = vmatmul.mubr.f32.gmra.mrb[0].mxu0 %v639
      %v1366 = vpop.f32.mrb[0].mxu0
      %v1367 = vadd.f32 %v542, %v1366
      %v1368 = vpop.f32.mrb[0].mxu0
      %1369 = vmatprep.mubr.f32.mxu0 0.0
      %1370 = vmatmul.mubr.f32.gmra.mrb[0].mxu0 %v642
      %v1371 = vpop.f32.mrb[0].mxu0
      %v1372 = vadd.f32 %v542, %v1371
      %v1373 = vpop.f32.mrb[0].mxu0
      %1374 = vmatprep.mubr.f32.mxu0 0.0
      %1375 = vmatmul.mubr.f32.gmra.mrb[0].mxu0 %v645
      %v1376 = vpop.f32.mrb[0].mxu0
      %v1377 = vadd.f32 %v542, %v1376
      %v1378 = vpop.f32.mrb[0].mxu0
      %1379 = vmatprep.mubr.f32.mxu0 0.0
      %1380 = vmatmul.mubr.f32.gmra.mrb[0].mxu0 %v648
      %v1381 = vpop.f32.mrb[0].mxu0
      %v1382 = vadd.f32 %v542, %v1381
      %v1383 = vpop.f32.mrb[0].mxu0
      %1384 = vmatprep.mubr.f32.mxu0 0.0
      %1385 = vmatmul.mubr.f32.gmra.mrb[0].mxu0 %v651
      %v1386 = vpop.f32.mrb[0].mxu0
      %v1387 = vadd.f32 %v542, %v1386
      %v1388 = vpop.f32.mrb[0].mxu0
      %1389 = vmatprep.mubr.f32.mxu0 0.0
      %1390 = vmatmul.mubr.f32.gmra.mrb[0].mxu0 %v654
      %v1391 = vpop.f32.mrb[0].mxu0
      %v1392 = vadd.f32 %v542, %v1391
      %v1393 = vpop.f32.mrb[0].mxu0
      %1394 = vmatprep.mubr.f32.mxu0 0.0
      %1395 = vmatmul.mubr.f32.gmra.mrb[0].mxu0 %v657
      %v1396 = vpop.f32.mrb[0].mxu0
      %v1397 = vadd.f32 %v542, %v1396
      %v1398 = vpop.f32.mrb[0].mxu0
      %1399 = vmatprep.mubr.f32.mxu0 0.0
      %1400 = vmatmul.mubr.f32.gmra.mrb[0].mxu0 %v660
      %v1401 = vpop.f32.mrb[0].mxu0
      %v1402 = vadd.f32 %v542, %v1401
      %v1403 = vpop.f32.mrb[0].mxu0
      %1404 = vmatprep.mubr.f32.mxu0 0.0
      %1405 = vmatmul.mubr.f32.gmra.mrb[0].mxu0 %v663
      %v1406 = vpop.f32.mrb[0].mxu0
      %v1407 = vadd.f32 %v542, %v1406
      %v1408 = vpop.f32.mrb[0].mxu0
      %1409 = vmatprep.mubr.f32.mxu0 0.0
      %1410 = vmatmul.mubr.f32.gmra.mrb[0].mxu0 %v666
      %v1411 = vpop.f32.mrb[0].mxu0
      %v1412 = vadd.f32 %v542, %v1411
      %v1413 = vpop.f32.mrb[0].mxu0
      %1414 = vmatprep.mubr.f32.mxu0 0.0
      %1415 = vmatmul.mubr.f32.gmra.mrb[0].mxu0 %v669
      %v1416 = vpop.f32.mrb[0].mxu0
      %v1417 = vadd.f32 %v542, %v1416
      %v1418 = vpop.f32.mrb[0].mxu0
      %1419 = vmatprep.mubr.f32.mxu0 0.0
      %1420 = vmatmul.mubr.f32.gmra.mrb[0].mxu0 %v672
      %v1421 = vpop.f32.mrb[0].mxu0
      %v1422 = vadd.f32 %v542, %v1421
      %v1423 = vpop.f32.mrb[0].mxu0
      %1424 = vmatprep.mubr.f32.mxu0 0.0
      %1425 = vmatmul.mubr.f32.gmra.mrb[0].mxu0 %v675
      %v1426 = vpop.f32.mrb[0].mxu0
      %v1427 = vadd.f32 %v542, %v1426
      %v1428 = vpop.f32.mrb[0].mxu0
      %1429 = vmatprep.mubr.f32.mxu0 0.0
      %1430 = vmatmul.mubr.f32.gmra.mrb[0].mxu0 %v678
      %v1431 = vpop.f32.mrb[0].mxu0
      %v1432 = vadd.f32 %v542, %v1431
      %v1433 = vpop.f32.mrb[0].mxu0
      %1434 = vmatprep.mubr.f32.mxu0 0.0
      %1435 = vmatmul.mubr.f32.gmra.mrb[0].mxu0 %v681
      %v1436 = vpop.f32.mrb[0].mxu0
      %v1437 = vadd.f32 %v542, %v1436
      %v1438 = vpop.f32.mrb[0].mxu0
      %1439 = vmatprep.mubr.f32.mxu0 0.0
      %1440 = vmatmul.mubr.f32.gmra.mrb[0].mxu0 %v684
      %v1441 = vpop.f32.mrb[0].mxu0
      %v1442 = vadd.f32 %v542, %v1441
      %v1443 = vpop.f32.mrb[0].mxu0
      %1444 = vmatprep.mubr.f32.mxu0 0.0
      %1445 = vmatmul.mubr.f32.gmra.mrb[0].mxu0 %v687
      %v1446 = vpop.f32.mrb[0].mxu0
      %v1447 = vadd.f32 %v542, %v1446
      %v1448 = vpop.f32.mrb[0].mxu0
      %1449 = vmatprep.mubr.f32.mxu0 0.0
      %1450 = vmatmul.mubr.f32.gmra.mrb[0].mxu0 %v690
      %v1451 = vpop.f32.mrb[0].mxu0
      %v1452 = vadd.f32 %v542, %v1451
      %v1453 = vpop.f32.mrb[0].mxu0
      %1454 = vmatprep.mubr.f32.mxu0 0.0
      %1455 = vmatmul.mubr.f32.gmra.mrb[0].mxu0 %v693
      %v1456 = vpop.f32.mrb[0].mxu0
      %v1457 = vadd.f32 %v542, %v1456
      %v1458 = vpop.f32.mrb[0].mxu0
      %1459 = vmatprep.mubr.f32.mxu0 0.0
      %1460 = vmatmul.mubr.f32.gmra.mrb[0].mxu0 %v696
      %v1461 = vpop.f32.mrb[0].mxu0
      %v1462 = vadd.f32 %v542, %v1461
      %v1463 = vpop.f32.mrb[0].mxu0
      %1464 = vmatprep.mubr.f32.mxu0 0.0
      %1465 = vmatmul.mubr.f32.gmra.mrb[0].mxu0 %v699
      %v1466 = vpop.f32.mrb[0].mxu0
      %v1467 = vadd.f32 %v542, %v1466
      %v1468 = vpop.f32.mrb[0].mxu0
      %1469 = vmatprep.mubr.f32.mxu0 0.0
      %1470 = vmatmul.mubr.f32.gmra.mrb[0].mxu0 %v702
      %v1471 = vpop.f32.mrb[0].mxu0
      %v1472 = vadd.f32 %v542, %v1471
      %v1473 = vpop.f32.mrb[0].mxu0
      %1474 = vmatprep.mubr.f32.mxu0 0.0
      %1475 = vmatmul.mubr.f32.gmra.mrb[0].mxu0 %v705
      %v1476 = vpop.f32.mrb[0].mxu0
      %v1477 = vadd.f32 %v542, %v1476
      %v1478 = vpop.f32.mrb[0].mxu0
      %1479 = vmatprep.mubr.f32.mxu0 0.0
      %1480 = vmatmul.mubr.f32.gmra.mrb[0].mxu0 %v708
      %v1481 = vpop.f32.mrb[0].mxu0
      %v1482 = vadd.f32 %v542, %v1481
      %v1483 = vpop.f32.mrb[0].mxu0
      %1484 = vmatprep.mubr.f32.mxu0 0.0
      %1485 = vmatmul.mubr.f32.gmra.mrb[0].mxu0 %v711
      %v1486 = vpop.f32.mrb[0].mxu0
      %v1487 = vadd.f32 %v542, %v1486
      %v1488 = vpop.f32.mrb[0].mxu0
      %1489 = vmatprep.mubr.f32.mxu0 0.0
      %1490 = vmatmul.mubr.f32.gmra.mrb[0].mxu0 %v714
      %v1491 = vpop.f32.mrb[0].mxu0
      %v1492 = vadd.f32 %v542, %v1491
      %v1493 = vpop.f32.mrb[0].mxu0
      %1494 = vmatprep.mubr.f32.mxu0 0.0
      %1495 = vmatmul.mubr.f32.gmra.mrb[0].mxu0 %v717
      %v1496 = vpop.f32.mrb[0].mxu0
      %v1497 = vadd.f32 %v542, %v1496
      %v1498 = vpop.f32.mrb[0].mxu0
      %1499 = vmatprep.mubr.f32.mxu0 0.0
      %1500 = vmatmul.mubr.f32.gmra.mrb[0].mxu0 %v720
      %v1501 = vpop.f32.mrb[0].mxu0
      %v1502 = vadd.f32 %v542, %v1501
      %v1503 = vpop.f32.mrb[0].mxu0
      %1504 = vmatprep.mubr.f32.mxu0 0.0
      %1505 = vmatmul.mubr.f32.gmra.mrb[0].mxu0 %v723
      %v1506 = vpop.f32.mrb[0].mxu0
      %v1507 = vadd.f32 %v542, %v1506
      %v1508 = vpop.f32.mrb[0].mxu0
      %1509 = vmatprep.mubr.f32.mxu0 0.0
      %1510 = vmatmul.mubr.f32.gmra.mrb[0].mxu0 %v726
      %v1511 = vpop.f32.mrb[0].mxu0
      %v1512 = vadd.f32 %v542, %v1511
      %v1513 = vpop.f32.mrb[0].mxu0
      %1514 = vmatprep.mubr.f32.mxu0 0.0
      %1515 = vmatmul.mubr.f32.gmra.mrb[0].mxu0 %v729
      %v1516 = vpop.f32.mrb[0].mxu0
      %v1517 = vadd.f32 %v542, %v1516
      %v1518 = vpop.f32.mrb[0].mxu0
      %1519 = vmatprep.mubr.f32.mxu0 0.0
      %1520 = vmatmul.mubr.f32.gmra.mrb[0].mxu0 %v732
      %v1521 = vpop.f32.mrb[0].mxu0
      %v1522 = vadd.f32 %v542, %v1521
      %v1523 = vpop.f32.mrb[0].mxu0
      %1524 = vmatprep.mubr.f32.mxu0 0.0
      %1525 = vmatmul.mubr.f32.gmra.mrb[0].mxu0 %v735
      %v1526 = vpop.f32.mrb[0].mxu0
      %v1527 = vadd.f32 %v542, %v1526
      %v1528 = vpop.f32.mrb[0].mxu0
      %1529 = vmatprep.mubr.f32.mxu0 0.0
      %1530 = vmatmul.mubr.f32.gmra.mrb[0].mxu0 %v738
      %v1531 = vpop.f32.mrb[0].mxu0
      %v1532 = vadd.f32 %v542, %v1531
      %v1533 = vpop.f32.mrb[0].mxu0
      %1534 = vmatprep.mubr.f32.mxu0 0.0
      %1535 = vmatmul.mubr.f32.gmra.mrb[0].mxu0 %v741
      %v1536 = vpop.f32.mrb[0].mxu0
      %v1537 = vadd.f32 %v542, %v1536
      %v1538 = vpop.f32.mrb[0].mxu0
      %1539 = vmatprep.mubr.f32.mxu0 0.0
      %1540 = vmatmul.mubr.f32.gmra.mrb[0].mxu0 %v744
      %v1541 = vpop.f32.mrb[0].mxu0
      %v1542 = vadd.f32 %v542, %v1541
      %v1543 = vpop.f32.mrb[0].mxu0
      %1544 = vmatprep.mubr.f32.mxu0 0.0
      %1545 = vmatmul.mubr.f32.gmra.mrb[0].mxu0 %v747
      %v1546 = vpop.f32.mrb[0].mxu0
      %v1547 = vadd.f32 %v542, %v1546
      %v1548 = vpop.f32.mrb[0].mxu0
      %1549 = vmatprep.mubr.f32.mxu0 0.0
      %1550 = vmatmul.mubr.f32.gmra.mrb[0].mxu0 %v750
      %v1551 = vpop.f32.mrb[0].mxu0
      %v1552 = vadd.f32 %v542, %v1551
      %v1553 = vpop.f32.mrb[0].mxu0
      %1554 = vmatprep.mubr.f32.mxu0 0.0
      %1555 = vmatmul.mubr.f32.gmra.mrb[0].mxu0 %v753
      %v1556 = vpop.f32.mrb[0].mxu0
      %v1557 = vadd.f32 %v542, %v1556
      %v1558 = vpop.f32.mrb[0].mxu0
      %1559 = vmatprep.mubr.f32.mxu0 0.0
      %1560 = vmatmul.mubr.f32.gmra.mrb[0].mxu0 %v756
      %v1561 = vpop.f32.mrb[0].mxu0
      %v1562 = vadd.f32 %v542, %v1561
      %v1563 = vpop.f32.mrb[0].mxu0
      %1564 = vmatprep.mubr.f32.mxu0 0.0
      %1565 = vmatmul.mubr.f32.gmra.mrb[0].mxu0 %v759
      %v1566 = vpop.f32.mrb[0].mxu0
      %v1567 = vadd.f32 %v542, %v1566
      %v1568 = vpop.f32.mrb[0].mxu0
      %1569 = vmatprep.mubr.f32.mxu0 0.0
      %1570 = vmatmul.mubr.f32.gmra.mrb[0].mxu0 %v762
      %v1571 = vpop.f32.mrb[0].mxu0
      %v1572 = vadd.f32 %v542, %v1571
      %v1573 = vpop.f32.mrb[0].mxu0
      %1574 = vmatprep.mubr.f32.mxu0 0.0
      %1575 = vmatmul.mubr.f32.gmra.mrb[0].mxu0 %v765
      %v1576 = vpop.f32.mrb[0].mxu0
      %v1577 = vadd.f32 %v542, %v1576
      %v1578 = vpop.f32.mrb[0].mxu0
      %1579 = vmatprep.mubr.f32.mxu0 0.0
      %1580 = vmatmul.mubr.f32.gmra.mrb[0].mxu0 %v768
      %v1581 = vpop.f32.mrb[0].mxu0
      %v1582 = vadd.f32 %v542, %v1581
      %v1583 = vpop.f32.mrb[0].mxu0
      %1584 = vmatprep.mubr.f32.mxu0 0.0
      %1585 = vmatmul.mubr.f32.gmra.mrb[0].mxu0 %v771
      %v1586 = vpop.f32.mrb[0].mxu0
      %v1587 = vadd.f32 %v542, %v1586
      %v1588 = vpop.f32.mrb[0].mxu0
      %1589 = vmatprep.mubr.f32.mxu0 0.0
      %1590 = vmatmul.mubr.f32.gmra.mrb[0].mxu0 %v774
      %v1591 = vpop.f32.mrb[0].mxu0
      %v1592 = vadd.f32 %v542, %v1591
      %v1593 = vpop.f32.mrb[0].mxu0
      %1594 = vmatprep.mubr.f32.mxu0 0.0
      %1595 = vmatmul.mubr.f32.gmra.mrb[0].mxu0 %v777
      %v1596 = vpop.f32.mrb[0].mxu0
      %v1597 = vadd.f32 %v542, %v1596
      %v1598 = vpop.f32.mrb[0].mxu0
      %1599 = vmatprep.mubr.f32.mxu0 0.0
      %1600 = vmatmul.mubr.f32.gmra.mrb[0].mxu0 %v780
      %v1601 = vpop.f32.mrb[0].mxu0
      %v1602 = vadd.f32 %v542, %v1601
      %v1603 = vpop.f32.mrb[0].mxu0
      %1604 = vmatprep.mubr.f32.mxu0 0.0
      %1605 = vmatmul.mubr.f32.gmra.mrb[0].mxu0 %v783
      %v1606 = vpop.f32.mrb[0].mxu0
      %v1607 = vadd.f32 %v542, %v1606
      %v1608 = vpop.f32.mrb[0].mxu0
      %1609 = vmatprep.mubr.f32.mxu0 0.0
      %1610 = vmatmul.mubr.f32.gmra.mrb[0].mxu0 %v786
      %v1611 = vpop.f32.mrb[0].mxu0
      %v1612 = vadd.f32 %v542, %v1611
      %v1613 = vpop.f32.mrb[0].mxu0
      %1614 = vmatprep.mubr.f32.mxu0 0.0
      %1615 = vmatmul.mubr.f32.gmra.mrb[0].mxu0 %v789
      %v1616 = vpop.f32.mrb[0].mxu0
      %v1617 = vadd.f32 %v542, %v1616
      %v1618 = vpop.f32.mrb[0].mxu0
      %1619 = vmatprep.mubr.f32.mxu0 0.0
      %1620 = vmatmul.mubr.f32.gmra.mrb[0].mxu0 %v792
      %v1621 = vpop.f32.mrb[0].mxu0
      %v1622 = vadd.f32 %v542, %v1621
      %v1623 = vpop.f32.mrb[0].mxu0
      %1624 = vmatprep.mubr.f32.mxu0 0.0
      %1625 = vmatmul.mubr.f32.gmra.mrb[0].mxu0 %v795
      %v1626 = vpop.f32.mrb[0].mxu0
      %v1627 = vadd.f32 %v542, %v1626
      %v1628 = vpop.f32.mrb[0].mxu0
      %1629 = vmatprep.mubr.f32.mxu0 0.0
      %1630 = vmatmul.mubr.f32.gmra.mrb[0].mxu0 %v798
      %v1631 = vpop.f32.mrb[0].mxu0
      %v1632 = vadd.f32 %v542, %v1631
      %v1633 = vpop.f32.mrb[0].mxu0
      %1634 = vmatprep.mubr.f32.mxu0 0.0
      %1635 = vmatmul.mubr.f32.gmra.mrb[0].mxu0 %v801
      %v1636 = vpop.f32.mrb[0].mxu0
      %v1637 = vadd.f32 %v542, %v1636
      %v1638 = vpop.f32.mrb[0].mxu0
      %1639 = vmatprep.mubr.f32.mxu0 0.0
      %1640 = vmatmul.mubr.f32.gmra.mrb[0].mxu0 %v804
      %v1641 = vpop.f32.mrb[0].mxu0
      %v1642 = vadd.f32 %v542, %v1641
      %v1643 = vpop.f32.mrb[0].mxu0
      %1644 = vmatprep.mubr.f32.mxu0 0.0
      %1645 = vmatmul.mubr.f32.gmra.mrb[0].mxu0 %v807
      %v1646 = vpop.f32.mrb[0].mxu0
      %v1647 = vadd.f32 %v542, %v1646
      %v1648 = vpop.f32.mrb[0].mxu0
      %1649 = vmatprep.mubr.f32.mxu0 0.0
      %1650 = vmatmul.mubr.f32.gmra.mrb[0].mxu0 %v810
      %v1651 = vpop.f32.mrb[0].mxu0
      %v1652 = vadd.f32 %v542, %v1651
      %v1653 = vpop.f32.mrb[0].mxu0
      %1654 = vmatprep.mubr.f32.mxu0 0.0
      %1655 = vmatmul.mubr.f32.gmra.mrb[0].mxu0 %v813
      %v1656 = vpop.f32.mrb[0].mxu0
      %v1657 = vadd.f32 %v542, %v1656
      %v1658 = vpop.f32.mrb[0].mxu0
      %1659 = vmatprep.mubr.f32.mxu0 0.0
      %1660 = vmatmul.mubr.f32.gmra.mrb[0].mxu0 %v816
      %v1661 = vpop.f32.mrb[0].mxu0
      %v1662 = vadd.f32 %v542, %v1661
      %v1663 = vpop.f32.mrb[0].mxu0
      %1664 = vmatprep.mubr.f32.mxu0 0.0
      %1665 = vmatmul.mubr.f32.gmra.mrb[0].mxu0 %v819
      %v1666 = vpop.f32.mrb[0].mxu0
      %v1667 = vadd.f32 %v542, %v1666
      %v1668 = vpop.f32.mrb[0].mxu0
      %1669 = vmatprep.mubr.f32.mxu0 0.0
      %1670 = vmatmul.mubr.f32.gmra.mrb[0].mxu0 %v822
      %v1671 = vpop.f32.mrb[0].mxu0
      %v1672 = vadd.f32 %v542, %v1671
      %v1673 = vpop.f32.mrb[0].mxu0
      %1674 = vmatprep.mubr.f32.mxu0 0.0
      %1675 = vmatmul.mubr.f32.gmra.mrb[0].mxu0 %v825
      %v1676 = vpop.f32.mrb[0].mxu0
      %v1677 = vadd.f32 %v542, %v1676
      %v1678 = vpop.f32.mrb[0].mxu0
      %1679 = vmatprep.mubr.f32.mxu0 0.0
      %1680 = vmatmul.mubr.f32.gmra.mrb[0].mxu0 %v828
      %v1681 = vpop.f32.mrb[0].mxu0
      %v1682 = vadd.f32 %v542, %v1681
      %v1683 = vpop.f32.mrb[0].mxu0
      %1684 = vmatprep.mubr.f32.mxu0 0.0
      %1685 = vmatmul.mubr.f32.gmra.mrb[0].mxu0 %v831
      %v1686 = vpop.f32.mrb[0].mxu0
      %v1687 = vadd.f32 %v542, %v1686
      %v1688 = vpop.f32.mrb[0].mxu0
      %1689 = vmatprep.mubr.f32.mxu0 0.0
      %1690 = vmatmul.mubr.f32.gmra.mrb[0].mxu0 %v834
      %v1691 = vpop.f32.mrb[0].mxu0
      %v1692 = vadd.f32 %v542, %v1691
      %v1693 = vpop.f32.mrb[0].mxu0
      %1694 = vmatprep.mubr.f32.mxu0 0.0
      %1695 = vmatmul.mubr.f32.gmra.mrb[0].mxu0 %v837
      %v1696 = vpop.f32.mrb[0].mxu0
      %v1697 = vadd.f32 %v542, %v1696
      %v1698 = vpop.f32.mrb[0].mxu0
      %1699 = vmatprep.mubr.f32.mxu0 0.0
      %1700 = vmatmul.mubr.f32.gmra.mrb[0].mxu0 %v840
      %v1701 = vpop.f32.mrb[0].mxu0
      %v1702 = vadd.f32 %v542, %v1701
      %v1703 = vpop.f32.mrb[0].mxu0
      %1704 = vmatprep.mubr.f32.mxu0 0.0
      %1705 = vmatmul.mubr.f32.gmra.mrb[0].mxu0 %v843
      %v1706 = vpop.f32.mrb[0].mxu0
      %v1707 = vadd.f32 %v542, %v1706
      %v1708 = vpop.f32.mrb[0].mxu0
      %1709 = vmatprep.mubr.f32.mxu0 0.0
      %1710 = vmatmul.mubr.f32.gmra.mrb[0].mxu0 %v846
      %v1711 = vpop.f32.mrb[0].mxu0
      %v1712 = vadd.f32 %v542, %v1711
      %v1713 = vpop.f32.mrb[0].mxu0
      %1714 = vmatprep.mubr.f32.mxu0 0.0
      %1715 = vmatmul.mubr.f32.gmra.mrb[0].mxu0 %v849
      %v1716 = vpop.f32.mrb[0].mxu0
      %v1717 = vadd.f32 %v542, %v1716
      %v1718 = vpop.f32.mrb[0].mxu0
      %1719 = vmatprep.mubr.f32.mxu0 0.0
      %1720 = vmatmul.mubr.f32.gmra.mrb[0].mxu0 %v852
      %v1721 = vpop.f32.mrb[0].mxu0
      %v1722 = vadd.f32 %v542, %v1721
      %v1723 = vpop.f32.mrb[0].mxu0
      %1724 = vmatprep.mubr.f32.mxu0 0.0
      %1725 = vmatmul.mubr.f32.gmra.mrb[0].mxu0 %v855
      %v1726 = vpop.f32.mrb[0].mxu0
      %v1727 = vadd.f32 %v542, %v1726
      %v1728 = vpop.f32.mrb[0].mxu0
      %1729 = vmatprep.mubr.f32.mxu0 0.0
      %1730 = vmatmul.mubr.f32.gmra.mrb[0].mxu0 %v858
      %v1731 = vpop.f32.mrb[0].mxu0
      %v1732 = vadd.f32 %v542, %v1731
      %v1733 = vpop.f32.mrb[0].mxu0
      %1734 = vmatprep.mubr.f32.mxu0 0.0
      %1735 = vmatmul.mubr.f32.gmra.mrb[0].mxu0 %v861
      %v1736 = vpop.f32.mrb[0].mxu0
      %v1737 = vadd.f32 %v542, %v1736
      %v1738 = vpop.f32.mrb[0].mxu0
      %1739 = vmatprep.mubr.f32.mxu0 0.0
      %1740 = vmatmul.mubr.f32.gmra.mrb[0].mxu0 %v864
      %v1741 = vpop.f32.mrb[0].mxu0
      %v1742 = vadd.f32 %v542, %v1741
      %v1743 = vpop.f32.mrb[0].mxu0
      %1744 = vmatprep.mubr.f32.mxu0 0.0
      %1745 = vmatmul.mubr.f32.gmra.mrb[0].mxu0 %v867
      %v1746 = vpop.f32.mrb[0].mxu0
      %v1747 = vadd.f32 %v542, %v1746
      %v1748 = vpop.f32.mrb[0].mxu0
      %1749 = vmatprep.mubr.f32.mxu0 0.0
      %1750 = vmatmul.mubr.f32.gmra.mrb[0].mxu0 %v870
      %v1751 = vpop.f32.mrb[0].mxu0
      %v1752 = vadd.f32 %v542, %v1751
      %v1753 = vpop.f32.mrb[0].mxu0
      %1754 = vmatprep.mubr.f32.mxu0 0.0
      %1755 = vmatmul.mubr.f32.gmra.mrb[0].mxu0 %v873
      %v1756 = vpop.f32.mrb[0].mxu0
      %v1757 = vadd.f32 %v542, %v1756
      %v1758 = vpop.f32.mrb[0].mxu0
      %1759 = vmatprep.mubr.f32.mxu0 0.0
      %1760 = vmatmul.mubr.f32.gmra.mrb[0].mxu0 %v876
      %v1761 = vpop.f32.mrb[0].mxu0
      %v1762 = vadd.f32 %v542, %v1761
      %v1763 = vpop.f32.mrb[0].mxu0
      %1764 = vmatprep.mubr.f32.mxu0 0.0
      %1765 = vmatmul.mubr.f32.gmra.mrb[0].mxu0 %v879
      %v1766 = vpop.f32.mrb[0].mxu0
      %v1767 = vadd.f32 %v542, %v1766
      %v1768 = vpop.f32.mrb[0].mxu0
      %1769 = vmatprep.mubr.f32.mxu0 0.0
      %1770 = vmatmul.mubr.f32.gmra.mrb[0].mxu0 %v882
      %v1771 = vpop.f32.mrb[0].mxu0
      %v1772 = vadd.f32 %v542, %v1771
      %v1773 = vpop.f32.mrb[0].mxu0
      %1774 = vmatprep.mubr.f32.mxu0 0.0
      %1775 = vmatmul.mubr.f32.gmra.mrb[0].mxu0 %v885
      %v1776 = vpop.f32.mrb[0].mxu0
      %v1777 = vadd.f32 %v542, %v1776
      %v1778 = vpop.f32.mrb[0].mxu0
      %1779 = vmatprep.mubr.f32.mxu0 0.0
      %1780 = vmatmul.mubr.f32.gmra.mrb[0].mxu0 %v888
      %v1781 = vpop.f32.mrb[0].mxu0
      %v1782 = vadd.f32 %v542, %v1781
      %v1783 = vpop.f32.mrb[0].mxu0
      %1784 = vmatprep.mubr.f32.mxu0 0.0
      %1785 = vmatmul.mubr.f32.gmra.mrb[0].mxu0 %v891
      %v1786 = vpop.f32.mrb[0].mxu0
      %v1787 = vadd.f32 %v542, %v1786
      %v1788 = vpop.f32.mrb[0].mxu0
      %1789 = vmatprep.mubr.f32.mxu0 0.0
      %1790 = vmatmul.mubr.f32.gmra.mrb[0].mxu0 %v894
      %v1791 = vpop.f32.mrb[0].mxu0
      %v1792 = vadd.f32 %v542, %v1791
      %v1793 = vpop.f32.mrb[0].mxu0
      %1794 = vmatprep.mubr.f32.mxu0 0.0
      %1795 = vmatmul.mubr.f32.gmra.mrb[0].mxu0 %v897
      %v1796 = vpop.f32.mrb[0].mxu0
      %v1797 = vadd.f32 %v542, %v1796
      %v1798 = vpop.f32.mrb[0].mxu0
      %1799 = vmatprep.mubr.f32.mxu0 0.0
      %1800 = vmatmul.mubr.f32.gmra.mrb[0].mxu0 %v900
      %v1801 = vpop.f32.mrb[0].mxu0
      %v1802 = vadd.f32 %v542, %v1801
      %v1803 = vpop.f32.mrb[0].mxu0
      %1804 = vmatprep.mubr.f32.mxu0 0.0
      %1805 = vmatmul.mubr.f32.gmra.mrb[0].mxu0 %v903
      %v1806 = vpop.f32.mrb[0].mxu0
      %v1807 = vadd.f32 %v542, %v1806
      %v1808 = vpop.f32.mrb[0].mxu0
      %1809 = vmatprep.mubr.f32.mxu0 0.0
      %1810 = vmatmul.mubr.f32.gmra.mrb[0].mxu0 %v906
      %v1811 = vpop.f32.mrb[0].mxu0
      %v1812 = vadd.f32 %v542, %v1811
      %v1813 = vpop.f32.mrb[0].mxu0
      %1814 = vmatprep.mubr.f32.mxu0 0.0
      %1815 = vmatmul.mubr.f32.gmra.mrb[0].mxu0 %v909
      %v1816 = vpop.f32.mrb[0].mxu0
      %v1817 = vadd.f32 %v542, %v1816
      %v1818 = vpop.f32.mrb[0].mxu0
      %1819 = vmatprep.mubr.f32.mxu0 0.0
      %1820 = vmatmul.mubr.f32.gmra.mrb[0].mxu0 %v912
      %v1821 = vpop.f32.mrb[0].mxu0
      %v1822 = vadd.f32 %v542, %v1821
      %v1823 = vpop.f32.mrb[0].mxu0
      %1824 = vmatprep.mubr.f32.mxu0 0.0
      %1825 = vmatmul.mubr.f32.gmra.mrb[0].mxu0 %v915
      %v1826 = vpop.f32.mrb[0].mxu0
      %v1827 = vadd.f32 %v542, %v1826
      %v1828 = vpop.f32.mrb[0].mxu0
      %1829 = vmatprep.mubr.f32.mxu0 0.0
      %1830 = vmatmul.mubr.f32.gmra.mrb[0].mxu0 %v918
      %v1831 = vpop.f32.mrb[0].mxu0
      %v1832 = vadd.f32 %v542, %v1831
      %v1833 = vpop.f32.mrb[0].mxu0
      %1834 = vmatprep.mubr.f32.mxu0 0.0
      %1835 = vmatmul.mubr.f32.gmra.mrb[0].mxu0 %v921
      %v1836 = vpop.f32.mrb[0].mxu0
      %v1837 = vadd.f32 %v542, %v1836
      %v1838 = vpop.f32.mrb[0].mxu0
      %1839 = vmatprep.mubr.f32.mxu0 0.0
      %1840 = vmatmul.mubr.f32.gmra.mrb[0].mxu0 %v924
      %v1841 = vpop.f32.mrb[0].mxu0
      %v1842 = vadd.f32 %v542, %v1841
      %v1843 = vpop.f32.mrb[0].mxu0
      %1844 = vmatprep.mubr.f32.mxu0 0.0
      %1845 = vmatmul.mubr.f32.gmra.mrb[0].mxu0 %v927
      %v1846 = vpop.f32.mrb[0].mxu0
      %v1847 = vadd.f32 %v542, %v1846
      %v1848 = vpop.f32.mrb[0].mxu0
      %1849 = vmatprep.mubr.f32.mxu0 0.0
      %1850 = vmatmul.mubr.f32.gmra.mrb[0].mxu0 %v930
      %v1851 = vpop.f32.mrb[0].mxu0
      %v1852 = vadd.f32 %v542, %v1851
      %v1853 = vpop.f32.mrb[0].mxu0
      %1854 = vmatprep.mubr.f32.mxu0 0.0
      %1855 = vmatmul.mubr.f32.gmra.mrb[0].mxu0 %v933
      %v1856 = vpop.f32.mrb[0].mxu0
      %v1857 = vadd.f32 %v542, %v1856
      %v1858 = vpop.f32.mrb[0].mxu0
      %1859 = vmatprep.mubr.f32.mxu0 0.0
      %1860 = vmatmul.mubr.f32.gmra.mrb[0].mxu0 %v936
      %v1861 = vpop.f32.mrb[0].mxu0
      %v1862 = vadd.f32 %v542, %v1861
      %v1863 = vpop.f32.mrb[0].mxu0
      %1864 = vmatprep.mubr.f32.mxu0 0.0
      %1865 = vmatmul.mubr.f32.gmra.mrb[0].mxu0 %v939
      %v1866 = vpop.f32.mrb[0].mxu0
      %v1867 = vadd.f32 %v542, %v1866
      %v1868 = vpop.f32.mrb[0].mxu0
      %1869 = vmatprep.mubr.f32.mxu0 0.0
      %1870 = vmatmul.mubr.f32.gmra.mrb[0].mxu0 %v942
      %v1871 = vpop.f32.mrb[0].mxu0
      %v1872 = vadd.f32 %v542, %v1871
      %v1873 = vpop.f32.mrb[0].mxu0
      %1874 = vmatprep.mubr.f32.mxu0 0.0
      %1875 = vmatmul.mubr.f32.gmra.mrb[0].mxu0 %v945
      %v1876 = vpop.f32.mrb[0].mxu0
      %v1877 = vadd.f32 %v542, %v1876
      %v1878 = vpop.f32.mrb[0].mxu0
      %1879 = vmatprep.mubr.f32.mxu0 0.0
      %1880 = vmatmul.mubr.f32.gmra.mrb[0].mxu0 %v948
      %v1881 = vpop.f32.mrb[0].mxu0
      %v1882 = vadd.f32 %v542, %v1881
      %v1883 = vpop.f32.mrb[0].mxu0
      %1884 = vmatprep.mubr.f32.mxu0 0.0
      %1885 = vmatmul.mubr.f32.gmra.mrb[0].mxu0 %v951
      %v1886 = vpop.f32.mrb[0].mxu0
      %v1887 = vadd.f32 %v542, %v1886
      %v1888 = vpop.f32.mrb[0].mxu0
      %1889 = vmatprep.mubr.f32.mxu0 0.0
      %1890 = vmatmul.mubr.f32.gmra.mrb[0].mxu0 %v954
      %v1891 = vpop.f32.mrb[0].mxu0
      %v1892 = vadd.f32 %v542, %v1891
      %v1893 = vpop.f32.mrb[0].mxu0
      %1894 = vmatprep.mubr.f32.mxu0 0.0
      %1895 = vmatmul.mubr.f32.gmra.mrb[0].mxu0 %v957
      %v1896 = vpop.f32.mrb[0].mxu0
      %v1897 = vadd.f32 %v542, %v1896
      %v1898 = vpop.f32.mrb[0].mxu0
      %1899 = vmatprep.mubr.f32.mxu0 0.0
      %1900 = vmatmul.mubr.f32.gmra.mrb[0].mxu0 %v960
      %v1901 = vpop.f32.mrb[0].mxu0
      %v1902 = vadd.f32 %v542, %v1901
      %v1903 = vpop.f32.mrb[0].mxu0
      %1904 = vmatprep.mubr.f32.mxu0 0.0
      %1905 = vmatmul.mubr.f32.gmra.mrb[0].mxu0 %v963
      %v1906 = vpop.f32.mrb[0].mxu0
      %v1907 = vadd.f32 %v542, %v1906
      %v1908 = vpop.f32.mrb[0].mxu0
      %1909 = vmatprep.mubr.f32.mxu0 0.0
      %1910 = vmatmul.mubr.f32.gmra.mrb[0].mxu0 %v966
      %v1911 = vpop.f32.mrb[0].mxu0
      %v1912 = vadd.f32 %v542, %v1911
      %v1913 = vpop.f32.mrb[0].mxu0
      %1914 = vmatprep.mubr.f32.mxu0 0.0
      %1915 = vmatmul.mubr.f32.gmra.mrb[0].mxu0 %v969
      %v1916 = vpop.f32.mrb[0].mxu0
      %v1917 = vadd.f32 %v542, %v1916
      %v1918 = vpop.f32.mrb[0].mxu0
      %1919 = vmatprep.mubr.f32.mxu0 0.0
      %1920 = vmatmul.mubr.f32.gmra.mrb[0].mxu0 %v972
      %v1921 = vpop.f32.mrb[0].mxu0
      %v1922 = vadd.f32 %v542, %v1921
      %v1923 = vpop.f32.mrb[0].mxu0
      %1924 = vmatprep.mubr.f32.mxu0 0.0
      %1925 = vmatmul.mubr.f32.gmra.mrb[0].mxu0 %v975
      %v1926 = vpop.f32.mrb[0].mxu0
      %v1927 = vadd.f32 %v542, %v1926
      %v1928 = vpop.f32.mrb[0].mxu0
      %1929 = vmatprep.mubr.f32.mxu0 0.0
      %1930 = vmatmul.mubr.f32.gmra.mrb[0].mxu0 %v978
      %v1931 = vpop.f32.mrb[0].mxu0
      %v1932 = vadd.f32 %v542, %v1931
      %v1933 = vpop.f32.mrb[0].mxu0
      %1934 = vmatprep.mubr.f32.mxu0 0.0
      %1935 = vmatmul.mubr.f32.gmra.mrb[0].mxu0 %v981
      %v1936 = vpop.f32.mrb[0].mxu0
      %v1937 = vadd.f32 %v542, %v1936
      %v1938 = vpop.f32.mrb[0].mxu0
      %1939 = vmatprep.mubr.f32.mxu0 0.0
      %1940 = vmatmul.mubr.f32.gmra.mrb[0].mxu0 %v984
      %v1941 = vpop.f32.mrb[0].mxu0
      %v1942 = vadd.f32 %v542, %v1941
      %v1943 = vpop.f32.mrb[0].mxu0
      %1944 = vmatprep.mubr.f32.mxu0 0.0
      %1945 = vmatmul.mubr.f32.gmra.mrb[0].mxu0 %v987
      %v1946 = vpop.f32.mrb[0].mxu0
      %v1947 = vadd.f32 %v542, %v1946
      %v1948 = vpop.f32.mrb[0].mxu0
      %1949 = vmatprep.mubr.f32.mxu0 0.0
      %1950 = vmatmul.mubr.f32.gmra.mrb[0].mxu0 %v990
      %v1951 = vpop.f32.mrb[0].mxu0
      %v1952 = vadd.f32 %v542, %v1951
      %v1953 = vpop.f32.mrb[0].mxu0
      %1954 = vmatprep.mubr.f32.mxu0 0.0
      %1955 = vmatmul.mubr.f32.gmra.mrb[0].mxu0 %v993
      %v1956 = vpop.f32.mrb[0].mxu0
      %v1957 = vadd.f32 %v542, %v1956
      %v1958 = vpop.f32.mrb[0].mxu0
      %1959 = vmatprep.mubr.f32.mxu0 0.0
      %1960 = vmatmul.mubr.f32.gmra.mrb[0].mxu0 %v996
      %v1961 = vpop.f32.mrb[0].mxu0
      %v1962 = vadd.f32 %v542, %v1961
      %v1963 = vpop.f32.mrb[0].mxu0
      %1964 = vmatprep.mubr.f32.mxu0 0.0
      %1965 = vmatmul.mubr.f32.gmra.mrb[0].mxu0 %v999
      %v1966 = vpop.f32.mrb[0].mxu0
      %v1967 = vadd.f32 %v542, %v1966
      %v1968 = vpop.f32.mrb[0].mxu0
      %1969 = vmatprep.mubr.f32.mxu0 0.0
      %1970 = vmatmul.mubr.f32.gmra.mrb[0].mxu0 %v1002
      %v1971 = vpop.f32.mrb[0].mxu0
      %v1972 = vadd.f32 %v542, %v1971
      %v1973 = vpop.f32.mrb[0].mxu0
      %1974 = vmatprep.mubr.f32.mxu0 0.0
      %1975 = vmatmul.mubr.f32.gmra.mrb[0].mxu0 %v1005
      %v1976 = vpop.f32.mrb[0].mxu0
      %v1977 = vadd.f32 %v542, %v1976
      %v1978 = vpop.f32.mrb[0].mxu0
      %1979 = vmatprep.mubr.f32.mxu0 0.0
      %1980 = vmatmul.mubr.f32.gmra.mrb[0].mxu0 %v1008
      %v1981 = vpop.f32.mrb[0].mxu0
      %v1982 = vadd.f32 %v542, %v1981
      %v1983 = vpop.f32.mrb[0].mxu0
      %1984 = vmatprep.mubr.f32.mxu0 0.0
      %1985 = vmatmul.mubr.f32.gmra.mrb[0].mxu0 %v1011
      %v1986 = vpop.f32.mrb[0].mxu0
      %v1987 = vadd.f32 %v542, %v1986
      %v1988 = vpop.f32.mrb[0].mxu0
      %1989 = vmatprep.mubr.f32.mxu0 0.0
      %1990 = vmatmul.mubr.f32.gmra.mrb[0].mxu0 %v1014
      %v1991 = vpop.f32.mrb[0].mxu0
      %v1992 = vadd.f32 %v542, %v1991
      %v1993 = vpop.f32.mrb[0].mxu0
      %1994 = vmatprep.mubr.f32.mxu0 0.0
      %1995 = vmatmul.mubr.f32.gmra.mrb[0].mxu0 %v1017
      %v1996 = vpop.f32.mrb[0].mxu0
      %v1997 = vadd.f32 %v542, %v1996
      %v1998 = vpop.f32.mrb[0].mxu0
      %1999 = vmatprep.mubr.f32.mxu0 0.0
      %2000 = vmatmul.mubr.f32.gmra.mrb[0].mxu0 %v1020
      %v2001 = vpop.f32.mrb[0].mxu0
      %v2002 = vadd.f32 %v542, %v2001
      %v2003 = vpop.f32.mrb[0].mxu0
      %2004 = vmatprep.mubr.f32.mxu0 0.0
      %2005 = vmatmul.mubr.f32.gmra.mrb[0].mxu0 %v1023
      %v2006 = vpop.f32.mrb[0].mxu0
      %v2007 = vadd.f32 %v542, %v2006
      %v2008 = vpop.f32.mrb[0].mxu0
      %2009 = vmatprep.mubr.f32.mxu0 0.0
      %2010 = vmatmul.mubr.f32.gmra.mrb[0].mxu0 %v1026
      %v2011 = vpop.f32.mrb[0].mxu0
      %v2012 = vadd.f32 %v542, %v2011
      %v2013 = vpop.f32.mrb[0].mxu0
      %2014 = vmatprep.mubr.f32.mxu0 0.0
      %2015 = vmatmul.mubr.f32.gmra.mrb[0].mxu0 %v1029
      %v2016 = vpop.f32.mrb[0].mxu0
      %v2017 = vadd.f32 %v542, %v2016
      %v2018 = vpop.f32.mrb[0].mxu0
      %2019 = vmatprep.mubr.f32.mxu0 0.0
      %2020 = vmatmul.mubr.f32.gmra.mrb[0].mxu0 %v1032
      %v2021 = vpop.f32.mrb[0].mxu0
      %v2022 = vadd.f32 %v542, %v2021
      %v2023 = vpop.f32.mrb[0].mxu0
      %2024 = vmatprep.mubr.f32.mxu0 0.0
      %2025 = vmatmul.mubr.f32.gmra.mrb[0].mxu0 %v1035
      %v2026 = vpop.f32.mrb[0].mxu0
      %v2027 = vadd.f32 %v542, %v2026
      %v2028 = vpop.f32.mrb[0].mxu0
      %2029 = vmatprep.mubr.f32.mxu0 0.0
      %2030 = vmatmul.mubr.f32.gmra.mrb[0].mxu0 %v1038
      %v2031 = vpop.f32.mrb[0].mxu0
      %v2032 = vadd.f32 %v542, %v2031
      %v2033 = vpop.f32.mrb[0].mxu0
      %2034 = vmatprep.mubr.f32.mxu0 0.0
      %2035 = vmatmul.mubr.f32.gmra.mrb[0].mxu0 %v1041
      %v2036 = vpop.f32.mrb[0].mxu0
      %v2037 = vadd.f32 %v542, %v2036
      %v2038 = vpop.f32.mrb[0].mxu0
      %2039 = vmatprep.mubr.f32.mxu0 0.0
      %2040 = vmatmul.mubr.f32.gmra.mrb[0].mxu0 %v1044
      %v2041 = vpop.f32.mrb[0].mxu0
      %v2042 = vadd.f32 %v542, %v2041
      %v2043 = vpop.f32.mrb[0].mxu0
      %2044 = vmatprep.mubr.f32.mxu0 0.0
      %2045 = vmatmul.mubr.f32.gmra.mrb[0].mxu0 %v1047
      %v2046 = vpop.f32.mrb[0].mxu0
      %v2047 = vadd.f32 %v542, %v2046
      %v2048 = vpop.f32.mrb[0].mxu0
      %2049 = vmatprep.mubr.f32.mxu0 0.0
      %2050 = vmatmul.mubr.f32.gmra.mrb[0].mxu0 %v1050
      %v2051 = vpop.f32.mrb[0].mxu0
      %v2052 = vadd.f32 %v542, %v2051
      %v2053 = vpop.f32.mrb[0].mxu0
      %2054 = vmatprep.mubr.f32.mxu0 0.0
      %2055 = vmatmul.mubr.f32.gmra.mrb[0].mxu0 %v1053
      %v2056 = vpop.f32.mrb[0].mxu0
      %v2057 = vadd.f32 %v542, %v2056
      %v2058 = vpop.f32.mrb[0].mxu0
      %2059 = vmatprep.mubr.f32.mxu0 0.0
      %2060 = vmatmul.mubr.f32.gmra.mrb[0].mxu0 %v1056
      %v2061 = vpop.f32.mrb[0].mxu0
      %v2062 = vadd.f32 %v542, %v2061
      %v2063 = vpop.f32.mrb[0].mxu0
      %2064 = vmatprep.mubr.f32.mxu0 0.0
      %2065 = vmatmul.mubr.f32.gmra.mrb[0].mxu0 %v1059
      %v2066 = vpop.f32.mrb[0].mxu0
      %v2067 = vadd.f32 %v542, %v2066
      %v2068 = vpop.f32.mrb[0].mxu0
      %2069 = vmatprep.mubr.f32.mxu0 0.0
      %2070 = vmatmul.mubr.f32.gmra.mrb[0].mxu0 %v1062
      %v2071 = vpop.f32.mrb[0].mxu0
      %v2072 = vadd.f32 %v542, %v2071
      %v2073 = vpop.f32.mrb[0].mxu0
      %2074 = vmatprep.mubr.f32.mxu0 0.0
      %2075 = vmatmul.mubr.f32.gmra.mrb[0].mxu0 %v1065
      %v2076 = vpop.f32.mrb[0].mxu0
      %v2077 = vadd.f32 %v542, %v2076
      %v2078 = vpop.f32.mrb[0].mxu0
      %2079 = vmatprep.mubr.f32.mxu0 0.0
      %2080 = vmatmul.mubr.f32.gmra.mrb[0].mxu0 %v1068
      %v2081 = vpop.f32.mrb[0].mxu0
      %v2082 = vadd.f32 %v542, %v2081
      %v2083 = vpop.f32.mrb[0].mxu0
      %2084 = vmatprep.mubr.f32.mxu0 0.0
      %2085 = vmatmul.mubr.f32.gmra.mrb[0].mxu0 %v1071
      %v2086 = vpop.f32.mrb[0].mxu0
      %v2087 = vadd.f32 %v542, %v2086
      %v2088 = vpop.f32.mrb[0].mxu0
      %2089 = vmatprep.mubr.f32.mxu0 0.0
      %2090 = vmatmul.mubr.f32.gmra.mrb[0].mxu0 %v1074
      %v2091 = vpop.f32.mrb[0].mxu0
      %v2092 = vadd.f32 %v542, %v2091
      %v2093 = vpop.f32.mrb[0].mxu0
      %2094 = vmatprep.mubr.f32.mxu0 0.0
      %2095 = vmatmul.mubr.f32.gmra.mrb[0].mxu0 %v1077
      %v2096 = vpop.f32.mrb[0].mxu0
      %v2097 = vadd.f32 %v542, %v2096
      %v2098 = vpop.f32.mrb[0].mxu0
      %2099 = vmatprep.mubr.f32.mxu0 0.0
      %2100 = vmatmul.mubr.f32.gmra.mrb[0].mxu0 %v1080
      %v2101 = vpop.f32.mrb[0].mxu0
      %v2102 = vadd.f32 %v542, %v2101
      %v2103 = vpop.f32.mrb[0].mxu0
      %2104 = vmatprep.mubr.f32.mxu0 0.0
      %2105 = vmatmul.mubr.f32.gmra.mrb[0].mxu0 %v1083
      %v2106 = vpop.f32.mrb[0].mxu0
      %v2107 = vadd.f32 %v542, %v2106
      %v2108 = vpop.f32.mrb[0].mxu0
      %2109 = vmatprep.mubr.f32.mxu0 0.0
      %2110 = vmatmul.mubr.f32.gmra.mrb[0].mxu0 %v1086
      %v2111 = vpop.f32.mrb[0].mxu0
      %v2112 = vadd.f32 %v542, %v2111
      %v2113 = vpop.f32.mrb[0].mxu0
      %2114 = vmatprep.mubr.f32.mxu0 0.0
      %2115 = vmatmul.mubr.f32.gmra.mrb[0].mxu0 %v1089
      %v2116 = vpop.f32.mrb[0].mxu0
      %v2117 = vadd.f32 %v542, %v2116
      %v2118 = vpop.f32.mrb[0].mxu0
      %2119 = vmatprep.mubr.f32.mxu0 0.0
      %2120 = vmatmul.mubr.f32.gmra.mrb[0].mxu0 %v1092
      %v2121 = vpop.f32.mrb[0].mxu0
      %v2122 = vadd.f32 %v542, %v2121
      %v2123 = vpop.f32.mrb[0].mxu0
      %2124 = vmatprep.mubr.f32.mxu0 0.0
      %2125 = vmatmul.mubr.f32.gmra.mrb[0].mxu0 %v1095
      %v2126 = vpop.f32.mrb[0].mxu0
      %v2127 = vadd.f32 %v542, %v2126
      %v2128 = vpop.f32.mrb[0].mxu0
      %2129 = vmatprep.mubr.f32.mxu0 0.0
      %2130 = vmatmul.mubr.f32.gmra.mrb[0].mxu0 %v1098
      %v2131 = vpop.f32.mrb[0].mxu0
      %v2132 = vadd.f32 %v542, %v2131
      %v2133 = vpop.f32.mrb[0].mxu0
      %2134 = vmatprep.mubr.f32.mxu0 0.0
      %2135 = vmatmul.mubr.f32.gmra.mrb[0].mxu0 %v1101
      %v2136 = vpop.f32.mrb[0].mxu0
      %v2137 = vadd.f32 %v542, %v2136
      %v2138 = vpop.f32.mrb[0].mxu0
      %2139 = vmatprep.mubr.f32.mxu0 0.0
      %2140 = vmatmul.mubr.f32.gmra.mrb[0].mxu0 %v1104
      %v2141 = vpop.f32.mrb[0].mxu0
      %v2142 = vadd.f32 %v542, %v2141
      %v2143 = vpop.f32.mrb[0].mxu0
      %2144 = vmatprep.mubr.f32.mxu0 0.0
      %2145 = vmatmul.mubr.f32.gmra.mrb[0].mxu0 %v1107
      %v2146 = vpop.f32.mrb[0].mxu0
      %v2147 = vadd.f32 %v542, %v2146
      %v2148 = vpop.f32.mrb[0].mxu0
      %2149 = vmatprep.mubr.f32.mxu0 0.0
      %2150 = vmatmul.mubr.f32.gmra.mrb[0].mxu0 %v1110
      %v2151 = vpop.f32.mrb[0].mxu0
      %v2152 = vadd.f32 %v542, %v2151
      %v2153 = vpop.f32.mrb[0].mxu0
      %2154 = vmatprep.mubr.f32.mxu0 0.0
      %2155 = vmatmul.mubr.f32.gmra.mrb[0].mxu0 %v1113
      %v2156 = vpop.f32.mrb[0].mxu0
      %v2157 = vadd.f32 %v542, %v2156
      %v2158 = vpop.f32.mrb[0].mxu0
      %2159 = vmatprep.mubr.f32.mxu0 0.0
      %2160 = vmatmul.mubr.f32.gmra.mrb[0].mxu0 %v1116
      %v2161 = vpop.f32.mrb[0].mxu0
      %v2162 = vadd.f32 %v542, %v2161
      %v2163 = vpop.f32.mrb[0].mxu0
      %2164 = vmatprep.mubr.f32.mxu0 0.0
      %2165 = vmatmul.mubr.f32.gmra.mrb[0].mxu0 %v1119
      %v2166 = vpop.f32.mrb[0].mxu0
      %v2167 = vadd.f32 %v542, %v2166
      %v2168 = vpop.f32.mrb[0].mxu0
      %2169 = vmatprep.mubr.f32.mxu0 0.0
      %2170 = vmatmul.mubr.f32.gmra.mrb[0].mxu0 %v1122
      %v2171 = vpop.f32.mrb[0].mxu0
      %v2172 = vadd.f32 %v542, %v2171
      %v2173 = vpop.f32.mrb[0].mxu0
      %2174 = vmatprep.mubr.f32.mxu0 0.0
      %2175 = vmatmul.mubr.f32.gmra.mrb[0].mxu0 %v1125
      %v2176 = vpop.f32.mrb[0].mxu0
      %v2177 = vadd.f32 %v542, %v2176
      %v2178 = vpop.f32.mrb[0].mxu0
      %2179 = vmatprep.mubr.f32.mxu0 0.0
      %2180 = vmatmul.mubr.f32.gmra.mrb[0].mxu0 %v1128
      %v2181 = vpop.f32.mrb[0].mxu0
      %v2182 = vadd.f32 %v542, %v2181
      %v2183 = vpop.f32.mrb[0].mxu0
      %2184 = vmatprep.mubr.f32.mxu0 0.0
      %2185 = vmatmul.mubr.f32.gmra.mrb[0].mxu0 %v1131
      %v2186 = vpop.f32.mrb[0].mxu0
      %v2187 = vadd.f32 %v542, %v2186
      %v2188 = vpop.f32.mrb[0].mxu0
      %2189 = vmatprep.mubr.f32.mxu0 0.0
      %2190 = vmatmul.mubr.f32.gmra.mrb[0].mxu0 %v1134
      %v2191 = vpop.f32.mrb[0].mxu0
      %v2192 = vadd.f32 %v542, %v2191
      %v2193 = vpop.f32.mrb[0].mxu0
      %2194 = vmatprep.mubr.f32.mxu0 0.0
      %2195 = vmatmul.mubr.f32.gmra.mrb[0].mxu0 %v1137
      %v2196 = vpop.f32.mrb[0].mxu0
      %v2197 = vadd.f32 %v542, %v2196
      %v2198 = vpop.f32.mrb[0].mxu0
      %2199 = vmatprep.mubr.f32.mxu0 0.0
      %2200 = vmatmul.mubr.f32.gmra.mrb[0].mxu0 %v1140
      %v2201 = vpop.f32.mrb[0].mxu0
      %v2202 = vadd.f32 %v542, %v2201
      %v2203 = vpop.f32.mrb[0].mxu0
      %2204 = vmatprep.mubr.f32.mxu0 0.0
      %2205 = vmatmul.mubr.f32.gmra.mrb[0].mxu0 %v1143
      %v2206 = vpop.f32.mrb[0].mxu0
      %v2207 = vadd.f32 %v542, %v2206
      %v2208 = vpop.f32.mrb[0].mxu0
      %2209 = vdwg.mxu0
      %v2210 = vmax.f32 %v1212, 0.0
      %v2211 = vmax.f32 %v1217, 0.0
      %v2212 = vmax.f32 %v1222, 0.0
      %v2213 = vmax.f32 %v1227, 0.0
      %v2214 = vmax.f32 %v1232, 0.0
      %v2215 = vmax.f32 %v1237, 0.0
      %v2216 = vmax.f32 %v1242, 0.0
      %v2217 = vmax.f32 %v1247, 0.0
      %v2218 = vmax.f32 %v1252, 0.0
      %v2219 = vmax.f32 %v1257, 0.0
      %v2220 = vmax.f32 %v1262, 0.0
      %v2221 = vmax.f32 %v1267, 0.0
      %v2222 = vmax.f32 %v1272, 0.0
      %v2223 = vmax.f32 %v1277, 0.0
      %v2224 = vmax.f32 %v1282, 0.0
      %v2225 = vmax.f32 %v1287, 0.0
      %v2226 = vmax.f32 %v1292, 0.0
      %v2227 = vmax.f32 %v1297, 0.0
      %v2228 = vmax.f32 %v1302, 0.0
      %v2229 = vmax.f32 %v1307, 0.0
      %v2230 = vmax.f32 %v1312, 0.0
      %v2231 = vmax.f32 %v1317, 0.0
      %v2232 = vmax.f32 %v1322, 0.0
      %v2233 = vmax.f32 %v1327, 0.0
      %v2234 = vmax.f32 %v1332, 0.0
      %v2235 = vmax.f32 %v1337, 0.0
      %v2236 = vmax.f32 %v1342, 0.0
      %v2237 = vmax.f32 %v1347, 0.0
      %v2238 = vmax.f32 %v1352, 0.0
      %v2239 = vmax.f32 %v1357, 0.0
      %v2240 = vmax.f32 %v1362, 0.0
      %v2241 = vmax.f32 %v1367, 0.0
      %v2242 = vmax.f32 %v1372, 0.0
      %v2243 = vmax.f32 %v1377, 0.0
      %v2244 = vmax.f32 %v1382, 0.0
      %v2245 = vmax.f32 %v1387, 0.0
      %v2246 = vmax.f32 %v1392, 0.0
      %v2247 = vmax.f32 %v1397, 0.0
      %v2248 = vmax.f32 %v1402, 0.0
      %v2249 = vmax.f32 %v1407, 0.0
      %v2250 = vmax.f32 %v1412, 0.0
      %v2251 = vmax.f32 %v1417, 0.0
      %v2252 = vmax.f32 %v1422, 0.0
      %v2253 = vmax.f32 %v1427, 0.0
      %v2254 = vmax.f32 %v1432, 0.0
      %v2255 = vmax.f32 %v1437, 0.0
      %v2256 = vmax.f32 %v1442, 0.0
      %v2257 = vmax.f32 %v1447, 0.0
      %v2258 = vmax.f32 %v1452, 0.0
      %v2259 = vmax.f32 %v1457, 0.0
      %v2260 = vmax.f32 %v1462, 0.0
      %v2261 = vmax.f32 %v1467, 0.0
      %v2262 = vmax.f32 %v1472, 0.0
      %v2263 = vmax.f32 %v1477, 0.0
      %v2264 = vmax.f32 %v1482, 0.0
      %v2265 = vmax.f32 %v1487, 0.0
      %v2266 = vmax.f32 %v1492, 0.0
      %v2267 = vmax.f32 %v1497, 0.0
      %v2268 = vmax.f32 %v1502, 0.0
      %v2269 = vmax.f32 %v1507, 0.0
      %v2270 = vmax.f32 %v1512, 0.0
      %v2271 = vmax.f32 %v1517, 0.0
      %v2272 = vmax.f32 %v1522, 0.0
      %v2273 = vmax.f32 %v1527, 0.0
      %v2274 = vmax.f32 %v1532, 0.0
      %v2275 = vmax.f32 %v1537, 0.0
      %v2276 = vmax.f32 %v1542, 0.0
      %v2277 = vmax.f32 %v1547, 0.0
      %v2278 = vmax.f32 %v1552, 0.0
      %v2279 = vmax.f32 %v1557, 0.0
      %v2280 = vmax.f32 %v1562, 0.0
      %v2281 = vmax.f32 %v1567, 0.0
      %v2282 = vmax.f32 %v1572, 0.0
      %v2283 = vmax.f32 %v1577, 0.0
      %v2284 = vmax.f32 %v1582, 0.0
      %v2285 = vmax.f32 %v1587, 0.0
      %v2286 = vmax.f32 %v1592, 0.0
      %v2287 = vmax.f32 %v1597, 0.0
      %v2288 = vmax.f32 %v1602, 0.0
      %v2289 = vmax.f32 %v1607, 0.0
      %v2290 = vmax.f32 %v1612, 0.0
      %v2291 = vmax.f32 %v1617, 0.0
      %v2292 = vmax.f32 %v1622, 0.0
      %v2293 = vmax.f32 %v1627, 0.0
      %v2294 = vmax.f32 %v1632, 0.0
      %v2295 = vmax.f32 %v1637, 0.0
      %v2296 = vmax.f32 %v1642, 0.0
      %v2297 = vmax.f32 %v1647, 0.0
      %v2298 = vmax.f32 %v1652, 0.0
      %v2299 = vmax.f32 %v1657, 0.0
      %v2300 = vmax.f32 %v1662, 0.0
      %v2301 = vmax.f32 %v1667, 0.0
      %v2302 = vmax.f32 %v1672, 0.0
      %v2303 = vmax.f32 %v1677, 0.0
      %v2304 = vmax.f32 %v1682, 0.0
      %v2305 = vmax.f32 %v1687, 0.0
      %v2306 = vmax.f32 %v1692, 0.0
      %v2307 = vmax.f32 %v1697, 0.0
      %v2308 = vmax.f32 %v1702, 0.0
      %v2309 = vmax.f32 %v1707, 0.0
      %v2310 = vmax.f32 %v1712, 0.0
      %v2311 = vmax.f32 %v1717, 0.0
      %v2312 = vmax.f32 %v1722, 0.0
      %v2313 = vmax.f32 %v1727, 0.0
      %v2314 = vmax.f32 %v1732, 0.0
      %v2315 = vmax.f32 %v1737, 0.0
      %v2316 = vmax.f32 %v1742, 0.0
      %v2317 = vmax.f32 %v1747, 0.0
      %v2318 = vmax.f32 %v1752, 0.0
      %v2319 = vmax.f32 %v1757, 0.0
      %v2320 = vmax.f32 %v1762, 0.0
      %v2321 = vmax.f32 %v1767, 0.0
      %v2322 = vmax.f32 %v1772, 0.0
      %v2323 = vmax.f32 %v1777, 0.0
      %v2324 = vmax.f32 %v1782, 0.0
      %v2325 = vmax.f32 %v1787, 0.0
      %v2326 = vmax.f32 %v1792, 0.0
      %v2327 = vmax.f32 %v1797, 0.0
      %v2328 = vmax.f32 %v1802, 0.0
      %v2329 = vmax.f32 %v1807, 0.0
      %v2330 = vmax.f32 %v1812, 0.0
      %v2331 = vmax.f32 %v1817, 0.0
      %v2332 = vmax.f32 %v1822, 0.0
      %v2333 = vmax.f32 %v1827, 0.0
      %v2334 = vmax.f32 %v1832, 0.0
      %v2335 = vmax.f32 %v1837, 0.0
      %v2336 = vmax.f32 %v1842, 0.0
      %v2337 = vmax.f32 %v1847, 0.0
      %v2338 = vmax.f32 %v1852, 0.0
      %v2339 = vmax.f32 %v1857, 0.0
      %v2340 = vmax.f32 %v1862, 0.0
      %v2341 = vmax.f32 %v1867, 0.0
      %v2342 = vmax.f32 %v1872, 0.0
      %v2343 = vmax.f32 %v1877, 0.0
      %v2344 = vmax.f32 %v1882, 0.0
      %v2345 = vmax.f32 %v1887, 0.0
      %v2346 = vmax.f32 %v1892, 0.0
      %v2347 = vmax.f32 %v1897, 0.0
      %v2348 = vmax.f32 %v1902, 0.0
      %v2349 = vmax.f32 %v1907, 0.0
      %v2350 = vmax.f32 %v1912, 0.0
      %v2351 = vmax.f32 %v1917, 0.0
      %v2352 = vmax.f32 %v1922, 0.0
      %v2353 = vmax.f32 %v1927, 0.0
      %v2354 = vmax.f32 %v1932, 0.0
      %v2355 = vmax.f32 %v1937, 0.0
      %v2356 = vmax.f32 %v1942, 0.0
      %v2357 = vmax.f32 %v1947, 0.0
      %v2358 = vmax.f32 %v1952, 0.0
      %v2359 = vmax.f32 %v1957, 0.0
      %v2360 = vmax.f32 %v1962, 0.0
      %v2361 = vmax.f32 %v1967, 0.0
      %v2362 = vmax.f32 %v1972, 0.0
      %v2363 = vmax.f32 %v1977, 0.0
      %v2364 = vmax.f32 %v1982, 0.0
      %v2365 = vmax.f32 %v1987, 0.0
      %v2366 = vmax.f32 %v1992, 0.0
      %v2367 = vmax.f32 %v1997, 0.0
      %v2368 = vmax.f32 %v2002, 0.0
      %v2369 = vmax.f32 %v2007, 0.0
      %v2370 = vmax.f32 %v2012, 0.0
      %v2371 = vmax.f32 %v2017, 0.0
      %v2372 = vmax.f32 %v2022, 0.0
      %v2373 = vmax.f32 %v2027, 0.0
      %v2374 = vmax.f32 %v2032, 0.0
      %v2375 = vmax.f32 %v2037, 0.0
      %v2376 = vmax.f32 %v2042, 0.0
      %v2377 = vmax.f32 %v2047, 0.0
      %v2378 = vmax.f32 %v2052, 0.0
      %v2379 = vmax.f32 %v2057, 0.0
      %v2380 = vmax.f32 %v2062, 0.0
      %v2381 = vmax.f32 %v2067, 0.0
      %v2382 = vmax.f32 %v2072, 0.0
      %v2383 = vmax.f32 %v2077, 0.0
      %v2384 = vmax.f32 %v2082, 0.0
      %v2385 = vmax.f32 %v2087, 0.0
      %v2386 = vmax.f32 %v2092, 0.0
      %v2387 = vmax.f32 %v2097, 0.0
      %v2388 = vmax.f32 %v2102, 0.0
      %v2389 = vmax.f32 %v2107, 0.0
      %v2390 = vmax.f32 %v2112, 0.0
      %v2391 = vmax.f32 %v2117, 0.0
      %v2392 = vmax.f32 %v2122, 0.0
      %v2393 = vmax.f32 %v2127, 0.0
      %v2394 = vmax.f32 %v2132, 0.0
      %v2395 = vmax.f32 %v2137, 0.0
      %v2396 = vmax.f32 %v2142, 0.0
      %v2397 = vmax.f32 %v2147, 0.0
      %v2398 = vmax.f32 %v2152, 0.0
      %v2399 = vmax.f32 %v2157, 0.0
      %v2400 = vmax.f32 %v2162, 0.0
      %v2401 = vmax.f32 %v2167, 0.0
      %v2402 = vmax.f32 %v2172, 0.0
      %v2403 = vmax.f32 %v2177, 0.0
      %v2404 = vmax.f32 %v2182, 0.0
      %v2405 = vmax.f32 %v2187, 0.0
      %v2406 = vmax.f32 %v2192, 0.0
      %v2407 = vmax.f32 %v2197, 0.0
      %v2408 = vmax.f32 %v2202, 0.0
      %v2409 = vmax.f32 %v2207, 0.0
      %v2610 = vcombine.high %v2210, %v2210
      %v2611 = vcombine.high %v2211, %v2211
      %v2612 = vcombine.high %v2212, %v2212
      %v2613 = vcombine.high %v2213, %v2213
      %v2614 = vcombine.high %v2214, %v2214
      %v2615 = vcombine.high %v2215, %v2215
      %v2616 = vcombine.high %v2216, %v2216
      %v2617 = vcombine.high %v2217, %v2217
      %v2618 = vcombine.high %v2218, %v2218
      %v2619 = vcombine.high %v2219, %v2219
      %v2620 = vcombine.high %v2220, %v2220
      %v2621 = vcombine.high %v2221, %v2221
      %v2622 = vcombine.high %v2222, %v2222
      %v2623 = vcombine.high %v2223, %v2223
      %v2624 = vcombine.high %v2224, %v2224
      %v2625 = vcombine.high %v2225, %v2225
      %v2626 = vcombine.high %v2226, %v2226
      %v2627 = vcombine.high %v2227, %v2227
      %v2628 = vcombine.high %v2228, %v2228
      %v2629 = vcombine.high %v2229, %v2229
      %v2630 = vcombine.high %v2230, %v2230
      %v2631 = vcombine.high %v2231, %v2231
      %v2632 = vcombine.high %v2232, %v2232
      %v2633 = vcombine.high %v2233, %v2233
      %v2634 = vcombine.high %v2234, %v2234
      %v2635 = vcombine.high %v2235, %v2235
      %v2636 = vcombine.high %v2236, %v2236
      %v2637 = vcombine.high %v2237, %v2237
      %v2638 = vcombine.high %v2238, %v2238
      %v2639 = vcombine.high %v2239, %v2239
      %v2640 = vcombine.high %v2240, %v2240
      %v2641 = vcombine.high %v2241, %v2241
      %v2642 = vcombine.high %v2242, %v2242
      %v2643 = vcombine.high %v2243, %v2243
      %v2644 = vcombine.high %v2244, %v2244
      %v2645 = vcombine.high %v2245, %v2245
      %v2646 = vcombine.high %v2246, %v2246
      %v2647 = vcombine.high %v2247, %v2247
      %v2648 = vcombine.high %v2248, %v2248
      %v2649 = vcombine.high %v2249, %v2249
      %v2650 = vcombine.high %v2250, %v2250
      %v2651 = vcombine.high %v2251, %v2251
      %v2652 = vcombine.high %v2252, %v2252
      %v2653 = vcombine.high %v2253, %v2253
      %v2654 = vcombine.high %v2254, %v2254
      %v2655 = vcombine.high %v2255, %v2255
      %v2656 = vcombine.high %v2256, %v2256
      %v2657 = vcombine.high %v2257, %v2257
      %v2658 = vcombine.high %v2258, %v2258
      %v2659 = vcombine.high %v2259, %v2259
      %v2660 = vcombine.high %v2260, %v2260
      %v2661 = vcombine.high %v2261, %v2261
      %v2662 = vcombine.high %v2262, %v2262
      %v2663 = vcombine.high %v2263, %v2263
      %v2664 = vcombine.high %v2264, %v2264
      %v2665 = vcombine.high %v2265, %v2265
      %v2666 = vcombine.high %v2266, %v2266
      %v2667 = vcombine.high %v2267, %v2267
      %v2668 = vcombine.high %v2268, %v2268
      %v2669 = vcombine.high %v2269, %v2269
      %v2670 = vcombine.high %v2270, %v2270
      %v2671 = vcombine.high %v2271, %v2271
      %v2672 = vcombine.high %v2272, %v2272
      %v2673 = vcombine.high %v2273, %v2273
      %v2674 = vcombine.high %v2274, %v2274
      %v2675 = vcombine.high %v2275, %v2275
      %v2676 = vcombine.high %v2276, %v2276
      %v2677 = vcombine.high %v2277, %v2277
      %v2678 = vcombine.high %v2278, %v2278
      %v2679 = vcombine.high %v2279, %v2279
      %v2680 = vcombine.high %v2280, %v2280
      %v2681 = vcombine.high %v2281, %v2281
      %v2682 = vcombine.high %v2282, %v2282
      %v2683 = vcombine.high %v2283, %v2283
      %v2684 = vcombine.high %v2284, %v2284
      %v2685 = vcombine.high %v2285, %v2285
      %v2686 = vcombine.high %v2286, %v2286
      %v2687 = vcombine.high %v2287, %v2287
      %v2688 = vcombine.high %v2288, %v2288
      %v2689 = vcombine.high %v2289, %v2289
      %v2690 = vcombine.high %v2290, %v2290
      %v2691 = vcombine.high %v2291, %v2291
      %v2692 = vcombine.high %v2292, %v2292
      %v2693 = vcombine.high %v2293, %v2293
      %v2694 = vcombine.high %v2294, %v2294
      %v2695 = vcombine.high %v2295, %v2295
      %v2696 = vcombine.high %v2296, %v2296
      %v2697 = vcombine.high %v2297, %v2297
      %v2698 = vcombine.high %v2298, %v2298
      %v2699 = vcombine.high %v2299, %v2299
      %v2700 = vcombine.high %v2300, %v2300
      %v2701 = vcombine.high %v2301, %v2301
      %v2702 = vcombine.high %v2302, %v2302
      %v2703 = vcombine.high %v2303, %v2303
      %v2704 = vcombine.high %v2304, %v2304
      %v2705 = vcombine.high %v2305, %v2305
      %v2706 = vcombine.high %v2306, %v2306
      %v2707 = vcombine.high %v2307, %v2307
      %v2708 = vcombine.high %v2308, %v2308
      %v2709 = vcombine.high %v2309, %v2309
      %v2710 = vcombine.high %v2310, %v2310
      %v2711 = vcombine.high %v2311, %v2311
      %v2712 = vcombine.high %v2312, %v2312
      %v2713 = vcombine.high %v2313, %v2313
      %v2714 = vcombine.high %v2314, %v2314
      %v2715 = vcombine.high %v2315, %v2315
      %v2716 = vcombine.high %v2316, %v2316
      %v2717 = vcombine.high %v2317, %v2317
      %v2718 = vcombine.high %v2318, %v2318
      %v2719 = vcombine.high %v2319, %v2319
      %v2720 = vcombine.high %v2320, %v2320
      %v2721 = vcombine.high %v2321, %v2321
      %v2722 = vcombine.high %v2322, %v2322
      %v2723 = vcombine.high %v2323, %v2323
      %v2724 = vcombine.high %v2324, %v2324
      %v2725 = vcombine.high %v2325, %v2325
      %v2726 = vcombine.high %v2326, %v2326
      %v2727 = vcombine.high %v2327, %v2327
      %v2728 = vcombine.high %v2328, %v2328
      %v2729 = vcombine.high %v2329, %v2329
      %v2730 = vcombine.high %v2330, %v2330
      %v2731 = vcombine.high %v2331, %v2331
      %v2732 = vcombine.high %v2332, %v2332
      %v2733 = vcombine.high %v2333, %v2333
      %v2734 = vcombine.high %v2334, %v2334
      %v2735 = vcombine.high %v2335, %v2335
      %v2736 = vcombine.high %v2336, %v2336
      %v2737 = vcombine.high %v2337, %v2337
      %v2738 = vcombine.high %v2338, %v2338
      %v2739 = vcombine.high %v2339, %v2339
      %v2740 = vcombine.high %v2340, %v2340
      %v2741 = vcombine.high %v2341, %v2341
      %v2742 = vcombine.high %v2342, %v2342
      %v2743 = vcombine.high %v2343, %v2343
      %v2744 = vcombine.high %v2344, %v2344
      %v2745 = vcombine.high %v2345, %v2345
      %v2746 = vcombine.high %v2346, %v2346
      %v2747 = vcombine.high %v2347, %v2347
      %v2748 = vcombine.high %v2348, %v2348
      %v2749 = vcombine.high %v2349, %v2349
      %v2750 = vcombine.high %v2350, %v2350
      %v2751 = vcombine.high %v2351, %v2351
      %v2752 = vcombine.high %v2352, %v2352
      %v2753 = vcombine.high %v2353, %v2353
      %v2754 = vcombine.high %v2354, %v2354
      %v2755 = vcombine.high %v2355, %v2355
      %v2756 = vcombine.high %v2356, %v2356
      %v2757 = vcombine.high %v2357, %v2357
      %v2758 = vcombine.high %v2358, %v2358
      %v2759 = vcombine.high %v2359, %v2359
      %v2760 = vcombine.high %v2360, %v2360
      %v2761 = vcombine.high %v2361, %v2361
      %v2762 = vcombine.high %v2362, %v2362
      %v2763 = vcombine.high %v2363, %v2363
      %v2764 = vcombine.high %v2364, %v2364
      %v2765 = vcombine.high %v2365, %v2365
      %v2766 = vcombine.high %v2366, %v2366
      %v2767 = vcombine.high %v2367, %v2367
      %v2768 = vcombine.high %v2368, %v2368
      %v2769 = vcombine.high %v2369, %v2369
      %v2770 = vcombine.high %v2370, %v2370
      %v2771 = vcombine.high %v2371, %v2371
      %v2772 = vcombine.high %v2372, %v2372
      %v2773 = vcombine.high %v2373, %v2373
      %v2774 = vcombine.high %v2374, %v2374
      %v2775 = vcombine.high %v2375, %v2375
      %v2776 = vcombine.high %v2376, %v2376
      %v2777 = vcombine.high %v2377, %v2377
      %v2778 = vcombine.high %v2378, %v2378
      %v2779 = vcombine.high %v2379, %v2379
      %v2780 = vcombine.high %v2380, %v2380
      %v2781 = vcombine.high %v2381, %v2381
      %v2782 = vcombine.high %v2382, %v2382
      %v2783 = vcombine.high %v2383, %v2383
      %v2784 = vcombine.high %v2384, %v2384
      %v2785 = vcombine.high %v2385, %v2385
      %v2786 = vcombine.high %v2386, %v2386
      %v2787 = vcombine.high %v2387, %v2387
      %v2788 = vcombine.high %v2388, %v2388
      %v2789 = vcombine.high %v2389, %v2389
      %v2790 = vcombine.high %v2390, %v2390
      %v2791 = vcombine.high %v2391, %v2391
      %v2792 = vcombine.high %v2392, %v2392
      %v2793 = vcombine.high %v2393, %v2393
      %v2794 = vcombine.high %v2394, %v2394
      %v2795 = vcombine.high %v2395, %v2395
      %v2796 = vcombine.high %v2396, %v2396
      %v2797 = vcombine.high %v2397, %v2397
      %v2798 = vcombine.high %v2398, %v2398
      %v2799 = vcombine.high %v2399, %v2399
      %v2800 = vcombine.high %v2400, %v2400
      %v2801 = vcombine.high %v2401, %v2401
      %v2802 = vcombine.high %v2402, %v2402
      %v2803 = vcombine.high %v2403, %v2403
      %v2804 = vcombine.high %v2404, %v2404
      %v2805 = vcombine.high %v2405, %v2405
      %v2806 = vcombine.high %v2406, %v2406
      %v2807 = vcombine.high %v2407, %v2407
      %v2808 = vcombine.high %v2408, %v2408
      %v2809 = vcombine.high %v2409, %v2409
      %vm3010 = vcmask 257024
      %v3011 = vsel %vm3010, %v2210, -inf
      %v3012 = vsel %vm3010, %v2612, -inf
      %v3013 = vmax.f32 %v3011, %v3012
      %v3014 = vsel %vm3010, %v2215, -inf
      %v3015 = vmax.f32 %v3013, %v3014
      %v3016 = vsel %vm3010, %v2617, -inf
      %v3017 = vmax.f32 %v3015, %v3016
      %v3018 = vsel %vm3010, %v2220, -inf
      %v3019 = vmax.f32 %v3017, %v3018
      %v3020 = vsel %vm3010, %v2622, -inf
      %v3021 = vmax.f32 %v3019, %v3020
      %v3022 = vsel %vm3010, %v2225, -inf
      %v3023 = vmax.f32 %v3021, %v3022
      %v3024 = vsel %vm3010, %v2627, -inf
      %v3025 = vmax.f32 %v3023, %v3024
      %v3026 = vsel %vm3010, %v2230, -inf
      %v3027 = vmax.f32 %v3025, %v3026
      %v3028 = vsel %vm3010, %v2632, -inf
      %v3029 = vmax.f32 %v3027, %v3028
      %v3030 = vsel %vm3010, %v2610, -inf
      %v3031 = vsel %vm3010, %v2213, -inf
      %v3032 = vmax.f32 %v3030, %v3031
      %v3033 = vsel %vm3010, %v2615, -inf
      %v3034 = vmax.f32 %v3032, %v3033
      %v3035 = vsel %vm3010, %v2218, -inf
      %v3036 = vmax.f32 %v3034, %v3035
      %v3037 = vsel %vm3010, %v2620, -inf
      %v3038 = vmax.f32 %v3036, %v3037
      %v3039 = vsel %vm3010, %v2223, -inf
      %v3040 = vmax.f32 %v3038, %v3039
      %v3041 = vsel %vm3010, %v2625, -inf
      %v3042 = vmax.f32 %v3040, %v3041
      %v3043 = vsel %vm3010, %v2228, -inf
      %v3044 = vmax.f32 %v3042, %v3043
      %v3045 = vsel %vm3010, %v2630, -inf
      %v3046 = vmax.f32 %v3044, %v3045
      %v3047 = vsel %vm3010, %v2233, -inf
      %v3048 = vmax.f32 %v3046, %v3047
      %v3049 = vsel %vm3010, %v2211, -inf
      %v3050 = vsel %vm3010, %v2613, -inf
      %v3051 = vmax.f32 %v3049, %v3050
      %v3052 = vsel %vm3010, %v2216, -inf
      %v3053 = vmax.f32 %v3051, %v3052
      %v3054 = vsel %vm3010, %v2618, -inf
      %v3055 = vmax.f32 %v3053, %v3054
      %v3056 = vsel %vm3010, %v2221, -inf
      %v3057 = vmax.f32 %v3055, %v3056
      %v3058 = vsel %vm3010, %v2623, -inf
      %v3059 = vmax.f32 %v3057, %v3058
      %v3060 = vsel %vm3010, %v2226, -inf
      %v3061 = vmax.f32 %v3059, %v3060
      %v3062 = vsel %vm3010, %v2628, -inf
      %v3063 = vmax.f32 %v3061, %v3062
      %v3064 = vsel %vm3010, %v2231, -inf
      %v3065 = vmax.f32 %v3063, %v3064
      %v3066 = vsel %vm3010, %v2633, -inf
      %v3067 = vmax.f32 %v3065, %v3066
      %v3068 = vsel %vm3010, %v2611, -inf
      %v3069 = vsel %vm3010, %v2214, -inf
      %v3070 = vmax.f32 %v3068, %v3069
      %v3071 = vsel %vm3010, %v2616, -inf
      %v3072 = vmax.f32 %v3070, %v3071
      %v3073 = vsel %vm3010, %v2219, -inf
      %v3074 = vmax.f32 %v3072, %v3073
      %v3075 = vsel %vm3010, %v2621, -inf
      %v3076 = vmax.f32 %v3074, %v3075
      %v3077 = vsel %vm3010, %v2224, -inf
      %v3078 = vmax.f32 %v3076, %v3077
      %v3079 = vsel %vm3010, %v2626, -inf
      %v3080 = vmax.f32 %v3078, %v3079
      %v3081 = vsel %vm3010, %v2229, -inf
      %v3082 = vmax.f32 %v3080, %v3081
      %v3083 = vsel %vm3010, %v2631, -inf
      %v3084 = vmax.f32 %v3082, %v3083
      %v3085 = vsel %vm3010, %v2234, -inf
      %v3086 = vmax.f32 %v3084, %v3085
      %v3087 = vsel %vm3010, %v2212, -inf
      %v3088 = vsel %vm3010, %v2614, -inf
      %v3089 = vmax.f32 %v3087, %v3088
      %v3090 = vsel %vm3010, %v2217, -inf
      %v3091 = vmax.f32 %v3089, %v3090
      %v3092 = vsel %vm3010, %v2619, -inf
      %v3093 = vmax.f32 %v3091, %v3092
      %v3094 = vsel %vm3010, %v2222, -inf
      %v3095 = vmax.f32 %v3093, %v3094
      %v3096 = vsel %vm3010, %v2624, -inf
      %v3097 = vmax.f32 %v3095, %v3096
      %v3098 = vsel %vm3010, %v2227, -inf
      %v3099 = vmax.f32 %v3097, %v3098
      %v3100 = vsel %vm3010, %v2629, -inf
      %v3101 = vmax.f32 %v3099, %v3100
      %v3102 = vsel %vm3010, %v2232, -inf
      %v3103 = vmax.f32 %v3101, %v3102
      %v3104 = vsel %vm3010, %v2634, -inf
      %v3105 = vmax.f32 %v3103, %v3104
      %v3106 = vsel %vm3010, %v2235, -inf
      %v3107 = vsel %vm3010, %v2637, -inf
      %v3108 = vmax.f32 %v3106, %v3107
      %v3109 = vsel %vm3010, %v2240, -inf
      %v3110 = vmax.f32 %v3108, %v3109
      %v3111 = vsel %vm3010, %v2642, -inf
      %v3112 = vmax.f32 %v3110, %v3111
      %v3113 = vsel %vm3010, %v2245, -inf
      %v3114 = vmax.f32 %v3112, %v3113
      %v3115 = vsel %vm3010, %v2647, -inf
      %v3116 = vmax.f32 %v3114, %v3115
      %v3117 = vsel %vm3010, %v2250, -inf
      %v3118 = vmax.f32 %v3116, %v3117
      %v3119 = vsel %vm3010, %v2652, -inf
      %v3120 = vmax.f32 %v3118, %v3119
      %v3121 = vsel %vm3010, %v2255, -inf
      %v3122 = vmax.f32 %v3120, %v3121
      %v3123 = vsel %vm3010, %v2657, -inf
      %v3124 = vmax.f32 %v3122, %v3123
      %v3125 = vsel %vm3010, %v2635, -inf
      %v3126 = vsel %vm3010, %v2238, -inf
      %v3127 = vmax.f32 %v3125, %v3126
      %v3128 = vsel %vm3010, %v2640, -inf
      %v3129 = vmax.f32 %v3127, %v3128
      %v3130 = vsel %vm3010, %v2243, -inf
      %v3131 = vmax.f32 %v3129, %v3130
      %v3132 = vsel %vm3010, %v2645, -inf
      %v3133 = vmax.f32 %v3131, %v3132
      %v3134 = vsel %vm3010, %v2248, -inf
      %v3135 = vmax.f32 %v3133, %v3134
      %v3136 = vsel %vm3010, %v2650, -inf
      %v3137 = vmax.f32 %v3135, %v3136
      %v3138 = vsel %vm3010, %v2253, -inf
      %v3139 = vmax.f32 %v3137, %v3138
      %v3140 = vsel %vm3010, %v2655, -inf
      %v3141 = vmax.f32 %v3139, %v3140
      %v3142 = vsel %vm3010, %v2258, -inf
      %v3143 = vmax.f32 %v3141, %v3142
      %v3144 = vsel %vm3010, %v2236, -inf
      %v3145 = vsel %vm3010, %v2638, -inf
      %v3146 = vmax.f32 %v3144, %v3145
      %v3147 = vsel %vm3010, %v2241, -inf
      %v3148 = vmax.f32 %v3146, %v3147
      %v3149 = vsel %vm3010, %v2643, -inf
      %v3150 = vmax.f32 %v3148, %v3149
      %v3151 = vsel %vm3010, %v2246, -inf
      %v3152 = vmax.f32 %v3150, %v3151
      %v3153 = vsel %vm3010, %v2648, -inf
      %v3154 = vmax.f32 %v3152, %v3153
      %v3155 = vsel %vm3010, %v2251, -inf
      %v3156 = vmax.f32 %v3154, %v3155
      %v3157 = vsel %vm3010, %v2653, -inf
      %v3158 = vmax.f32 %v3156, %v3157
      %v3159 = vsel %vm3010, %v2256, -inf
      %v3160 = vmax.f32 %v3158, %v3159
      %v3161 = vsel %vm3010, %v2658, -inf
      %v3162 = vmax.f32 %v3160, %v3161
      %v3163 = vsel %vm3010, %v2636, -inf
      %v3164 = vsel %vm3010, %v2239, -inf
      %v3165 = vmax.f32 %v3163, %v3164
      %v3166 = vsel %vm3010, %v2641, -inf
      %v3167 = vmax.f32 %v3165, %v3166
      %v3168 = vsel %vm3010, %v2244, -inf
      %v3169 = vmax.f32 %v3167, %v3168
      %v3170 = vsel %vm3010, %v2646, -inf
      %v3171 = vmax.f32 %v3169, %v3170
      %v3172 = vsel %vm3010, %v2249, -inf
      %v3173 = vmax.f32 %v3171, %v3172
      %v3174 = vsel %vm3010, %v2651, -inf
      %v3175 = vmax.f32 %v3173, %v3174
      %v3176 = vsel %vm3010, %v2254, -inf
      %v3177 = vmax.f32 %v3175, %v3176
      %v3178 = vsel %vm3010, %v2656, -inf
      %v3179 = vmax.f32 %v3177, %v3178
      %v3180 = vsel %vm3010, %v2259, -inf
      %v3181 = vmax.f32 %v3179, %v3180
      %v3182 = vsel %vm3010, %v2237, -inf
      %v3183 = vsel %vm3010, %v2639, -inf
      %v3184 = vmax.f32 %v3182, %v3183
      %v3185 = vsel %vm3010, %v2242, -inf
      %v3186 = vmax.f32 %v3184, %v3185
      %v3187 = vsel %vm3010, %v2644, -inf
      %v3188 = vmax.f32 %v3186, %v3187
      %v3189 = vsel %vm3010, %v2247, -inf
      %v3190 = vmax.f32 %v3188, %v3189
      %v3191 = vsel %vm3010, %v2649, -inf
      %v3192 = vmax.f32 %v3190, %v3191
      %v3193 = vsel %vm3010, %v2252, -inf
      %v3194 = vmax.f32 %v3192, %v3193
      %v3195 = vsel %vm3010, %v2654, -inf
      %v3196 = vmax.f32 %v3194, %v3195
      %v3197 = vsel %vm3010, %v2257, -inf
      %v3198 = vmax.f32 %v3196, %v3197
      %v3199 = vsel %vm3010, %v2659, -inf
      %v3200 = vmax.f32 %v3198, %v3199
      %v3201 = vsel %vm3010, %v2260, -inf
      %v3202 = vsel %vm3010, %v2662, -inf
      %v3203 = vmax.f32 %v3201, %v3202
      %v3204 = vsel %vm3010, %v2265, -inf
      %v3205 = vmax.f32 %v3203, %v3204
      %v3206 = vsel %vm3010, %v2667, -inf
      %v3207 = vmax.f32 %v3205, %v3206
      %v3208 = vsel %vm3010, %v2270, -inf
      %v3209 = vmax.f32 %v3207, %v3208
      %v3210 = vsel %vm3010, %v2672, -inf
      %v3211 = vmax.f32 %v3209, %v3210
      %v3212 = vsel %vm3010, %v2275, -inf
      %v3213 = vmax.f32 %v3211, %v3212
      %v3214 = vsel %vm3010, %v2677, -inf
      %v3215 = vmax.f32 %v3213, %v3214
      %v3216 = vsel %vm3010, %v2280, -inf
      %v3217 = vmax.f32 %v3215, %v3216
      %v3218 = vsel %vm3010, %v2682, -inf
      %v3219 = vmax.f32 %v3217, %v3218
      %v3220 = vsel %vm3010, %v2660, -inf
      %v3221 = vsel %vm3010, %v2263, -inf
      %v3222 = vmax.f32 %v3220, %v3221
      %v3223 = vsel %vm3010, %v2665, -inf
      %v3224 = vmax.f32 %v3222, %v3223
      %v3225 = vsel %vm3010, %v2268, -inf
      %v3226 = vmax.f32 %v3224, %v3225
      %v3227 = vsel %vm3010, %v2670, -inf
      %v3228 = vmax.f32 %v3226, %v3227
      %v3229 = vsel %vm3010, %v2273, -inf
      %v3230 = vmax.f32 %v3228, %v3229
      %v3231 = vsel %vm3010, %v2675, -inf
      %v3232 = vmax.f32 %v3230, %v3231
      %v3233 = vsel %vm3010, %v2278, -inf
      %v3234 = vmax.f32 %v3232, %v3233
      %v3235 = vsel %vm3010, %v2680, -inf
      %v3236 = vmax.f32 %v3234, %v3235
      %v3237 = vsel %vm3010, %v2283, -inf
      %v3238 = vmax.f32 %v3236, %v3237
      %v3239 = vsel %vm3010, %v2261, -inf
      %v3240 = vsel %vm3010, %v2663, -inf
      %v3241 = vmax.f32 %v3239, %v3240
      %v3242 = vsel %vm3010, %v2266, -inf
      %v3243 = vmax.f32 %v3241, %v3242
      %v3244 = vsel %vm3010, %v2668, -inf
      %v3245 = vmax.f32 %v3243, %v3244
      %v3246 = vsel %vm3010, %v2271, -inf
      %v3247 = vmax.f32 %v3245, %v3246
      %v3248 = vsel %vm3010, %v2673, -inf
      %v3249 = vmax.f32 %v3247, %v3248
      %v3250 = vsel %vm3010, %v2276, -inf
      %v3251 = vmax.f32 %v3249, %v3250
      %v3252 = vsel %vm3010, %v2678, -inf
      %v3253 = vmax.f32 %v3251, %v3252
      %v3254 = vsel %vm3010, %v2281, -inf
      %v3255 = vmax.f32 %v3253, %v3254
      %v3256 = vsel %vm3010, %v2683, -inf
      %v3257 = vmax.f32 %v3255, %v3256
      %v3258 = vsel %vm3010, %v2661, -inf
      %v3259 = vsel %vm3010, %v2264, -inf
      %v3260 = vmax.f32 %v3258, %v3259
      %v3261 = vsel %vm3010, %v2666, -inf
      %v3262 = vmax.f32 %v3260, %v3261
      %v3263 = vsel %vm3010, %v2269, -inf
      %v3264 = vmax.f32 %v3262, %v3263
      %v3265 = vsel %vm3010, %v2671, -inf
      %v3266 = vmax.f32 %v3264, %v3265
      %v3267 = vsel %vm3010, %v2274, -inf
      %v3268 = vmax.f32 %v3266, %v3267
      %v3269 = vsel %vm3010, %v2676, -inf
      %v3270 = vmax.f32 %v3268, %v3269
      %v3271 = vsel %vm3010, %v2279, -inf
      %v3272 = vmax.f32 %v3270, %v3271
      %v3273 = vsel %vm3010, %v2681, -inf
      %v3274 = vmax.f32 %v3272, %v3273
      %v3275 = vsel %vm3010, %v2284, -inf
      %v3276 = vmax.f32 %v3274, %v3275
      %v3277 = vsel %vm3010, %v2262, -inf
      %v3278 = vsel %vm3010, %v2664, -inf
      %v3279 = vmax.f32 %v3277, %v3278
      %v3280 = vsel %vm3010, %v2267, -inf
      %v3281 = vmax.f32 %v3279, %v3280
      %v3282 = vsel %vm3010, %v2669, -inf
      %v3283 = vmax.f32 %v3281, %v3282
      %v3284 = vsel %vm3010, %v2272, -inf
      %v3285 = vmax.f32 %v3283, %v3284
      %v3286 = vsel %vm3010, %v2674, -inf
      %v3287 = vmax.f32 %v3285, %v3286
      %v3288 = vsel %vm3010, %v2277, -inf
      %v3289 = vmax.f32 %v3287, %v3288
      %v3290 = vsel %vm3010, %v2679, -inf
      %v3291 = vmax.f32 %v3289, %v3290
      %v3292 = vsel %vm3010, %v2282, -inf
      %v3293 = vmax.f32 %v3291, %v3292
      %v3294 = vsel %vm3010, %v2684, -inf
      %v3295 = vmax.f32 %v3293, %v3294
      %v3296 = vsel %vm3010, %v2285, -inf
      %v3297 = vsel %vm3010, %v2687, -inf
      %v3298 = vmax.f32 %v3296, %v3297
      %v3299 = vsel %vm3010, %v2290, -inf
      %v3300 = vmax.f32 %v3298, %v3299
      %v3301 = vsel %vm3010, %v2692, -inf
      %v3302 = vmax.f32 %v3300, %v3301
      %v3303 = vsel %vm3010, %v2295, -inf
      %v3304 = vmax.f32 %v3302, %v3303
      %v3305 = vsel %vm3010, %v2697, -inf
      %v3306 = vmax.f32 %v3304, %v3305
      %v3307 = vsel %vm3010, %v2300, -inf
      %v3308 = vmax.f32 %v3306, %v3307
      %v3309 = vsel %vm3010, %v2702, -inf
      %v3310 = vmax.f32 %v3308, %v3309
      %v3311 = vsel %vm3010, %v2305, -inf
      %v3312 = vmax.f32 %v3310, %v3311
      %v3313 = vsel %vm3010, %v2707, -inf
      %v3314 = vmax.f32 %v3312, %v3313
      %v3315 = vsel %vm3010, %v2685, -inf
      %v3316 = vsel %vm3010, %v2288, -inf
      %v3317 = vmax.f32 %v3315, %v3316
      %v3318 = vsel %vm3010, %v2690, -inf
      %v3319 = vmax.f32 %v3317, %v3318
      %v3320 = vsel %vm3010, %v2293, -inf
      %v3321 = vmax.f32 %v3319, %v3320
      %v3322 = vsel %vm3010, %v2695, -inf
      %v3323 = vmax.f32 %v3321, %v3322
      %v3324 = vsel %vm3010, %v2298, -inf
      %v3325 = vmax.f32 %v3323, %v3324
      %v3326 = vsel %vm3010, %v2700, -inf
      %v3327 = vmax.f32 %v3325, %v3326
      %v3328 = vsel %vm3010, %v2303, -inf
      %v3329 = vmax.f32 %v3327, %v3328
      %v3330 = vsel %vm3010, %v2705, -inf
      %v3331 = vmax.f32 %v3329, %v3330
      %v3332 = vsel %vm3010, %v2308, -inf
      %v3333 = vmax.f32 %v3331, %v3332
      %v3334 = vsel %vm3010, %v2286, -inf
      %v3335 = vsel %vm3010, %v2688, -inf
      %v3336 = vmax.f32 %v3334, %v3335
      %v3337 = vsel %vm3010, %v2291, -inf
      %v3338 = vmax.f32 %v3336, %v3337
      %v3339 = vsel %vm3010, %v2693, -inf
      %v3340 = vmax.f32 %v3338, %v3339
      %v3341 = vsel %vm3010, %v2296, -inf
      %v3342 = vmax.f32 %v3340, %v3341
      %v3343 = vsel %vm3010, %v2698, -inf
      %v3344 = vmax.f32 %v3342, %v3343
      %v3345 = vsel %vm3010, %v2301, -inf
      %v3346 = vmax.f32 %v3344, %v3345
      %v3347 = vsel %vm3010, %v2703, -inf
      %v3348 = vmax.f32 %v3346, %v3347
      %v3349 = vsel %vm3010, %v2306, -inf
      %v3350 = vmax.f32 %v3348, %v3349
      %v3351 = vsel %vm3010, %v2708, -inf
      %v3352 = vmax.f32 %v3350, %v3351
      %v3353 = vsel %vm3010, %v2686, -inf
      %v3354 = vsel %vm3010, %v2289, -inf
      %v3355 = vmax.f32 %v3353, %v3354
      %v3356 = vsel %vm3010, %v2691, -inf
      %v3357 = vmax.f32 %v3355, %v3356
      %v3358 = vsel %vm3010, %v2294, -inf
      %v3359 = vmax.f32 %v3357, %v3358
      %v3360 = vsel %vm3010, %v2696, -inf
      %v3361 = vmax.f32 %v3359, %v3360
      %v3362 = vsel %vm3010, %v2299, -inf
      %v3363 = vmax.f32 %v3361, %v3362
      %v3364 = vsel %vm3010, %v2701, -inf
      %v3365 = vmax.f32 %v3363, %v3364
      %v3366 = vsel %vm3010, %v2304, -inf
      %v3367 = vmax.f32 %v3365, %v3366
      %v3368 = vsel %vm3010, %v2706, -inf
      %v3369 = vmax.f32 %v3367, %v3368
      %v3370 = vsel %vm3010, %v2309, -inf
      %v3371 = vmax.f32 %v3369, %v3370
      %v3372 = vsel %vm3010, %v2287, -inf
      %v3373 = vsel %vm3010, %v2689, -inf
      %v3374 = vmax.f32 %v3372, %v3373
      %v3375 = vsel %vm3010, %v2292, -inf
      %v3376 = vmax.f32 %v3374, %v3375
      %v3377 = vsel %vm3010, %v2694, -inf
      %v3378 = vmax.f32 %v3376, %v3377
      %v3379 = vsel %vm3010, %v2297, -inf
      %v3380 = vmax.f32 %v3378, %v3379
      %v3381 = vsel %vm3010, %v2699, -inf
      %v3382 = vmax.f32 %v3380, %v3381
      %v3383 = vsel %vm3010, %v2302, -inf
      %v3384 = vmax.f32 %v3382, %v3383
      %v3385 = vsel %vm3010, %v2704, -inf
      %v3386 = vmax.f32 %v3384, %v3385
      %v3387 = vsel %vm3010, %v2307, -inf
      %v3388 = vmax.f32 %v3386, %v3387
      %v3389 = vsel %vm3010, %v2709, -inf
      %v3390 = vmax.f32 %v3388, %v3389
      %v3391 = vsel %vm3010, %v2310, -inf
      %v3392 = vsel %vm3010, %v2712, -inf
      %v3393 = vmax.f32 %v3391, %v3392
      %v3394 = vsel %vm3010, %v2315, -inf
      %v3395 = vmax.f32 %v3393, %v3394
      %v3396 = vsel %vm3010, %v2717, -inf
      %v3397 = vmax.f32 %v3395, %v3396
      %v3398 = vsel %vm3010, %v2320, -inf
      %v3399 = vmax.f32 %v3397, %v3398
      %v3400 = vsel %vm3010, %v2722, -inf
      %v3401 = vmax.f32 %v3399, %v3400
      %v3402 = vsel %vm3010, %v2325, -inf
      %v3403 = vmax.f32 %v3401, %v3402
      %v3404 = vsel %vm3010, %v2727, -inf
      %v3405 = vmax.f32 %v3403, %v3404
      %v3406 = vsel %vm3010, %v2330, -inf
      %v3407 = vmax.f32 %v3405, %v3406
      %v3408 = vsel %vm3010, %v2732, -inf
      %v3409 = vmax.f32 %v3407, %v3408
      %v3410 = vsel %vm3010, %v2710, -inf
      %v3411 = vsel %vm3010, %v2313, -inf
      %v3412 = vmax.f32 %v3410, %v3411
      %v3413 = vsel %vm3010, %v2715, -inf
      %v3414 = vmax.f32 %v3412, %v3413
      %v3415 = vsel %vm3010, %v2318, -inf
      %v3416 = vmax.f32 %v3414, %v3415
      %v3417 = vsel %vm3010, %v2720, -inf
      %v3418 = vmax.f32 %v3416, %v3417
      %v3419 = vsel %vm3010, %v2323, -inf
      %v3420 = vmax.f32 %v3418, %v3419
      %v3421 = vsel %vm3010, %v2725, -inf
      %v3422 = vmax.f32 %v3420, %v3421
      %v3423 = vsel %vm3010, %v2328, -inf
      %v3424 = vmax.f32 %v3422, %v3423
      %v3425 = vsel %vm3010, %v2730, -inf
      %v3426 = vmax.f32 %v3424, %v3425
      %v3427 = vsel %vm3010, %v2333, -inf
      %v3428 = vmax.f32 %v3426, %v3427
      %v3429 = vsel %vm3010, %v2311, -inf
      %v3430 = vsel %vm3010, %v2713, -inf
      %v3431 = vmax.f32 %v3429, %v3430
      %v3432 = vsel %vm3010, %v2316, -inf
      %v3433 = vmax.f32 %v3431, %v3432
      %v3434 = vsel %vm3010, %v2718, -inf
      %v3435 = vmax.f32 %v3433, %v3434
      %v3436 = vsel %vm3010, %v2321, -inf
      %v3437 = vmax.f32 %v3435, %v3436
      %v3438 = vsel %vm3010, %v2723, -inf
      %v3439 = vmax.f32 %v3437, %v3438
      %v3440 = vsel %vm3010, %v2326, -inf
      %v3441 = vmax.f32 %v3439, %v3440
      %v3442 = vsel %vm3010, %v2728, -inf
      %v3443 = vmax.f32 %v3441, %v3442
      %v3444 = vsel %vm3010, %v2331, -inf
      %v3445 = vmax.f32 %v3443, %v3444
      %v3446 = vsel %vm3010, %v2733, -inf
      %v3447 = vmax.f32 %v3445, %v3446
      %v3448 = vsel %vm3010, %v2711, -inf
      %v3449 = vsel %vm3010, %v2314, -inf
      %v3450 = vmax.f32 %v3448, %v3449
      %v3451 = vsel %vm3010, %v2716, -inf
      %v3452 = vmax.f32 %v3450, %v3451
      %v3453 = vsel %vm3010, %v2319, -inf
      %v3454 = vmax.f32 %v3452, %v3453
      %v3455 = vsel %vm3010, %v2721, -inf
      %v3456 = vmax.f32 %v3454, %v3455
      %v3457 = vsel %vm3010, %v2324, -inf
      %v3458 = vmax.f32 %v3456, %v3457
      %v3459 = vsel %vm3010, %v2726, -inf
      %v3460 = vmax.f32 %v3458, %v3459
      %v3461 = vsel %vm3010, %v2329, -inf
      %v3462 = vmax.f32 %v3460, %v3461
      %v3463 = vsel %vm3010, %v2731, -inf
      %v3464 = vmax.f32 %v3462, %v3463
      %v3465 = vsel %vm3010, %v2334, -inf
      %v3466 = vmax.f32 %v3464, %v3465
      %v3467 = vsel %vm3010, %v2312, -inf
      %v3468 = vsel %vm3010, %v2714, -inf
      %v3469 = vmax.f32 %v3467, %v3468
      %v3470 = vsel %vm3010, %v2317, -inf
      %v3471 = vmax.f32 %v3469, %v3470
      %v3472 = vsel %vm3010, %v2719, -inf
      %v3473 = vmax.f32 %v3471, %v3472
      %v3474 = vsel %vm3010, %v2322, -inf
      %v3475 = vmax.f32 %v3473, %v3474
      %v3476 = vsel %vm3010, %v2724, -inf
      %v3477 = vmax.f32 %v3475, %v3476
      %v3478 = vsel %vm3010, %v2327, -inf
      %v3479 = vmax.f32 %v3477, %v3478
      %v3480 = vsel %vm3010, %v2729, -inf
      %v3481 = vmax.f32 %v3479, %v3480
      %v3482 = vsel %vm3010, %v2332, -inf
      %v3483 = vmax.f32 %v3481, %v3482
      %v3484 = vsel %vm3010, %v2734, -inf
      %v3485 = vmax.f32 %v3483, %v3484
      %v3486 = vsel %vm3010, %v2335, -inf
      %v3487 = vsel %vm3010, %v2737, -inf
      %v3488 = vmax.f32 %v3486, %v3487
      %v3489 = vsel %vm3010, %v2340, -inf
      %v3490 = vmax.f32 %v3488, %v3489
      %v3491 = vsel %vm3010, %v2742, -inf
      %v3492 = vmax.f32 %v3490, %v3491
      %v3493 = vsel %vm3010, %v2345, -inf
      %v3494 = vmax.f32 %v3492, %v3493
      %v3495 = vsel %vm3010, %v2747, -inf
      %v3496 = vmax.f32 %v3494, %v3495
      %v3497 = vsel %vm3010, %v2350, -inf
      %v3498 = vmax.f32 %v3496, %v3497
      %v3499 = vsel %vm3010, %v2752, -inf
      %v3500 = vmax.f32 %v3498, %v3499
      %v3501 = vsel %vm3010, %v2355, -inf
      %v3502 = vmax.f32 %v3500, %v3501
      %v3503 = vsel %vm3010, %v2757, -inf
      %v3504 = vmax.f32 %v3502, %v3503
      %v3505 = vsel %vm3010, %v2735, -inf
      %v3506 = vsel %vm3010, %v2338, -inf
      %v3507 = vmax.f32 %v3505, %v3506
      %v3508 = vsel %vm3010, %v2740, -inf
      %v3509 = vmax.f32 %v3507, %v3508
      %v3510 = vsel %vm3010, %v2343, -inf
      %v3511 = vmax.f32 %v3509, %v3510
      %v3512 = vsel %vm3010, %v2745, -inf
      %v3513 = vmax.f32 %v3511, %v3512
      %v3514 = vsel %vm3010, %v2348, -inf
      %v3515 = vmax.f32 %v3513, %v3514
      %v3516 = vsel %vm3010, %v2750, -inf
      %v3517 = vmax.f32 %v3515, %v3516
      %v3518 = vsel %vm3010, %v2353, -inf
      %v3519 = vmax.f32 %v3517, %v3518
      %v3520 = vsel %vm3010, %v2755, -inf
      %v3521 = vmax.f32 %v3519, %v3520
      %v3522 = vsel %vm3010, %v2358, -inf
      %v3523 = vmax.f32 %v3521, %v3522
      %v3524 = vsel %vm3010, %v2336, -inf
      %v3525 = vsel %vm3010, %v2738, -inf
      %v3526 = vmax.f32 %v3524, %v3525
      %v3527 = vsel %vm3010, %v2341, -inf
      %v3528 = vmax.f32 %v3526, %v3527
      %v3529 = vsel %vm3010, %v2743, -inf
      %v3530 = vmax.f32 %v3528, %v3529
      %v3531 = vsel %vm3010, %v2346, -inf
      %v3532 = vmax.f32 %v3530, %v3531
      %v3533 = vsel %vm3010, %v2748, -inf
      %v3534 = vmax.f32 %v3532, %v3533
      %v3535 = vsel %vm3010, %v2351, -inf
      %v3536 = vmax.f32 %v3534, %v3535
      %v3537 = vsel %vm3010, %v2753, -inf
      %v3538 = vmax.f32 %v3536, %v3537
      %v3539 = vsel %vm3010, %v2356, -inf
      %v3540 = vmax.f32 %v3538, %v3539
      %v3541 = vsel %vm3010, %v2758, -inf
      %v3542 = vmax.f32 %v3540, %v3541
      %v3543 = vsel %vm3010, %v2736, -inf
      %v3544 = vsel %vm3010, %v2339, -inf
      %v3545 = vmax.f32 %v3543, %v3544
      %v3546 = vsel %vm3010, %v2741, -inf
      %v3547 = vmax.f32 %v3545, %v3546
      %v3548 = vsel %vm3010, %v2344, -inf
      %v3549 = vmax.f32 %v3547, %v3548
      %v3550 = vsel %vm3010, %v2746, -inf
      %v3551 = vmax.f32 %v3549, %v3550
      %v3552 = vsel %vm3010, %v2349, -inf
      %v3553 = vmax.f32 %v3551, %v3552
      %v3554 = vsel %vm3010, %v2751, -inf
      %v3555 = vmax.f32 %v3553, %v3554
      %v3556 = vsel %vm3010, %v2354, -inf
      %v3557 = vmax.f32 %v3555, %v3556
      %v3558 = vsel %vm3010, %v2756, -inf
      %v3559 = vmax.f32 %v3557, %v3558
      %v3560 = vsel %vm3010, %v2359, -inf
      %v3561 = vmax.f32 %v3559, %v3560
      %v3562 = vsel %vm3010, %v2337, -inf
      %v3563 = vsel %vm3010, %v2739, -inf
      %v3564 = vmax.f32 %v3562, %v3563
      %v3565 = vsel %vm3010, %v2342, -inf
      %v3566 = vmax.f32 %v3564, %v3565
      %v3567 = vsel %vm3010, %v2744, -inf
      %v3568 = vmax.f32 %v3566, %v3567
      %v3569 = vsel %vm3010, %v2347, -inf
      %v3570 = vmax.f32 %v3568, %v3569
      %v3571 = vsel %vm3010, %v2749, -inf
      %v3572 = vmax.f32 %v3570, %v3571
      %v3573 = vsel %vm3010, %v2352, -inf
      %v3574 = vmax.f32 %v3572, %v3573
      %v3575 = vsel %vm3010, %v2754, -inf
      %v3576 = vmax.f32 %v3574, %v3575
      %v3577 = vsel %vm3010, %v2357, -inf
      %v3578 = vmax.f32 %v3576, %v3577
      %v3579 = vsel %vm3010, %v2759, -inf
      %v3580 = vmax.f32 %v3578, %v3579
      %v3581 = vsel %vm3010, %v2360, -inf
      %v3582 = vsel %vm3010, %v2762, -inf
      %v3583 = vmax.f32 %v3581, %v3582
      %v3584 = vsel %vm3010, %v2365, -inf
      %v3585 = vmax.f32 %v3583, %v3584
      %v3586 = vsel %vm3010, %v2767, -inf
      %v3587 = vmax.f32 %v3585, %v3586
      %v3588 = vsel %vm3010, %v2370, -inf
      %v3589 = vmax.f32 %v3587, %v3588
      %v3590 = vsel %vm3010, %v2772, -inf
      %v3591 = vmax.f32 %v3589, %v3590
      %v3592 = vsel %vm3010, %v2375, -inf
      %v3593 = vmax.f32 %v3591, %v3592
      %v3594 = vsel %vm3010, %v2777, -inf
      %v3595 = vmax.f32 %v3593, %v3594
      %v3596 = vsel %vm3010, %v2380, -inf
      %v3597 = vmax.f32 %v3595, %v3596
      %v3598 = vsel %vm3010, %v2782, -inf
      %v3599 = vmax.f32 %v3597, %v3598
      %v3600 = vsel %vm3010, %v2760, -inf
      %v3601 = vsel %vm3010, %v2363, -inf
      %v3602 = vmax.f32 %v3600, %v3601
      %v3603 = vsel %vm3010, %v2765, -inf
      %v3604 = vmax.f32 %v3602, %v3603
      %v3605 = vsel %vm3010, %v2368, -inf
      %v3606 = vmax.f32 %v3604, %v3605
      %v3607 = vsel %vm3010, %v2770, -inf
      %v3608 = vmax.f32 %v3606, %v3607
      %v3609 = vsel %vm3010, %v2373, -inf
      %v3610 = vmax.f32 %v3608, %v3609
      %v3611 = vsel %vm3010, %v2775, -inf
      %v3612 = vmax.f32 %v3610, %v3611
      %v3613 = vsel %vm3010, %v2378, -inf
      %v3614 = vmax.f32 %v3612, %v3613
      %v3615 = vsel %vm3010, %v2780, -inf
      %v3616 = vmax.f32 %v3614, %v3615
      %v3617 = vsel %vm3010, %v2383, -inf
      %v3618 = vmax.f32 %v3616, %v3617
      %v3619 = vsel %vm3010, %v2361, -inf
      %v3620 = vsel %vm3010, %v2763, -inf
      %v3621 = vmax.f32 %v3619, %v3620
      %v3622 = vsel %vm3010, %v2366, -inf
      %v3623 = vmax.f32 %v3621, %v3622
      %v3624 = vsel %vm3010, %v2768, -inf
      %v3625 = vmax.f32 %v3623, %v3624
      %v3626 = vsel %vm3010, %v2371, -inf
      %v3627 = vmax.f32 %v3625, %v3626
      %v3628 = vsel %vm3010, %v2773, -inf
      %v3629 = vmax.f32 %v3627, %v3628
      %v3630 = vsel %vm3010, %v2376, -inf
      %v3631 = vmax.f32 %v3629, %v3630
      %v3632 = vsel %vm3010, %v2778, -inf
      %v3633 = vmax.f32 %v3631, %v3632
      %v3634 = vsel %vm3010, %v2381, -inf
      %v3635 = vmax.f32 %v3633, %v3634
      %v3636 = vsel %vm3010, %v2783, -inf
      %v3637 = vmax.f32 %v3635, %v3636
      %v3638 = vsel %vm3010, %v2761, -inf
      %v3639 = vsel %vm3010, %v2364, -inf
      %v3640 = vmax.f32 %v3638, %v3639
      %v3641 = vsel %vm3010, %v2766, -inf
      %v3642 = vmax.f32 %v3640, %v3641
      %v3643 = vsel %vm3010, %v2369, -inf
      %v3644 = vmax.f32 %v3642, %v3643
      %v3645 = vsel %vm3010, %v2771, -inf
      %v3646 = vmax.f32 %v3644, %v3645
      %v3647 = vsel %vm3010, %v2374, -inf
      %v3648 = vmax.f32 %v3646, %v3647
      %v3649 = vsel %vm3010, %v2776, -inf
      %v3650 = vmax.f32 %v3648, %v3649
      %v3651 = vsel %vm3010, %v2379, -inf
      %v3652 = vmax.f32 %v3650, %v3651
      %v3653 = vsel %vm3010, %v2781, -inf
      %v3654 = vmax.f32 %v3652, %v3653
      %v3655 = vsel %vm3010, %v2384, -inf
      %v3656 = vmax.f32 %v3654, %v3655
      %v3657 = vsel %vm3010, %v2362, -inf
      %v3658 = vsel %vm3010, %v2764, -inf
      %v3659 = vmax.f32 %v3657, %v3658
      %v3660 = vsel %vm3010, %v2367, -inf
      %v3661 = vmax.f32 %v3659, %v3660
      %v3662 = vsel %vm3010, %v2769, -inf
      %v3663 = vmax.f32 %v3661, %v3662
      %v3664 = vsel %vm3010, %v2372, -inf
      %v3665 = vmax.f32 %v3663, %v3664
      %v3666 = vsel %vm3010, %v2774, -inf
      %v3667 = vmax.f32 %v3665, %v3666
      %v3668 = vsel %vm3010, %v2377, -inf
      %v3669 = vmax.f32 %v3667, %v3668
      %v3670 = vsel %vm3010, %v2779, -inf
      %v3671 = vmax.f32 %v3669, %v3670
      %v3672 = vsel %vm3010, %v2382, -inf
      %v3673 = vmax.f32 %v3671, %v3672
      %v3674 = vsel %vm3010, %v2784, -inf
      %v3675 = vmax.f32 %v3673, %v3674
      %v3676 = vsel %vm3010, %v2385, -inf
      %v3677 = vsel %vm3010, %v2787, -inf
      %v3678 = vmax.f32 %v3676, %v3677
      %v3679 = vsel %vm3010, %v2390, -inf
      %v3680 = vmax.f32 %v3678, %v3679
      %v3681 = vsel %vm3010, %v2792, -inf
      %v3682 = vmax.f32 %v3680, %v3681
      %v3683 = vsel %vm3010, %v2395, -inf
      %v3684 = vmax.f32 %v3682, %v3683
      %v3685 = vsel %vm3010, %v2797, -inf
      %v3686 = vmax.f32 %v3684, %v3685
      %v3687 = vsel %vm3010, %v2400, -inf
      %v3688 = vmax.f32 %v3686, %v3687
      %v3689 = vsel %vm3010, %v2802, -inf
      %v3690 = vmax.f32 %v3688, %v3689
      %v3691 = vsel %vm3010, %v2405, -inf
      %v3692 = vmax.f32 %v3690, %v3691
      %v3693 = vsel %vm3010, %v2807, -inf
      %v3694 = vmax.f32 %v3692, %v3693
      %v3695 = vsel %vm3010, %v2785, -inf
      %v3696 = vsel %vm3010, %v2388, -inf
      %v3697 = vmax.f32 %v3695, %v3696
      %v3698 = vsel %vm3010, %v2790, -inf
      %v3699 = vmax.f32 %v3697, %v3698
      %v3700 = vsel %vm3010, %v2393, -inf
      %v3701 = vmax.f32 %v3699, %v3700
      %v3702 = vsel %vm3010, %v2795, -inf
      %v3703 = vmax.f32 %v3701, %v3702
      %v3704 = vsel %vm3010, %v2398, -inf
      %v3705 = vmax.f32 %v3703, %v3704
      %v3706 = vsel %vm3010, %v2800, -inf
      %v3707 = vmax.f32 %v3705, %v3706
      %v3708 = vsel %vm3010, %v2403, -inf
      %v3709 = vmax.f32 %v3707, %v3708
      %v3710 = vsel %vm3010, %v2805, -inf
      %v3711 = vmax.f32 %v3709, %v3710
      %v3712 = vsel %vm3010, %v2408, -inf
      %v3713 = vmax.f32 %v3711, %v3712
      %v3714 = vsel %vm3010, %v2386, -inf
      %v3715 = vsel %vm3010, %v2788, -inf
      %v3716 = vmax.f32 %v3714, %v3715
      %v3717 = vsel %vm3010, %v2391, -inf
      %v3718 = vmax.f32 %v3716, %v3717
      %v3719 = vsel %vm3010, %v2793, -inf
      %v3720 = vmax.f32 %v3718, %v3719
      %v3721 = vsel %vm3010, %v2396, -inf
      %v3722 = vmax.f32 %v3720, %v3721
      %v3723 = vsel %vm3010, %v2798, -inf
      %v3724 = vmax.f32 %v3722, %v3723
      %v3725 = vsel %vm3010, %v2401, -inf
      %v3726 = vmax.f32 %v3724, %v3725
      %v3727 = vsel %vm3010, %v2803, -inf
      %v3728 = vmax.f32 %v3726, %v3727
      %v3729 = vsel %vm3010, %v2406, -inf
      %v3730 = vmax.f32 %v3728, %v3729
      %v3731 = vsel %vm3010, %v2808, -inf
      %v3732 = vmax.f32 %v3730, %v3731
      %v3733 = vsel %vm3010, %v2786, -inf
      %v3734 = vsel %vm3010, %v2389, -inf
      %v3735 = vmax.f32 %v3733, %v3734
      %v3736 = vsel %vm3010, %v2791, -inf
      %v3737 = vmax.f32 %v3735, %v3736
      %v3738 = vsel %vm3010, %v2394, -inf
      %v3739 = vmax.f32 %v3737, %v3738
      %v3740 = vsel %vm3010, %v2796, -inf
      %v3741 = vmax.f32 %v3739, %v3740
      %v3742 = vsel %vm3010, %v2399, -inf
      %v3743 = vmax.f32 %v3741, %v3742
      %v3744 = vsel %vm3010, %v2801, -inf
      %v3745 = vmax.f32 %v3743, %v3744
      %v3746 = vsel %vm3010, %v2404, -inf
      %v3747 = vmax.f32 %v3745, %v3746
      %v3748 = vsel %vm3010, %v2806, -inf
      %v3749 = vmax.f32 %v3747, %v3748
      %v3750 = vsel %vm3010, %v2409, -inf
      %v3751 = vmax.f32 %v3749, %v3750
      %v3752 = vsel %vm3010, %v2387, -inf
      %v3753 = vsel %vm3010, %v2789, -inf
      %v3754 = vmax.f32 %v3752, %v3753
      %v3755 = vsel %vm3010, %v2392, -inf
      %v3756 = vmax.f32 %v3754, %v3755
      %v3757 = vsel %vm3010, %v2794, -inf
      %v3758 = vmax.f32 %v3756, %v3757
      %v3759 = vsel %vm3010, %v2397, -inf
      %v3760 = vmax.f32 %v3758, %v3759
      %v3761 = vsel %vm3010, %v2799, -inf
      %v3762 = vmax.f32 %v3760, %v3761
      %v3763 = vsel %vm3010, %v2402, -inf
      %v3764 = vmax.f32 %v3762, %v3763
      %v3765 = vsel %vm3010, %v2804, -inf
      %v3766 = vmax.f32 %v3764, %v3765
      %v3767 = vsel %vm3010, %v2407, -inf
      %v3768 = vmax.f32 %v3766, %v3767
      %v3769 = vsel %vm3010, %v2809, -inf
      %v3770 = vmax.f32 %v3768, %v3769
      %v3811 = vcombine.low %v3029, %v3048
      %v3812 = vcombine.low %v3067, %v3086
      %v3813 = vcombine.low %v3124, %v3143
      %v3814 = vcombine.low %v3162, %v3181
      %v3815 = vcombine.low %v3219, %v3238
      %v3816 = vcombine.low %v3257, %v3276
      %v3817 = vcombine.low %v3314, %v3333
      %v3818 = vcombine.low %v3352, %v3371
      %v3819 = vcombine.low %v3409, %v3428
      %v3820 = vcombine.low %v3447, %v3466
      %v3821 = vcombine.low %v3504, %v3523
      %v3822 = vcombine.low %v3542, %v3561
      %v3823 = vcombine.low %v3599, %v3618
      %v3824 = vcombine.low %v3637, %v3656
      %v3825 = vcombine.low %v3694, %v3713
      %v3826 = vcombine.low %v3732, %v3751
      %vm3828 = vcmask 1040384
      %v3829 = vrot.slane 0.0, 7
      %v3830 = vsel %vm3828, %v3829, %v3829
      %v3831 = vrot.slane %v3811, 7
      %v3832 = vrot.slane %v3812, 7
      %v3833 = vsel %vm3828, %v3831, %v3832
      %v3834 = vrot.slane %v3105, 7
      %v3835 = vsel %vm3828, %v3832, %v3834
      %v3836 = vrot.slane %v3813, 7
      %v3837 = vrot.slane %v3814, 7
      %v3838 = vsel %vm3828, %v3836, %v3837
      %v3839 = vrot.slane %v3200, 7
      %v3840 = vsel %vm3828, %v3837, %v3839
      %v3841 = vrot.slane %v3815, 7
      %v3842 = vrot.slane %v3816, 7
      %v3843 = vsel %vm3828, %v3841, %v3842
      %v3844 = vrot.slane %v3295, 7
      %v3845 = vsel %vm3828, %v3842, %v3844
      %v3846 = vrot.slane %v3817, 7
      %v3847 = vrot.slane %v3818, 7
      %v3848 = vsel %vm3828, %v3846, %v3847
      %v3849 = vrot.slane %v3390, 7
      %v3850 = vsel %vm3828, %v3847, %v3849
      %v3851 = vrot.slane %v3819, 7
      %v3852 = vrot.slane %v3820, 7
      %v3853 = vsel %vm3828, %v3851, %v3852
      %v3854 = vrot.slane %v3485, 7
      %v3855 = vsel %vm3828, %v3852, %v3854
      %v3856 = vrot.slane %v3821, 7
      %v3857 = vrot.slane %v3822, 7
      %v3858 = vsel %vm3828, %v3856, %v3857
      %v3859 = vrot.slane %v3580, 7
      %v3860 = vsel %vm3828, %v3857, %v3859
      %v3861 = vrot.slane %v3823, 7
      %v3862 = vrot.slane %v3824, 7
      %v3863 = vsel %vm3828, %v3861, %v3862
      %v3864 = vrot.slane %v3675, 7
      %v3865 = vsel %vm3828, %v3862, %v3864
      %v3866 = vrot.slane %v3825, 7
      %v3867 = vrot.slane %v3826, 7
      %v3868 = vsel %vm3828, %v3866, %v3867
      %v3869 = vrot.slane %v3770, 7
      %v3870 = vsel %vm3828, %v3867, %v3869
      %v3896 = vsel %vm3828, 0.0, %v3829
      %v3897 = vsel %vm3828, 0.0, %v3831
      %v3898 = vsel %vm3828, 0.0, %v3836
      %v3899 = vsel %vm3828, 0.0, %v3841
      %v3900 = vsel %vm3828, 0.0, %v3846
      %v3901 = vsel %vm3828, 0.0, %v3851
      %v3902 = vsel %vm3828, 0.0, %v3856
      %v3903 = vsel %vm3828, 0.0, %v3861
      %v3904 = vsel %vm3828, 0.0, %v3866
      %vm3905 = vcmask 1044480
      %v3906 = vsel %vm3905, %v3830, 0.0
      %v3907 = vsel %vm3905, %v3835, 0.0
      %v3908 = vsel %vm3905, %v3840, 0.0
      %v3909 = vsel %vm3905, %v3845, 0.0
      %v3910 = vsel %vm3905, %v3850, 0.0
      %v3911 = vsel %vm3905, %v3855, 0.0
      %v3912 = vsel %vm3905, %v3860, 0.0
      %v3913 = vsel %vm3905, %v3865, 0.0
      %v3914 = vsel %vm3905, %v3870, 0.0
      %vm3931 = vcmask 1046528
      %v3932 = vrot.slane %v3896, 1
      %v3933 = vrot.slane %v3830, 1
      %v3934 = vsel %vm3931, %v3932, %v3933
      %v3935 = vrot.slane %v3906, 1
      %v3936 = vsel %vm3931, %v3933, %v3935
      %v3937 = vrot.slane %v3897, 1
      %v3938 = vrot.slane %v3833, 1
      %v3939 = vsel %vm3931, %v3937, %v3938
      %v3940 = vrot.slane %v3907, 1
      %v3941 = vsel %vm3931, %v3938, %v3940
      %v3942 = vrot.slane %v3898, 1
      %v3943 = vrot.slane %v3838, 1
      %v3944 = vsel %vm3931, %v3942, %v3943
      %v3945 = vrot.slane %v3908, 1
      %v3946 = vsel %vm3931, %v3943, %v3945
      %v3947 = vrot.slane %v3899, 1
      %v3948 = vrot.slane %v3843, 1
      %v3949 = vsel %vm3931, %v3947, %v3948
      %v3950 = vrot.slane %v3909, 1
      %v3951 = vsel %vm3931, %v3948, %v3950
      %v3952 = vrot.slane %v3900, 1
      %v3953 = vrot.slane %v3848, 1
      %v3954 = vsel %vm3931, %v3952, %v3953
      %v3955 = vrot.slane %v3910, 1
      %v3956 = vsel %vm3931, %v3953, %v3955
      %v3957 = vrot.slane %v3901, 1
      %v3958 = vrot.slane %v3853, 1
      %v3959 = vsel %vm3931, %v3957, %v3958
      %v3960 = vrot.slane %v3911, 1
      %v3961 = vsel %vm3931, %v3958, %v3960
      %v3962 = vrot.slane %v3902, 1
      %v3963 = vrot.slane %v3858, 1
      %v3964 = vsel %vm3931, %v3962, %v3963
      %v3965 = vrot.slane %v3912, 1
      %v3966 = vsel %vm3931, %v3963, %v3965
      %v3967 = vrot.slane %v3903, 1
      %v3968 = vrot.slane %v3863, 1
      %v3969 = vsel %vm3931, %v3967, %v3968
      %v3970 = vrot.slane %v3913, 1
      %v3971 = vsel %vm3931, %v3968, %v3970
      %3972 = vrot.lane.b32.xlu0 %v3934, 32
      %v3973 = vpop.permute.xlu0 %3972
      %3974 = vrot.lane.b32.xlu0 %v3936, 32
      %v3975 = vpop.permute.xlu0 %3974
      %3976 = vrot.lane.b32.xlu0 %v3935, 32
      %v3977 = vpop.permute.xlu0 %3976
      %3978 = vrot.lane.b32.xlu0 %v3939, 32
      %v3979 = vpop.permute.xlu0 %3978
      %3980 = vrot.lane.b32.xlu0 %v3941, 32
      %v3981 = vpop.permute.xlu0 %3980
      %3982 = vrot.lane.b32.xlu0 %v3940, 32
      %v3983 = vpop.permute.xlu0 %3982
      %3984 = vrot.lane.b32.xlu0 %v3944, 32
      %v3985 = vpop.permute.xlu0 %3984
      %3986 = vrot.lane.b32.xlu0 %v3946, 32
      %v3987 = vpop.permute.xlu0 %3986
      %3988 = vrot.lane.b32.xlu0 %v3945, 32
      %v3989 = vpop.permute.xlu0 %3988
      %3990 = vrot.lane.b32.xlu0 %v3949, 32
      %v3991 = vpop.permute.xlu0 %3990
      %3992 = vrot.lane.b32.xlu0 %v3951, 32
      %v3993 = vpop.permute.xlu0 %3992
      %3994 = vrot.lane.b32.xlu0 %v3950, 32
      %v3995 = vpop.permute.xlu0 %3994
      %3996 = vrot.lane.b32.xlu0 %v3954, 32
      %v3997 = vpop.permute.xlu0 %3996
      %3998 = vrot.lane.b32.xlu0 %v3956, 32
      %v3999 = vpop.permute.xlu0 %3998
      %4000 = vrot.lane.b32.xlu0 %v3955, 32
      %v4001 = vpop.permute.xlu0 %4000
      %4002 = vrot.lane.b32.xlu0 %v3959, 32
      %v4003 = vpop.permute.xlu0 %4002
      %4004 = vrot.lane.b32.xlu0 %v3961, 32
      %v4005 = vpop.permute.xlu0 %4004
      %4006 = vrot.lane.b32.xlu0 %v3960, 32
      %v4007 = vpop.permute.xlu0 %4006
      %4008 = vrot.lane.b32.xlu0 %v3964, 32
      %v4009 = vpop.permute.xlu0 %4008
      %4010 = vrot.lane.b32.xlu0 %v3966, 32
      %v4011 = vpop.permute.xlu0 %4010
      %4012 = vrot.lane.b32.xlu0 %v3965, 32
      %v4013 = vpop.permute.xlu0 %4012
      %4014 = vrot.lane.b32.xlu0 %v3969, 32
      %v4015 = vpop.permute.xlu0 %4014
      %4016 = vrot.lane.b32.xlu0 %v3971, 32
      %v4017 = vpop.permute.xlu0 %4016
      %4018 = vrot.lane.b32.xlu0 %v3970, 32
      %v4019 = vpop.permute.xlu0 %4018
      %vm4044 = vcmask 1045504
      %v4045 = vrot.slane %v3896, 2
      %v4046 = vrot.slane %v3830, 2
      %v4047 = vsel %vm4044, %v4045, %v4046
      %v4048 = vrot.slane %v3906, 2
      %v4049 = vsel %vm4044, %v4046, %v4048
      %v4050 = vrot.slane %v3897, 2
      %v4051 = vrot.slane %v3833, 2
      %v4052 = vsel %vm4044, %v4050, %v4051
      %v4053 = vrot.slane %v3907, 2
      %v4054 = vsel %vm4044, %v4051, %v4053
      %v4055 = vrot.slane %v3898, 2
      %v4056 = vrot.slane %v3838, 2
      %v4057 = vsel %vm4044, %v4055, %v4056
      %v4058 = vrot.slane %v3908, 2
      %v4059 = vsel %vm4044, %v4056, %v4058
      %v4060 = vrot.slane %v3899, 2
      %v4061 = vrot.slane %v3843, 2
      %v4062 = vsel %vm4044, %v4060, %v4061
      %v4063 = vrot.slane %v3909, 2
      %v4064 = vsel %vm4044, %v4061, %v4063
      %v4065 = vrot.slane %v3900, 2
      %v4066 = vrot.slane %v3848, 2
      %v4067 = vsel %vm4044, %v4065, %v4066
      %v4068 = vrot.slane %v3910, 2
      %v4069 = vsel %vm4044, %v4066, %v4068
      %v4070 = vrot.slane %v3901, 2
      %v4071 = vrot.slane %v3853, 2
      %v4072 = vsel %vm4044, %v4070, %v4071
      %v4073 = vrot.slane %v3911, 2
      %v4074 = vsel %vm4044, %v4071, %v4073
      %v4075 = vrot.slane %v3902, 2
      %v4076 = vrot.slane %v3858, 2
      %v4077 = vsel %vm4044, %v4075, %v4076
      %v4078 = vrot.slane %v3912, 2
      %v4079 = vsel %vm4044, %v4076, %v4078
      %v4080 = vrot.slane %v3903, 2
      %v4081 = vrot.slane %v3863, 2
      %v4082 = vsel %vm4044, %v4080, %v4081
      %v4083 = vrot.slane %v3913, 2
      %v4084 = vsel %vm4044, %v4081, %v4083
      %4085 = vrot.lane.b32.xlu0 %v4047, 64
      %v4086 = vpop.permute.xlu0 %4085
      %4087 = vrot.lane.b32.xlu0 %v4049, 64
      %v4088 = vpop.permute.xlu0 %4087
      %4089 = vrot.lane.b32.xlu0 %v4048, 64
      %v4090 = vpop.permute.xlu0 %4089
      %4091 = vrot.lane.b32.xlu0 %v4052, 64
      %v4092 = vpop.permute.xlu0 %4091
      %4093 = vrot.lane.b32.xlu0 %v4054, 64
      %v4094 = vpop.permute.xlu0 %4093
      %4095 = vrot.lane.b32.xlu0 %v4053, 64
      %v4096 = vpop.permute.xlu0 %4095
      %4097 = vrot.lane.b32.xlu0 %v4057, 64
      %v4098 = vpop.permute.xlu0 %4097
      %4099 = vrot.lane.b32.xlu0 %v4059, 64
      %v4100 = vpop.permute.xlu0 %4099
      %4101 = vrot.lane.b32.xlu0 %v4058, 64
      %v4102 = vpop.permute.xlu0 %4101
      %4103 = vrot.lane.b32.xlu0 %v4062, 64
      %v4104 = vpop.permute.xlu0 %4103
      %4105 = vrot.lane.b32.xlu0 %v4064, 64
      %v4106 = vpop.permute.xlu0 %4105
      %4107 = vrot.lane.b32.xlu0 %v4063, 64
      %v4108 = vpop.permute.xlu0 %4107
      %4109 = vrot.lane.b32.xlu0 %v4067, 64
      %v4110 = vpop.permute.xlu0 %4109
      %4111 = vrot.lane.b32.xlu0 %v4069, 64
      %v4112 = vpop.permute.xlu0 %4111
      %4113 = vrot.lane.b32.xlu0 %v4068, 64
      %v4114 = vpop.permute.xlu0 %4113
      %4115 = vrot.lane.b32.xlu0 %v4072, 64
      %v4116 = vpop.permute.xlu0 %4115
      %4117 = vrot.lane.b32.xlu0 %v4074, 64
      %v4118 = vpop.permute.xlu0 %4117
      %4119 = vrot.lane.b32.xlu0 %v4073, 64
      %v4120 = vpop.permute.xlu0 %4119
      %4121 = vrot.lane.b32.xlu0 %v4077, 64
      %v4122 = vpop.permute.xlu0 %4121
      %4123 = vrot.lane.b32.xlu0 %v4079, 64
      %v4124 = vpop.permute.xlu0 %4123
      %4125 = vrot.lane.b32.xlu0 %v4078, 64
      %v4126 = vpop.permute.xlu0 %4125
      %4127 = vrot.lane.b32.xlu0 %v4082, 64
      %v4128 = vpop.permute.xlu0 %4127
      %4129 = vrot.lane.b32.xlu0 %v4084, 64
      %v4130 = vpop.permute.xlu0 %4129
      %4131 = vrot.lane.b32.xlu0 %v4083, 64
      %v4132 = vpop.permute.xlu0 %4131
      %4159 = vrot.lane.b32.xlu0 %v3897, 96
      %v4160 = vpop.permute.xlu0 %4159
      %4161 = vrot.lane.b32.xlu0 %v3833, 96
      %v4162 = vpop.permute.xlu0 %4161
      %4163 = vrot.lane.b32.xlu0 %v3907, 96
      %v4164 = vpop.permute.xlu0 %4163
      %4165 = vrot.lane.b32.xlu0 %v3898, 96
      %v4166 = vpop.permute.xlu0 %4165
      %4167 = vrot.lane.b32.xlu0 %v3838, 96
      %v4168 = vpop.permute.xlu0 %4167
      %4169 = vrot.lane.b32.xlu0 %v3908, 96
      %v4170 = vpop.permute.xlu0 %4169
      %4171 = vrot.lane.b32.xlu0 %v3899, 96
      %v4172 = vpop.permute.xlu0 %4171
      %4173 = vrot.lane.b32.xlu0 %v3843, 96
      %v4174 = vpop.permute.xlu0 %4173
      %4175 = vrot.lane.b32.xlu0 %v3909, 96
      %v4176 = vpop.permute.xlu0 %4175
      %4177 = vrot.lane.b32.xlu0 %v3900, 96
      %v4178 = vpop.permute.xlu0 %4177
      %4179 = vrot.lane.b32.xlu0 %v3848, 96
      %v4180 = vpop.permute.xlu0 %4179
      %4181 = vrot.lane.b32.xlu0 %v3910, 96
      %v4182 = vpop.permute.xlu0 %4181
      %4183 = vrot.lane.b32.xlu0 %v3901, 96
      %v4184 = vpop.permute.xlu0 %4183
      %4185 = vrot.lane.b32.xlu0 %v3853, 96
      %v4186 = vpop.permute.xlu0 %4185
      %4187 = vrot.lane.b32.xlu0 %v3911, 96
      %v4188 = vpop.permute.xlu0 %4187
      %4189 = vrot.lane.b32.xlu0 %v3902, 96
      %v4190 = vpop.permute.xlu0 %4189
      %4191 = vrot.lane.b32.xlu0 %v3858, 96
      %v4192 = vpop.permute.xlu0 %4191
      %4193 = vrot.lane.b32.xlu0 %v3912, 96
      %v4194 = vpop.permute.xlu0 %4193
      %4195 = vrot.lane.b32.xlu0 %v3903, 96
      %v4196 = vpop.permute.xlu0 %4195
      %4197 = vrot.lane.b32.xlu0 %v3863, 96
      %v4198 = vpop.permute.xlu0 %4197
      %4199 = vrot.lane.b32.xlu0 %v3913, 96
      %v4200 = vpop.permute.xlu0 %4199
      %4201 = vrot.lane.b32.xlu0 %v3904, 96
      %v4202 = vpop.permute.xlu0 %4201
      %4203 = vrot.lane.b32.xlu0 %v3868, 96
      %v4204 = vpop.permute.xlu0 %4203
      %4205 = vrot.lane.b32.xlu0 %v3914, 96
      %v4206 = vpop.permute.xlu0 %4205
      %v4231 = vrot.slane %v3904, 1
      %v4232 = vrot.slane %v3868, 1
      %v4233 = vsel %vm3931, %v4231, %v4232
      %v4234 = vrot.slane %v3914, 1
      %v4235 = vsel %vm3931, %v4232, %v4234
      %v4260 = vrot.slane %v3904, 2
      %v4261 = vrot.slane %v3868, 2
      %v4262 = vsel %vm4044, %v4260, %v4261
      %v4263 = vrot.slane %v3914, 2
      %v4264 = vsel %vm4044, %v4261, %v4263
      %4265 = vrot.lane.b32.xlu0 %v4052, 32
      %v4266 = vpop.permute.xlu0 %4265
      %4267 = vrot.lane.b32.xlu0 %v4054, 32
      %v4268 = vpop.permute.xlu0 %4267
      %4269 = vrot.lane.b32.xlu0 %v4053, 32
      %v4270 = vpop.permute.xlu0 %4269
      %4271 = vrot.lane.b32.xlu0 %v4057, 32
      %v4272 = vpop.permute.xlu0 %4271
      %4273 = vrot.lane.b32.xlu0 %v4059, 32
      %v4274 = vpop.permute.xlu0 %4273
      %4275 = vrot.lane.b32.xlu0 %v4058, 32
      %v4276 = vpop.permute.xlu0 %4275
      %4277 = vrot.lane.b32.xlu0 %v4062, 32
      %v4278 = vpop.permute.xlu0 %4277
      %4279 = vrot.lane.b32.xlu0 %v4064, 32
      %v4280 = vpop.permute.xlu0 %4279
      %4281 = vrot.lane.b32.xlu0 %v4063, 32
      %v4282 = vpop.permute.xlu0 %4281
      %4283 = vrot.lane.b32.xlu0 %v4067, 32
      %v4284 = vpop.permute.xlu0 %4283
      %4285 = vrot.lane.b32.xlu0 %v4069, 32
      %v4286 = vpop.permute.xlu0 %4285
      %4287 = vrot.lane.b32.xlu0 %v4068, 32
      %v4288 = vpop.permute.xlu0 %4287
      %4289 = vrot.lane.b32.xlu0 %v4072, 32
      %v4290 = vpop.permute.xlu0 %4289
      %4291 = vrot.lane.b32.xlu0 %v4074, 32
      %v4292 = vpop.permute.xlu0 %4291
      %4293 = vrot.lane.b32.xlu0 %v4073, 32
      %v4294 = vpop.permute.xlu0 %4293
      %4295 = vrot.lane.b32.xlu0 %v4077, 32
      %v4296 = vpop.permute.xlu0 %4295
      %4297 = vrot.lane.b32.xlu0 %v4079, 32
      %v4298 = vpop.permute.xlu0 %4297
      %4299 = vrot.lane.b32.xlu0 %v4078, 32
      %v4300 = vpop.permute.xlu0 %4299
      %4301 = vrot.lane.b32.xlu0 %v4082, 32
      %v4302 = vpop.permute.xlu0 %4301
      %4303 = vrot.lane.b32.xlu0 %v4084, 32
      %v4304 = vpop.permute.xlu0 %4303
      %4305 = vrot.lane.b32.xlu0 %v4083, 32
      %v4306 = vpop.permute.xlu0 %4305
      %4307 = vrot.lane.b32.xlu0 %v4262, 32
      %v4308 = vpop.permute.xlu0 %4307
      %4309 = vrot.lane.b32.xlu0 %v4264, 32
      %v4310 = vpop.permute.xlu0 %4309
      %4311 = vrot.lane.b32.xlu0 %v4263, 32
      %v4312 = vpop.permute.xlu0 %4311
      %4337 = vrot.lane.b32.xlu0 %v3898, 64
      %v4338 = vpop.permute.xlu0 %4337
      %4339 = vrot.lane.b32.xlu0 %v3838, 64
      %v4340 = vpop.permute.xlu0 %4339
      %4341 = vrot.lane.b32.xlu0 %v3908, 64
      %v4342 = vpop.permute.xlu0 %4341
      %4343 = vrot.lane.b32.xlu0 %v3899, 64
      %v4344 = vpop.permute.xlu0 %4343
      %4345 = vrot.lane.b32.xlu0 %v3843, 64
      %v4346 = vpop.permute.xlu0 %4345
      %4347 = vrot.lane.b32.xlu0 %v3909, 64
      %v4348 = vpop.permute.xlu0 %4347
      %4349 = vrot.lane.b32.xlu0 %v3900, 64
      %v4350 = vpop.permute.xlu0 %4349
      %4351 = vrot.lane.b32.xlu0 %v3848, 64
      %v4352 = vpop.permute.xlu0 %4351
      %4353 = vrot.lane.b32.xlu0 %v3910, 64
      %v4354 = vpop.permute.xlu0 %4353
      %4355 = vrot.lane.b32.xlu0 %v3901, 64
      %v4356 = vpop.permute.xlu0 %4355
      %4357 = vrot.lane.b32.xlu0 %v3853, 64
      %v4358 = vpop.permute.xlu0 %4357
      %4359 = vrot.lane.b32.xlu0 %v3911, 64
      %v4360 = vpop.permute.xlu0 %4359
      %4361 = vrot.lane.b32.xlu0 %v3902, 64
      %v4362 = vpop.permute.xlu0 %4361
      %4363 = vrot.lane.b32.xlu0 %v3858, 64
      %v4364 = vpop.permute.xlu0 %4363
      %4365 = vrot.lane.b32.xlu0 %v3912, 64
      %v4366 = vpop.permute.xlu0 %4365
      %4367 = vrot.lane.b32.xlu0 %v3903, 64
      %v4368 = vpop.permute.xlu0 %4367
      %4369 = vrot.lane.b32.xlu0 %v3863, 64
      %v4370 = vpop.permute.xlu0 %4369
      %4371 = vrot.lane.b32.xlu0 %v3913, 64
      %v4372 = vpop.permute.xlu0 %4371
      %4373 = vrot.lane.b32.xlu0 %v3904, 64
      %v4374 = vpop.permute.xlu0 %4373
      %4375 = vrot.lane.b32.xlu0 %v3868, 64
      %v4376 = vpop.permute.xlu0 %4375
      %4377 = vrot.lane.b32.xlu0 %v3914, 64
      %v4378 = vpop.permute.xlu0 %4377
      %4379 = vrot.lane.b32.xlu0 %v3896, 64
      %v4380 = vpop.permute.xlu0 %4379
      %4381 = vrot.lane.b32.xlu0 %v3830, 64
      %v4382 = vpop.permute.xlu0 %4381
      %4383 = vrot.lane.b32.xlu0 %v3906, 64
      %v4384 = vpop.permute.xlu0 %4383
      %4409 = vrot.lane.b32.xlu0 %v3944, 96
      %v4410 = vpop.permute.xlu0 %4409
      %4411 = vrot.lane.b32.xlu0 %v3946, 96
      %v4412 = vpop.permute.xlu0 %4411
      %4413 = vrot.lane.b32.xlu0 %v3945, 96
      %v4414 = vpop.permute.xlu0 %4413
      %4415 = vrot.lane.b32.xlu0 %v3949, 96
      %v4416 = vpop.permute.xlu0 %4415
      %4417 = vrot.lane.b32.xlu0 %v3951, 96
      %v4418 = vpop.permute.xlu0 %4417
      %4419 = vrot.lane.b32.xlu0 %v3950, 96
      %v4420 = vpop.permute.xlu0 %4419
      %4421 = vrot.lane.b32.xlu0 %v3954, 96
      %v4422 = vpop.permute.xlu0 %4421
      %4423 = vrot.lane.b32.xlu0 %v3956, 96
      %v4424 = vpop.permute.xlu0 %4423
      %4425 = vrot.lane.b32.xlu0 %v3955, 96
      %v4426 = vpop.permute.xlu0 %4425
      %4427 = vrot.lane.b32.xlu0 %v3959, 96
      %v4428 = vpop.permute.xlu0 %4427
      %4429 = vrot.lane.b32.xlu0 %v3961, 96
      %v4430 = vpop.permute.xlu0 %4429
      %4431 = vrot.lane.b32.xlu0 %v3960, 96
      %v4432 = vpop.permute.xlu0 %4431
      %4433 = vrot.lane.b32.xlu0 %v3964, 96
      %v4434 = vpop.permute.xlu0 %4433
      %4435 = vrot.lane.b32.xlu0 %v3966, 96
      %v4436 = vpop.permute.xlu0 %4435
      %4437 = vrot.lane.b32.xlu0 %v3965, 96
      %v4438 = vpop.permute.xlu0 %4437
      %4439 = vrot.lane.b32.xlu0 %v3969, 96
      %v4440 = vpop.permute.xlu0 %4439
      %4441 = vrot.lane.b32.xlu0 %v3971, 96
      %v4442 = vpop.permute.xlu0 %4441
      %4443 = vrot.lane.b32.xlu0 %v3970, 96
      %v4444 = vpop.permute.xlu0 %4443
      %4445 = vrot.lane.b32.xlu0 %v4233, 96
      %v4446 = vpop.permute.xlu0 %4445
      %4447 = vrot.lane.b32.xlu0 %v4235, 96
      %v4448 = vpop.permute.xlu0 %4447
      %4449 = vrot.lane.b32.xlu0 %v4234, 96
      %v4450 = vpop.permute.xlu0 %4449
      %4451 = vrot.lane.b32.xlu0 %v3934, 96
      %v4452 = vpop.permute.xlu0 %4451
      %4453 = vrot.lane.b32.xlu0 %v3936, 96
      %v4454 = vpop.permute.xlu0 %4453
      %4455 = vrot.lane.b32.xlu0 %v3935, 96
      %v4456 = vpop.permute.xlu0 %4455
      %vm4481 = vcmask 261120
      %v4482 = vsel %vm4481, %v3896, %v3973
      %v4483 = vsel %vm4481, %v3830, %v3975
      %v4484 = vsel %vm4481, %v3906, %v3977
      %v4485 = vsel %vm4481, %v3897, %v3979
      %v4486 = vsel %vm4481, %v3833, %v3981
      %v4487 = vsel %vm4481, %v3907, %v3983
      %v4488 = vsel %vm4481, %v3898, %v3985
      %v4489 = vsel %vm4481, %v3838, %v3987
      %v4490 = vsel %vm4481, %v3908, %v3989
      %v4491 = vsel %vm4481, %v3899, %v3991
      %v4492 = vsel %vm4481, %v3843, %v3993
      %v4493 = vsel %vm4481, %v3909, %v3995
      %v4494 = vsel %vm4481, %v3900, %v3997
      %v4495 = vsel %vm4481, %v3848, %v3999
      %v4496 = vsel %vm4481, %v3910, %v4001
      %v4497 = vsel %vm4481, %v3901, %v4003
      %v4498 = vsel %vm4481, %v3853, %v4005
      %v4499 = vsel %vm4481, %v3911, %v4007
      %v4500 = vsel %vm4481, %v3902, %v4009
      %v4501 = vsel %vm4481, %v3858, %v4011
      %v4502 = vsel %vm4481, %v3912, %v4013
      %v4503 = vsel %vm4481, %v3903, %v4015
      %v4504 = vsel %vm4481, %v3863, %v4017
      %v4505 = vsel %vm4481, %v3913, %v4019
      %v4506 = vsel %vm544, %v4482, %v4086
      %v4507 = vsel %vm544, %v4483, %v4088
      %v4508 = vsel %vm544, %v4484, %v4090
      %v4509 = vsel %vm544, %v4485, %v4092
      %v4510 = vsel %vm544, %v4486, %v4094
      %v4511 = vsel %vm544, %v4487, %v4096
      %v4512 = vsel %vm544, %v4488, %v4098
      %v4513 = vsel %vm544, %v4489, %v4100
      %v4514 = vsel %vm544, %v4490, %v4102
      %v4515 = vsel %vm544, %v4491, %v4104
      %v4516 = vsel %vm544, %v4492, %v4106
      %v4517 = vsel %vm544, %v4493, %v4108
      %v4518 = vsel %vm544, %v4494, %v4110
      %v4519 = vsel %vm544, %v4495, %v4112
      %v4520 = vsel %vm544, %v4496, %v4114
      %v4521 = vsel %vm544, %v4497, %v4116
      %v4522 = vsel %vm544, %v4498, %v4118
      %v4523 = vsel %vm544, %v4499, %v4120
      %v4524 = vsel %vm544, %v4500, %v4122
      %v4525 = vsel %vm544, %v4501, %v4124
      %v4526 = vsel %vm544, %v4502, %v4126
      %v4527 = vsel %vm544, %v4503, %v4128
      %v4528 = vsel %vm544, %v4504, %v4130
      %v4529 = vsel %vm544, %v4505, %v4132
      %vm4530 = vcmask 785408
      %v4531 = vsel %vm4530, %v4506, %v4160
      %v4532 = vsel %vm4530, %v4507, %v4162
      %v4533 = vsel %vm4530, %v4508, %v4164
      %v4534 = vsel %vm4530, %v4509, %v4166
      %v4535 = vsel %vm4530, %v4510, %v4168
      %v4536 = vsel %vm4530, %v4511, %v4170
      %v4537 = vsel %vm4530, %v4512, %v4172
      %v4538 = vsel %vm4530, %v4513, %v4174
      %v4539 = vsel %vm4530, %v4514, %v4176
      %v4540 = vsel %vm4530, %v4515, %v4178
      %v4541 = vsel %vm4530, %v4516, %v4180
      %v4542 = vsel %vm4530, %v4517, %v4182
      %v4543 = vsel %vm4530, %v4518, %v4184
      %v4544 = vsel %vm4530, %v4519, %v4186
      %v4545 = vsel %vm4530, %v4520, %v4188
      %v4546 = vsel %vm4530, %v4521, %v4190
      %v4547 = vsel %vm4530, %v4522, %v4192
      %v4548 = vsel %vm4530, %v4523, %v4194
      %v4549 = vsel %vm4530, %v4524, %v4196
      %v4550 = vsel %vm4530, %v4525, %v4198
      %v4551 = vsel %vm4530, %v4526, %v4200
      %v4552 = vsel %vm4530, %v4527, %v4202
      %v4553 = vsel %vm4530, %v4528, %v4204
      %v4554 = vsel %vm4530, %v4529, %v4206
      %v4555 = vsel %vm4481, %v3939, %v4266
      %v4556 = vsel %vm4481, %v3941, %v4268
      %v4557 = vsel %vm4481, %v3940, %v4270
      %v4558 = vsel %vm4481, %v3944, %v4272
      %v4559 = vsel %vm4481, %v3946, %v4274
      %v4560 = vsel %vm4481, %v3945, %v4276
      %v4561 = vsel %vm4481, %v3949, %v4278
      %v4562 = vsel %vm4481, %v3951, %v4280
      %v4563 = vsel %vm4481, %v3950, %v4282
      %v4564 = vsel %vm4481, %v3954, %v4284
      %v4565 = vsel %vm4481, %v3956, %v4286
      %v4566 = vsel %vm4481, %v3955, %v4288
      %v4567 = vsel %vm4481, %v3959, %v4290
      %v4568 = vsel %vm4481, %v3961, %v4292
      %v4569 = vsel %vm4481, %v3960, %v4294
      %v4570 = vsel %vm4481, %v3964, %v4296
      %v4571 = vsel %vm4481, %v3966, %v4298
      %v4572 = vsel %vm4481, %v3965, %v4300
      %v4573 = vsel %vm4481, %v3969, %v4302
      %v4574 = vsel %vm4481, %v3971, %v4304
      %v4575 = vsel %vm4481, %v3970, %v4306
      %v4576 = vsel %vm4481, %v4233, %v4308
      %v4577 = vsel %vm4481, %v4235, %v4310
      %v4578 = vsel %vm4481, %v4234, %v4312
      %v4579 = vsel %vm544, %v4555, %v4338
      %v4580 = vsel %vm544, %v4556, %v4340
      %v4581 = vsel %vm544, %v4557, %v4342
      %v4582 = vsel %vm544, %v4558, %v4344
      %v4583 = vsel %vm544, %v4559, %v4346
      %v4584 = vsel %vm544, %v4560, %v4348
      %v4585 = vsel %vm544, %v4561, %v4350
      %v4586 = vsel %vm544, %v4562, %v4352
      %v4587 = vsel %vm544, %v4563, %v4354
      %v4588 = vsel %vm544, %v4564, %v4356
      %v4589 = vsel %vm544, %v4565, %v4358
      %v4590 = vsel %vm544, %v4566, %v4360
      %v4591 = vsel %vm544, %v4567, %v4362
      %v4592 = vsel %vm544, %v4568, %v4364
      %v4593 = vsel %vm544, %v4569, %v4366
      %v4594 = vsel %vm544, %v4570, %v4368
      %v4595 = vsel %vm544, %v4571, %v4370
      %v4596 = vsel %vm544, %v4572, %v4372
      %v4597 = vsel %vm544, %v4573, %v4374
      %v4598 = vsel %vm544, %v4574, %v4376
      %v4599 = vsel %vm544, %v4575, %v4378
      %v4600 = vsel %vm544, %v4576, %v4380
      %v4601 = vsel %vm544, %v4577, %v4382
      %v4602 = vsel %vm544, %v4578, %v4384
      %v4603 = vsel %vm4530, %v4579, %v4410
      %v4604 = vsel %vm4530, %v4580, %v4412
      %v4605 = vsel %vm4530, %v4581, %v4414
      %v4606 = vsel %vm4530, %v4582, %v4416
      %v4607 = vsel %vm4530, %v4583, %v4418
      %v4608 = vsel %vm4530, %v4584, %v4420
      %v4609 = vsel %vm4530, %v4585, %v4422
      %v4610 = vsel %vm4530, %v4586, %v4424
      %v4611 = vsel %vm4530, %v4587, %v4426
      %v4612 = vsel %vm4530, %v4588, %v4428
      %v4613 = vsel %vm4530, %v4589, %v4430
      %v4614 = vsel %vm4530, %v4590, %v4432
      %v4615 = vsel %vm4530, %v4591, %v4434
      %v4616 = vsel %vm4530, %v4592, %v4436
      %v4617 = vsel %vm4530, %v4593, %v4438
      %v4618 = vsel %vm4530, %v4594, %v4440
      %v4619 = vsel %vm4530, %v4595, %v4442
      %v4620 = vsel %vm4530, %v4596, %v4444
      %v4621 = vsel %vm4530, %v4597, %v4446
      %v4622 = vsel %vm4530, %v4598, %v4448
      %v4623 = vsel %vm4530, %v4599, %v4450
      %v4624 = vsel %vm4530, %v4600, %v4452
      %v4625 = vsel %vm4530, %v4601, %v4454
      %v4626 = vsel %vm4530, %v4602, %v4456
      %v4675 = vcombine.low %v4531, %v4603
      %v4676 = vcombine.high %v4531, %v4603
      %v4677 = vcombine.high %v4057, %v4057
      %v4678 = vcombine.low %v4532, %v4604
      %v4679 = vcombine.high %v4532, %v4604
      %v4680 = vcombine.high %v4059, %v4059
      %v4681 = vcombine.low %v4533, %v4605
      %v4682 = vcombine.low %v4534, %v4606
      %v4683 = vcombine.high %v4534, %v4606
      %v4684 = vcombine.high %v4062, %v4062
      %v4685 = vcombine.low %v4535, %v4607
      %v4686 = vcombine.high %v4535, %v4607
      %v4687 = vcombine.high %v4064, %v4064
      %v4688 = vcombine.low %v4536, %v4608
      %v4689 = vcombine.low %v4537, %v4609
      %v4690 = vcombine.high %v4537, %v4609
      %v4691 = vcombine.high %v4067, %v4067
      %v4692 = vcombine.low %v4538, %v4610
      %v4693 = vcombine.high %v4538, %v4610
      %v4694 = vcombine.high %v4069, %v4069
      %v4695 = vcombine.low %v4539, %v4611
      %v4696 = vcombine.low %v4540, %v4612
      %v4697 = vcombine.high %v4540, %v4612
      %v4698 = vcombine.high %v4072, %v4072
      %v4699 = vcombine.low %v4541, %v4613
      %v4700 = vcombine.high %v4541, %v4613
      %v4701 = vcombine.high %v4074, %v4074
      %v4702 = vcombine.low %v4542, %v4614
      %v4703 = vcombine.low %v4543, %v4615
      %v4704 = vcombine.high %v4543, %v4615
      %v4705 = vcombine.high %v4077, %v4077
      %v4706 = vcombine.low %v4544, %v4616
      %v4707 = vcombine.high %v4544, %v4616
      %v4708 = vcombine.high %v4079, %v4079
      %v4709 = vcombine.low %v4545, %v4617
      %v4710 = vcombine.low %v4546, %v4618
      %v4711 = vcombine.high %v4546, %v4618
      %v4712 = vcombine.high %v4082, %v4082
      %v4713 = vcombine.low %v4547, %v4619
      %v4714 = vcombine.high %v4547, %v4619
      %v4715 = vcombine.high %v4084, %v4084
      %v4716 = vcombine.low %v4548, %v4620
      %v4717 = vcombine.low %v4549, %v4621
      %v4718 = vcombine.high %v4549, %v4621
      %v4719 = vcombine.high %v4262, %v4262
      %v4720 = vcombine.low %v4550, %v4622
      %v4721 = vcombine.high %v4550, %v4622
      %v4722 = vcombine.high %v4264, %v4264
      %v4723 = vcombine.low %v4551, %v4623
      %v4724 = vcombine.low %v4552, %v4624
      %v4725 = vcombine.high %v4552, %v4624
      %v4726 = vcombine.high %v4047, %v4047
      %v4727 = vcombine.low %v4553, %v4625
      %v4728 = vcombine.high %v4553, %v4625
      %v4729 = vcombine.high %v4049, %v4049
      %v4730 = vcombine.low %v4554, %v4626
      %v4731 = vld [vmem:[%s3] sm:$0xff]
      %v4732 = vld [vmem:[%s3 + $0x8] sm:$0xff]
      %v4733 = vld [vmem:[%s3 + $0x10] sm:$0xff]
      %v4734 = vld [vmem:[%s3 + $0x18] sm:$0xff]
      %v4735 = vld [vmem:[%s3 + $0x20] sm:$0xff]
      %v4736 = vld [vmem:[%s3 + $0x28] sm:$0xff]
      %v4737 = vld [vmem:[%s3 + $0x30] sm:$0xff]
      %v4738 = vld [vmem:[%s3 + $0x38] sm:$0xff]
      %v4739 = vld [vmem:[%s3 + $0x40] sm:$0xff]
      %v4740 = vld [vmem:[%s3 + $0x48] sm:$0xff]
      %v4741 = vld [vmem:[%s3 + $0x50] sm:$0xff]
      %v4742 = vld [vmem:[%s3 + $0x58] sm:$0xff]
      %v4743 = vld [vmem:[%s3 + $0x60] sm:$0xff]
      %v4744 = vld [vmem:[%s3 + $0x68] sm:$0xff]
      %v4745 = vld [vmem:[%s3 + $0x70] sm:$0xff]
      %v4746 = vld [vmem:[%s3 + $0x78] sm:$0xff]
      %v4747 = vld [vmem:[%s3 + $0x80] sm:$0xff]
      %v4748 = vld [vmem:[%s3 + $0x88] sm:$0xff]
      %v4749 = vld [vmem:[%s3 + $0x90] sm:$0xff]
      %v4750 = vld [vmem:[%s3 + $0x98] sm:$0xff]
      %v4751 = vld [vmem:[%s3 + $0xa0] sm:$0xff]
      %v4752 = vld [vmem:[%s3 + $0xa8] sm:$0xff]
      %v4753 = vld [vmem:[%s3 + $0xb0] sm:$0xff]
      %v4754 = vld [vmem:[%s3 + $0xb8] sm:$0xff]
      %v4755 = vld [vmem:[%s3 + $0xc0] sm:$0xff]
      %v4756 = vld [vmem:[%s3 + $0xc8] sm:$0xff]
      %v4757 = vld [vmem:[%s3 + $0xd0] sm:$0xff]
      %v4758 = vld [vmem:[%s3 + $0xd8] sm:$0xff]
      %v4759 = vld [vmem:[%s3 + $0xe0] sm:$0xff]
      %v4760 = vld [vmem:[%s3 + $0xe8] sm:$0xff]
      %v4761 = vld [vmem:[%s3 + $0xf0] sm:$0xff]
      %v4762 = vld [vmem:[%s3 + $0xf8] sm:$0xff]
      %v4763 = vld [vmem:[%s3 + $0x100] sm:$0xff]
      %v4764 = vld [vmem:[%s3 + $0x108] sm:$0xff]
      %v4765 = vld [vmem:[%s3 + $0x110] sm:$0xff]
      %v4766 = vld [vmem:[%s3 + $0x118] sm:$0xff]
      %v4767 = vld [vmem:[%s4] sm:$0x1]
      %v4769 = vlaneseq
      %v4770 = vshrl.u32 %v4769, 7
      %v4771 = vsub.s32 0, %v4770
      %v4772 = vrot.slane %v4767, %v4771
      %v4774 = vcombine.low %v4675, %v4676
      %v4775 = vcombine.high %v4675, %v4676
      %v4776 = vcombine.low %v4057, %v4677
      %v4777 = vcombine.low %v4678, %v4679
      %v4778 = vcombine.high %v4678, %v4679
      %v4779 = vcombine.low %v4059, %v4680
      %v4780 = vcombine.low %v4681, %v4682
      %v4781 = vcombine.high %v4681, %v4682
      %v4782 = vcombine.low %v4058, %v4062
      %v4783 = vcombine.low %v4683, %v4685
      %v4784 = vcombine.high %v4683, %v4685
      %v4785 = vcombine.low %v4684, %v4064
      %v4786 = vcombine.low %v4686, %v4688
      %v4787 = vcombine.high %v4686, %v4688
      %v4788 = vcombine.low %v4687, %v4063
      %v4789 = vcombine.low %v4689, %v4690
      %v4790 = vcombine.high %v4689, %v4690
      %v4791 = vcombine.low %v4067, %v4691
      %v4792 = vcombine.low %v4692, %v4693
      %v4793 = vcombine.high %v4692, %v4693
      %v4794 = vcombine.low %v4069, %v4694
      %v4795 = vcombine.low %v4695, %v4696
      %v4796 = vcombine.high %v4695, %v4696
      %v4797 = vcombine.low %v4068, %v4072
      %v4798 = vcombine.low %v4697, %v4699
      %v4799 = vcombine.high %v4697, %v4699
      %v4800 = vcombine.low %v4698, %v4074
      %v4801 = vcombine.low %v4700, %v4702
      %v4802 = vcombine.high %v4700, %v4702
      %v4803 = vcombine.low %v4701, %v4073
      %v4804 = vcombine.low %v4703, %v4704
      %v4805 = vcombine.high %v4703, %v4704
      %v4806 = vcombine.low %v4077, %v4705
      %v4807 = vcombine.low %v4706, %v4707
      %v4808 = vcombine.high %v4706, %v4707
      %v4809 = vcombine.low %v4079, %v4708
      %v4810 = vcombine.low %v4709, %v4710
      %v4811 = vcombine.high %v4709, %v4710
      %v4812 = vcombine.low %v4078, %v4082
      %v4813 = vcombine.low %v4711, %v4713
      %v4814 = vcombine.high %v4711, %v4713
      %v4815 = vcombine.low %v4712, %v4084
      %v4816 = vcombine.low %v4714, %v4716
      %v4817 = vcombine.high %v4714, %v4716
      %v4818 = vcombine.low %v4715, %v4083
      %v4819 = vcombine.low %v4717, %v4718
      %v4820 = vcombine.high %v4717, %v4718
      %v4821 = vcombine.low %v4262, %v4719
      %v4822 = vcombine.low %v4720, %v4721
      %v4823 = vcombine.high %v4720, %v4721
      %v4824 = vcombine.low %v4264, %v4722
      %v4825 = vcombine.low %v4723, %v4724
      %v4826 = vcombine.high %v4723, %v4724
      %v4827 = vcombine.low %v4263, %v4047
      %v4828 = vcombine.low %v4725, %v4727
      %v4829 = vcombine.high %v4725, %v4727
      %v4830 = vcombine.low %v4726, %v4049
      %v4831 = vcombine.low %v4728, %v4730
      %v4832 = vcombine.high %v4728, %v4730
      %v4833 = vcombine.low %v4729, %v4048
      %v4874 = vsel %vm4481, %v4776, 0
      %v4876 = vsel %vm4481, %v4779, 0
      %v4878 = vsel %vm4481, %v4782, 0
      %v4880 = vsel %vm4481, %v4785, 0
      %v4882 = vsel %vm4481, %v4788, 0
      %v4884 = vsel %vm4481, %v4791, 0
      %v4886 = vsel %vm4481, %v4794, 0
      %v4888 = vsel %vm4481, %v4797, 0
      %v4890 = vsel %vm4481, %v4800, 0
      %v4892 = vsel %vm4481, %v4803, 0
      %v4894 = vsel %vm4481, %v4806, 0
      %v4896 = vsel %vm4481, %v4809, 0
      %v4898 = vsel %vm4481, %v4812, 0
      %v4900 = vsel %vm4481, %v4815, 0
      %v4902 = vsel %vm4481, %v4818, 0
      %v4904 = vsel %vm4481, %v4821, 0
      %v4906 = vsel %vm4481, %v4824, 0
      %v4908 = vsel %vm4481, %v4827, 0
      %v4910 = vsel %vm4481, %v4830, 0
      %v4912 = vsel %vm4481, %v4833, 0
      %4914 = vmatprep.subr.mxu0 0.0
      %4915 = vmatpush1.msra.mxu0 %v4731
      %4916 = vmatprep.subr.mxu0 0.0
      %4917 = vmatpush1.msra.mxu0 %v4732
      %4918 = vmatprep.subr.mxu0 0.0
      %4919 = vmatpush1.msra.mxu0 %v4733
      %4920 = vmatprep.subr.mxu0 0.0
      %4921 = vmatpush1.msra.mxu0 %v4734
      %4922 = vmatprep.subr.mxu0 0.0
      %4923 = vmatpush1.msra.mxu0 %v4735
      %4924 = vmatprep.subr.mxu0 0.0
      %4925 = vmatpush1.msra.mxu0 %v4736
      %4926 = vmatprep.subr.mxu0 0.0
      %4927 = vmatpush1.msra.mxu0 %v4737
      %4928 = vmatprep.subr.mxu0 0.0
      %4929 = vmatpush1.msra.mxu0 %v4738
      %4930 = vmatprep.subr.mxu0 0.0
      %4931 = vmatpush1.msra.mxu0 %v4739
      %4932 = vmatprep.subr.mxu0 0.0
      %4933 = vmatpush1.msra.mxu0 %v4740
      %4934 = vmatprep.subr.mxu0 0.0
      %4935 = vmatpush1.msra.mxu0 %v4741
      %4936 = vmatprep.subr.mxu0 0.0
      %4937 = vmatpush1.msra.mxu0 %v4742
      %4938 = vmatprep.subr.mxu0 0.0
      %4939 = vmatpush1.msra.mxu0 %v4743
      %4940 = vmatprep.subr.mxu0 0.0
      %4941 = vmatpush1.msra.mxu0 %v4744
      %4942 = vmatprep.subr.mxu0 0.0
      %4943 = vmatpush1.msra.mxu0 %v4745
      %4944 = vmatprep.subr.mxu0 0.0
      %4945 = vmatpush1.msra.mxu0 %v4746
      %4946 = vmatprep.subr.mxu0 0.0
      %4947 = vmatpush1.msra.mxu0 %v4747
      %4948 = vmatprep.subr.mxu0 0.0
      %4949 = vmatpush1.msra.mxu0 %v4748
      %4950 = vmatprep.subr.mxu0 0.0
      %4951 = vmatpush1.msra.mxu0 %v4749
      %4952 = vmatprep.subr.mxu0 0.0
      %4953 = vmatpush1.msra.mxu0 %v4750
      %4954 = vmatprep.subr.mxu0 0.0
      %4955 = vmatpush1.msra.mxu0 %v4751
      %4956 = vmatprep.subr.mxu0 0.0
      %4957 = vmatpush1.msra.mxu0 %v4752
      %4958 = vmatprep.subr.mxu0 0.0
      %4959 = vmatpush1.msra.mxu0 %v4753
      %4960 = vmatprep.subr.mxu0 0.0
      %4961 = vmatpush1.msra.mxu0 %v4754
      %4962 = vmatprep.subr.mxu0 0.0
      %4963 = vmatpush1.msra.mxu0 %v4755
      %4964 = vmatprep.subr.mxu0 0.0
      %4965 = vmatpush1.msra.mxu0 %v4756
      %4966 = vmatprep.subr.mxu0 0.0
      %4967 = vmatpush1.msra.mxu0 %v4757
      %4968 = vmatprep.subr.mxu0 0.0
      %4969 = vmatpush1.msra.mxu0 %v4758
      %4970 = vmatprep.subr.mxu0 0.0
      %4971 = vmatpush1.msra.mxu0 %v4759
      %4972 = vmatprep.subr.mxu0 0.0
      %4973 = vmatpush1.msra.mxu0 %v4760
      %4974 = vmatprep.subr.mxu0 0.0
      %4975 = vmatpush1.msra.mxu0 %v4761
      %4976 = vmatprep.subr.mxu0 0.0
      %4977 = vmatpush1.msra.mxu0 %v4762
      %4978 = vmatprep.mubr.f32.mxu0 %v4775
      %4979 = vmatmul.mubr.f32.gmra.mrb[0].mxu0 %v4774
      %v4980 = vpop.f32.mrb[0].mxu0
      %v4981 = vadd.f32 %v4772, %v4980
      %v4982 = vpop.f32.mrb[0].mxu0
      %4983 = vmatprep.mubr.f32.mxu0 %v4778
      %4984 = vmatmul.mubr.f32.gmra.mrb[0].mxu0 %v4777
      %v4985 = vpop.f32.mrb[0].mxu0
      %v4986 = vadd.f32 %v4772, %v4985
      %v4987 = vpop.f32.mrb[0].mxu0
      %4988 = vmatprep.mubr.f32.mxu0 %v4781
      %4989 = vmatmul.mubr.f32.gmra.mrb[0].mxu0 %v4780
      %v4990 = vpop.f32.mrb[0].mxu0
      %v4991 = vadd.f32 %v4772, %v4990
      %v4992 = vpop.f32.mrb[0].mxu0
      %4993 = vmatprep.mubr.f32.mxu0 %v4784
      %4994 = vmatmul.mubr.f32.gmra.mrb[0].mxu0 %v4783
      %v4995 = vpop.f32.mrb[0].mxu0
      %v4996 = vadd.f32 %v4772, %v4995
      %v4997 = vpop.f32.mrb[0].mxu0
      %4998 = vmatprep.mubr.f32.mxu0 %v4787
      %4999 = vmatmul.mubr.f32.gmra.mrb[0].mxu0 %v4786
      %v5000 = vpop.f32.mrb[0].mxu0
      %v5001 = vadd.f32 %v4772, %v5000
      %v5002 = vpop.f32.mrb[0].mxu0
      %5003 = vmatprep.mubr.f32.mxu0 %v4790
      %5004 = vmatmul.mubr.f32.gmra.mrb[0].mxu0 %v4789
      %v5005 = vpop.f32.mrb[0].mxu0
      %v5006 = vadd.f32 %v4772, %v5005
      %v5007 = vpop.f32.mrb[0].mxu0
      %5008 = vmatprep.mubr.f32.mxu0 %v4793
      %5009 = vmatmul.mubr.f32.gmra.mrb[0].mxu0 %v4792
      %v5010 = vpop.f32.mrb[0].mxu0
      %v5011 = vadd.f32 %v4772, %v5010
      %v5012 = vpop.f32.mrb[0].mxu0
      %5013 = vmatprep.mubr.f32.mxu0 %v4796
      %5014 = vmatmul.mubr.f32.gmra.mrb[0].mxu0 %v4795
      %v5015 = vpop.f32.mrb[0].mxu0
      %v5016 = vadd.f32 %v4772, %v5015
      %v5017 = vpop.f32.mrb[0].mxu0
      %5018 = vmatprep.mubr.f32.mxu0 %v4799
      %5019 = vmatmul.mubr.f32.gmra.mrb[0].mxu0 %v4798
      %v5020 = vpop.f32.mrb[0].mxu0
      %v5021 = vadd.f32 %v4772, %v5020
      %v5022 = vpop.f32.mrb[0].mxu0
      %5023 = vmatprep.mubr.f32.mxu0 %v4802
      %5024 = vmatmul.mubr.f32.gmra.mrb[0].mxu0 %v4801
      %v5025 = vpop.f32.mrb[0].mxu0
      %v5026 = vadd.f32 %v4772, %v5025
      %v5027 = vpop.f32.mrb[0].mxu0
      %5028 = vmatprep.mubr.f32.mxu0 %v4805
      %5029 = vmatmul.mubr.f32.gmra.mrb[0].mxu0 %v4804
      %v5030 = vpop.f32.mrb[0].mxu0
      %v5031 = vadd.f32 %v4772, %v5030
      %v5032 = vpop.f32.mrb[0].mxu0
      %5033 = vmatprep.mubr.f32.mxu0 %v4808
      %5034 = vmatmul.mubr.f32.gmra.mrb[0].mxu0 %v4807
      %v5035 = vpop.f32.mrb[0].mxu0
      %v5036 = vadd.f32 %v4772, %v5035
      %v5037 = vpop.f32.mrb[0].mxu0
      %5038 = vmatprep.mubr.f32.mxu0 %v4811
      %5039 = vmatmul.mubr.f32.gmra.mrb[0].mxu0 %v4810
      %v5040 = vpop.f32.mrb[0].mxu0
      %v5041 = vadd.f32 %v4772, %v5040
      %v5042 = vpop.f32.mrb[0].mxu0
      %5043 = vmatprep.mubr.f32.mxu0 %v4814
      %5044 = vmatmul.mubr.f32.gmra.mrb[0].mxu0 %v4813
      %v5045 = vpop.f32.mrb[0].mxu0
      %v5046 = vadd.f32 %v4772, %v5045
      %v5047 = vpop.f32.mrb[0].mxu0
      %5048 = vmatprep.mubr.f32.mxu0 %v4817
      %5049 = vmatmul.mubr.f32.gmra.mrb[0].mxu0 %v4816
      %v5050 = vpop.f32.mrb[0].mxu0
      %v5051 = vadd.f32 %v4772, %v5050
      %v5052 = vpop.f32.mrb[0].mxu0
      %5053 = vmatprep.mubr.f32.mxu0 %v4820
      %5054 = vmatmul.mubr.f32.gmra.mrb[0].mxu0 %v4819
      %v5055 = vpop.f32.mrb[0].mxu0
      %v5056 = vadd.f32 %v4772, %v5055
      %v5057 = vpop.f32.mrb[0].mxu0
      %5058 = vmatprep.mubr.f32.mxu0 %v4823
      %5059 = vmatmul.mubr.f32.gmra.mrb[0].mxu0 %v4822
      %v5060 = vpop.f32.mrb[0].mxu0
      %v5061 = vadd.f32 %v4772, %v5060
      %v5062 = vpop.f32.mrb[0].mxu0
      %5063 = vmatprep.mubr.f32.mxu0 %v4826
      %5064 = vmatmul.mubr.f32.gmra.mrb[0].mxu0 %v4825
      %v5065 = vpop.f32.mrb[0].mxu0
      %v5066 = vadd.f32 %v4772, %v5065
      %v5067 = vpop.f32.mrb[0].mxu0
      %5068 = vmatprep.mubr.f32.mxu0 %v4829
      %5069 = vmatmul.mubr.f32.gmra.mrb[0].mxu0 %v4828
      %v5070 = vpop.f32.mrb[0].mxu0
      %v5071 = vadd.f32 %v4772, %v5070
      %v5072 = vpop.f32.mrb[0].mxu0
      %5073 = vmatprep.mubr.f32.mxu0 %v4832
      %5074 = vmatmul.mubr.f32.gmra.mrb[0].mxu0 %v4831
      %v5075 = vpop.f32.mrb[0].mxu0
      %v5076 = vadd.f32 %v4772, %v5075
      %v5077 = vpop.f32.mrb[0].mxu0
      %5078 = vdwg.mxu0
      %5079 = vmatprep.subr.mxu0 0.0
      %5080 = vmatpush1.msra.mxu0 %v4763
      %5081 = vmatprep.subr.mxu0 0.0
      %5082 = vmatpush1.msra.mxu0 %v4764
      %5083 = vmatprep.subr.mxu0 0.0
      %5084 = vmatpush1.msra.mxu0 %v4765
      %5085 = vmatprep.subr.mxu0 0.0
      %5086 = vmatpush1.msra.mxu0 %v4766
      %5087 = vmatprep.subr.mxu0 0.0
      %5088 = vmatpush1.msra.mxu0 0.0
      %5089 = vmatprep.subr.mxu0 0.0
      %5090 = vmatpush1.msra.mxu0 0.0
      %5091 = vmatprep.subr.mxu0 0.0
      %5092 = vmatpush1.msra.mxu0 0.0
      %5093 = vmatprep.subr.mxu0 0.0
      %5094 = vmatpush1.msra.mxu0 0.0
      %5095 = vmatprep.subr.mxu0 0.0
      %5096 = vmatpush1.msra.mxu0 0.0
      %5097 = vmatprep.subr.mxu0 0.0
      %5098 = vmatpush1.msra.mxu0 0.0
      %5099 = vmatprep.subr.mxu0 0.0
      %5100 = vmatpush1.msra.mxu0 0.0
      %5101 = vmatprep.subr.mxu0 0.0
      %5102 = vmatpush1.msra.mxu0 0.0
      %5103 = vmatprep.subr.mxu0 0.0
      %5104 = vmatpush1.msra.mxu0 0.0
      %5105 = vmatprep.subr.mxu0 0.0
      %5106 = vmatpush1.msra.mxu0 0.0
      %5107 = vmatprep.subr.mxu0 0.0
      %5108 = vmatpush1.msra.mxu0 0.0
      %5109 = vmatprep.subr.mxu0 0.0
      %5110 = vmatpush1.msra.mxu0 0.0
      %5111 = vmatprep.subr.mxu0 0.0
      %5112 = vmatpush1.msra.mxu0 0.0
      %5113 = vmatprep.subr.mxu0 0.0
      %5114 = vmatpush1.msra.mxu0 0.0
      %5115 = vmatprep.subr.mxu0 0.0
      %5116 = vmatpush1.msra.mxu0 0.0
      %5117 = vmatprep.subr.mxu0 0.0
      %5118 = vmatpush1.msra.mxu0 0.0
      %5119 = vmatprep.subr.mxu0 0.0
      %5120 = vmatpush1.msra.mxu0 0.0
      %5121 = vmatprep.subr.mxu0 0.0
      %5122 = vmatpush1.msra.mxu0 0.0
      %5123 = vmatprep.subr.mxu0 0.0
      %5124 = vmatpush1.msra.mxu0 0.0
      %5125 = vmatprep.subr.mxu0 0.0
      %5126 = vmatpush1.msra.mxu0 0.0
      %5127 = vmatprep.subr.mxu0 0.0
      %5128 = vmatpush1.msra.mxu0 0.0
      %5129 = vmatprep.subr.mxu0 0.0
      %5130 = vmatpush1.msra.mxu0 0.0
      %5131 = vmatprep.subr.mxu0 0.0
      %5132 = vmatpush1.msra.mxu0 0.0
      %5133 = vmatprep.subr.mxu0 0.0
      %5134 = vmatpush1.msra.mxu0 0.0
      %5135 = vmatprep.subr.mxu0 0.0
      %5136 = vmatpush1.msra.mxu0 0.0
      %5137 = vmatprep.subr.mxu0 0.0
      %5138 = vmatpush1.msra.mxu0 0.0
      %5139 = vmatprep.subr.mxu0 0.0
      %5140 = vmatpush1.msra.mxu0 0.0
      %5141 = vmatprep.subr.mxu0 0.0
      %5142 = vmatpush1.msra.mxu0 0.0
      %5143 = vmatprep.mubr.f32.mxu0 0.0
      %5144 = vmatmul.mubr.f32.gmra.mrb[0].mxu0 %v4874
      %v5145 = vpop.f32.mrb[0].mxu0
      %v5146 = vadd.f32 %v4981, %v5145
      %v5147 = vpop.f32.mrb[0].mxu0
      %5148 = vmatprep.mubr.f32.mxu0 0.0
      %5149 = vmatmul.mubr.f32.gmra.mrb[0].mxu0 %v4876
      %v5150 = vpop.f32.mrb[0].mxu0
      %v5151 = vadd.f32 %v4986, %v5150
      %v5152 = vpop.f32.mrb[0].mxu0
      %5153 = vmatprep.mubr.f32.mxu0 0.0
      %5154 = vmatmul.mubr.f32.gmra.mrb[0].mxu0 %v4878
      %v5155 = vpop.f32.mrb[0].mxu0
      %v5156 = vadd.f32 %v4991, %v5155
      %v5157 = vpop.f32.mrb[0].mxu0
      %5158 = vmatprep.mubr.f32.mxu0 0.0
      %5159 = vmatmul.mubr.f32.gmra.mrb[0].mxu0 %v4880
      %v5160 = vpop.f32.mrb[0].mxu0
      %v5161 = vadd.f32 %v4996, %v5160
      %v5162 = vpop.f32.mrb[0].mxu0
      %5163 = vmatprep.mubr.f32.mxu0 0.0
      %5164 = vmatmul.mubr.f32.gmra.mrb[0].mxu0 %v4882
      %v5165 = vpop.f32.mrb[0].mxu0
      %v5166 = vadd.f32 %v5001, %v5165
      %v5167 = vpop.f32.mrb[0].mxu0
      %5168 = vmatprep.mubr.f32.mxu0 0.0
      %5169 = vmatmul.mubr.f32.gmra.mrb[0].mxu0 %v4884
      %v5170 = vpop.f32.mrb[0].mxu0
      %v5171 = vadd.f32 %v5006, %v5170
      %v5172 = vpop.f32.mrb[0].mxu0
      %5173 = vmatprep.mubr.f32.mxu0 0.0
      %5174 = vmatmul.mubr.f32.gmra.mrb[0].mxu0 %v4886
      %v5175 = vpop.f32.mrb[0].mxu0
      %v5176 = vadd.f32 %v5011, %v5175
      %v5177 = vpop.f32.mrb[0].mxu0
      %5178 = vmatprep.mubr.f32.mxu0 0.0
      %5179 = vmatmul.mubr.f32.gmra.mrb[0].mxu0 %v4888
      %v5180 = vpop.f32.mrb[0].mxu0
      %v5181 = vadd.f32 %v5016, %v5180
      %v5182 = vpop.f32.mrb[0].mxu0
      %5183 = vmatprep.mubr.f32.mxu0 0.0
      %5184 = vmatmul.mubr.f32.gmra.mrb[0].mxu0 %v4890
      %v5185 = vpop.f32.mrb[0].mxu0
      %v5186 = vadd.f32 %v5021, %v5185
      %v5187 = vpop.f32.mrb[0].mxu0
      %5188 = vmatprep.mubr.f32.mxu0 0.0
      %5189 = vmatmul.mubr.f32.gmra.mrb[0].mxu0 %v4892
      %v5190 = vpop.f32.mrb[0].mxu0
      %v5191 = vadd.f32 %v5026, %v5190
      %v5192 = vpop.f32.mrb[0].mxu0
      %5193 = vmatprep.mubr.f32.mxu0 0.0
      %5194 = vmatmul.mubr.f32.gmra.mrb[0].mxu0 %v4894
      %v5195 = vpop.f32.mrb[0].mxu0
      %v5196 = vadd.f32 %v5031, %v5195
      %v5197 = vpop.f32.mrb[0].mxu0
      %5198 = vmatprep.mubr.f32.mxu0 0.0
      %5199 = vmatmul.mubr.f32.gmra.mrb[0].mxu0 %v4896
      %v5200 = vpop.f32.mrb[0].mxu0
      %v5201 = vadd.f32 %v5036, %v5200
      %v5202 = vpop.f32.mrb[0].mxu0
      %5203 = vmatprep.mubr.f32.mxu0 0.0
      %5204 = vmatmul.mubr.f32.gmra.mrb[0].mxu0 %v4898
      %v5205 = vpop.f32.mrb[0].mxu0
      %v5206 = vadd.f32 %v5041, %v5205
      %v5207 = vpop.f32.mrb[0].mxu0
      %5208 = vmatprep.mubr.f32.mxu0 0.0
      %5209 = vmatmul.mubr.f32.gmra.mrb[0].mxu0 %v4900
      %v5210 = vpop.f32.mrb[0].mxu0
      %v5211 = vadd.f32 %v5046, %v5210
      %v5212 = vpop.f32.mrb[0].mxu0
      %5213 = vmatprep.mubr.f32.mxu0 0.0
      %5214 = vmatmul.mubr.f32.gmra.mrb[0].mxu0 %v4902
      %v5215 = vpop.f32.mrb[0].mxu0
      %v5216 = vadd.f32 %v5051, %v5215
      %v5217 = vpop.f32.mrb[0].mxu0
      %5218 = vmatprep.mubr.f32.mxu0 0.0
      %5219 = vmatmul.mubr.f32.gmra.mrb[0].mxu0 %v4904
      %v5220 = vpop.f32.mrb[0].mxu0
      %v5221 = vadd.f32 %v5056, %v5220
      %v5222 = vpop.f32.mrb[0].mxu0
      %5223 = vmatprep.mubr.f32.mxu0 0.0
      %5224 = vmatmul.mubr.f32.gmra.mrb[0].mxu0 %v4906
      %v5225 = vpop.f32.mrb[0].mxu0
      %v5226 = vadd.f32 %v5061, %v5225
      %v5227 = vpop.f32.mrb[0].mxu0
      %5228 = vmatprep.mubr.f32.mxu0 0.0
      %5229 = vmatmul.mubr.f32.gmra.mrb[0].mxu0 %v4908
      %v5230 = vpop.f32.mrb[0].mxu0
      %v5231 = vadd.f32 %v5066, %v5230
      %v5232 = vpop.f32.mrb[0].mxu0
      %5233 = vmatprep.mubr.f32.mxu0 0.0
      %5234 = vmatmul.mubr.f32.gmra.mrb[0].mxu0 %v4910
      %v5235 = vpop.f32.mrb[0].mxu0
      %v5236 = vadd.f32 %v5071, %v5235
      %v5237 = vpop.f32.mrb[0].mxu0
      %5238 = vmatprep.mubr.f32.mxu0 0.0
      %5239 = vmatmul.mubr.f32.gmra.mrb[0].mxu0 %v4912
      %v5240 = vpop.f32.mrb[0].mxu0
      %v5241 = vadd.f32 %v5076, %v5240
      %v5242 = vpop.f32.mrb[0].mxu0
      %5243 = vdwg.mxu0
      %v5244 = vmax.f32 %v5146, 0.0
      %v5245 = vmax.f32 %v5151, 0.0
      %v5246 = vmax.f32 %v5156, 0.0
      %v5247 = vmax.f32 %v5161, 0.0
      %v5248 = vmax.f32 %v5166, 0.0
      %v5249 = vmax.f32 %v5171, 0.0
      %v5250 = vmax.f32 %v5176, 0.0
      %v5251 = vmax.f32 %v5181, 0.0
      %v5252 = vmax.f32 %v5186, 0.0
      %v5253 = vmax.f32 %v5191, 0.0
      %v5254 = vmax.f32 %v5196, 0.0
      %v5255 = vmax.f32 %v5201, 0.0
      %v5256 = vmax.f32 %v5206, 0.0
      %v5257 = vmax.f32 %v5211, 0.0
      %v5258 = vmax.f32 %v5216, 0.0
      %v5259 = vmax.f32 %v5221, 0.0
      %v5260 = vmax.f32 %v5226, 0.0
      %v5261 = vmax.f32 %v5231, 0.0
      %v5262 = vmax.f32 %v5236, 0.0
      %v5263 = vmax.f32 %v5241, 0.0
      %v5284 = vcombine.high %v5244, %v5244
      %v5285 = vcombine.high %v5245, %v5245
      %v5286 = vcombine.high %v5246, %v5246
      %v5287 = vcombine.high %v5247, %v5247
      %v5288 = vcombine.high %v5248, %v5248
      %v5289 = vcombine.high %v5249, %v5249
      %v5290 = vcombine.high %v5250, %v5250
      %v5291 = vcombine.high %v5251, %v5251
      %v5292 = vcombine.high %v5252, %v5252
      %v5293 = vcombine.high %v5253, %v5253
      %v5294 = vcombine.high %v5254, %v5254
      %v5295 = vcombine.high %v5255, %v5255
      %v5296 = vcombine.high %v5256, %v5256
      %v5297 = vcombine.high %v5257, %v5257
      %v5298 = vcombine.high %v5258, %v5258
      %v5299 = vcombine.high %v5259, %v5259
      %v5300 = vcombine.high %v5260, %v5260
      %v5301 = vcombine.high %v5261, %v5261
      %v5302 = vcombine.high %v5262, %v5262
      %v5303 = vcombine.high %v5263, %v5263
      %v5324 = vsel %vm3010, %v5244, -inf
      %v5325 = vrot.slane %v5324, 4
      %v5326 = vmax.f32 %v5324, %v5325
      %v5327 = vrot.slane %v5326, 2
      %v5328 = vmax.f32 %v5326, %v5327
      %v5329 = vrot.slane %v5328, 1
      %v5330 = vmax.f32 %v5328, %v5329
      %v5331 = vsel %vm3010, %v5284, -inf
      %v5332 = vrot.slane %v5331, 4
      %v5333 = vmax.f32 %v5331, %v5332
      %v5334 = vrot.slane %v5333, 2
      %v5335 = vmax.f32 %v5333, %v5334
      %v5336 = vrot.slane %v5335, 1
      %v5337 = vmax.f32 %v5335, %v5336
      %v5338 = vsel %vm3010, %v5245, -inf
      %v5339 = vrot.slane %v5338, 4
      %v5340 = vmax.f32 %v5338, %v5339
      %v5341 = vrot.slane %v5340, 2
      %v5342 = vmax.f32 %v5340, %v5341
      %v5343 = vrot.slane %v5342, 1
      %v5344 = vmax.f32 %v5342, %v5343
      %v5345 = vsel %vm3010, %v5285, -inf
      %v5346 = vrot.slane %v5345, 4
      %v5347 = vmax.f32 %v5345, %v5346
      %v5348 = vrot.slane %v5347, 2
      %v5349 = vmax.f32 %v5347, %v5348
      %v5350 = vrot.slane %v5349, 1
      %v5351 = vmax.f32 %v5349, %v5350
      %v5352 = vsel %vm3010, %v5246, -inf
      %v5353 = vrot.slane %v5352, 4
      %v5354 = vmax.f32 %v5352, %v5353
      %v5355 = vrot.slane %v5354, 2
      %v5356 = vmax.f32 %v5354, %v5355
      %v5357 = vrot.slane %v5356, 1
      %v5358 = vmax.f32 %v5356, %v5357
      %v5359 = vsel %vm3010, %v5286, -inf
      %v5360 = vrot.slane %v5359, 4
      %v5361 = vmax.f32 %v5359, %v5360
      %v5362 = vrot.slane %v5361, 2
      %v5363 = vmax.f32 %v5361, %v5362
      %v5364 = vrot.slane %v5363, 1
      %v5365 = vmax.f32 %v5363, %v5364
      %v5366 = vsel %vm3010, %v5247, -inf
      %v5367 = vrot.slane %v5366, 4
      %v5368 = vmax.f32 %v5366, %v5367
      %v5369 = vrot.slane %v5368, 2
      %v5370 = vmax.f32 %v5368, %v5369
      %v5371 = vrot.slane %v5370, 1
      %v5372 = vmax.f32 %v5370, %v5371
      %v5373 = vsel %vm3010, %v5287, -inf
      %v5374 = vrot.slane %v5373, 4
      %v5375 = vmax.f32 %v5373, %v5374
      %v5376 = vrot.slane %v5375, 2
      %v5377 = vmax.f32 %v5375, %v5376
      %v5378 = vrot.slane %v5377, 1
      %v5379 = vmax.f32 %v5377, %v5378
      %v5380 = vsel %vm3010, %v5248, -inf
      %v5381 = vrot.slane %v5380, 4
      %v5382 = vmax.f32 %v5380, %v5381
      %v5383 = vrot.slane %v5382, 2
      %v5384 = vmax.f32 %v5382, %v5383
      %v5385 = vrot.slane %v5384, 1
      %v5386 = vmax.f32 %v5384, %v5385
      %v5387 = vsel %vm3010, %v5288, -inf
      %v5388 = vrot.slane %v5387, 4
      %v5389 = vmax.f32 %v5387, %v5388
      %v5390 = vrot.slane %v5389, 2
      %v5391 = vmax.f32 %v5389, %v5390
      %v5392 = vrot.slane %v5391, 1
      %v5393 = vmax.f32 %v5391, %v5392
      %v5394 = vsel %vm3010, %v5249, -inf
      %v5395 = vrot.slane %v5394, 4
      %v5396 = vmax.f32 %v5394, %v5395
      %v5397 = vrot.slane %v5396, 2
      %v5398 = vmax.f32 %v5396, %v5397
      %v5399 = vrot.slane %v5398, 1
      %v5400 = vmax.f32 %v5398, %v5399
      %v5401 = vsel %vm3010, %v5289, -inf
      %v5402 = vrot.slane %v5401, 4
      %v5403 = vmax.f32 %v5401, %v5402
      %v5404 = vrot.slane %v5403, 2
      %v5405 = vmax.f32 %v5403, %v5404
      %v5406 = vrot.slane %v5405, 1
      %v5407 = vmax.f32 %v5405, %v5406
      %v5408 = vsel %vm3010, %v5250, -inf
      %v5409 = vrot.slane %v5408, 4
      %v5410 = vmax.f32 %v5408, %v5409
      %v5411 = vrot.slane %v5410, 2
      %v5412 = vmax.f32 %v5410, %v5411
      %v5413 = vrot.slane %v5412, 1
      %v5414 = vmax.f32 %v5412, %v5413
      %v5415 = vsel %vm3010, %v5290, -inf
      %v5416 = vrot.slane %v5415, 4
      %v5417 = vmax.f32 %v5415, %v5416
      %v5418 = vrot.slane %v5417, 2
      %v5419 = vmax.f32 %v5417, %v5418
      %v5420 = vrot.slane %v5419, 1
      %v5421 = vmax.f32 %v5419, %v5420
      %v5422 = vsel %vm3010, %v5251, -inf
      %v5423 = vrot.slane %v5422, 4
      %v5424 = vmax.f32 %v5422, %v5423
      %v5425 = vrot.slane %v5424, 2
      %v5426 = vmax.f32 %v5424, %v5425
      %v5427 = vrot.slane %v5426, 1
      %v5428 = vmax.f32 %v5426, %v5427
      %v5429 = vsel %vm3010, %v5291, -inf
      %v5430 = vrot.slane %v5429, 4
      %v5431 = vmax.f32 %v5429, %v5430
      %v5432 = vrot.slane %v5431, 2
      %v5433 = vmax.f32 %v5431, %v5432
      %v5434 = vrot.slane %v5433, 1
      %v5435 = vmax.f32 %v5433, %v5434
      %v5436 = vsel %vm3010, %v5252, -inf
      %v5437 = vrot.slane %v5436, 4
      %v5438 = vmax.f32 %v5436, %v5437
      %v5439 = vrot.slane %v5438, 2
      %v5440 = vmax.f32 %v5438, %v5439
      %v5441 = vrot.slane %v5440, 1
      %v5442 = vmax.f32 %v5440, %v5441
      %v5443 = vsel %vm3010, %v5292, -inf
      %v5444 = vrot.slane %v5443, 4
      %v5445 = vmax.f32 %v5443, %v5444
      %v5446 = vrot.slane %v5445, 2
      %v5447 = vmax.f32 %v5445, %v5446
      %v5448 = vrot.slane %v5447, 1
      %v5449 = vmax.f32 %v5447, %v5448
      %v5450 = vsel %vm3010, %v5253, -inf
      %v5451 = vrot.slane %v5450, 4
      %v5452 = vmax.f32 %v5450, %v5451
      %v5453 = vrot.slane %v5452, 2
      %v5454 = vmax.f32 %v5452, %v5453
      %v5455 = vrot.slane %v5454, 1
      %v5456 = vmax.f32 %v5454, %v5455
      %v5457 = vsel %vm3010, %v5293, -inf
      %v5458 = vrot.slane %v5457, 4
      %v5459 = vmax.f32 %v5457, %v5458
      %v5460 = vrot.slane %v5459, 2
      %v5461 = vmax.f32 %v5459, %v5460
      %v5462 = vrot.slane %v5461, 1
      %v5463 = vmax.f32 %v5461, %v5462
      %v5464 = vsel %vm3010, %v5254, -inf
      %v5465 = vrot.slane %v5464, 4
      %v5466 = vmax.f32 %v5464, %v5465
      %v5467 = vrot.slane %v5466, 2
      %v5468 = vmax.f32 %v5466, %v5467
      %v5469 = vrot.slane %v5468, 1
      %v5470 = vmax.f32 %v5468, %v5469
      %v5471 = vsel %vm3010, %v5294, -inf
      %v5472 = vrot.slane %v5471, 4
      %v5473 = vmax.f32 %v5471, %v5472
      %v5474 = vrot.slane %v5473, 2
      %v5475 = vmax.f32 %v5473, %v5474
      %v5476 = vrot.slane %v5475, 1
      %v5477 = vmax.f32 %v5475, %v5476
      %v5478 = vsel %vm3010, %v5255, -inf
      %v5479 = vrot.slane %v5478, 4
      %v5480 = vmax.f32 %v5478, %v5479
      %v5481 = vrot.slane %v5480, 2
      %v5482 = vmax.f32 %v5480, %v5481
      %v5483 = vrot.slane %v5482, 1
      %v5484 = vmax.f32 %v5482, %v5483
      %v5485 = vsel %vm3010, %v5295, -inf
      %v5486 = vrot.slane %v5485, 4
      %v5487 = vmax.f32 %v5485, %v5486
      %v5488 = vrot.slane %v5487, 2
      %v5489 = vmax.f32 %v5487, %v5488
      %v5490 = vrot.slane %v5489, 1
      %v5491 = vmax.f32 %v5489, %v5490
      %v5492 = vsel %vm3010, %v5256, -inf
      %v5493 = vrot.slane %v5492, 4
      %v5494 = vmax.f32 %v5492, %v5493
      %v5495 = vrot.slane %v5494, 2
      %v5496 = vmax.f32 %v5494, %v5495
      %v5497 = vrot.slane %v5496, 1
      %v5498 = vmax.f32 %v5496, %v5497
      %v5499 = vsel %vm3010, %v5296, -inf
      %v5500 = vrot.slane %v5499, 4
      %v5501 = vmax.f32 %v5499, %v5500
      %v5502 = vrot.slane %v5501, 2
      %v5503 = vmax.f32 %v5501, %v5502
      %v5504 = vrot.slane %v5503, 1
      %v5505 = vmax.f32 %v5503, %v5504
      %v5506 = vsel %vm3010, %v5257, -inf
      %v5507 = vrot.slane %v5506, 4
      %v5508 = vmax.f32 %v5506, %v5507
      %v5509 = vrot.slane %v5508, 2
      %v5510 = vmax.f32 %v5508, %v5509
      %v5511 = vrot.slane %v5510, 1
      %v5512 = vmax.f32 %v5510, %v5511
      %v5513 = vsel %vm3010, %v5297, -inf
      %v5514 = vrot.slane %v5513, 4
      %v5515 = vmax.f32 %v5513, %v5514
      %v5516 = vrot.slane %v5515, 2
      %v5517 = vmax.f32 %v5515, %v5516
      %v5518 = vrot.slane %v5517, 1
      %v5519 = vmax.f32 %v5517, %v5518
      %v5520 = vsel %vm3010, %v5258, -inf
      %v5521 = vrot.slane %v5520, 4
      %v5522 = vmax.f32 %v5520, %v5521
      %v5523 = vrot.slane %v5522, 2
      %v5524 = vmax.f32 %v5522, %v5523
      %v5525 = vrot.slane %v5524, 1
      %v5526 = vmax.f32 %v5524, %v5525
      %v5527 = vsel %vm3010, %v5298, -inf
      %v5528 = vrot.slane %v5527, 4
      %v5529 = vmax.f32 %v5527, %v5528
      %v5530 = vrot.slane %v5529, 2
      %v5531 = vmax.f32 %v5529, %v5530
      %v5532 = vrot.slane %v5531, 1
      %v5533 = vmax.f32 %v5531, %v5532
      %v5534 = vsel %vm3010, %v5259, -inf
      %v5535 = vrot.slane %v5534, 4
      %v5536 = vmax.f32 %v5534, %v5535
      %v5537 = vrot.slane %v5536, 2
      %v5538 = vmax.f32 %v5536, %v5537
      %v5539 = vrot.slane %v5538, 1
      %v5540 = vmax.f32 %v5538, %v5539
      %v5541 = vsel %vm3010, %v5299, -inf
      %v5542 = vrot.slane %v5541, 4
      %v5543 = vmax.f32 %v5541, %v5542
      %v5544 = vrot.slane %v5543, 2
      %v5545 = vmax.f32 %v5543, %v5544
      %v5546 = vrot.slane %v5545, 1
      %v5547 = vmax.f32 %v5545, %v5546
      %v5548 = vsel %vm3010, %v5260, -inf
      %v5549 = vrot.slane %v5548, 4
      %v5550 = vmax.f32 %v5548, %v5549
      %v5551 = vrot.slane %v5550, 2
      %v5552 = vmax.f32 %v5550, %v5551
      %v5553 = vrot.slane %v5552, 1
      %v5554 = vmax.f32 %v5552, %v5553
      %v5555 = vsel %vm3010, %v5300, -inf
      %v5556 = vrot.slane %v5555, 4
      %v5557 = vmax.f32 %v5555, %v5556
      %v5558 = vrot.slane %v5557, 2
      %v5559 = vmax.f32 %v5557, %v5558
      %v5560 = vrot.slane %v5559, 1
      %v5561 = vmax.f32 %v5559, %v5560
      %v5562 = vsel %vm3010, %v5261, -inf
      %v5563 = vrot.slane %v5562, 4
      %v5564 = vmax.f32 %v5562, %v5563
      %v5565 = vrot.slane %v5564, 2
      %v5566 = vmax.f32 %v5564, %v5565
      %v5567 = vrot.slane %v5566, 1
      %v5568 = vmax.f32 %v5566, %v5567
      %v5569 = vsel %vm3010, %v5301, -inf
      %v5570 = vrot.slane %v5569, 4
      %v5571 = vmax.f32 %v5569, %v5570
      %v5572 = vrot.slane %v5571, 2
      %v5573 = vmax.f32 %v5571, %v5572
      %v5574 = vrot.slane %v5573, 1
      %v5575 = vmax.f32 %v5573, %v5574
      %v5576 = vsel %vm3010, %v5262, -inf
      %v5577 = vrot.slane %v5576, 4
      %v5578 = vmax.f32 %v5576, %v5577
      %v5579 = vrot.slane %v5578, 2
      %v5580 = vmax.f32 %v5578, %v5579
      %v5581 = vrot.slane %v5580, 1
      %v5582 = vmax.f32 %v5580, %v5581
      %v5583 = vsel %vm3010, %v5302, -inf
      %v5584 = vrot.slane %v5583, 4
      %v5585 = vmax.f32 %v5583, %v5584
      %v5586 = vrot.slane %v5585, 2
      %v5587 = vmax.f32 %v5585, %v5586
      %v5588 = vrot.slane %v5587, 1
      %v5589 = vmax.f32 %v5587, %v5588
      %v5590 = vsel %vm3010, %v5263, -inf
      %v5591 = vrot.slane %v5590, 4
      %v5592 = vmax.f32 %v5590, %v5591
      %v5593 = vrot.slane %v5592, 2
      %v5594 = vmax.f32 %v5592, %v5593
      %v5595 = vrot.slane %v5594, 1
      %v5596 = vmax.f32 %v5594, %v5595
      %v5597 = vsel %vm3010, %v5303, -inf
      %v5598 = vrot.slane %v5597, 4
      %v5599 = vmax.f32 %v5597, %v5598
      %v5600 = vrot.slane %v5599, 2
      %v5601 = vmax.f32 %v5599, %v5600
      %v5602 = vrot.slane %v5601, 1
      %v5603 = vmax.f32 %v5601, %v5602
      %v5604 = vsel %vm4481, %v5330, -inf
      %v5605 = vsel %vm4481, %v5365, -inf
      %v5606 = vmax.f32 %v5604, %v5605
      %v5607 = vsel %vm4481, %v5400, -inf
      %v5608 = vmax.f32 %v5606, %v5607
      %v5609 = vsel %vm4481, %v5435, -inf
      %v5610 = vmax.f32 %v5608, %v5609
      %v5611 = vsel %vm4481, %v5337, -inf
      %v5612 = vsel %vm4481, %v5372, -inf
      %v5613 = vmax.f32 %v5611, %v5612
      %v5614 = vsel %vm4481, %v5407, -inf
      %v5615 = vmax.f32 %v5613, %v5614
      %v5616 = vsel %vm4481, %v5442, -inf
      %v5617 = vmax.f32 %v5615, %v5616
      %v5618 = vsel %vm4481, %v5344, -inf
      %v5619 = vsel %vm4481, %v5379, -inf
      %v5620 = vmax.f32 %v5618, %v5619
      %v5621 = vsel %vm4481, %v5414, -inf
      %v5622 = vmax.f32 %v5620, %v5621
      %v5623 = vsel %vm4481, %v5449, -inf
      %v5624 = vmax.f32 %v5622, %v5623
      %v5625 = vsel %vm4481, %v5351, -inf
      %v5626 = vsel %vm4481, %v5386, -inf
      %v5627 = vmax.f32 %v5625, %v5626
      %v5628 = vsel %vm4481, %v5421, -inf
      %v5629 = vmax.f32 %v5627, %v5628
      %v5630 = vsel %vm4481, %v5456, -inf
      %v5631 = vmax.f32 %v5629, %v5630
      %v5632 = vsel %vm4481, %v5358, -inf
      %v5633 = vsel %vm4481, %v5393, -inf
      %v5634 = vmax.f32 %v5632, %v5633
      %v5635 = vsel %vm4481, %v5428, -inf
      %v5636 = vmax.f32 %v5634, %v5635
      %v5637 = vsel %vm4481, %v5463, -inf
      %v5638 = vmax.f32 %v5636, %v5637
      %v5639 = vsel %vm4481, %v5470, -inf
      %v5640 = vsel %vm4481, %v5505, -inf
      %v5641 = vmax.f32 %v5639, %v5640
      %v5642 = vsel %vm4481, %v5540, -inf
      %v5643 = vmax.f32 %v5641, %v5642
      %v5644 = vsel %vm4481, %v5575, -inf
      %v5645 = vmax.f32 %v5643, %v5644
      %v5646 = vsel %vm4481, %v5477, -inf
      %v5647 = vsel %vm4481, %v5512, -inf
      %v5648 = vmax.f32 %v5646, %v5647
      %v5649 = vsel %vm4481, %v5547, -inf
      %v5650 = vmax.f32 %v5648, %v5649
      %v5651 = vsel %vm4481, %v5582, -inf
      %v5652 = vmax.f32 %v5650, %v5651
      %v5653 = vsel %vm4481, %v5484, -inf
      %v5654 = vsel %vm4481, %v5519, -inf
      %v5655 = vmax.f32 %v5653, %v5654
      %v5656 = vsel %vm4481, %v5554, -inf
      %v5657 = vmax.f32 %v5655, %v5656
      %v5658 = vsel %vm4481, %v5589, -inf
      %v5659 = vmax.f32 %v5657, %v5658
      %v5660 = vsel %vm4481, %v5491, -inf
      %v5661 = vsel %vm4481, %v5526, -inf
      %v5662 = vmax.f32 %v5660, %v5661
      %v5663 = vsel %vm4481, %v5561, -inf
      %v5664 = vmax.f32 %v5662, %v5663
      %v5665 = vsel %vm4481, %v5596, -inf
      %v5666 = vmax.f32 %v5664, %v5665
      %v5667 = vsel %vm4481, %v5498, -inf
      %v5668 = vsel %vm4481, %v5533, -inf
      %v5669 = vmax.f32 %v5667, %v5668
      %v5670 = vsel %vm4481, %v5568, -inf
      %v5671 = vmax.f32 %v5669, %v5670
      %v5672 = vsel %vm4481, %v5603, -inf
      %v5673 = vmax.f32 %v5671, %v5672
      %5675 = vrot.lane.b32.xlu0 %v5617, 32
      %v5676 = vpop.permute.xlu0 %5675
      %5679 = vrot.lane.b32.xlu0 %v5624, 64
      %v5680 = vpop.permute.xlu0 %5679
      %5683 = vrot.lane.b32.xlu0 %v5631, 96
      %v5684 = vpop.permute.xlu0 %5683
      %5687 = vrot.lane.b32.xlu0 %v5645, 32
      %v5688 = vpop.permute.xlu0 %5687
      %5691 = vrot.lane.b32.xlu0 %v5652, 64
      %v5692 = vpop.permute.xlu0 %5691
      %5695 = vrot.lane.b32.xlu0 %v5659, 96
      %v5696 = vpop.permute.xlu0 %5695
      %5699 = vrot.lane.b32.xlu0 %v5673, 32
      %v5700 = vpop.permute.xlu0 %5699
      %v5702 = vsel %vm4481, %v5610, %v5676
      %v5703 = vsel %vm544, %v5702, %v5680
      %v5704 = vsel %vm4530, %v5703, %v5684
      %v5705 = vsel %vm4481, %v5638, %v5688
      %v5706 = vsel %vm544, %v5705, %v5692
      %v5707 = vsel %vm4530, %v5706, %v5696
      %v5708 = vsel %vm4481, %v5666, %v5700
      %v5709 = vld [vmem:[%s5] sm:$0xff]
      %v5710 = vld [vmem:[%s5 + $0x8] sm:$0xff]
      %v5711 = vld [vmem:[%s5 + $0x10] sm:$0xff]
      %v5712 = vld [vmem:[%s5 + $0x18] sm:$0xff]
      %v5713 = vld [vmem:[%s5 + $0x20] sm:$0xff]
      %v5714 = vld [vmem:[%s5 + $0x28] sm:$0xff]
      %v5715 = vld [vmem:[%s5 + $0x30] sm:$0xff]
      %v5716 = vld [vmem:[%s5 + $0x38] sm:$0xff]
      %v5717 = vld [vmem:[%s5 + $0x40] sm:$0xff]
      %v5718 = vld [vmem:[%s5 + $0x48] sm:$0xff]
      %v5719 = vld [vmem:[%s5 + $0x50] sm:$0xff]
      %v5720 = vld [vmem:[%s5 + $0x58] sm:$0xff]
      %v5721 = vld [vmem:[%s5 + $0x60] sm:$0xff]
      %v5722 = vld [vmem:[%s5 + $0x68] sm:$0xff]
      %v5723 = vld [vmem:[%s5 + $0x70] sm:$0xff]
      %v5724 = vld [vmem:[%s5 + $0x78] sm:$0xff]
      %v5725 = vld [vmem:[%s5 + $0x80] sm:$0xff]
      %v5726 = vld [vmem:[%s5 + $0x88] sm:$0xff]
      %v5727 = vld [vmem:[%s5 + $0x90] sm:$0xff]
      %v5728 = vld [vmem:[%s5 + $0x98] sm:$0xff]
      %v5729 = vld [vmem:[%s5 + $0xa0] sm:$0xff]
      %v5730 = vld [vmem:[%s5 + $0xa8] sm:$0xff]
      %v5731 = vld [vmem:[%s5 + $0xb0] sm:$0xff]
      %v5732 = vld [vmem:[%s5 + $0xb8] sm:$0xff]
      %v5733 = vld [vmem:[%s5 + $0xc0] sm:$0xff]
      %v5734 = vld [vmem:[%s5 + $0xc8] sm:$0xff]
      %v5735 = vld [vmem:[%s5 + $0xd0] sm:$0xff]
      %v5736 = vld [vmem:[%s5 + $0xd8] sm:$0xff]
      %v5737 = vld [vmem:[%s5 + $0xe0] sm:$0xff]
      %v5738 = vld [vmem:[%s5 + $0xe8] sm:$0xff]
      %v5739 = vld [vmem:[%s5 + $0xf0] sm:$0xff]
      %v5740 = vld [vmem:[%s5 + $0xf8] sm:$0xff]
      %v5741 = vld [vmem:[%s5 + $0x100] sm:$0xff]
      %v5742 = vld [vmem:[%s5 + $0x108] sm:$0xff]
      %v5743 = vld [vmem:[%s5 + $0x110] sm:$0xff]
      %v5744 = vld [vmem:[%s5 + $0x118] sm:$0xff]
      %v5745 = vld [vmem:[%s5 + $0x120] sm:$0xff]
      %v5746 = vld [vmem:[%s5 + $0x128] sm:$0xff]
      %v5747 = vld [vmem:[%s5 + $0x130] sm:$0xff]
      %v5748 = vld [vmem:[%s5 + $0x138] sm:$0xff]
      %v5749 = vld [vmem:[%s6] sm:$0x1]
      %v5751 = vsel %vm544, %v5708, 0
      %5753 = vmatprep.subr.mxu0 0.0
      %5754 = vmatpush1.msra.mxu0 %v5709
      %5755 = vmatprep.subr.mxu0 0.0
      %5756 = vmatpush1.msra.mxu0 %v5710
      %5757 = vmatprep.subr.mxu0 0.0
      %5758 = vmatpush1.msra.mxu0 %v5711
      %5759 = vmatprep.subr.mxu0 0.0
      %5760 = vmatpush1.msra.mxu0 %v5712
      %5761 = vmatprep.subr.mxu0 0.0
      %5762 = vmatpush1.msra.mxu0 %v5713
      %5763 = vmatprep.subr.mxu0 0.0
      %5764 = vmatpush1.msra.mxu0 %v5714
      %5765 = vmatprep.subr.mxu0 0.0
      %5766 = vmatpush1.msra.mxu0 %v5715
      %5767 = vmatprep.subr.mxu0 0.0
      %5768 = vmatpush1.msra.mxu0 %v5716
      %5769 = vmatprep.subr.mxu0 0.0
      %5770 = vmatpush1.msra.mxu0 %v5717
      %5771 = vmatprep.subr.mxu0 0.0
      %5772 = vmatpush1.msra.mxu0 %v5718
      %5773 = vmatprep.subr.mxu0 0.0
      %5774 = vmatpush1.msra.mxu0 %v5719
      %5775 = vmatprep.subr.mxu0 0.0
      %5776 = vmatpush1.msra.mxu0 %v5720
      %5777 = vmatprep.subr.mxu0 0.0
      %5778 = vmatpush1.msra.mxu0 %v5721
      %5779 = vmatprep.subr.mxu0 0.0
      %5780 = vmatpush1.msra.mxu0 %v5722
      %5781 = vmatprep.subr.mxu0 0.0
      %5782 = vmatpush1.msra.mxu0 %v5723
      %5783 = vmatprep.subr.mxu0 0.0
      %5784 = vmatpush1.msra.mxu0 %v5724
      %5785 = vmatprep.subr.mxu0 0.0
      %5786 = vmatpush1.msra.mxu0 %v5725
      %5787 = vmatprep.subr.mxu0 0.0
      %5788 = vmatpush1.msra.mxu0 %v5726
      %5789 = vmatprep.subr.mxu0 0.0
      %5790 = vmatpush1.msra.mxu0 %v5727
      %5791 = vmatprep.subr.mxu0 0.0
      %5792 = vmatpush1.msra.mxu0 %v5728
      %5793 = vmatprep.subr.mxu0 0.0
      %5794 = vmatpush1.msra.mxu0 %v5729
      %5795 = vmatprep.subr.mxu0 0.0
      %5796 = vmatpush1.msra.mxu0 %v5730
      %5797 = vmatprep.subr.mxu0 0.0
      %5798 = vmatpush1.msra.mxu0 %v5731
      %5799 = vmatprep.subr.mxu0 0.0
      %5800 = vmatpush1.msra.mxu0 %v5732
      %5801 = vmatprep.subr.mxu0 0.0
      %5802 = vmatpush1.msra.mxu0 %v5733
      %5803 = vmatprep.subr.mxu0 0.0
      %5804 = vmatpush1.msra.mxu0 %v5734
      %5805 = vmatprep.subr.mxu0 0.0
      %5806 = vmatpush1.msra.mxu0 %v5735
      %5807 = vmatprep.subr.mxu0 0.0
      %5808 = vmatpush1.msra.mxu0 %v5736
      %5809 = vmatprep.subr.mxu0 0.0
      %5810 = vmatpush1.msra.mxu0 %v5737
      %5811 = vmatprep.subr.mxu0 0.0
      %5812 = vmatpush1.msra.mxu0 %v5738
      %5813 = vmatprep.subr.mxu0 0.0
      %5814 = vmatpush1.msra.mxu0 %v5739
      %5815 = vmatprep.subr.mxu0 0.0
      %5816 = vmatpush1.msra.mxu0 %v5740
      %5817 = vmatprep.mubr.f32.mxu0 %v5707
      %5818 = vmatmul.mubr.f32.gmra.mrb[0].mxu0 %v5704
      %v5819 = vpop.f32.mrb[0].mxu0
      %v5820 = vadd.f32 %v5749, %v5819
      %v5821 = vpop.f32.mrb[0].mxu0
      %5822 = vdwg.mxu0
      %5823 = vmatprep.subr.mxu0 0.0
      %5824 = vmatpush1.msra.mxu0 %v5741
      %5825 = vmatprep.subr.mxu0 0.0
      %5826 = vmatpush1.msra.mxu0 %v5742
      %5827 = vmatprep.subr.mxu0 0.0
      %5828 = vmatpush1.msra.mxu0 %v5743
      %5829 = vmatprep.subr.mxu0 0.0
      %5830 = vmatpush1.msra.mxu0 %v5744
      %5831 = vmatprep.subr.mxu0 0.0
      %5832 = vmatpush1.msra.mxu0 %v5745
      %5833 = vmatprep.subr.mxu0 0.0
      %5834 = vmatpush1.msra.mxu0 %v5746
      %5835 = vmatprep.subr.mxu0 0.0
      %5836 = vmatpush1.msra.mxu0 %v5747
      %5837 = vmatprep.subr.mxu0 0.0
      %5838 = vmatpush1.msra.mxu0 %v5748
      %5839 = vmatprep.subr.mxu0 0.0
      %5840 = vmatpush1.msra.mxu0 0.0
      %5841 = vmatprep.subr.mxu0 0.0
      %5842 = vmatpush1.msra.mxu0 0.0
      %5843 = vmatprep.subr.mxu0 0.0
      %5844 = vmatpush1.msra.mxu0 0.0
      %5845 = vmatprep.subr.mxu0 0.0
      %5846 = vmatpush1.msra.mxu0 0.0
      %5847 = vmatprep.subr.mxu0 0.0
      %5848 = vmatpush1.msra.mxu0 0.0
      %5849 = vmatprep.subr.mxu0 0.0
      %5850 = vmatpush1.msra.mxu0 0.0
      %5851 = vmatprep.subr.mxu0 0.0
      %5852 = vmatpush1.msra.mxu0 0.0
      %5853 = vmatprep.subr.mxu0 0.0
      %5854 = vmatpush1.msra.mxu0 0.0
      %5855 = vmatprep.subr.mxu0 0.0
      %5856 = vmatpush1.msra.mxu0 0.0
      %5857 = vmatprep.subr.mxu0 0.0
      %5858 = vmatpush1.msra.mxu0 0.0
      %5859 = vmatprep.subr.mxu0 0.0
      %5860 = vmatpush1.msra.mxu0 0.0
      %5861 = vmatprep.subr.mxu0 0.0
      %5862 = vmatpush1.msra.mxu0 0.0
      %5863 = vmatprep.subr.mxu0 0.0
      %5864 = vmatpush1.msra.mxu0 0.0
      %5865 = vmatprep.subr.mxu0 0.0
      %5866 = vmatpush1.msra.mxu0 0.0
      %5867 = vmatprep.subr.mxu0 0.0
      %5868 = vmatpush1.msra.mxu0 0.0
      %5869 = vmatprep.subr.mxu0 0.0
      %5870 = vmatpush1.msra.mxu0 0.0
      %5871 = vmatprep.subr.mxu0 0.0
      %5872 = vmatpush1.msra.mxu0 0.0
      %5873 = vmatprep.subr.mxu0 0.0
      %5874 = vmatpush1.msra.mxu0 0.0
      %5875 = vmatprep.subr.mxu0 0.0
      %5876 = vmatpush1.msra.mxu0 0.0
      %5877 = vmatprep.subr.mxu0 0.0
      %5878 = vmatpush1.msra.mxu0 0.0
      %5879 = vmatprep.subr.mxu0 0.0
      %5880 = vmatpush1.msra.mxu0 0.0
      %5881 = vmatprep.subr.mxu0 0.0
      %5882 = vmatpush1.msra.mxu0 0.0
      %5883 = vmatprep.subr.mxu0 0.0
      %5884 = vmatpush1.msra.mxu0 0.0
      %5885 = vmatprep.subr.mxu0 0.0
      %5886 = vmatpush1.msra.mxu0 0.0
      %5887 = vmatprep.mubr.f32.mxu0 0.0
      %5888 = vmatmul.mubr.f32.gmra.mrb[0].mxu0 %v5751
      %v5889 = vpop.f32.mrb[0].mxu0
      %v5890 = vadd.f32 %v5820, %v5889
      %v5891 = vpop.f32.mrb[0].mxu0
      %5892 = vdwg.mxu0
      %v5893 = vmax.f32 %v5890, 0.0
      %v5894 = vld [vmem:[%s7] sm:$0xff]
      %v5895 = vld [vmem:[%s7 + $0x8] sm:$0xff]
      %v5896 = vld [vmem:[%s7 + $0x10] sm:$0xff]
      %v5897 = vld [vmem:[%s7 + $0x18] sm:$0xff]
      %v5898 = vld [vmem:[%s7 + $0x20] sm:$0xff]
      %v5899 = vld [vmem:[%s7 + $0x28] sm:$0xff]
      %v5900 = vld [vmem:[%s7 + $0x30] sm:$0xff]
      %v5901 = vld [vmem:[%s7 + $0x38] sm:$0xff]
      %v5902 = vld [vmem:[%s8] sm:$0x1]
      %v5904 = vsel %vm544, %v5893, 0
      %5906 = vmatprep.subr.mxu0 0.0
      %5907 = vmatpush1.msra.mxu0 %v5894
      %5908 = vmatprep.subr.mxu0 0.0
      %5909 = vmatpush1.msra.mxu0 %v5895
      %5910 = vmatprep.subr.mxu0 0.0
      %5911 = vmatpush1.msra.mxu0 %v5896
      %5912 = vmatprep.subr.mxu0 0.0
      %5913 = vmatpush1.msra.mxu0 %v5897
      %5914 = vmatprep.subr.mxu0 0.0
      %5915 = vmatpush1.msra.mxu0 %v5898
      %5916 = vmatprep.subr.mxu0 0.0
      %5917 = vmatpush1.msra.mxu0 %v5899
      %5918 = vmatprep.subr.mxu0 0.0
      %5919 = vmatpush1.msra.mxu0 %v5900
      %5920 = vmatprep.subr.mxu0 0.0
      %5921 = vmatpush1.msra.mxu0 %v5901
      %5922 = vmatprep.subr.mxu0 0.0
      %5923 = vmatpush1.msra.mxu0 0.0
      %5924 = vmatprep.subr.mxu0 0.0
      %5925 = vmatpush1.msra.mxu0 0.0
      %5926 = vmatprep.subr.mxu0 0.0
      %5927 = vmatpush1.msra.mxu0 0.0
      %5928 = vmatprep.subr.mxu0 0.0
      %5929 = vmatpush1.msra.mxu0 0.0
      %5930 = vmatprep.subr.mxu0 0.0
      %5931 = vmatpush1.msra.mxu0 0.0
      %5932 = vmatprep.subr.mxu0 0.0
      %5933 = vmatpush1.msra.mxu0 0.0
      %5934 = vmatprep.subr.mxu0 0.0
      %5935 = vmatpush1.msra.mxu0 0.0
      %5936 = vmatprep.subr.mxu0 0.0
      %5937 = vmatpush1.msra.mxu0 0.0
      %5938 = vmatprep.subr.mxu0 0.0
      %5939 = vmatpush1.msra.mxu0 0.0
      %5940 = vmatprep.subr.mxu0 0.0
      %5941 = vmatpush1.msra.mxu0 0.0
      %5942 = vmatprep.subr.mxu0 0.0
      %5943 = vmatpush1.msra.mxu0 0.0
      %5944 = vmatprep.subr.mxu0 0.0
      %5945 = vmatpush1.msra.mxu0 0.0
      %5946 = vmatprep.subr.mxu0 0.0
      %5947 = vmatpush1.msra.mxu0 0.0
      %5948 = vmatprep.subr.mxu0 0.0
      %5949 = vmatpush1.msra.mxu0 0.0
      %5950 = vmatprep.subr.mxu0 0.0
      %5951 = vmatpush1.msra.mxu0 0.0
      %5952 = vmatprep.subr.mxu0 0.0
      %5953 = vmatpush1.msra.mxu0 0.0
      %5954 = vmatprep.subr.mxu0 0.0
      %5955 = vmatpush1.msra.mxu0 0.0
      %5956 = vmatprep.subr.mxu0 0.0
      %5957 = vmatpush1.msra.mxu0 0.0
      %5958 = vmatprep.subr.mxu0 0.0
      %5959 = vmatpush1.msra.mxu0 0.0
      %5960 = vmatprep.subr.mxu0 0.0
      %5961 = vmatpush1.msra.mxu0 0.0
      %5962 = vmatprep.subr.mxu0 0.0
      %5963 = vmatpush1.msra.mxu0 0.0
      %5964 = vmatprep.subr.mxu0 0.0
      %5965 = vmatpush1.msra.mxu0 0.0
      %5966 = vmatprep.subr.mxu0 0.0
      %5967 = vmatpush1.msra.mxu0 0.0
      %5968 = vmatprep.subr.mxu0 0.0
      %5969 = vmatpush1.msra.mxu0 0.0
      %5970 = vmatprep.mubr.f32.mxu0 0.0
      %5971 = vmatmul.mubr.f32.gmra.mrb[0].mxu0 %v5904
      %v5972 = vpop.f32.mrb[0].mxu0
      %v5973 = vadd.f32 %v5902, %v5972
      %v5974 = vpop.f32.mrb[0].mxu0
      %5975 = vdwg.mxu0
      %vm5976 = vcmp.gt.f32.partialorder %v5973, 20.0
      %v5977 = vmin.f32 %v5973, 20.0
      %v5978 = vmul.f32 %v5977, 1.442695
      %v5979 = vpow.pop %v5978
      %v5980 = vadd.f32 %v5979, 1.0
      %v5981 = vlog2.pop %v5980
      %v5982 = vmul.f32 %v5981, 0.6931472
      %v5983 = vsel %vm5976, %v5973, %v5982
      %vm5984 = vcmask 73728
      %5985 = vst.msk [vmem:[%s328] sm:$0x1] %vm5984, %v5983
      %p5986 = scmp.lt.s32.totalorder %s20, 1
      %s5987 = scalar_select %p5986, %s20, 1
      %s5988 = scalar_lea.vmem %s9, %s5987
      // Predicated region
      $region57: #{vc_ensemble_forward.3} parent=55 // pred_check
        %p5989 = pneg %p232
      $region58: #{vc_ensemble_forward.3} parent=55 // pred_check_branch
        %5991 = sbr.rel (%p5989) target = $region60
      $region59: #{vc_ensemble_forward.3} parent=55 // pred_region
        _
      $region60: #{vc_ensemble_forward.3} parent=55 // pred_fallthru
        _
    $region56: #{vc_ensemble_forward.3} parent=5 // pred_fallthru
      _
    %p5992 = scmp.le.s32.totalorder 2, %s15
    // Predicated region
    $region61: #{vc_ensemble_forward.3} parent=5 // pred_check
      %p5993 = pneg %p5992
    $region62: #{vc_ensemble_forward.3} parent=5 // pred_check_branch
      %5995 = sbr.rel (%p5993) target = $region64
    $region63: #{vc_ensemble_forward.3} parent=5 // pred_region
      %s5996 = ssub.s32 %s15, 2
      // Predicated region
      $region65: #{vc_ensemble_forward.3} parent=63 // pred_check
        %p5997 = pneg %p238
      $region66: #{vc_ensemble_forward.3} parent=63 // pred_check_branch
        %5999 = sbr.rel (%p5997) target = $region68
      $region67: #{vc_ensemble_forward.3} parent=63 // pred_region
        %p6000 = scmp.lt.s32.totalorder %s21, 1
        %s6001 = scalar_select %p6000, %s21, 1
        %s6002 = scalar_lea.vmem %s9, %s6001
      $region68: #{vc_ensemble_forward.3} parent=63 // pred_fallthru
        _
    $region64: #{vc_ensemble_forward.3} parent=5 // pred_fallthru
      _
  $region6: #{vc_ensemble_forward.3} parent=0 // loop_footer
    %s19 = sadd.s32 1, %s15
  $region7: #{vc_ensemble_forward.3} parent=0 // loop_footer_branch
    %14 = sbr.rel target = $region3
  $region8: #{vc_ensemble_forward.3} parent=0 // loop_exit
    _

// kernel: vc_ensemble_forward.2
$region0: #{vc_ensemble_forward.2}
  #allocation0 [shape = 'u32[]', space=smem, size = 0x4, offset = 0x4, fixed_abs, tag = 'smem constant byte address 0x4 - core index']
  #allocation1 [shape = 'u32[144,128]{1,0:T(1,128)}', space=vmem, size = 0x12000, scoped, tag = 'internal scratch']
  %s0 = inlined_call_operand.vmem [shape: f32[2,25,64], index: 0, kind: input, shape index: {}]
  %s1 = inlined_call_operand.vmem [shape: f32[64,64], index: 1, kind: input, shape index: {}]
  %s2 = inlined_call_operand.vmem [shape: f32[26,64], index: 2, kind: input, shape index: {}]
  %s3 = inlined_call_operand.vmem [shape: f32[1,64], index: 3, kind: input, shape index: {}]
  %s4 = inlined_call_operand.vmem [shape: f32[1,64], index: 4, kind: input, shape index: {}]
  %s5 = inlined_call_operand.vmem [shape: f32[1,64], index: 5, kind: input, shape index: {}]
  %s6 = inlined_call_operand.vmem [shape: f32[1,64], index: 6, kind: input, shape index: {}]
  %s7 = inlined_call_operand.vmem [shape: f32[64,192], index: 7, kind: input, shape index: {}]
  %s8 = inlined_call_operand.vmem [shape: f32[1,192], index: 8, kind: input, shape index: {}]
  %s9 = inlined_call_operand.vmem [shape: f32[64,64], index: 9, kind: input, shape index: {}]
  %s10 = inlined_call_operand.vmem [shape: f32[1,64], index: 10, kind: input, shape index: {}]
  %s11 = inlined_call_operand.vmem [shape: f32[1,64], index: 11, kind: input, shape index: {}]
  %s12 = inlined_call_operand.vmem [shape: f32[1,64], index: 12, kind: input, shape index: {}]
  %s13 = inlined_call_operand.vmem [shape: f32[64,256], index: 13, kind: input, shape index: {}]
  %s14 = inlined_call_operand.vmem [shape: f32[1,256], index: 14, kind: input, shape index: {}]
  %s15 = inlined_call_operand.vmem [shape: f32[256,64], index: 15, kind: input, shape index: {}]
  %s16 = inlined_call_operand.vmem [shape: f32[1,64], index: 16, kind: input, shape index: {}]
  %s17 = inlined_call_operand.vmem [shape: f32[1,64], index: 17, kind: input, shape index: {}]
  %s18 = inlined_call_operand.vmem [shape: f32[1,64], index: 18, kind: input, shape index: {}]
  %s19 = inlined_call_operand.vmem [shape: f32[64,10], index: 19, kind: input, shape index: {}]
  %s20 = inlined_call_operand.vmem [shape: f32[2,1,10], index: 20, kind: output, shape index: {}]
  %s21 = sld [smem:[#allocation0]]
  $region113: #{vc_ensemble_forward.2} parent=0
    _
  %s23 = ssub.s32 1, %s21
  %s24 = scalar_select 0, %s23, %s21
  loop: start=0, step=1, limit=4
  $region2: #{vc_ensemble_forward.2} parent=0 // loop_pre_header
    _
  $region3: #{vc_ensemble_forward.2} parent=0 // loop_header
    %s26 = sphi 0, %s30
    %p27 = scmp.ge.s32.totalorder %s26, 4
    %s36 = sphi 0, %s38
    %s39 = sphi 0, %s36
    %s40 = sphi 0, %s39
    %s56 = sphi 0, %s40
    %s60 = sphi 0, %s60
    %s62 = sphi 0, %s60
    %s63 = sphi 0, %s62
    %s77 = sphi 0, %s63
    %s81 = sphi 0, %s81
    %s83 = sphi 0, %s81
    %s84 = sphi 0, %s83
    %s98 = sphi 0, %s84
    %s102 = sphi 0, %s102
    %s104 = sphi 0, %s102
    %s105 = sphi 0, %s104
    %s119 = sphi 0, %s105
    %s123 = sphi 0, %s123
    %s125 = sphi 0, %s123
    %s126 = sphi 0, %s125
    %s140 = sphi 0, %s126
    %s144 = sphi 0, %s144
    %s146 = sphi 0, %s144
    %s147 = sphi 0, %s146
    %s161 = sphi 0, %s147
    %s165 = sphi 0, %s165
    %s167 = sphi 0, %s165
    %s168 = sphi 0, %s167
    %s182 = sphi 0, %s168
    %s186 = sphi 0, %s186
    %s188 = sphi 0, %s186
    %s189 = sphi 0, %s188
    %s203 = sphi 0, %s189
    %s207 = sphi 0, %s207
    %s209 = sphi 0, %s207
    %s210 = sphi 0, %s209
    %s224 = sphi 0, %s210
    %s228 = sphi 0, %s228
    %s230 = sphi 0, %s228
    %s231 = sphi 0, %s230
    %s245 = sphi 0, %s231
    %s249 = sphi 0, %s249
    %s251 = sphi 0, %s249
    %s252 = sphi 0, %s251
    %s266 = sphi 0, %s252
    %s270 = sphi 0, %s270
    %s272 = sphi 0, %s270
    %s273 = sphi 0, %s272
    %s287 = sphi 0, %s273
    %s291 = sphi 0, %s291
    %s293 = sphi 0, %s291
    %s294 = sphi 0, %s293
    %s308 = sphi 0, %s294
    %s312 = sphi 0, %s312
    %s314 = sphi 0, %s312
    %s315 = sphi 0, %s314
    %s329 = sphi 0, %s315
    %s333 = sphi 0, %s333
    %s335 = sphi 0, %s333
    %s336 = sphi 0, %s335
    %s350 = sphi 0, %s336
    %s354 = sphi 0, %s354
    %s356 = sphi 0, %s354
    %s357 = sphi 0, %s356
    %s371 = sphi 0, %s357
    %s375 = sphi 0, %s375
    %s377 = sphi 0, %s375
    %s378 = sphi 0, %s377
    %s392 = sphi 0, %s378
    %s396 = sphi 0, %s396
    %s398 = sphi 0, %s396
    %s399 = sphi 0, %s398
    %s413 = sphi 0, %s399
    %s417 = sphi 0, %s417
    %s419 = sphi 0, %s417
    %s420 = sphi 0, %s419
    %s434 = sphi 0, %s420
    %s438 = sphi 0, %s438
    %s440 = sphi 0, %s438
    %s441 = sphi 0, %s440
    %s455 = sphi 0, %s441
    %s461 = sphi 0, %s463
    %s464 = sphi 0, %s461
    %s465 = sphi 0, %s464
    %s481 = sphi 0, %s465
  $region4: #{vc_ensemble_forward.2} parent=0 // loop_header_branch
    %29 = sbr.rel (%p27) target = $region8
  $region5: #{vc_ensemble_forward.2} parent=0 // loop_body
    %s31 = ssub.s32 %s26, 1
    %s32 = ssub.s32 %s26, 2
    %s33 = sadd.s32 %s26, 1
    %s34 = ssub.s32 %s26, %s33
    %p35 = scmp.eq.s32.totalorder %s34, 0
    %s37 = sadd.s32 %s36, 1
    %s38 = scalar_select %p35, %s36, %s37
    %p41 = pneg %p35
    %p42 = scmp.eq.s32.totalorder %s26, 1
    %p43 = por %p41, %p42
    %p44 = scmp.ne.s32.totalorder %s36, %s39
    %p45 = scmp.eq.s32.totalorder %s26, 0
    %p46 = por %p44, %p45
    %p47 = scmp.ne.s32.totalorder %s36, %s39
    %p48 = scmp.eq.s32.totalorder %s31, 1
    %p49 = por %p47, %p48
    %p50 = scmp.ne.s32.totalorder %s39, %s40
    %p51 = scmp.eq.s32.totalorder %s31, 0
    %p52 = por %p50, %p51
    %p53 = scmp.ne.s32.totalorder %s39, %s40
    %p54 = scmp.eq.s32.totalorder %s32, 1
    %p55 = por %p53, %p54
    %p57 = scmp.ne.s32.totalorder %s40, %s56
    %p58 = scmp.eq.s32.totalorder %s32, 0
    %p59 = por %p57, %p58
    %s61 = sadd.s32 %s60, 1
    %p64 = scmp.eq.s32.totalorder %s26, 1
    %p65 = scmp.ne.s32.totalorder %s60, %s62
    %p66 = scmp.eq.s32.totalorder %s26, 0
    %p67 = por %p65, %p66
    %p68 = scmp.ne.s32.totalorder %s60, %s62
    %p69 = scmp.eq.s32.totalorder %s31, 1
    %p70 = por %p68, %p69
    %p71 = scmp.ne.s32.totalorder %s62, %s63
    %p72 = scmp.eq.s32.totalorder %s31, 0
    %p73 = por %p71, %p72
    %p74 = scmp.ne.s32.totalorder %s62, %s63
    %p75 = scmp.eq.s32.totalorder %s32, 1
    %p76 = por %p74, %p75
    %p78 = scmp.ne.s32.totalorder %s63, %s77
    %p79 = scmp.eq.s32.totalorder %s32, 0
    %p80 = por %p78, %p79
    %s82 = sadd.s32 %s81, 1
    %p85 = scmp.eq.s32.totalorder %s26, 1
    %p86 = scmp.ne.s32.totalorder %s81, %s83
    %p87 = scmp.eq.s32.totalorder %s26, 0
    %p88 = por %p86, %p87
    %p89 = scmp.ne.s32.totalorder %s81, %s83
    %p90 = scmp.eq.s32.totalorder %s31, 1
    %p91 = por %p89, %p90
    %p92 = scmp.ne.s32.totalorder %s83, %s84
    %p93 = scmp.eq.s32.totalorder %s31, 0
    %p94 = por %p92, %p93
    %p95 = scmp.ne.s32.totalorder %s83, %s84
    %p96 = scmp.eq.s32.totalorder %s32, 1
    %p97 = por %p95, %p96
    %p99 = scmp.ne.s32.totalorder %s84, %s98
    %p100 = scmp.eq.s32.totalorder %s32, 0
    %p101 = por %p99, %p100
    %s103 = sadd.s32 %s102, 1
    %p106 = scmp.eq.s32.totalorder %s26, 1
    %p107 = scmp.ne.s32.totalorder %s102, %s104
    %p108 = scmp.eq.s32.totalorder %s26, 0
    %p109 = por %p107, %p108
    %p110 = scmp.ne.s32.totalorder %s102, %s104
    %p111 = scmp.eq.s32.totalorder %s31, 1
    %p112 = por %p110, %p111
    %p113 = scmp.ne.s32.totalorder %s104, %s105
    %p114 = scmp.eq.s32.totalorder %s31, 0
    %p115 = por %p113, %p114
    %p116 = scmp.ne.s32.totalorder %s104, %s105
    %p117 = scmp.eq.s32.totalorder %s32, 1
    %p118 = por %p116, %p117
    %p120 = scmp.ne.s32.totalorder %s105, %s119
    %p121 = scmp.eq.s32.totalorder %s32, 0
    %p122 = por %p120, %p121
    %s124 = sadd.s32 %s123, 1
    %p127 = scmp.eq.s32.totalorder %s26, 1
    %p128 = scmp.ne.s32.totalorder %s123, %s125
    %p129 = scmp.eq.s32.totalorder %s26, 0
    %p130 = por %p128, %p129
    %p131 = scmp.ne.s32.totalorder %s123, %s125
    %p132 = scmp.eq.s32.totalorder %s31, 1
    %p133 = por %p131, %p132
    %p134 = scmp.ne.s32.totalorder %s125, %s126
    %p135 = scmp.eq.s32.totalorder %s31, 0
    %p136 = por %p134, %p135
    %p137 = scmp.ne.s32.totalorder %s125, %s126
    %p138 = scmp.eq.s32.totalorder %s32, 1
    %p139 = por %p137, %p138
    %p141 = scmp.ne.s32.totalorder %s126, %s140
    %p142 = scmp.eq.s32.totalorder %s32, 0
    %p143 = por %p141, %p142
    %s145 = sadd.s32 %s144, 1
    %p148 = scmp.eq.s32.totalorder %s26, 1
    %p149 = scmp.ne.s32.totalorder %s144, %s146
    %p150 = scmp.eq.s32.totalorder %s26, 0
    %p151 = por %p149, %p150
    %p152 = scmp.ne.s32.totalorder %s144, %s146
    %p153 = scmp.eq.s32.totalorder %s31, 1
    %p154 = por %p152, %p153
    %p155 = scmp.ne.s32.totalorder %s146, %s147
    %p156 = scmp.eq.s32.totalorder %s31, 0
    %p157 = por %p155, %p156
    %p158 = scmp.ne.s32.totalorder %s146, %s147
    %p159 = scmp.eq.s32.totalorder %s32, 1
    %p160 = por %p158, %p159
    %p162 = scmp.ne.s32.totalorder %s147, %s161
    %p163 = scmp.eq.s32.totalorder %s32, 0
    %p164 = por %p162, %p163
    %s166 = sadd.s32 %s165, 1
    %p169 = scmp.eq.s32.totalorder %s26, 1
    %p170 = scmp.ne.s32.totalorder %s165, %s167
    %p171 = scmp.eq.s32.totalorder %s26, 0
    %p172 = por %p170, %p171
    %p173 = scmp.ne.s32.totalorder %s165, %s167
    %p174 = scmp.eq.s32.totalorder %s31, 1
    %p175 = por %p173, %p174
    %p176 = scmp.ne.s32.totalorder %s167, %s168
    %p177 = scmp.eq.s32.totalorder %s31, 0
    %p178 = por %p176, %p177
    %p179 = scmp.ne.s32.totalorder %s167, %s168
    %p180 = scmp.eq.s32.totalorder %s32, 1
    %p181 = por %p179, %p180
    %p183 = scmp.ne.s32.totalorder %s168, %s182
    %p184 = scmp.eq.s32.totalorder %s32, 0
    %p185 = por %p183, %p184
    %s187 = sadd.s32 %s186, 1
    %p190 = scmp.eq.s32.totalorder %s26, 1
    %p191 = scmp.ne.s32.totalorder %s186, %s188
    %p192 = scmp.eq.s32.totalorder %s26, 0
    %p193 = por %p191, %p192
    %p194 = scmp.ne.s32.totalorder %s186, %s188
    %p195 = scmp.eq.s32.totalorder %s31, 1
    %p196 = por %p194, %p195
    %p197 = scmp.ne.s32.totalorder %s188, %s189
    %p198 = scmp.eq.s32.totalorder %s31, 0
    %p199 = por %p197, %p198
    %p200 = scmp.ne.s32.totalorder %s188, %s189
    %p201 = scmp.eq.s32.totalorder %s32, 1
    %p202 = por %p200, %p201
    %p204 = scmp.ne.s32.totalorder %s189, %s203
    %p205 = scmp.eq.s32.totalorder %s32, 0
    %p206 = por %p204, %p205
    %s208 = sadd.s32 %s207, 1
    %p211 = scmp.eq.s32.totalorder %s26, 1
    %p212 = scmp.ne.s32.totalorder %s207, %s209
    %p213 = scmp.eq.s32.totalorder %s26, 0
    %p214 = por %p212, %p213
    %p215 = scmp.ne.s32.totalorder %s207, %s209
    %p216 = scmp.eq.s32.totalorder %s31, 1
    %p217 = por %p215, %p216
    %p218 = scmp.ne.s32.totalorder %s209, %s210
    %p219 = scmp.eq.s32.totalorder %s31, 0
    %p220 = por %p218, %p219
    %p221 = scmp.ne.s32.totalorder %s209, %s210
    %p222 = scmp.eq.s32.totalorder %s32, 1
    %p223 = por %p221, %p222
    %p225 = scmp.ne.s32.totalorder %s210, %s224
    %p226 = scmp.eq.s32.totalorder %s32, 0
    %p227 = por %p225, %p226
    %s229 = sadd.s32 %s228, 1
    %p232 = scmp.eq.s32.totalorder %s26, 1
    %p233 = scmp.ne.s32.totalorder %s228, %s230
    %p234 = scmp.eq.s32.totalorder %s26, 0
    %p235 = por %p233, %p234
    %p236 = scmp.ne.s32.totalorder %s228, %s230
    %p237 = scmp.eq.s32.totalorder %s31, 1
    %p238 = por %p236, %p237
    %p239 = scmp.ne.s32.totalorder %s230, %s231
    %p240 = scmp.eq.s32.totalorder %s31, 0
    %p241 = por %p239, %p240
    %p242 = scmp.ne.s32.totalorder %s230, %s231
    %p243 = scmp.eq.s32.totalorder %s32, 1
    %p244 = por %p242, %p243
    %p246 = scmp.ne.s32.totalorder %s231, %s245
    %p247 = scmp.eq.s32.totalorder %s32, 0
    %p248 = por %p246, %p247
    %s250 = sadd.s32 %s249, 1
    %p253 = scmp.eq.s32.totalorder %s26, 1
    %p254 = scmp.ne.s32.totalorder %s249, %s251
    %p255 = scmp.eq.s32.totalorder %s26, 0
    %p256 = por %p254, %p255
    %p257 = scmp.ne.s32.totalorder %s249, %s251
    %p258 = scmp.eq.s32.totalorder %s31, 1
    %p259 = por %p257, %p258
    %p260 = scmp.ne.s32.totalorder %s251, %s252
    %p261 = scmp.eq.s32.totalorder %s31, 0
    %p262 = por %p260, %p261
    %p263 = scmp.ne.s32.totalorder %s251, %s252
    %p264 = scmp.eq.s32.totalorder %s32, 1
    %p265 = por %p263, %p264
    %p267 = scmp.ne.s32.totalorder %s252, %s266
    %p268 = scmp.eq.s32.totalorder %s32, 0
    %p269 = por %p267, %p268
    %s271 = sadd.s32 %s270, 1
    %p274 = scmp.eq.s32.totalorder %s26, 1
    %p275 = scmp.ne.s32.totalorder %s270, %s272
    %p276 = scmp.eq.s32.totalorder %s26, 0
    %p277 = por %p275, %p276
    %p278 = scmp.ne.s32.totalorder %s270, %s272
    %p279 = scmp.eq.s32.totalorder %s31, 1
    %p280 = por %p278, %p279
    %p281 = scmp.ne.s32.totalorder %s272, %s273
    %p282 = scmp.eq.s32.totalorder %s31, 0
    %p283 = por %p281, %p282
    %p284 = scmp.ne.s32.totalorder %s272, %s273
    %p285 = scmp.eq.s32.totalorder %s32, 1
    %p286 = por %p284, %p285
    %p288 = scmp.ne.s32.totalorder %s273, %s287
    %p289 = scmp.eq.s32.totalorder %s32, 0
    %p290 = por %p288, %p289
    %s292 = sadd.s32 %s291, 1
    %p295 = scmp.eq.s32.totalorder %s26, 1
    %p296 = scmp.ne.s32.totalorder %s291, %s293
    %p297 = scmp.eq.s32.totalorder %s26, 0
    %p298 = por %p296, %p297
    %p299 = scmp.ne.s32.totalorder %s291, %s293
    %p300 = scmp.eq.s32.totalorder %s31, 1
    %p301 = por %p299, %p300
    %p302 = scmp.ne.s32.totalorder %s293, %s294
    %p303 = scmp.eq.s32.totalorder %s31, 0
    %p304 = por %p302, %p303
    %p305 = scmp.ne.s32.totalorder %s293, %s294
    %p306 = scmp.eq.s32.totalorder %s32, 1
    %p307 = por %p305, %p306
    %p309 = scmp.ne.s32.totalorder %s294, %s308
    %p310 = scmp.eq.s32.totalorder %s32, 0
    %p311 = por %p309, %p310
    %s313 = sadd.s32 %s312, 1
    %p316 = scmp.eq.s32.totalorder %s26, 1
    %p317 = scmp.ne.s32.totalorder %s312, %s314
    %p318 = scmp.eq.s32.totalorder %s26, 0
    %p319 = por %p317, %p318
    %p320 = scmp.ne.s32.totalorder %s312, %s314
    %p321 = scmp.eq.s32.totalorder %s31, 1
    %p322 = por %p320, %p321
    %p323 = scmp.ne.s32.totalorder %s314, %s315
    %p324 = scmp.eq.s32.totalorder %s31, 0
    %p325 = por %p323, %p324
    %p326 = scmp.ne.s32.totalorder %s314, %s315
    %p327 = scmp.eq.s32.totalorder %s32, 1
    %p328 = por %p326, %p327
    %p330 = scmp.ne.s32.totalorder %s315, %s329
    %p331 = scmp.eq.s32.totalorder %s32, 0
    %p332 = por %p330, %p331
    %s334 = sadd.s32 %s333, 1
    %p337 = scmp.eq.s32.totalorder %s26, 1
    %p338 = scmp.ne.s32.totalorder %s333, %s335
    %p339 = scmp.eq.s32.totalorder %s26, 0
    %p340 = por %p338, %p339
    %p341 = scmp.ne.s32.totalorder %s333, %s335
    %p342 = scmp.eq.s32.totalorder %s31, 1
    %p343 = por %p341, %p342
    %p344 = scmp.ne.s32.totalorder %s335, %s336
    %p345 = scmp.eq.s32.totalorder %s31, 0
    %p346 = por %p344, %p345
    %p347 = scmp.ne.s32.totalorder %s335, %s336
    %p348 = scmp.eq.s32.totalorder %s32, 1
    %p349 = por %p347, %p348
    %p351 = scmp.ne.s32.totalorder %s336, %s350
    %p352 = scmp.eq.s32.totalorder %s32, 0
    %p353 = por %p351, %p352
    %s355 = sadd.s32 %s354, 1
    %p358 = scmp.eq.s32.totalorder %s26, 1
    %p359 = scmp.ne.s32.totalorder %s354, %s356
    %p360 = scmp.eq.s32.totalorder %s26, 0
    %p361 = por %p359, %p360
    %p362 = scmp.ne.s32.totalorder %s354, %s356
    %p363 = scmp.eq.s32.totalorder %s31, 1
    %p364 = por %p362, %p363
    %p365 = scmp.ne.s32.totalorder %s356, %s357
    %p366 = scmp.eq.s32.totalorder %s31, 0
    %p367 = por %p365, %p366
    %p368 = scmp.ne.s32.totalorder %s356, %s357
    %p369 = scmp.eq.s32.totalorder %s32, 1
    %p370 = por %p368, %p369
    %p372 = scmp.ne.s32.totalorder %s357, %s371
    %p373 = scmp.eq.s32.totalorder %s32, 0
    %p374 = por %p372, %p373
    %s376 = sadd.s32 %s375, 1
    %p379 = scmp.eq.s32.totalorder %s26, 1
    %p380 = scmp.ne.s32.totalorder %s375, %s377
    %p381 = scmp.eq.s32.totalorder %s26, 0
    %p382 = por %p380, %p381
    %p383 = scmp.ne.s32.totalorder %s375, %s377
    %p384 = scmp.eq.s32.totalorder %s31, 1
    %p385 = por %p383, %p384
    %p386 = scmp.ne.s32.totalorder %s377, %s378
    %p387 = scmp.eq.s32.totalorder %s31, 0
    %p388 = por %p386, %p387
    %p389 = scmp.ne.s32.totalorder %s377, %s378
    %p390 = scmp.eq.s32.totalorder %s32, 1
    %p391 = por %p389, %p390
    %p393 = scmp.ne.s32.totalorder %s378, %s392
    %p394 = scmp.eq.s32.totalorder %s32, 0
    %p395 = por %p393, %p394
    %s397 = sadd.s32 %s396, 1
    %p400 = scmp.eq.s32.totalorder %s26, 1
    %p401 = scmp.ne.s32.totalorder %s396, %s398
    %p402 = scmp.eq.s32.totalorder %s26, 0
    %p403 = por %p401, %p402
    %p404 = scmp.ne.s32.totalorder %s396, %s398
    %p405 = scmp.eq.s32.totalorder %s31, 1
    %p406 = por %p404, %p405
    %p407 = scmp.ne.s32.totalorder %s398, %s399
    %p408 = scmp.eq.s32.totalorder %s31, 0
    %p409 = por %p407, %p408
    %p410 = scmp.ne.s32.totalorder %s398, %s399
    %p411 = scmp.eq.s32.totalorder %s32, 1
    %p412 = por %p410, %p411
    %p414 = scmp.ne.s32.totalorder %s399, %s413
    %p415 = scmp.eq.s32.totalorder %s32, 0
    %p416 = por %p414, %p415
    %s418 = sadd.s32 %s417, 1
    %p421 = scmp.eq.s32.totalorder %s26, 1
    %p422 = scmp.ne.s32.totalorder %s417, %s419
    %p423 = scmp.eq.s32.totalorder %s26, 0
    %p424 = por %p422, %p423
    %p425 = scmp.ne.s32.totalorder %s417, %s419
    %p426 = scmp.eq.s32.totalorder %s31, 1
    %p427 = por %p425, %p426
    %p428 = scmp.ne.s32.totalorder %s419, %s420
    %p429 = scmp.eq.s32.totalorder %s31, 0
    %p430 = por %p428, %p429
    %p431 = scmp.ne.s32.totalorder %s419, %s420
    %p432 = scmp.eq.s32.totalorder %s32, 1
    %p433 = por %p431, %p432
    %p435 = scmp.ne.s32.totalorder %s420, %s434
    %p436 = scmp.eq.s32.totalorder %s32, 0
    %p437 = por %p435, %p436
    %s439 = sadd.s32 %s438, 1
    %p442 = scmp.eq.s32.totalorder %s26, 1
    %p443 = scmp.ne.s32.totalorder %s438, %s440
    %p444 = scmp.eq.s32.totalorder %s26, 0
    %p445 = por %p443, %p444
    %p446 = scmp.ne.s32.totalorder %s438, %s440
    %p447 = scmp.eq.s32.totalorder %s31, 1
    %p448 = por %p446, %p447
    %p449 = scmp.ne.s32.totalorder %s440, %s441
    %p450 = scmp.eq.s32.totalorder %s31, 0
    %p451 = por %p449, %p450
    %p452 = scmp.ne.s32.totalorder %s440, %s441
    %p453 = scmp.eq.s32.totalorder %s32, 1
    %p454 = por %p452, %p453
    %p456 = scmp.ne.s32.totalorder %s441, %s455
    %p457 = scmp.eq.s32.totalorder %s32, 0
    %p458 = por %p456, %p457
    %s459 = ssub.s32 %s26, %s33
    %p460 = scmp.eq.s32.totalorder %s459, 0
    %s462 = sadd.s32 %s461, 1
    %s463 = scalar_select %p460, %s461, %s462
    %p466 = pneg %p460
    %p467 = scmp.eq.s32.totalorder %s26, 1
    %p468 = por %p466, %p467
    %p469 = scmp.ne.s32.totalorder %s461, %s464
    %p470 = scmp.eq.s32.totalorder %s26, 0
    %p471 = por %p469, %p470
    %p472 = scmp.ne.s32.totalorder %s461, %s464
    %p473 = scmp.eq.s32.totalorder %s31, 1
    %p474 = por %p472, %p473
    %p475 = scmp.ne.s32.totalorder %s464, %s465
    %p476 = scmp.eq.s32.totalorder %s31, 0
    %p477 = por %p475, %p476
    %p478 = scmp.ne.s32.totalorder %s464, %s465
    %p479 = scmp.eq.s32.totalorder %s32, 1
    %p480 = por %p478, %p479
    %p482 = scmp.ne.s32.totalorder %s465, %s481
    %p483 = scmp.eq.s32.totalorder %s32, 0
    %p484 = por %p482, %p483
    %p485 = scmp.le.s32.totalorder 1, %s26
    %p486 = scmp.lt.s32.totalorder %s26, 3
    %p487 = pnand %p485, %p486
    %p488 = pneg %p487
    // Predicated region
    $region9: #{vc_ensemble_forward.2} parent=5 // pred_check
      _
    $region10: #{vc_ensemble_forward.2} parent=5 // pred_check_branch
      %490 = sbr.rel (%p487) target = $region12
    $region11: #{vc_ensemble_forward.2} parent=5 // pred_region
      %s491 = ssub.s32 %s26, 1
      // Predicated region
      $region13: #{vc_ensemble_forward.2} parent=11 // pred_check
        %p492 = pneg %p73
      $region14: #{vc_ensemble_forward.2} parent=11 // pred_check_branch
        %494 = sbr.rel (%p492) target = $region16
      $region15: #{vc_ensemble_forward.2} parent=11 // pred_region
        _
      $region16: #{vc_ensemble_forward.2} parent=11 // pred_fallthru
        _
      // Predicated region
      $region17: #{vc_ensemble_forward.2} parent=11 // pred_check
        %p495 = pneg %p94
      $region18: #{vc_ensemble_forward.2} parent=11 // pred_check_branch
        %497 = sbr.rel (%p495) target = $region20
      $region19: #{vc_ensemble_forward.2} parent=11 // pred_region
        _
      $region20: #{vc_ensemble_forward.2} parent=11 // pred_fallthru
        _
      // Predicated region
      $region21: #{vc_ensemble_forward.2} parent=11 // pred_check
        %p498 = pneg %p115
      $region22: #{vc_ensemble_forward.2} parent=11 // pred_check_branch
        %500 = sbr.rel (%p498) target = $region24
      $region23: #{vc_ensemble_forward.2} parent=11 // pred_region
        _
      $region24: #{vc_ensemble_forward.2} parent=11 // pred_fallthru
        _
      // Predicated region
      $region25: #{vc_ensemble_forward.2} parent=11 // pred_check
        %p501 = pneg %p136
      $region26: #{vc_ensemble_forward.2} parent=11 // pred_check_branch
        %503 = sbr.rel (%p501) target = $region28
      $region27: #{vc_ensemble_forward.2} parent=11 // pred_region
        _
      $region28: #{vc_ensemble_forward.2} parent=11 // pred_fallthru
        _
      // Predicated region
      $region29: #{vc_ensemble_forward.2} parent=11 // pred_check
        %p504 = pneg %p157
      $region30: #{vc_ensemble_forward.2} parent=11 // pred_check_branch
        %506 = sbr.rel (%p504) target = $region32
      $region31: #{vc_ensemble_forward.2} parent=11 // pred_region
        _
      $region32: #{vc_ensemble_forward.2} parent=11 // pred_fallthru
        _
      // Predicated region
      $region33: #{vc_ensemble_forward.2} parent=11 // pred_check
        %p507 = pneg %p178
      $region34: #{vc_ensemble_forward.2} parent=11 // pred_check_branch
        %509 = sbr.rel (%p507) target = $region36
      $region35: #{vc_ensemble_forward.2} parent=11 // pred_region
        _
      $region36: #{vc_ensemble_forward.2} parent=11 // pred_fallthru
        _
      // Predicated region
      $region37: #{vc_ensemble_forward.2} parent=11 // pred_check
        %p510 = pneg %p199
      $region38: #{vc_ensemble_forward.2} parent=11 // pred_check_branch
        %512 = sbr.rel (%p510) target = $region40
      $region39: #{vc_ensemble_forward.2} parent=11 // pred_region
        _
      $region40: #{vc_ensemble_forward.2} parent=11 // pred_fallthru
        _
      // Predicated region
      $region41: #{vc_ensemble_forward.2} parent=11 // pred_check
        %p513 = pneg %p220
      $region42: #{vc_ensemble_forward.2} parent=11 // pred_check_branch
        %515 = sbr.rel (%p513) target = $region44
      $region43: #{vc_ensemble_forward.2} parent=11 // pred_region
        _
      $region44: #{vc_ensemble_forward.2} parent=11 // pred_fallthru
        _
      // Predicated region
      $region45: #{vc_ensemble_forward.2} parent=11 // pred_check
        %p516 = pneg %p241
      $region46: #{vc_ensemble_forward.2} parent=11 // pred_check_branch
        %518 = sbr.rel (%p516) target = $region48
      $region47: #{vc_ensemble_forward.2} parent=11 // pred_region
        _
      $region48: #{vc_ensemble_forward.2} parent=11 // pred_fallthru
        _
      // Predicated region
      $region49: #{vc_ensemble_forward.2} parent=11 // pred_check
        %p519 = pneg %p262
      $region50: #{vc_ensemble_forward.2} parent=11 // pred_check_branch
        %521 = sbr.rel (%p519) target = $region52
      $region51: #{vc_ensemble_forward.2} parent=11 // pred_region
        _
      $region52: #{vc_ensemble_forward.2} parent=11 // pred_fallthru
        _
      // Predicated region
      $region53: #{vc_ensemble_forward.2} parent=11 // pred_check
        %p522 = pneg %p283
      $region54: #{vc_ensemble_forward.2} parent=11 // pred_check_branch
        %524 = sbr.rel (%p522) target = $region56
      $region55: #{vc_ensemble_forward.2} parent=11 // pred_region
        _
      $region56: #{vc_ensemble_forward.2} parent=11 // pred_fallthru
        _
      // Predicated region
      $region57: #{vc_ensemble_forward.2} parent=11 // pred_check
        %p525 = pneg %p304
      $region58: #{vc_ensemble_forward.2} parent=11 // pred_check_branch
        %527 = sbr.rel (%p525) target = $region60
      $region59: #{vc_ensemble_forward.2} parent=11 // pred_region
        _
      $region60: #{vc_ensemble_forward.2} parent=11 // pred_fallthru
        _
      // Predicated region
      $region61: #{vc_ensemble_forward.2} parent=11 // pred_check
        %p528 = pneg %p325
      $region62: #{vc_ensemble_forward.2} parent=11 // pred_check_branch
        %530 = sbr.rel (%p528) target = $region64
      $region63: #{vc_ensemble_forward.2} parent=11 // pred_region
        _
      $region64: #{vc_ensemble_forward.2} parent=11 // pred_fallthru
        _
      // Predicated region
      $region65: #{vc_ensemble_forward.2} parent=11 // pred_check
        %p531 = pneg %p346
      $region66: #{vc_ensemble_forward.2} parent=11 // pred_check_branch
        %533 = sbr.rel (%p531) target = $region68
      $region67: #{vc_ensemble_forward.2} parent=11 // pred_region
        _
      $region68: #{vc_ensemble_forward.2} parent=11 // pred_fallthru
        _
      // Predicated region
      $region69: #{vc_ensemble_forward.2} parent=11 // pred_check
        %p534 = pneg %p367
      $region70: #{vc_ensemble_forward.2} parent=11 // pred_check_branch
        %536 = sbr.rel (%p534) target = $region72
      $region71: #{vc_ensemble_forward.2} parent=11 // pred_region
        _
      $region72: #{vc_ensemble_forward.2} parent=11 // pred_fallthru
        _
      // Predicated region
      $region73: #{vc_ensemble_forward.2} parent=11 // pred_check
        %p537 = pneg %p388
      $region74: #{vc_ensemble_forward.2} parent=11 // pred_check_branch
        %539 = sbr.rel (%p537) target = $region76
      $region75: #{vc_ensemble_forward.2} parent=11 // pred_region
        _
      $region76: #{vc_ensemble_forward.2} parent=11 // pred_fallthru
        _
      // Predicated region
      $region77: #{vc_ensemble_forward.2} parent=11 // pred_check
        %p540 = pneg %p409
      $region78: #{vc_ensemble_forward.2} parent=11 // pred_check_branch
        %542 = sbr.rel (%p540) target = $region80
      $region79: #{vc_ensemble_forward.2} parent=11 // pred_region
        _
      $region80: #{vc_ensemble_forward.2} parent=11 // pred_fallthru
        _
      // Predicated region
      $region81: #{vc_ensemble_forward.2} parent=11 // pred_check
        %p543 = pneg %p430
      $region82: #{vc_ensemble_forward.2} parent=11 // pred_check_branch
        %545 = sbr.rel (%p543) target = $region84
      $region83: #{vc_ensemble_forward.2} parent=11 // pred_region
        _
      $region84: #{vc_ensemble_forward.2} parent=11 // pred_fallthru
        _
      // Predicated region
      $region85: #{vc_ensemble_forward.2} parent=11 // pred_check
        %p546 = pneg %p451
      $region86: #{vc_ensemble_forward.2} parent=11 // pred_check_branch
        %548 = sbr.rel (%p546) target = $region88
      $region87: #{vc_ensemble_forward.2} parent=11 // pred_region
        _
      $region88: #{vc_ensemble_forward.2} parent=11 // pred_fallthru
        _
    $region12: #{vc_ensemble_forward.2} parent=5 // pred_fallthru
      _
    %p549 = scmp.lt.s32.totalorder %s26, 2
    // Predicated region
    $region89: #{vc_ensemble_forward.2} parent=5 // pred_check
      %p550 = pneg %p549
    $region90: #{vc_ensemble_forward.2} parent=5 // pred_check_branch
      %552 = sbr.rel (%p550) target = $region92
    $region91: #{vc_ensemble_forward.2} parent=5 // pred_region
      // Predicated region
      $region93: #{vc_ensemble_forward.2} parent=91 // pred_check
        %p553 = pneg %p46
      $region94: #{vc_ensemble_forward.2} parent=91 // pred_check_branch
        %555 = sbr.rel (%p553) target = $region96
      $region95: #{vc_ensemble_forward.2} parent=91 // pred_region
        %p556 = scmp.lt.s32.totalorder %s26, 1
        %s557 = scalar_select %p556, %s26, 1
        %s558 = smul.addr %s557, 4
        %s559 = smul.addr %s558, 8
        %s560 = scalar_lea.vmem %s0, %s559
      $region96: #{vc_ensemble_forward.2} parent=91 // pred_fallthru
        _
    $region92: #{vc_ensemble_forward.2} parent=5 // pred_fallthru
      _
    %p561 = scmp.le.s32.totalorder 1, %s26
    %p562 = scmp.lt.s32.totalorder %s26, 3
    %p563 = pnand %p561, %p562
    %p564 = pneg %p563
    // Predicated region
    $region97: #{vc_ensemble_forward.2} parent=5 // pred_check
      _
    $region98: #{vc_ensemble_forward.2} parent=5 // pred_check_branch
      %566 = sbr.rel (%p563) target = $region100
    $region99: #{vc_ensemble_forward.2} parent=5 // pred_region
      %s567 = ssub.s32 %s26, 1
      %p568 = scmp.lt.s32.totalorder %s31, 1
      %s569 = scalar_select %p568, %s31, 1
      %s570 = smul.addr %s569, 4
      %s571 = smul.addr %s570, 8
      %s572 = scalar_lea.vmem %s0, %s571
      %p573 = pneg %p52
      %p574 = pneg %p49
      %p575 = pneg %p73
      %p576 = pneg %p70
      %p577 = pneg %p94
      %p578 = pneg %p91
      %p579 = pneg %p115
      %p580 = pneg %p112
      %p581 = pneg %p136
      %p582 = pneg %p133
      %p583 = pneg %p157
      %p584 = pneg %p154
      %p585 = pneg %p178
      %p586 = pneg %p175
      %p587 = pneg %p199
      %p588 = pneg %p196
      %p589 = pneg %p220
      %p590 = pneg %p217
      %p591 = pneg %p241
      %p592 = pneg %p238
      %p593 = pneg %p262
      %p594 = pneg %p259
      %p595 = pneg %p283
      %p596 = pneg %p280
      %p597 = pneg %p304
      %p598 = pneg %p301
      %p599 = pneg %p325
      %p600 = pneg %p322
      %p601 = pneg %p346
      %p602 = pneg %p343
      %p603 = pneg %p367
      %p604 = pneg %p364
      %p605 = pneg %p388
      %p606 = pneg %p385
      %p607 = pneg %p409
      %p608 = pneg %p406
      %p609 = pneg %p430
      %p610 = pneg %p427
      %p611 = pneg %p451
      %p612 = pneg %p448
      %p613 = pneg %p477
      %p614 = pneg %p474
      %p615 = scmp.lt.s32.totalorder %s31, 1
      %s616 = scalar_select %p615, %s31, 1
      %s617 = scalar_lea.vmem %s20, %s616
      %p618 = scmp.lt.s32.totalorder %s31, 1
      %s619 = scalar_select %p618, %s31, 1
      %s620 = smul.addr %s619, 4
      %s621 = smul.addr %s620, 8
      %s622 = scalar_lea.vmem %s0, %s621
      %p623 = scmp.lt.s32.totalorder %s31, 1
      %s624 = scalar_select %p623, %s31, 1
      %s625 = scalar_lea.vmem %s20, %s624
      %v626 = vld [vmem:[%s1] sm:$0xff]
      %v627 = vld [vmem:[%s1 + $0x8] sm:$0xff]
      %v628 = vld [vmem:[%s1 + $0x10] sm:$0xff]
      %v629 = vld [vmem:[%s1 + $0x18] sm:$0xff]
      %v630 = vld [vmem:[%s1 + $0x20] sm:$0xff]
      %v631 = vld [vmem:[%s1 + $0x28] sm:$0xff]
      %v632 = vld [vmem:[%s1 + $0x30] sm:$0xff]
      %v633 = vld [vmem:[%s1 + $0x38] sm:$0xff]
      %v634 = vld [vmem:[%s622] sm:$0xff]
      %v635 = vld [vmem:[%s622 + $0x8] sm:$0xff]
      %v636 = vld [vmem:[%s622 + $0x10] sm:$0xff]
      %v637 = vld [vmem:[%s622 + $0x18] sm:$0x1]
      %vm638 = vcmask 523264
      %v640 = vsel %vm638, %v634, 0
      %v643 = vsel %vm638, %v635, 0
      %v646 = vsel %vm638, %v636, 0
      %v649 = vsel %vm638, %v637, 0
      %651 = vmatprep.subr.mxu0 0.0
      %652 = vmatpush1.msra.mxu0 %v626
      %653 = vmatprep.subr.mxu0 0.0
      %654 = vmatpush1.msra.mxu0 %v627
      %655 = vmatprep.subr.mxu0 0.0
      %656 = vmatpush1.msra.mxu0 %v628
      %657 = vmatprep.subr.mxu0 0.0
      %658 = vmatpush1.msra.mxu0 %v629
      %659 = vmatprep.subr.mxu0 0.0
      %660 = vmatpush1.msra.mxu0 %v630
      %661 = vmatprep.subr.mxu0 0.0
      %662 = vmatpush1.msra.mxu0 %v631
      %663 = vmatprep.subr.mxu0 0.0
      %664 = vmatpush1.msra.mxu0 %v632
      %665 = vmatprep.subr.mxu0 0.0
      %666 = vmatpush1.msra.mxu0 %v633
      %667 = vmatprep.subr.mxu0 0.0
      %668 = vmatpush1.msra.mxu0 0.0
      %669 = vmatprep.subr.mxu0 0.0
      %670 = vmatpush1.msra.mxu0 0.0
      %671 = vmatprep.subr.mxu0 0.0
      %672 = vmatpush1.msra.mxu0 0.0
      %673 = vmatprep.subr.mxu0 0.0
      %674 = vmatpush1.msra.mxu0 0.0
      %675 = vmatprep.subr.mxu0 0.0
      %676 = vmatpush1.msra.mxu0 0.0
      %677 = vmatprep.subr.mxu0 0.0
      %678 = vmatpush1.msra.mxu0 0.0
      %679 = vmatprep.subr.mxu0 0.0
      %680 = vmatpush1.msra.mxu0 0.0
      %681 = vmatprep.subr.mxu0 0.0
      %682 = vmatpush1.msra.mxu0 0.0
      %683 = vmatprep.subr.mxu0 0.0
      %684 = vmatpush1.msra.mxu0 0.0
      %685 = vmatprep.subr.mxu0 0.0
      %686 = vmatpush1.msra.mxu0 0.0
      %687 = vmatprep.subr.mxu0 0.0
      %688 = vmatpush1.msra.mxu0 0.0
      %689 = vmatprep.subr.mxu0 0.0
      %690 = vmatpush1.msra.mxu0 0.0
      %691 = vmatprep.subr.mxu0 0.0
      %692 = vmatpush1.msra.mxu0 0.0
      %693 = vmatprep.subr.mxu0 0.0
      %694 = vmatpush1.msra.mxu0 0.0
      %695 = vmatprep.subr.mxu0 0.0
      %696 = vmatpush1.msra.mxu0 0.0
      %697 = vmatprep.subr.mxu0 0.0
      %698 = vmatpush1.msra.mxu0 0.0
      %699 = vmatprep.subr.mxu0 0.0
      %700 = vmatpush1.msra.mxu0 0.0
      %701 = vmatprep.subr.mxu0 0.0
      %702 = vmatpush1.msra.mxu0 0.0
      %703 = vmatprep.subr.mxu0 0.0
      %704 = vmatpush1.msra.mxu0 0.0
      %705 = vmatprep.subr.mxu0 0.0
      %706 = vmatpush1.msra.mxu0 0.0
      %707 = vmatprep.subr.mxu0 0.0
      %708 = vmatpush1.msra.mxu0 0.0
      %709 = vmatprep.subr.mxu0 0.0
      %710 = vmatpush1.msra.mxu0 0.0
      %711 = vmatprep.subr.mxu0 0.0
      %712 = vmatpush1.msra.mxu0 0.0
      %713 = vmatprep.subr.mxu0 0.0
      %714 = vmatpush1.msra.mxu0 0.0
      %715 = vmatprep.mubr.f32.mxu0 0.0
      %716 = vmatmul.mubr.f32.gmra.mrb[0].mxu0 %v640
      %v717 = vpop.f32.mrb[0].mxu0
      %v718 = vadd.f32 0.0, %v717
      %v719 = vpop.f32.mrb[0].mxu0
      %720 = vmatprep.mubr.f32.mxu0 0.0
      %721 = vmatmul.mubr.f32.gmra.mrb[0].mxu0 %v643
      %v722 = vpop.f32.mrb[0].mxu0
      %v723 = vadd.f32 0.0, %v722
      %v724 = vpop.f32.mrb[0].mxu0
      %725 = vmatprep.mubr.f32.mxu0 0.0
      %726 = vmatmul.mubr.f32.gmra.mrb[0].mxu0 %v646
      %v727 = vpop.f32.mrb[0].mxu0
      %v728 = vadd.f32 0.0, %v727
      %v729 = vpop.f32.mrb[0].mxu0
      %730 = vmatprep.mubr.f32.mxu0 0.0
      %731 = vmatmul.mubr.f32.gmra.mrb[0].mxu0 %v649
      %v732 = vpop.f32.mrb[0].mxu0
      %v733 = vadd.f32 0.0, %v732
      %v734 = vpop.f32.mrb[0].mxu0
      %735 = vdwg.mxu0
      %vm740 = vcmask 1040384
      %v741 = vrot.slane %v718, 7
      %v742 = vrot.slane %v723, 7
      %v743 = vsel %vm740, %v741, %v742
      %v744 = vrot.slane %v728, 7
      %v745 = vsel %vm740, %v742, %v744
      %v746 = vrot.slane %v733, 7
      %v747 = vsel %vm740, %v744, %v746
      %v752 = vsel %vm740, 0.0, %v741
      %v753 = vld [vmem:[%s2] sm:$0xff]
      %v754 = vld [vmem:[%s2 + $0x8] sm:$0xff]
      %v755 = vld [vmem:[%s2 + $0x10] sm:$0xff]
      %v756 = vld [vmem:[%s2 + $0x18] sm:$0x3]
      %v757 = vadd.f32 %v752, %v753
      %v758 = vadd.f32 %v743, %v754
      %v759 = vadd.f32 %v745, %v755
      %v760 = vadd.f32 %v747, %v756
      %v761 = vld [vmem:[%s3] sm:$0x1]
      %v762 = vld [vmem:[%s4] sm:$0x1]
      %v763 = vsel %vm638, %v757, 0.0
      %764 = vadd.xlane.f32.xlu0 %v763
      %v765 = vpop.xlane.xlu0 %764
      %v766 = vsel %vm638, %v758, 0.0
      %767 = vadd.xlane.f32.xlu0 %v766
      %v768 = vpop.xlane.xlu0 %767
      %v769 = vsel %vm638, %v759, 0.0
      %770 = vadd.xlane.f32.xlu0 %v769
      %v771 = vpop.xlane.xlu0 %770
      %vm772 = vcmask 517120
      %v773 = vsel %vm772, %v760, 0.0
      %774 = vadd.xlane.f32.xlu0 %v773
      %v775 = vpop.xlane.xlu0 %774
      %v776 = vrcp.pop 64.0
      %v777 = vmul.f32 %v765, %v776
      %v778 = vmul.f32 %v768, %v776
      %v779 = vmul.f32 %v771, %v776
      %v780 = vmul.f32 %v775, %v776
      %v781 = vsub.f32 %v757, %v777
      %v782 = vsub.f32 %v758, %v778
      %v783 = vsub.f32 %v759, %v779
      %v784 = vsub.f32 %v760, %v780
      %v785 = vmul.f32 %v781, %v781
      %v786 = vmul.f32 %v782, %v782
      %v787 = vmul.f32 %v783, %v783
      %v788 = vmul.f32 %v784, %v784
      %v789 = vsel %vm638, %v785, 0.0
      %790 = vadd.xlane.f32.xlu0 %v789
      %v791 = vpop.xlane.xlu0 %790
      %v792 = vsel %vm638, %v786, 0.0
      %793 = vadd.xlane.f32.xlu0 %v792
      %v794 = vpop.xlane.xlu0 %793
      %v795 = vsel %vm638, %v787, 0.0
      %796 = vadd.xlane.f32.xlu0 %v795
      %v797 = vpop.xlane.xlu0 %796
      %v798 = vsel %vm772, %v788, 0.0
      %799 = vadd.xlane.f32.xlu0 %v798
      %v800 = vpop.xlane.xlu0 %799
      %v801 = vmul.f32 %v791, %v776
      %v802 = vmul.f32 %v794, %v776
      %v803 = vmul.f32 %v797, %v776
      %v804 = vmul.f32 %v800, %v776
      %v805 = vadd.f32 %v801, 1e-05
      %v806 = vadd.f32 %v802, 1e-05
      %v807 = vadd.f32 %v803, 1e-05
      %v808 = vadd.f32 %v804, 1e-05
      %v809 = vrsqrt.pop %v805
      %v810 = vrsqrt.pop %v806
      %v811 = vrsqrt.pop %v807
      %v812 = vrsqrt.pop %v808
      %v813 = vmul.f32 %v781, %v809
      %v814 = vmul.f32 %v782, %v810
      %v815 = vmul.f32 %v783, %v811
      %v816 = vmul.f32 %v784, %v812
      %v818 = vlaneseq
      %v819 = vshrl.u32 %v818, 7
      %v820 = vsub.s32 0, %v819
      %v821 = vrot.slane %v761, %v820
      %v823 = vmul.f32 %v813, %v821
      %v824 = vmul.f32 %v814, %v821
      %v825 = vmul.f32 %v815, %v821
      %v826 = vmul.f32 %v816, %v821
      %v828 = vlaneseq
      %v829 = vshrl.u32 %v828, 7
      %v830 = vsub.s32 0, %v829
      %v831 = vrot.slane %v762, %v830
      %v833 = vadd.f32 %v823, %v831
      %v834 = vadd.f32 %v824, %v831
      %v835 = vadd.f32 %v825, %v831
      %v836 = vadd.f32 %v826, %v831
      %v837 = vld [vmem:[%s5] sm:$0x1]
      %v838 = vld [vmem:[%s6] sm:$0x1]
      %v839 = vsel %vm638, %v833, 0.0
      %840 = vadd.xlane.f32.xlu0 %v839
      %v841 = vpop.xlane.xlu0 %840
      %v842 = vsel %vm638, %v834, 0.0
      %843 = vadd.xlane.f32.xlu0 %v842
      %v844 = vpop.xlane.xlu0 %843
      %v845 = vsel %vm638, %v835, 0.0
      %846 = vadd.xlane.f32.xlu0 %v845
      %v847 = vpop.xlane.xlu0 %846
      %v848 = vsel %vm772, %v836, 0.0
      %849 = vadd.xlane.f32.xlu0 %v848
      %v850 = vpop.xlane.xlu0 %849
      %v851 = vmul.f32 %v841, %v776
      %v852 = vmul.f32 %v844, %v776
      %v853 = vmul.f32 %v847, %v776
      %v854 = vmul.f32 %v850, %v776
      %v855 = vsub.f32 %v833, %v851
      %v856 = vsub.f32 %v834, %v852
      %v857 = vsub.f32 %v835, %v853
      %v858 = vsub.f32 %v836, %v854
      %v859 = vmul.f32 %v855, %v855
      %v860 = vmul.f32 %v856, %v856
      %v861 = vmul.f32 %v857, %v857
      %v862 = vmul.f32 %v858, %v858
      %v863 = vsel %vm638, %v859, 0.0
      %864 = vadd.xlane.f32.xlu0 %v863
      %v865 = vpop.xlane.xlu0 %864
      %v866 = vsel %vm638, %v860, 0.0
      %867 = vadd.xlane.f32.xlu0 %v866
      %v868 = vpop.xlane.xlu0 %867
      %v869 = vsel %vm638, %v861, 0.0
      %870 = vadd.xlane.f32.xlu0 %v869
      %v871 = vpop.xlane.xlu0 %870
      %v872 = vsel %vm772, %v862, 0.0
      %873 = vadd.xlane.f32.xlu0 %v872
      %v874 = vpop.xlane.xlu0 %873
      %v875 = vmul.f32 %v865, %v776
      %v876 = vmul.f32 %v868, %v776
      %v877 = vmul.f32 %v871, %v776
      %v878 = vmul.f32 %v874, %v776
      %v879 = vadd.f32 %v875, 1e-05
      %v880 = vadd.f32 %v876, 1e-05
      %v881 = vadd.f32 %v877, 1e-05
      %v882 = vadd.f32 %v878, 1e-05
      %v883 = vrsqrt.pop %v879
      %v884 = vrsqrt.pop %v880
      %v885 = vrsqrt.pop %v881
      %v886 = vrsqrt.pop %v882
      %v887 = vmul.f32 %v855, %v883
      %v888 = vmul.f32 %v856, %v884
      %v889 = vmul.f32 %v857, %v885
      %v890 = vmul.f32 %v858, %v886
      %v892 = vlaneseq
      %v893 = vshrl.u32 %v892, 7
      %v894 = vsub.s32 0, %v893
      %v895 = vrot.slane %v837, %v894
      %v897 = vmul.f32 %v887, %v895
      %v898 = vmul.f32 %v888, %v895
      %v899 = vmul.f32 %v889, %v895
      %v900 = vmul.f32 %v890, %v895
      %v902 = vlaneseq
      %v903 = vshrl.u32 %v902, 7
      %v904 = vsub.s32 0, %v903
      %v905 = vrot.slane %v838, %v904
      %v907 = vadd.f32 %v897, %v905
      %v908 = vadd.f32 %v898, %v905
      %v909 = vadd.f32 %v899, %v905
      %v910 = vadd.f32 %v900, %v905
      %v911 = vld [vmem:[%s7] sm:$0xff]
      %v912 = vld [vmem:[%s7 + $0x8] sm:$0xff]
      %v913 = vld [vmem:[%s7 + $0x10] sm:$0xff]
      %v914 = vld [vmem:[%s7 + $0x18] sm:$0xff]
      %v915 = vld [vmem:[%s7 + $0x20] sm:$0xff]
      %v916 = vld [vmem:[%s7 + $0x28] sm:$0xff]
      %v917 = vld [vmem:[%s7 + $0x30] sm:$0xff]
      %v918 = vld [vmem:[%s7 + $0x38] sm:$0xff]
      %v919 = vld [vmem:[%s7 + $0x40] sm:$0xff]
      %v920 = vld [vmem:[%s7 + $0x48] sm:$0xff]
      %v921 = vld [vmem:[%s7 + $0x50] sm:$0xff]
      %v922 = vld [vmem:[%s7 + $0x58] sm:$0xff]
      %v923 = vld [vmem:[%s7 + $0x60] sm:$0xff]
      %v924 = vld [vmem:[%s7 + $0x68] sm:$0xff]
      %v925 = vld [vmem:[%s7 + $0x70] sm:$0xff]
      %v926 = vld [vmem:[%s7 + $0x78] sm:$0xff]
      %v927 = vld [vmem:[%s8] sm:$0x3]
      %v929 = vlaneseq
      %v930 = vshrl.u32 %v929, 7
      %v931 = vsub.s32 0, %v930
      %v932 = vrot.slane %v927, %v931
      %v933 = vlaneseq
      %v934 = vshrl.u32 %v933, 7
      %v935 = vsub.s32 1, %v934
      %v936 = vrot.slane %v927, %v935
      %v940 = vsel %vm638, %v907, 0
      %v943 = vsel %vm638, %v908, 0
      %v946 = vsel %vm638, %v909, 0
      %v949 = vsel %vm638, %v910, 0
      %951 = vmatprep.subr.mxu0 %v912
      %952 = vmatpush1.msra.mxu0 %v911
      %953 = vmatprep.subr.mxu0 %v914
      %954 = vmatpush1.msra.mxu0 %v913
      %955 = vmatprep.subr.mxu0 %v916
      %956 = vmatpush1.msra.mxu0 %v915
      %957 = vmatprep.subr.mxu0 %v918
      %958 = vmatpush1.msra.mxu0 %v917
      %959 = vmatprep.subr.mxu0 %v920
      %960 = vmatpush1.msra.mxu0 %v919
      %961 = vmatprep.subr.mxu0 %v922
      %962 = vmatpush1.msra.mxu0 %v921
      %963 = vmatprep.subr.mxu0 %v924
      %964 = vmatpush1.msra.mxu0 %v923
      %965 = vmatprep.subr.mxu0 %v926
      %966 = vmatpush1.msra.mxu0 %v925
      %967 = vmatprep.subr.mxu0 0.0
      %968 = vmatpush1.msra.mxu0 0.0
      %969 = vmatprep.subr.mxu0 0.0
      %970 = vmatpush1.msra.mxu0 0.0
      %971 = vmatprep.subr.mxu0 0.0
      %972 = vmatpush1.msra.mxu0 0.0
      %973 = vmatprep.subr.mxu0 0.0
      %974 = vmatpush1.msra.mxu0 0.0
      %975 = vmatprep.subr.mxu0 0.0
      %976 = vmatpush1.msra.mxu0 0.0
      %977 = vmatprep.subr.mxu0 0.0
      %978 = vmatpush1.msra.mxu0 0.0
      %979 = vmatprep.subr.mxu0 0.0
      %980 = vmatpush1.msra.mxu0 0.0
      %981 = vmatprep.subr.mxu0 0.0
      %982 = vmatpush1.msra.mxu0 0.0
      %983 = vmatprep.subr.mxu0 0.0
      %984 = vmatpush1.msra.mxu0 0.0
      %985 = vmatprep.subr.mxu0 0.0
      %986 = vmatpush1.msra.mxu0 0.0
      %987 = vmatprep.subr.mxu0 0.0
      %988 = vmatpush1.msra.mxu0 0.0
      %989 = vmatprep.subr.mxu0 0.0
      %990 = vmatpush1.msra.mxu0 0.0
      %991 = vmatprep.subr.mxu0 0.0
      %992 = vmatpush1.msra.mxu0 0.0
      %993 = vmatprep.subr.mxu0 0.0
      %994 = vmatpush1.msra.mxu0 0.0
      %995 = vmatprep.subr.mxu0 0.0
      %996 = vmatpush1.msra.mxu0 0.0
      %997 = vmatprep.subr.mxu0 0.0
      %998 = vmatpush1.msra.mxu0 0.0
      %999 = vmatprep.subr.mxu0 0.0
      %1000 = vmatpush1.msra.mxu0 0.0
      %1001 = vmatprep.subr.mxu0 0.0
      %1002 = vmatpush1.msra.mxu0 0.0
      %1003 = vmatprep.subr.mxu0 0.0
      %1004 = vmatpush1.msra.mxu0 0.0
      %1005 = vmatprep.subr.mxu0 0.0
      %1006 = vmatpush1.msra.mxu0 0.0
      %1007 = vmatprep.subr.mxu0 0.0
      %1008 = vmatpush1.msra.mxu0 0.0
      %1009 = vmatprep.subr.mxu0 0.0
      %1010 = vmatpush1.msra.mxu0 0.0
      %1011 = vmatprep.subr.mxu0 0.0
      %1012 = vmatpush1.msra.mxu0 0.0
      %1013 = vmatprep.subr.mxu0 0.0
      %1014 = vmatpush1.msra.mxu0 0.0
      %1015 = vmatprep.mubr.f32.mxu0 0.0
      %1016 = vmatmul.mubr.f32.gmra.mrb[0].mxu0 %v940
      %v1017 = vpop.f32.mrb[0].mxu0
      %v1018 = vadd.f32 %v932, %v1017
      %v1019 = vpop.f32.mrb[0].mxu0
      %v1020 = vadd.f32 %v936, %v1019
      %1021 = vmatprep.mubr.f32.mxu0 0.0
      %1022 = vmatmul.mubr.f32.gmra.mrb[0].mxu0 %v943
      %v1023 = vpop.f32.mrb[0].mxu0
      %v1024 = vadd.f32 %v932, %v1023
      %v1025 = vpop.f32.mrb[0].mxu0
      %v1026 = vadd.f32 %v936, %v1025
      %1027 = vmatprep.mubr.f32.mxu0 0.0
      %1028 = vmatmul.mubr.f32.gmra.mrb[0].mxu0 %v946
      %v1029 = vpop.f32.mrb[0].mxu0
      %v1030 = vadd.f32 %v932, %v1029
      %v1031 = vpop.f32.mrb[0].mxu0
      %v1032 = vadd.f32 %v936, %v1031
      %1033 = vmatprep.mubr.f32.mxu0 0.0
      %1034 = vmatmul.mubr.f32.gmra.mrb[0].mxu0 %v949
      %v1035 = vpop.f32.mrb[0].mxu0
      %v1036 = vadd.f32 %v932, %v1035
      %v1037 = vpop.f32.mrb[0].mxu0
      %v1038 = vadd.f32 %v936, %v1037
      %1039 = vdwg.mxu0
      %v1044 = vcombine.high %v1018, %v1018
      %v1046 = vunpack.c.l.s4 1966171168
      %v1047 = vunpack.c.0.s8 %v1046
      %v1048 = vlaneseq
      %v1049 = vshrl.u32 %v1048, 7
      %v1050 = vsub.s32 %v1047, %v1049
      %v1051 = vrot.slane %v1018, %v1050
      %v1053 = vunpack.c.l.s4 1966171168
      %v1054 = vunpack.c.0.s8 %v1053
      %v1055 = vlaneseq
      %v1056 = vshrl.u32 %v1055, 7
      %v1057 = vsub.s32 %v1054, %v1056
      %v1058 = vrot.slane %v1044, %v1057
      %v1059 = vcombine.high %v1051, %v1051
      %v1060 = vcombine.high %v1058, %v1058
      %v1062 = vunpack.c.l.s4 1966171168
      %v1063 = vunpack.c.0.s8 %v1062
      %v1064 = vlaneseq
      %v1065 = vshrl.u32 %v1064, 7
      %v1066 = vsub.s32 %v1063, %v1065
      %v1067 = vrot.slane %v1051, %v1066
      %v1069 = vunpack.c.l.s4 1966171168
      %v1070 = vunpack.c.0.s8 %v1069
      %v1071 = vlaneseq
      %v1072 = vshrl.u32 %v1071, 7
      %v1073 = vsub.s32 %v1070, %v1072
      %v1074 = vrot.slane %v1058, %v1073
      %v1076 = vunpack.c.l.s4 1966171168
      %v1077 = vunpack.c.0.s8 %v1076
      %v1078 = vlaneseq
      %v1079 = vshrl.u32 %v1078, 7
      %v1080 = vsub.s32 %v1077, %v1079
      %v1081 = vrot.slane %v1059, %v1080
      %v1083 = vunpack.c.l.s4 1966171168
      %v1084 = vunpack.c.0.s8 %v1083
      %v1085 = vlaneseq
      %v1086 = vshrl.u32 %v1085, 7
      %v1087 = vsub.s32 %v1084, %v1086
      %v1088 = vrot.slane %v1060, %v1087
      %v1089 = vcombine.high %v1067, %v1067
      %v1090 = vcombine.high %v1074, %v1074
      %v1091 = vcombine.high %v1081, %v1081
      %v1092 = vcombine.high %v1088, %v1088
      %v1093 = vcombine.high %v1024, %v1024
      %v1095 = vunpack.c.l.s4 1966171168
      %v1096 = vunpack.c.0.s8 %v1095
      %v1097 = vlaneseq
      %v1098 = vshrl.u32 %v1097, 7
      %v1099 = vsub.s32 %v1096, %v1098
      %v1100 = vrot.slane %v1024, %v1099
      %v1102 = vunpack.c.l.s4 1966171168
      %v1103 = vunpack.c.0.s8 %v1102
      %v1104 = vlaneseq
      %v1105 = vshrl.u32 %v1104, 7
      %v1106 = vsub.s32 %v1103, %v1105
      %v1107 = vrot.slane %v1093, %v1106
      %v1108 = vcombine.high %v1100, %v1100
      %v1109 = vcombine.high %v1107, %v1107
      %v1111 = vunpack.c.l.s4 1966171168
      %v1112 = vunpack.c.0.s8 %v1111
      %v1113 = vlaneseq
      %v1114 = vshrl.u32 %v1113, 7
      %v1115 = vsub.s32 %v1112, %v1114
      %v1116 = vrot.slane %v1100, %v1115
      %v1118 = vunpack.c.l.s4 1966171168
      %v1119 = vunpack.c.0.s8 %v1118
      %v1120 = vlaneseq
      %v1121 = vshrl.u32 %v1120, 7
      %v1122 = vsub.s32 %v1119, %v1121
      %v1123 = vrot.slane %v1107, %v1122
      %v1125 = vunpack.c.l.s4 1966171168
      %v1126 = vunpack.c.0.s8 %v1125
      %v1127 = vlaneseq
      %v1128 = vshrl.u32 %v1127, 7
      %v1129 = vsub.s32 %v1126, %v1128
      %v1130 = vrot.slane %v1108, %v1129
      %v1132 = vunpack.c.l.s4 1966171168
      %v1133 = vunpack.c.0.s8 %v1132
      %v1134 = vlaneseq
      %v1135 = vshrl.u32 %v1134, 7
      %v1136 = vsub.s32 %v1133, %v1135
      %v1137 = vrot.slane %v1109, %v1136
      %v1138 = vcombine.high %v1116, %v1116
      %v1139 = vcombine.high %v1123, %v1123
      %v1140 = vcombine.high %v1130, %v1130
      %v1141 = vcombine.high %v1137, %v1137
      %v1142 = vcombine.high %v1030, %v1030
      %v1144 = vunpack.c.l.s4 1966171168
      %v1145 = vunpack.c.0.s8 %v1144
      %v1146 = vlaneseq
      %v1147 = vshrl.u32 %v1146, 7
      %v1148 = vsub.s32 %v1145, %v1147
      %v1149 = vrot.slane %v1030, %v1148
      %v1151 = vunpack.c.l.s4 1966171168
      %v1152 = vunpack.c.0.s8 %v1151
      %v1153 = vlaneseq
      %v1154 = vshrl.u32 %v1153, 7
      %v1155 = vsub.s32 %v1152, %v1154
      %v1156 = vrot.slane %v1142, %v1155
      %v1157 = vcombine.high %v1149, %v1149
      %v1158 = vcombine.high %v1156, %v1156
      %v1160 = vunpack.c.l.s4 1966171168
      %v1161 = vunpack.c.0.s8 %v1160
      %v1162 = vlaneseq
      %v1163 = vshrl.u32 %v1162, 7
      %v1164 = vsub.s32 %v1161, %v1163
      %v1165 = vrot.slane %v1149, %v1164
      %v1167 = vunpack.c.l.s4 1966171168
      %v1168 = vunpack.c.0.s8 %v1167
      %v1169 = vlaneseq
      %v1170 = vshrl.u32 %v1169, 7
      %v1171 = vsub.s32 %v1168, %v1170
      %v1172 = vrot.slane %v1156, %v1171
      %v1174 = vunpack.c.l.s4 1966171168
      %v1175 = vunpack.c.0.s8 %v1174
      %v1176 = vlaneseq
      %v1177 = vshrl.u32 %v1176, 7
      %v1178 = vsub.s32 %v1175, %v1177
      %v1179 = vrot.slane %v1157, %v1178
      %v1181 = vunpack.c.l.s4 1966171168
      %v1182 = vunpack.c.0.s8 %v1181
      %v1183 = vlaneseq
      %v1184 = vshrl.u32 %v1183, 7
      %v1185 = vsub.s32 %v1182, %v1184
      %v1186 = vrot.slane %v1158, %v1185
      %v1187 = vcombine.high %v1165, %v1165
      %v1188 = vcombine.high %v1172, %v1172
      %v1189 = vcombine.high %v1179, %v1179
      %v1190 = vcombine.high %v1186, %v1186
      %v1192 = vunpack.c.l.s4 1966171168
      %v1193 = vunpack.c.0.s8 %v1192
      %v1194 = vlaneseq
      %v1195 = vshrl.u32 %v1194, 7
      %v1196 = vsub.s32 %v1193, %v1195
      %v1197 = vrot.slane %v1036, %v1196
      %v1198 = vcombine.high %v1197, %v1197
      %v1200 = vunpack.c.l.s4 1966171168
      %v1201 = vunpack.c.0.s8 %v1200
      %v1202 = vlaneseq
      %v1203 = vshrl.u32 %v1202, 7
      %v1204 = vsub.s32 %v1201, %v1203
      %v1205 = vrot.slane %v1197, %v1204
      %v1207 = vunpack.c.l.s4 1966171168
      %v1208 = vunpack.c.0.s8 %v1207
      %v1209 = vlaneseq
      %v1210 = vshrl.u32 %v1209, 7
      %v1211 = vsub.s32 %v1208, %v1210
      %v1212 = vrot.slane %v1198, %v1211
      %v1213 = vlaneseq
      %v1214 = vshrl.u32 %v1213, 7
      %v1215 = vsub.s32 0, %v1214
      %v1216 = vrot.slane %v1067, %v1215
      %v1217 = vlaneseq
      %v1218 = vshrl.u32 %v1217, 7
      %v1219 = vsub.s32 0, %v1218
      %v1220 = vrot.slane %v1081, %v1219
      %v1221 = vlaneseq
      %v1222 = vshrl.u32 %v1221, 7
      %v1223 = vsub.s32 0, %v1222
      %v1224 = vrot.slane %v1089, %v1223
      %v1225 = vlaneseq
      %v1226 = vshrl.u32 %v1225, 7
      %v1227 = vsub.s32 0, %v1226
      %v1228 = vrot.slane %v1091, %v1227
      %v1229 = vlaneseq
      %v1230 = vshrl.u32 %v1229, 7
      %v1231 = vsub.s32 0, %v1230
      %v1232 = vrot.slane %v1074, %v1231
      %v1233 = vlaneseq
      %v1234 = vshrl.u32 %v1233, 7
      %v1235 = vsub.s32 0, %v1234
      %v1236 = vrot.slane %v1088, %v1235
      %v1237 = vlaneseq
      %v1238 = vshrl.u32 %v1237, 7
      %v1239 = vsub.s32 0, %v1238
      %v1240 = vrot.slane %v1090, %v1239
      %v1241 = vlaneseq
      %v1242 = vshrl.u32 %v1241, 7
      %v1243 = vsub.s32 0, %v1242
      %v1244 = vrot.slane %v1092, %v1243
      %v1245 = vlaneseq
      %v1246 = vshrl.u32 %v1245, 7
      %v1247 = vsub.s32 0, %v1246
      %v1248 = vrot.slane %v1116, %v1247
      %v1249 = vlaneseq
      %v1250 = vshrl.u32 %v1249, 7
      %v1251 = vsub.s32 0, %v1250
      %v1252 = vrot.slane %v1130, %v1251
      %v1253 = vlaneseq
      %v1254 = vshrl.u32 %v1253, 7
      %v1255 = vsub.s32 0, %v1254
      %v1256 = vrot.slane %v1138, %v1255
      %v1257 = vlaneseq
      %v1258 = vshrl.u32 %v1257, 7
      %v1259 = vsub.s32 0, %v1258
      %v1260 = vrot.slane %v1140, %v1259
      %v1261 = vlaneseq
      %v1262 = vshrl.u32 %v1261, 7
      %v1263 = vsub.s32 0, %v1262
      %v1264 = vrot.slane %v1123, %v1263
      %v1265 = vlaneseq
      %v1266 = vshrl.u32 %v1265, 7
      %v1267 = vsub.s32 0, %v1266
      %v1268 = vrot.slane %v1137, %v1267
      %v1269 = vlaneseq
      %v1270 = vshrl.u32 %v1269, 7
      %v1271 = vsub.s32 0, %v1270
      %v1272 = vrot.slane %v1139, %v1271
      %v1273 = vlaneseq
      %v1274 = vshrl.u32 %v1273, 7
      %v1275 = vsub.s32 0, %v1274
      %v1276 = vrot.slane %v1141, %v1275
      %v1277 = vlaneseq
      %v1278 = vshrl.u32 %v1277, 7
      %v1279 = vsub.s32 0, %v1278
      %v1280 = vrot.slane %v1165, %v1279
      %v1281 = vlaneseq
      %v1282 = vshrl.u32 %v1281, 7
      %v1283 = vsub.s32 0, %v1282
      %v1284 = vrot.slane %v1179, %v1283
      %v1285 = vlaneseq
      %v1286 = vshrl.u32 %v1285, 7
      %v1287 = vsub.s32 0, %v1286
      %v1288 = vrot.slane %v1187, %v1287
      %v1289 = vlaneseq
      %v1290 = vshrl.u32 %v1289, 7
      %v1291 = vsub.s32 0, %v1290
      %v1292 = vrot.slane %v1189, %v1291
      %v1293 = vlaneseq
      %v1294 = vshrl.u32 %v1293, 7
      %v1295 = vsub.s32 0, %v1294
      %v1296 = vrot.slane %v1172, %v1295
      %v1297 = vlaneseq
      %v1298 = vshrl.u32 %v1297, 7
      %v1299 = vsub.s32 0, %v1298
      %v1300 = vrot.slane %v1186, %v1299
      %v1301 = vlaneseq
      %v1302 = vshrl.u32 %v1301, 7
      %v1303 = vsub.s32 0, %v1302
      %v1304 = vrot.slane %v1188, %v1303
      %v1305 = vlaneseq
      %v1306 = vshrl.u32 %v1305, 7
      %v1307 = vsub.s32 0, %v1306
      %v1308 = vrot.slane %v1190, %v1307
      %v1309 = vlaneseq
      %v1310 = vshrl.u32 %v1309, 7
      %v1311 = vsub.s32 0, %v1310
      %v1312 = vrot.slane %v1205, %v1311
      %v1313 = vlaneseq
      %v1314 = vshrl.u32 %v1313, 7
      %v1315 = vsub.s32 0, %v1314
      %v1316 = vrot.slane %v1212, %v1315
      %1317 = vrot.lane.b32.xlu0 %v1216, 64
      %v1318 = vpop.permute.xlu0 %1317
      %1319 = vrot.lane.b32.xlu0 %v1220, 64
      %v1320 = vpop.permute.xlu0 %1319
      %1321 = vrot.lane.b32.xlu0 %v1224, 64
      %v1322 = vpop.permute.xlu0 %1321
      %1323 = vrot.lane.b32.xlu0 %v1228, 64
      %v1324 = vpop.permute.xlu0 %1323
      %1325 = vrot.lane.b32.xlu0 %v1232, 64
      %v1326 = vpop.permute.xlu0 %1325
      %1327 = vrot.lane.b32.xlu0 %v1236, 64
      %v1328 = vpop.permute.xlu0 %1327
      %1329 = vrot.lane.b32.xlu0 %v1240, 64
      %v1330 = vpop.permute.xlu0 %1329
      %1331 = vrot.lane.b32.xlu0 %v1244, 64
      %v1332 = vpop.permute.xlu0 %1331
      %1333 = vrot.lane.b32.xlu0 %v1248, 64
      %v1334 = vpop.permute.xlu0 %1333
      %1335 = vrot.lane.b32.xlu0 %v1252, 64
      %v1336 = vpop.permute.xlu0 %1335
      %1337 = vrot.lane.b32.xlu0 %v1256, 64
      %v1338 = vpop.permute.xlu0 %1337
      %1339 = vrot.lane.b32.xlu0 %v1260, 64
      %v1340 = vpop.permute.xlu0 %1339
      %1341 = vrot.lane.b32.xlu0 %v1264, 64
      %v1342 = vpop.permute.xlu0 %1341
      %1343 = vrot.lane.b32.xlu0 %v1268, 64
      %v1344 = vpop.permute.xlu0 %1343
      %1345 = vrot.lane.b32.xlu0 %v1272, 64
      %v1346 = vpop.permute.xlu0 %1345
      %1347 = vrot.lane.b32.xlu0 %v1276, 64
      %v1348 = vpop.permute.xlu0 %1347
      %1349 = vrot.lane.b32.xlu0 %v1280, 64
      %v1350 = vpop.permute.xlu0 %1349
      %1351 = vrot.lane.b32.xlu0 %v1284, 64
      %v1352 = vpop.permute.xlu0 %1351
      %1353 = vrot.lane.b32.xlu0 %v1288, 64
      %v1354 = vpop.permute.xlu0 %1353
      %1355 = vrot.lane.b32.xlu0 %v1292, 64
      %v1356 = vpop.permute.xlu0 %1355
      %1357 = vrot.lane.b32.xlu0 %v1296, 64
      %v1358 = vpop.permute.xlu0 %1357
      %1359 = vrot.lane.b32.xlu0 %v1300, 64
      %v1360 = vpop.permute.xlu0 %1359
      %1361 = vrot.lane.b32.xlu0 %v1304, 64
      %v1362 = vpop.permute.xlu0 %1361
      %1363 = vrot.lane.b32.xlu0 %v1308, 64
      %v1364 = vpop.permute.xlu0 %1363
      %1365 = vrot.lane.b32.xlu0 %v1312, 64
      %v1366 = vpop.permute.xlu0 %1365
      %1367 = vrot.lane.b32.xlu0 %v1316, 64
      %v1368 = vpop.permute.xlu0 %1367
      %v1395 = vmul.f32 %v1018, %v1318
      %v1396 = vmul.f32 %v1024, %v1318
      %v1397 = vmul.f32 %v1030, %v1318
      %v1398 = vmul.f32 %v1036, %v1318
      %v1399 = vmul.f32 %v1018, %v1320
      %v1400 = vmul.f32 %v1024, %v1320
      %v1401 = vmul.f32 %v1030, %v1320
      %v1402 = vmul.f32 %v1036, %v1320
      %v1403 = vmul.f32 %v1018, %v1322
      %v1404 = vmul.f32 %v1024, %v1322
      %v1405 = vmul.f32 %v1030, %v1322
      %v1406 = vmul.f32 %v1036, %v1322
      %v1407 = vmul.f32 %v1018, %v1324
      %v1408 = vmul.f32 %v1024, %v1324
      %v1409 = vmul.f32 %v1030, %v1324
      %v1410 = vmul.f32 %v1036, %v1324
      %v1411 = vmul.f32 %v1018, %v1326
      %v1412 = vmul.f32 %v1024, %v1326
      %v1413 = vmul.f32 %v1030, %v1326
      %v1414 = vmul.f32 %v1036, %v1326
      %v1415 = vmul.f32 %v1018, %v1328
      %v1416 = vmul.f32 %v1024, %v1328
      %v1417 = vmul.f32 %v1030, %v1328
      %v1418 = vmul.f32 %v1036, %v1328
      %v1419 = vmul.f32 %v1018, %v1330
      %v1420 = vmul.f32 %v1024, %v1330
      %v1421 = vmul.f32 %v1030, %v1330
      %v1422 = vmul.f32 %v1036, %v1330
      %v1423 = vmul.f32 %v1018, %v1332
      %v1424 = vmul.f32 %v1024, %v1332
      %v1425 = vmul.f32 %v1030, %v1332
      %v1426 = vmul.f32 %v1036, %v1332
      %v1427 = vmul.f32 %v1018, %v1334
      %v1428 = vmul.f32 %v1024, %v1334
      %v1429 = vmul.f32 %v1030, %v1334
      %v1430 = vmul.f32 %v1036, %v1334
      %v1431 = vmul.f32 %v1018, %v1336
      %v1432 = vmul.f32 %v1024, %v1336
      %v1433 = vmul.f32 %v1030, %v1336
      %v1434 = vmul.f32 %v1036, %v1336
      %v1435 = vmul.f32 %v1018, %v1338
      %v1436 = vmul.f32 %v1024, %v1338
      %v1437 = vmul.f32 %v1030, %v1338
      %v1438 = vmul.f32 %v1036, %v1338
      %v1439 = vmul.f32 %v1018, %v1340
      %v1440 = vmul.f32 %v1024, %v1340
      %v1441 = vmul.f32 %v1030, %v1340
      %v1442 = vmul.f32 %v1036, %v1340
      %v1443 = vmul.f32 %v1018, %v1342
      %v1444 = vmul.f32 %v1024, %v1342
      %v1445 = vmul.f32 %v1030, %v1342
      %v1446 = vmul.f32 %v1036, %v1342
      %v1447 = vmul.f32 %v1018, %v1344
      %v1448 = vmul.f32 %v1024, %v1344
      %v1449 = vmul.f32 %v1030, %v1344
      %v1450 = vmul.f32 %v1036, %v1344
      %v1451 = vmul.f32 %v1018, %v1346
      %v1452 = vmul.f32 %v1024, %v1346
      %v1453 = vmul.f32 %v1030, %v1346
      %v1454 = vmul.f32 %v1036, %v1346
      %v1455 = vmul.f32 %v1018, %v1348
      %v1456 = vmul.f32 %v1024, %v1348
      %v1457 = vmul.f32 %v1030, %v1348
      %v1458 = vmul.f32 %v1036, %v1348
      %v1459 = vmul.f32 %v1018, %v1350
      %v1460 = vmul.f32 %v1024, %v1350
      %v1461 = vmul.f32 %v1030, %v1350
      %v1462 = vmul.f32 %v1036, %v1350
      %v1463 = vmul.f32 %v1018, %v1352
      %v1464 = vmul.f32 %v1024, %v1352
      %v1465 = vmul.f32 %v1030, %v1352
      %v1466 = vmul.f32 %v1036, %v1352
      %v1467 = vmul.f32 %v1018, %v1354
      %v1468 = vmul.f32 %v1024, %v1354
      %v1469 = vmul.f32 %v1030, %v1354
      %v1470 = vmul.f32 %v1036, %v1354
      %v1471 = vmul.f32 %v1018, %v1356
      %v1472 = vmul.f32 %v1024, %v1356
      %v1473 = vmul.f32 %v1030, %v1356
      %v1474 = vmul.f32 %v1036, %v1356
      %v1475 = vmul.f32 %v1018, %v1358
      %v1476 = vmul.f32 %v1024, %v1358
      %v1477 = vmul.f32 %v1030, %v1358
      %v1478 = vmul.f32 %v1036, %v1358
      %v1479 = vmul.f32 %v1018, %v1360
      %v1480 = vmul.f32 %v1024, %v1360
      %v1481 = vmul.f32 %v1030, %v1360
      %v1482 = vmul.f32 %v1036, %v1360
      %v1483 = vmul.f32 %v1018, %v1362
      %v1484 = vmul.f32 %v1024, %v1362
      %v1485 = vmul.f32 %v1030, %v1362
      %v1486 = vmul.f32 %v1036, %v1362
      %v1487 = vmul.f32 %v1018, %v1364
      %v1488 = vmul.f32 %v1024, %v1364
      %v1489 = vmul.f32 %v1030, %v1364
      %v1490 = vmul.f32 %v1036, %v1364
      %v1491 = vmul.f32 %v1018, %v1366
      %v1492 = vmul.f32 %v1024, %v1366
      %v1493 = vmul.f32 %v1030, %v1366
      %v1494 = vmul.f32 %v1036, %v1366
      %v1495 = vmul.f32 %v1018, %v1368
      %v1496 = vmul.f32 %v1024, %v1368
      %v1497 = vmul.f32 %v1030, %v1368
      %v1498 = vmul.f32 %v1036, %v1368
      %1603 = vrot.lane.b32.xlu0 %v1395, 96
      %v1604 = vpop.permute.xlu0 %1603
      %1605 = vrot.lane.b32.xlu0 %v1396, 96
      %v1606 = vpop.permute.xlu0 %1605
      %1607 = vrot.lane.b32.xlu0 %v1397, 96
      %v1608 = vpop.permute.xlu0 %1607
      %1609 = vrot.lane.b32.xlu0 %v1398, 96
      %v1610 = vpop.permute.xlu0 %1609
      %1611 = vrot.lane.b32.xlu0 %v1399, 96
      %v1612 = vpop.permute.xlu0 %1611
      %1613 = vrot.lane.b32.xlu0 %v1400, 96
      %v1614 = vpop.permute.xlu0 %1613
      %1615 = vrot.lane.b32.xlu0 %v1401, 96
      %v1616 = vpop.permute.xlu0 %1615
      %1617 = vrot.lane.b32.xlu0 %v1402, 96
      %v1618 = vpop.permute.xlu0 %1617
      %1619 = vrot.lane.b32.xlu0 %v1403, 96
      %v1620 = vpop.permute.xlu0 %1619
      %1621 = vrot.lane.b32.xlu0 %v1404, 96
      %v1622 = vpop.permute.xlu0 %1621
      %1623 = vrot.lane.b32.xlu0 %v1405, 96
      %v1624 = vpop.permute.xlu0 %1623
      %1625 = vrot.lane.b32.xlu0 %v1406, 96
      %v1626 = vpop.permute.xlu0 %1625
      %1627 = vrot.lane.b32.xlu0 %v1407, 96
      %v1628 = vpop.permute.xlu0 %1627
      %1629 = vrot.lane.b32.xlu0 %v1408, 96
      %v1630 = vpop.permute.xlu0 %1629
      %1631 = vrot.lane.b32.xlu0 %v1409, 96
      %v1632 = vpop.permute.xlu0 %1631
      %1633 = vrot.lane.b32.xlu0 %v1410, 96
      %v1634 = vpop.permute.xlu0 %1633
      %1635 = vrot.lane.b32.xlu0 %v1411, 96
      %v1636 = vpop.permute.xlu0 %1635
      %1637 = vrot.lane.b32.xlu0 %v1412, 96
      %v1638 = vpop.permute.xlu0 %1637
      %1639 = vrot.lane.b32.xlu0 %v1413, 96
      %v1640 = vpop.permute.xlu0 %1639
      %1641 = vrot.lane.b32.xlu0 %v1414, 96
      %v1642 = vpop.permute.xlu0 %1641
      %1643 = vrot.lane.b32.xlu0 %v1415, 96
      %v1644 = vpop.permute.xlu0 %1643
      %1645 = vrot.lane.b32.xlu0 %v1416, 96
      %v1646 = vpop.permute.xlu0 %1645
      %1647 = vrot.lane.b32.xlu0 %v1417, 96
      %v1648 = vpop.permute.xlu0 %1647
      %1649 = vrot.lane.b32.xlu0 %v1418, 96
      %v1650 = vpop.permute.xlu0 %1649
      %1651 = vrot.lane.b32.xlu0 %v1419, 96
      %v1652 = vpop.permute.xlu0 %1651
      %1653 = vrot.lane.b32.xlu0 %v1420, 96
      %v1654 = vpop.permute.xlu0 %1653
      %1655 = vrot.lane.b32.xlu0 %v1421, 96
      %v1656 = vpop.permute.xlu0 %1655
      %1657 = vrot.lane.b32.xlu0 %v1422, 96
      %v1658 = vpop.permute.xlu0 %1657
      %1659 = vrot.lane.b32.xlu0 %v1423, 96
      %v1660 = vpop.permute.xlu0 %1659
      %1661 = vrot.lane.b32.xlu0 %v1424, 96
      %v1662 = vpop.permute.xlu0 %1661
      %1663 = vrot.lane.b32.xlu0 %v1425, 96
      %v1664 = vpop.permute.xlu0 %1663
      %1665 = vrot.lane.b32.xlu0 %v1426, 96
      %v1666 = vpop.permute.xlu0 %1665
      %1667 = vrot.lane.b32.xlu0 %v1427, 96
      %v1668 = vpop.permute.xlu0 %1667
      %1669 = vrot.lane.b32.xlu0 %v1428, 96
      %v1670 = vpop.permute.xlu0 %1669
      %1671 = vrot.lane.b32.xlu0 %v1429, 96
      %v1672 = vpop.permute.xlu0 %1671
      %1673 = vrot.lane.b32.xlu0 %v1430, 96
      %v1674 = vpop.permute.xlu0 %1673
      %1675 = vrot.lane.b32.xlu0 %v1431, 96
      %v1676 = vpop.permute.xlu0 %1675
      %1677 = vrot.lane.b32.xlu0 %v1432, 96
      %v1678 = vpop.permute.xlu0 %1677
      %1679 = vrot.lane.b32.xlu0 %v1433, 96
      %v1680 = vpop.permute.xlu0 %1679
      %1681 = vrot.lane.b32.xlu0 %v1434, 96
      %v1682 = vpop.permute.xlu0 %1681
      %1683 = vrot.lane.b32.xlu0 %v1435, 96
      %v1684 = vpop.permute.xlu0 %1683
      %1685 = vrot.lane.b32.xlu0 %v1436, 96
      %v1686 = vpop.permute.xlu0 %1685
      %1687 = vrot.lane.b32.xlu0 %v1437, 96
      %v1688 = vpop.permute.xlu0 %1687
      %1689 = vrot.lane.b32.xlu0 %v1438, 96
      %v1690 = vpop.permute.xlu0 %1689
      %1691 = vrot.lane.b32.xlu0 %v1439, 96
      %v1692 = vpop.permute.xlu0 %1691
      %1693 = vrot.lane.b32.xlu0 %v1440, 96
      %v1694 = vpop.permute.xlu0 %1693
      %1695 = vrot.lane.b32.xlu0 %v1441, 96
      %v1696 = vpop.permute.xlu0 %1695
      %1697 = vrot.lane.b32.xlu0 %v1442, 96
      %v1698 = vpop.permute.xlu0 %1697
      %1699 = vrot.lane.b32.xlu0 %v1443, 96
      %v1700 = vpop.permute.xlu0 %1699
      %1701 = vrot.lane.b32.xlu0 %v1444, 96
      %v1702 = vpop.permute.xlu0 %1701
      %1703 = vrot.lane.b32.xlu0 %v1445, 96
      %v1704 = vpop.permute.xlu0 %1703
      %1705 = vrot.lane.b32.xlu0 %v1446, 96
      %v1706 = vpop.permute.xlu0 %1705
      %1707 = vrot.lane.b32.xlu0 %v1447, 96
      %v1708 = vpop.permute.xlu0 %1707
      %1709 = vrot.lane.b32.xlu0 %v1448, 96
      %v1710 = vpop.permute.xlu0 %1709
      %1711 = vrot.lane.b32.xlu0 %v1449, 96
      %v1712 = vpop.permute.xlu0 %1711
      %1713 = vrot.lane.b32.xlu0 %v1450, 96
      %v1714 = vpop.permute.xlu0 %1713
      %1715 = vrot.lane.b32.xlu0 %v1451, 96
      %v1716 = vpop.permute.xlu0 %1715
      %1717 = vrot.lane.b32.xlu0 %v1452, 96
      %v1718 = vpop.permute.xlu0 %1717
      %1719 = vrot.lane.b32.xlu0 %v1453, 96
      %v1720 = vpop.permute.xlu0 %1719
      %1721 = vrot.lane.b32.xlu0 %v1454, 96
      %v1722 = vpop.permute.xlu0 %1721
      %1723 = vrot.lane.b32.xlu0 %v1455, 96
      %v1724 = vpop.permute.xlu0 %1723
      %1725 = vrot.lane.b32.xlu0 %v1456, 96
      %v1726 = vpop.permute.xlu0 %1725
      %1727 = vrot.lane.b32.xlu0 %v1457, 96
      %v1728 = vpop.permute.xlu0 %1727
      %1729 = vrot.lane.b32.xlu0 %v1458, 96
      %v1730 = vpop.permute.xlu0 %1729
      %1731 = vrot.lane.b32.xlu0 %v1459, 96
      %v1732 = vpop.permute.xlu0 %1731
      %1733 = vrot.lane.b32.xlu0 %v1460, 96
      %v1734 = vpop.permute.xlu0 %1733
      %1735 = vrot.lane.b32.xlu0 %v1461, 96
      %v1736 = vpop.permute.xlu0 %1735
      %1737 = vrot.lane.b32.xlu0 %v1462, 96
      %v1738 = vpop.permute.xlu0 %1737
      %1739 = vrot.lane.b32.xlu0 %v1463, 96
      %v1740 = vpop.permute.xlu0 %1739
      %1741 = vrot.lane.b32.xlu0 %v1464, 96
      %v1742 = vpop.permute.xlu0 %1741
      %1743 = vrot.lane.b32.xlu0 %v1465, 96
      %v1744 = vpop.permute.xlu0 %1743
      %1745 = vrot.lane.b32.xlu0 %v1466, 96
      %v1746 = vpop.permute.xlu0 %1745
      %1747 = vrot.lane.b32.xlu0 %v1467, 96
      %v1748 = vpop.permute.xlu0 %1747
      %1749 = vrot.lane.b32.xlu0 %v1468, 96
      %v1750 = vpop.permute.xlu0 %1749
      %1751 = vrot.lane.b32.xlu0 %v1469, 96
      %v1752 = vpop.permute.xlu0 %1751
      %1753 = vrot.lane.b32.xlu0 %v1470, 96
      %v1754 = vpop.permute.xlu0 %1753
      %1755 = vrot.lane.b32.xlu0 %v1471, 96
      %v1756 = vpop.permute.xlu0 %1755
      %1757 = vrot.lane.b32.xlu0 %v1472, 96
      %v1758 = vpop.permute.xlu0 %1757
      %1759 = vrot.lane.b32.xlu0 %v1473, 96
      %v1760 = vpop.permute.xlu0 %1759
      %1761 = vrot.lane.b32.xlu0 %v1474, 96
      %v1762 = vpop.permute.xlu0 %1761
      %1763 = vrot.lane.b32.xlu0 %v1475, 96
      %v1764 = vpop.permute.xlu0 %1763
      %1765 = vrot.lane.b32.xlu0 %v1476, 96
      %v1766 = vpop.permute.xlu0 %1765
      %1767 = vrot.lane.b32.xlu0 %v1477, 96
      %v1768 = vpop.permute.xlu0 %1767
      %1769 = vrot.lane.b32.xlu0 %v1478, 96
      %v1770 = vpop.permute.xlu0 %1769
      %1771 = vrot.lane.b32.xlu0 %v1479, 96
      %v1772 = vpop.permute.xlu0 %1771
      %1773 = vrot.lane.b32.xlu0 %v1480, 96
      %v1774 = vpop.permute.xlu0 %1773
      %1775 = vrot.lane.b32.xlu0 %v1481, 96
      %v1776 = vpop.permute.xlu0 %1775
      %1777 = vrot.lane.b32.xlu0 %v1482, 96
      %v1778 = vpop.permute.xlu0 %1777
      %1779 = vrot.lane.b32.xlu0 %v1483, 96
      %v1780 = vpop.permute.xlu0 %1779
      %1781 = vrot.lane.b32.xlu0 %v1484, 96
      %v1782 = vpop.permute.xlu0 %1781
      %1783 = vrot.lane.b32.xlu0 %v1485, 96
      %v1784 = vpop.permute.xlu0 %1783
      %1785 = vrot.lane.b32.xlu0 %v1486, 96
      %v1786 = vpop.permute.xlu0 %1785
      %1787 = vrot.lane.b32.xlu0 %v1487, 96
      %v1788 = vpop.permute.xlu0 %1787
      %1789 = vrot.lane.b32.xlu0 %v1488, 96
      %v1790 = vpop.permute.xlu0 %1789
      %1791 = vrot.lane.b32.xlu0 %v1489, 96
      %v1792 = vpop.permute.xlu0 %1791
      %1793 = vrot.lane.b32.xlu0 %v1490, 96
      %v1794 = vpop.permute.xlu0 %1793
      %1795 = vrot.lane.b32.xlu0 %v1491, 96
      %v1796 = vpop.permute.xlu0 %1795
      %1797 = vrot.lane.b32.xlu0 %v1492, 96
      %v1798 = vpop.permute.xlu0 %1797
      %1799 = vrot.lane.b32.xlu0 %v1493, 96
      %v1800 = vpop.permute.xlu0 %1799
      %1801 = vrot.lane.b32.xlu0 %v1494, 96
      %v1802 = vpop.permute.xlu0 %1801
      %1803 = vrot.lane.b32.xlu0 %v1495, 96
      %v1804 = vpop.permute.xlu0 %1803
      %1805 = vrot.lane.b32.xlu0 %v1496, 96
      %v1806 = vpop.permute.xlu0 %1805
      %1807 = vrot.lane.b32.xlu0 %v1497, 96
      %v1808 = vpop.permute.xlu0 %1807
      %1809 = vrot.lane.b32.xlu0 %v1498, 96
      %v1810 = vpop.permute.xlu0 %1809
      %v1915 = vadd.f32 %v1395, %v1604
      %v1916 = vadd.f32 %v1396, %v1606
      %v1917 = vadd.f32 %v1397, %v1608
      %v1918 = vadd.f32 %v1398, %v1610
      %v1919 = vadd.f32 %v1399, %v1612
      %v1920 = vadd.f32 %v1400, %v1614
      %v1921 = vadd.f32 %v1401, %v1616
      %v1922 = vadd.f32 %v1402, %v1618
      %v1923 = vadd.f32 %v1403, %v1620
      %v1924 = vadd.f32 %v1404, %v1622
      %v1925 = vadd.f32 %v1405, %v1624
      %v1926 = vadd.f32 %v1406, %v1626
      %v1927 = vadd.f32 %v1407, %v1628
      %v1928 = vadd.f32 %v1408, %v1630
      %v1929 = vadd.f32 %v1409, %v1632
      %v1930 = vadd.f32 %v1410, %v1634
      %v1931 = vadd.f32 %v1411, %v1636
      %v1932 = vadd.f32 %v1412, %v1638
      %v1933 = vadd.f32 %v1413, %v1640
      %v1934 = vadd.f32 %v1414, %v1642
      %v1935 = vadd.f32 %v1415, %v1644
      %v1936 = vadd.f32 %v1416, %v1646
      %v1937 = vadd.f32 %v1417, %v1648
      %v1938 = vadd.f32 %v1418, %v1650
      %v1939 = vadd.f32 %v1419, %v1652
      %v1940 = vadd.f32 %v1420, %v1654
      %v1941 = vadd.f32 %v1421, %v1656
      %v1942 = vadd.f32 %v1422, %v1658
      %v1943 = vadd.f32 %v1423, %v1660
      %v1944 = vadd.f32 %v1424, %v1662
      %v1945 = vadd.f32 %v1425, %v1664
      %v1946 = vadd.f32 %v1426, %v1666
      %v1947 = vadd.f32 %v1427, %v1668
      %v1948 = vadd.f32 %v1428, %v1670
      %v1949 = vadd.f32 %v1429, %v1672
      %v1950 = vadd.f32 %v1430, %v1674
      %v1951 = vadd.f32 %v1431, %v1676
      %v1952 = vadd.f32 %v1432, %v1678
      %v1953 = vadd.f32 %v1433, %v1680
      %v1954 = vadd.f32 %v1434, %v1682
      %v1955 = vadd.f32 %v1435, %v1684
      %v1956 = vadd.f32 %v1436, %v1686
      %v1957 = vadd.f32 %v1437, %v1688
      %v1958 = vadd.f32 %v1438, %v1690
      %v1959 = vadd.f32 %v1439, %v1692
      %v1960 = vadd.f32 %v1440, %v1694
      %v1961 = vadd.f32 %v1441, %v1696
      %v1962 = vadd.f32 %v1442, %v1698
      %v1963 = vadd.f32 %v1443, %v1700
      %v1964 = vadd.f32 %v1444, %v1702
      %v1965 = vadd.f32 %v1445, %v1704
      %v1966 = vadd.f32 %v1446, %v1706
      %v1967 = vadd.f32 %v1447, %v1708
      %v1968 = vadd.f32 %v1448, %v1710
      %v1969 = vadd.f32 %v1449, %v1712
      %v1970 = vadd.f32 %v1450, %v1714
      %v1971 = vadd.f32 %v1451, %v1716
      %v1972 = vadd.f32 %v1452, %v1718
      %v1973 = vadd.f32 %v1453, %v1720
      %v1974 = vadd.f32 %v1454, %v1722
      %v1975 = vadd.f32 %v1455, %v1724
      %v1976 = vadd.f32 %v1456, %v1726
      %v1977 = vadd.f32 %v1457, %v1728
      %v1978 = vadd.f32 %v1458, %v1730
      %v1979 = vadd.f32 %v1459, %v1732
      %v1980 = vadd.f32 %v1460, %v1734
      %v1981 = vadd.f32 %v1461, %v1736
      %v1982 = vadd.f32 %v1462, %v1738
      %v1983 = vadd.f32 %v1463, %v1740
      %v1984 = vadd.f32 %v1464, %v1742
      %v1985 = vadd.f32 %v1465, %v1744
      %v1986 = vadd.f32 %v1466, %v1746
      %v1987 = vadd.f32 %v1467, %v1748
      %v1988 = vadd.f32 %v1468, %v1750
      %v1989 = vadd.f32 %v1469, %v1752
      %v1990 = vadd.f32 %v1470, %v1754
      %v1991 = vadd.f32 %v1471, %v1756
      %v1992 = vadd.f32 %v1472, %v1758
      %v1993 = vadd.f32 %v1473, %v1760
      %v1994 = vadd.f32 %v1474, %v1762
      %v1995 = vadd.f32 %v1475, %v1764
      %v1996 = vadd.f32 %v1476, %v1766
      %v1997 = vadd.f32 %v1477, %v1768
      %v1998 = vadd.f32 %v1478, %v1770
      %v1999 = vadd.f32 %v1479, %v1772
      %v2000 = vadd.f32 %v1480, %v1774
      %v2001 = vadd.f32 %v1481, %v1776
      %v2002 = vadd.f32 %v1482, %v1778
      %v2003 = vadd.f32 %v1483, %v1780
      %v2004 = vadd.f32 %v1484, %v1782
      %v2005 = vadd.f32 %v1485, %v1784
      %v2006 = vadd.f32 %v1486, %v1786
      %v2007 = vadd.f32 %v1487, %v1788
      %v2008 = vadd.f32 %v1488, %v1790
      %v2009 = vadd.f32 %v1489, %v1792
      %v2010 = vadd.f32 %v1490, %v1794
      %v2011 = vadd.f32 %v1491, %v1796
      %v2012 = vadd.f32 %v1492, %v1798
      %v2013 = vadd.f32 %v1493, %v1800
      %v2014 = vadd.f32 %v1494, %v1802
      %v2015 = vadd.f32 %v1495, %v1804
      %v2016 = vadd.f32 %v1496, %v1806
      %v2017 = vadd.f32 %v1497, %v1808
      %v2018 = vadd.f32 %v1498, %v1810
      %vm2019 = vcmask 261120
      %v2020 = vsel %vm2019, %v1915, -inf
      %v2021 = vsel %vm2019, %v1919, -inf
      %v2022 = vmax.f32 %v2020, %v2021
      %v2023 = vsel %vm2019, %v1923, -inf
      %v2024 = vmax.f32 %v2022, %v2023
      %v2025 = vsel %vm2019, %v1927, -inf
      %v2026 = vmax.f32 %v2024, %v2025
      %v2027 = vsel %vm2019, %v1931, -inf
      %v2028 = vmax.f32 %v2026, %v2027
      %v2029 = vsel %vm2019, %v1935, -inf
      %v2030 = vmax.f32 %v2028, %v2029
      %v2031 = vsel %vm2019, %v1939, -inf
      %v2032 = vmax.f32 %v2030, %v2031
      %v2033 = vsel %vm2019, %v1943, -inf
      %v2034 = vmax.f32 %v2032, %v2033
      %v2035 = vsel %vm2019, %v1947, -inf
      %v2036 = vmax.f32 %v2034, %v2035
      %v2037 = vsel %vm2019, %v1951, -inf
      %v2038 = vmax.f32 %v2036, %v2037
      %v2039 = vsel %vm2019, %v1955, -inf
      %v2040 = vmax.f32 %v2038, %v2039
      %v2041 = vsel %vm2019, %v1959, -inf
      %v2042 = vmax.f32 %v2040, %v2041
      %v2043 = vsel %vm2019, %v1963, -inf
      %v2044 = vmax.f32 %v2042, %v2043
      %v2045 = vsel %vm2019, %v1967, -inf
      %v2046 = vmax.f32 %v2044, %v2045
      %v2047 = vsel %vm2019, %v1971, -inf
      %v2048 = vmax.f32 %v2046, %v2047
      %v2049 = vsel %vm2019, %v1975, -inf
      %v2050 = vmax.f32 %v2048, %v2049
      %v2051 = vsel %vm2019, %v1979, -inf
      %v2052 = vmax.f32 %v2050, %v2051
      %v2053 = vsel %vm2019, %v1983, -inf
      %v2054 = vmax.f32 %v2052, %v2053
      %v2055 = vsel %vm2019, %v1987, -inf
      %v2056 = vmax.f32 %v2054, %v2055
      %v2057 = vsel %vm2019, %v1991, -inf
      %v2058 = vmax.f32 %v2056, %v2057
      %v2059 = vsel %vm2019, %v1995, -inf
      %v2060 = vmax.f32 %v2058, %v2059
      %v2061 = vsel %vm2019, %v1999, -inf
      %v2062 = vmax.f32 %v2060, %v2061
      %v2063 = vsel %vm2019, %v2003, -inf
      %v2064 = vmax.f32 %v2062, %v2063
      %v2065 = vsel %vm2019, %v2007, -inf
      %v2066 = vmax.f32 %v2064, %v2065
      %v2067 = vsel %vm2019, %v2011, -inf
      %v2068 = vmax.f32 %v2066, %v2067
      %v2069 = vsel %vm2019, %v2015, -inf
      %v2070 = vmax.f32 %v2068, %v2069
      %v2071 = vsel %vm2019, %v1916, -inf
      %v2072 = vsel %vm2019, %v1920, -inf
      %v2073 = vmax.f32 %v2071, %v2072
      %v2074 = vsel %vm2019, %v1924, -inf
      %v2075 = vmax.f32 %v2073, %v2074
      %v2076 = vsel %vm2019, %v1928, -inf
      %v2077 = vmax.f32 %v2075, %v2076
      %v2078 = vsel %vm2019, %v1932, -inf
      %v2079 = vmax.f32 %v2077, %v2078
      %v2080 = vsel %vm2019, %v1936, -inf
      %v2081 = vmax.f32 %v2079, %v2080
      %v2082 = vsel %vm2019, %v1940, -inf
      %v2083 = vmax.f32 %v2081, %v2082
      %v2084 = vsel %vm2019, %v1944, -inf
      %v2085 = vmax.f32 %v2083, %v2084
      %v2086 = vsel %vm2019, %v1948, -inf
      %v2087 = vmax.f32 %v2085, %v2086
      %v2088 = vsel %vm2019, %v1952, -inf
      %v2089 = vmax.f32 %v2087, %v2088
      %v2090 = vsel %vm2019, %v1956, -inf
      %v2091 = vmax.f32 %v2089, %v2090
      %v2092 = vsel %vm2019, %v1960, -inf
      %v2093 = vmax.f32 %v2091, %v2092
      %v2094 = vsel %vm2019, %v1964, -inf
      %v2095 = vmax.f32 %v2093, %v2094
      %v2096 = vsel %vm2019, %v1968, -inf
      %v2097 = vmax.f32 %v2095, %v2096
      %v2098 = vsel %vm2019, %v1972, -inf
      %v2099 = vmax.f32 %v2097, %v2098
      %v2100 = vsel %vm2019, %v1976, -inf
      %v2101 = vmax.f32 %v2099, %v2100
      %v2102 = vsel %vm2019, %v1980, -inf
      %v2103 = vmax.f32 %v2101, %v2102
      %v2104 = vsel %vm2019, %v1984, -inf
      %v2105 = vmax.f32 %v2103, %v2104
      %v2106 = vsel %vm2019, %v1988, -inf
      %v2107 = vmax.f32 %v2105, %v2106
      %v2108 = vsel %vm2019, %v1992, -inf
      %v2109 = vmax.f32 %v2107, %v2108
      %v2110 = vsel %vm2019, %v1996, -inf
      %v2111 = vmax.f32 %v2109, %v2110
      %v2112 = vsel %vm2019, %v2000, -inf
      %v2113 = vmax.f32 %v2111, %v2112
      %v2114 = vsel %vm2019, %v2004, -inf
      %v2115 = vmax.f32 %v2113, %v2114
      %v2116 = vsel %vm2019, %v2008, -inf
      %v2117 = vmax.f32 %v2115, %v2116
      %v2118 = vsel %vm2019, %v2012, -inf
      %v2119 = vmax.f32 %v2117, %v2118
      %v2120 = vsel %vm2019, %v2016, -inf
      %v2121 = vmax.f32 %v2119, %v2120
      %v2122 = vsel %vm2019, %v1917, -inf
      %v2123 = vsel %vm2019, %v1921, -inf
      %v2124 = vmax.f32 %v2122, %v2123
      %v2125 = vsel %vm2019, %v1925, -inf
      %v2126 = vmax.f32 %v2124, %v2125
      %v2127 = vsel %vm2019, %v1929, -inf
      %v2128 = vmax.f32 %v2126, %v2127
      %v2129 = vsel %vm2019, %v1933, -inf
      %v2130 = vmax.f32 %v2128, %v2129
      %v2131 = vsel %vm2019, %v1937, -inf
      %v2132 = vmax.f32 %v2130, %v2131
      %v2133 = vsel %vm2019, %v1941, -inf
      %v2134 = vmax.f32 %v2132, %v2133
      %v2135 = vsel %vm2019, %v1945, -inf
      %v2136 = vmax.f32 %v2134, %v2135
      %v2137 = vsel %vm2019, %v1949, -inf
      %v2138 = vmax.f32 %v2136, %v2137
      %v2139 = vsel %vm2019, %v1953, -inf
      %v2140 = vmax.f32 %v2138, %v2139
      %v2141 = vsel %vm2019, %v1957, -inf
      %v2142 = vmax.f32 %v2140, %v2141
      %v2143 = vsel %vm2019, %v1961, -inf
      %v2144 = vmax.f32 %v2142, %v2143
      %v2145 = vsel %vm2019, %v1965, -inf
      %v2146 = vmax.f32 %v2144, %v2145
      %v2147 = vsel %vm2019, %v1969, -inf
      %v2148 = vmax.f32 %v2146, %v2147
      %v2149 = vsel %vm2019, %v1973, -inf
      %v2150 = vmax.f32 %v2148, %v2149
      %v2151 = vsel %vm2019, %v1977, -inf
      %v2152 = vmax.f32 %v2150, %v2151
      %v2153 = vsel %vm2019, %v1981, -inf
      %v2154 = vmax.f32 %v2152, %v2153
      %v2155 = vsel %vm2019, %v1985, -inf
      %v2156 = vmax.f32 %v2154, %v2155
      %v2157 = vsel %vm2019, %v1989, -inf
      %v2158 = vmax.f32 %v2156, %v2157
      %v2159 = vsel %vm2019, %v1993, -inf
      %v2160 = vmax.f32 %v2158, %v2159
      %v2161 = vsel %vm2019, %v1997, -inf
      %v2162 = vmax.f32 %v2160, %v2161
      %v2163 = vsel %vm2019, %v2001, -inf
      %v2164 = vmax.f32 %v2162, %v2163
      %v2165 = vsel %vm2019, %v2005, -inf
      %v2166 = vmax.f32 %v2164, %v2165
      %v2167 = vsel %vm2019, %v2009, -inf
      %v2168 = vmax.f32 %v2166, %v2167
      %v2169 = vsel %vm2019, %v2013, -inf
      %v2170 = vmax.f32 %v2168, %v2169
      %v2171 = vsel %vm2019, %v2017, -inf
      %v2172 = vmax.f32 %v2170, %v2171
      %vm2173 = vcmask 254976
      %v2174 = vsel %vm2173, %v1918, -inf
      %v2175 = vsel %vm2173, %v1922, -inf
      %v2176 = vmax.f32 %v2174, %v2175
      %v2177 = vsel %vm2173, %v1926, -inf
      %v2178 = vmax.f32 %v2176, %v2177
      %v2179 = vsel %vm2173, %v1930, -inf
      %v2180 = vmax.f32 %v2178, %v2179
      %v2181 = vsel %vm2173, %v1934, -inf
      %v2182 = vmax.f32 %v2180, %v2181
      %v2183 = vsel %vm2173, %v1938, -inf
      %v2184 = vmax.f32 %v2182, %v2183
      %v2185 = vsel %vm2173, %v1942, -inf
      %v2186 = vmax.f32 %v2184, %v2185
      %v2187 = vsel %vm2173, %v1946, -inf
      %v2188 = vmax.f32 %v2186, %v2187
      %v2189 = vsel %vm2173, %v1950, -inf
      %v2190 = vmax.f32 %v2188, %v2189
      %v2191 = vsel %vm2173, %v1954, -inf
      %v2192 = vmax.f32 %v2190, %v2191
      %v2193 = vsel %vm2173, %v1958, -inf
      %v2194 = vmax.f32 %v2192, %v2193
      %v2195 = vsel %vm2173, %v1962, -inf
      %v2196 = vmax.f32 %v2194, %v2195
      %v2197 = vsel %vm2173, %v1966, -inf
      %v2198 = vmax.f32 %v2196, %v2197
      %v2199 = vsel %vm2173, %v1970, -inf
      %v2200 = vmax.f32 %v2198, %v2199
      %v2201 = vsel %vm2173, %v1974, -inf
      %v2202 = vmax.f32 %v2200, %v2201
      %v2203 = vsel %vm2173, %v1978, -inf
      %v2204 = vmax.f32 %v2202, %v2203
      %v2205 = vsel %vm2173, %v1982, -inf
      %v2206 = vmax.f32 %v2204, %v2205
      %v2207 = vsel %vm2173, %v1986, -inf
      %v2208 = vmax.f32 %v2206, %v2207
      %v2209 = vsel %vm2173, %v1990, -inf
      %v2210 = vmax.f32 %v2208, %v2209
      %v2211 = vsel %vm2173, %v1994, -inf
      %v2212 = vmax.f32 %v2210, %v2211
      %v2213 = vsel %vm2173, %v1998, -inf
      %v2214 = vmax.f32 %v2212, %v2213
      %v2215 = vsel %vm2173, %v2002, -inf
      %v2216 = vmax.f32 %v2214, %v2215
      %v2217 = vsel %vm2173, %v2006, -inf
      %v2218 = vmax.f32 %v2216, %v2217
      %v2219 = vsel %vm2173, %v2010, -inf
      %v2220 = vmax.f32 %v2218, %v2219
      %v2221 = vsel %vm2173, %v2014, -inf
      %v2222 = vmax.f32 %v2220, %v2221
      %v2223 = vsel %vm2173, %v2018, -inf
      %v2224 = vmax.f32 %v2222, %v2223
      %v2225 = vsub.f32 %v1915, %v2070
      %v2226 = vsub.f32 %v1916, %v2121
      %v2227 = vsub.f32 %v1917, %v2172
      %v2228 = vsub.f32 %v1918, %v2224
      %v2229 = vsub.f32 %v1919, %v2070
      %v2230 = vsub.f32 %v1920, %v2121
      %v2231 = vsub.f32 %v1921, %v2172
      %v2232 = vsub.f32 %v1922, %v2224
      %v2233 = vsub.f32 %v1923, %v2070
      %v2234 = vsub.f32 %v1924, %v2121
      %v2235 = vsub.f32 %v1925, %v2172
      %v2236 = vsub.f32 %v1926, %v2224
      %v2237 = vsub.f32 %v1927, %v2070
      %v2238 = vsub.f32 %v1928, %v2121
      %v2239 = vsub.f32 %v1929, %v2172
      %v2240 = vsub.f32 %v1930, %v2224
      %v2241 = vsub.f32 %v1931, %v2070
      %v2242 = vsub.f32 %v1932, %v2121
      %v2243 = vsub.f32 %v1933, %v2172
      %v2244 = vsub.f32 %v1934, %v2224
      %v2245 = vsub.f32 %v1935, %v2070
      %v2246 = vsub.f32 %v1936, %v2121
      %v2247 = vsub.f32 %v1937, %v2172
      %v2248 = vsub.f32 %v1938, %v2224
      %v2249 = vsub.f32 %v1939, %v2070
      %v2250 = vsub.f32 %v1940, %v2121
      %v2251 = vsub.f32 %v1941, %v2172
      %v2252 = vsub.f32 %v1942, %v2224
      %v2253 = vsub.f32 %v1943, %v2070
      %v2254 = vsub.f32 %v1944, %v2121
      %v2255 = vsub.f32 %v1945, %v2172
      %v2256 = vsub.f32 %v1946, %v2224
      %v2257 = vsub.f32 %v1947, %v2070
      %v2258 = vsub.f32 %v1948, %v2121
      %v2259 = vsub.f32 %v1949, %v2172
      %v2260 = vsub.f32 %v1950, %v2224
      %v2261 = vsub.f32 %v1951, %v2070
      %v2262 = vsub.f32 %v1952, %v2121
      %v2263 = vsub.f32 %v1953, %v2172
      %v2264 = vsub.f32 %v1954, %v2224
      %v2265 = vsub.f32 %v1955, %v2070
      %v2266 = vsub.f32 %v1956, %v2121
      %v2267 = vsub.f32 %v1957, %v2172
      %v2268 = vsub.f32 %v1958, %v2224
      %v2269 = vsub.f32 %v1959, %v2070
      %v2270 = vsub.f32 %v1960, %v2121
      %v2271 = vsub.f32 %v1961, %v2172
      %v2272 = vsub.f32 %v1962, %v2224
      %v2273 = vsub.f32 %v1963, %v2070
      %v2274 = vsub.f32 %v1964, %v2121
      %v2275 = vsub.f32 %v1965, %v2172
      %v2276 = vsub.f32 %v1966, %v2224
      %v2277 = vsub.f32 %v1967, %v2070
      %v2278 = vsub.f32 %v1968, %v2121
      %v2279 = vsub.f32 %v1969, %v2172
      %v2280 = vsub.f32 %v1970, %v2224
      %v2281 = vsub.f32 %v1971, %v2070
      %v2282 = vsub.f32 %v1972, %v2121
      %v2283 = vsub.f32 %v1973, %v2172
      %v2284 = vsub.f32 %v1974, %v2224
      %v2285 = vsub.f32 %v1975, %v2070
      %v2286 = vsub.f32 %v1976, %v2121
      %v2287 = vsub.f32 %v1977, %v2172
      %v2288 = vsub.f32 %v1978, %v2224
      %v2289 = vsub.f32 %v1979, %v2070
      %v2290 = vsub.f32 %v1980, %v2121
      %v2291 = vsub.f32 %v1981, %v2172
      %v2292 = vsub.f32 %v1982, %v2224
      %v2293 = vsub.f32 %v1983, %v2070
      %v2294 = vsub.f32 %v1984, %v2121
      %v2295 = vsub.f32 %v1985, %v2172
      %v2296 = vsub.f32 %v1986, %v2224
      %v2297 = vsub.f32 %v1987, %v2070
      %v2298 = vsub.f32 %v1988, %v2121
      %v2299 = vsub.f32 %v1989, %v2172
      %v2300 = vsub.f32 %v1990, %v2224
      %v2301 = vsub.f32 %v1991, %v2070
      %v2302 = vsub.f32 %v1992, %v2121
      %v2303 = vsub.f32 %v1993, %v2172
      %v2304 = vsub.f32 %v1994, %v2224
      %v2305 = vsub.f32 %v1995, %v2070
      %v2306 = vsub.f32 %v1996, %v2121
      %v2307 = vsub.f32 %v1997, %v2172
      %v2308 = vsub.f32 %v1998, %v2224
      %v2309 = vsub.f32 %v1999, %v2070
      %v2310 = vsub.f32 %v2000, %v2121
      %v2311 = vsub.f32 %v2001, %v2172
      %v2312 = vsub.f32 %v2002, %v2224
      %v2313 = vsub.f32 %v2003, %v2070
      %v2314 = vsub.f32 %v2004, %v2121
      %v2315 = vsub.f32 %v2005, %v2172
      %v2316 = vsub.f32 %v2006, %v2224
      %v2317 = vsub.f32 %v2007, %v2070
      %v2318 = vsub.f32 %v2008, %v2121
      %v2319 = vsub.f32 %v2009, %v2172
      %v2320 = vsub.f32 %v2010, %v2224
      %v2321 = vsub.f32 %v2011, %v2070
      %v2322 = vsub.f32 %v2012, %v2121
      %v2323 = vsub.f32 %v2013, %v2172
      %v2324 = vsub.f32 %v2014, %v2224
      %v2325 = vsub.f32 %v2015, %v2070
      %v2326 = vsub.f32 %v2016, %v2121
      %v2327 = vsub.f32 %v2017, %v2172
      %v2328 = vsub.f32 %v2018, %v2224
      %v2329 = vmul.f32 %v2225, 1.442695
      %v2330 = vpow.pop %v2329
      %v2331 = vmul.f32 %v2226, 1.442695
      %v2332 = vpow.pop %v2331
      %v2333 = vmul.f32 %v2227, 1.442695
      %v2334 = vpow.pop %v2333
      %v2335 = vmul.f32 %v2228, 1.442695
      %v2336 = vpow.pop %v2335
      %v2337 = vmul.f32 %v2229, 1.442695
      %v2338 = vpow.pop %v2337
      %v2339 = vmul.f32 %v2230, 1.442695
      %v2340 = vpow.pop %v2339
      %v2341 = vmul.f32 %v2231, 1.442695
      %v2342 = vpow.pop %v2341
      %v2343 = vmul.f32 %v2232, 1.442695
      %v2344 = vpow.pop %v2343
      %v2345 = vmul.f32 %v2233, 1.442695
      %v2346 = vpow.pop %v2345
      %v2347 = vmul.f32 %v2234, 1.442695
      %v2348 = vpow.pop %v2347
      %v2349 = vmul.f32 %v2235, 1.442695
      %v2350 = vpow.pop %v2349
      %v2351 = vmul.f32 %v2236, 1.442695
      %v2352 = vpow.pop %v2351
      %v2353 = vmul.f32 %v2237, 1.442695
      %v2354 = vpow.pop %v2353
      %v2355 = vmul.f32 %v2238, 1.442695
      %v2356 = vpow.pop %v2355
      %v2357 = vmul.f32 %v2239, 1.442695
      %v2358 = vpow.pop %v2357
      %v2359 = vmul.f32 %v2240, 1.442695
      %v2360 = vpow.pop %v2359
      %v2361 = vmul.f32 %v2241, 1.442695
      %v2362 = vpow.pop %v2361
      %v2363 = vmul.f32 %v2242, 1.442695
      %v2364 = vpow.pop %v2363
      %v2365 = vmul.f32 %v2243, 1.442695
      %v2366 = vpow.pop %v2365
      %v2367 = vmul.f32 %v2244, 1.442695
      %v2368 = vpow.pop %v2367
      %v2369 = vmul.f32 %v2245, 1.442695
      %v2370 = vpow.pop %v2369
      %v2371 = vmul.f32 %v2246, 1.442695
      %v2372 = vpow.pop %v2371
      %v2373 = vmul.f32 %v2247, 1.442695
      %v2374 = vpow.pop %v2373
      %v2375 = vmul.f32 %v2248, 1.442695
      %v2376 = vpow.pop %v2375
      %v2377 = vmul.f32 %v2249, 1.442695
      %v2378 = vpow.pop %v2377
      %v2379 = vmul.f32 %v2250, 1.442695
      %v2380 = vpow.pop %v2379
      %v2381 = vmul.f32 %v2251, 1.442695
      %v2382 = vpow.pop %v2381
      %v2383 = vmul.f32 %v2252, 1.442695
      %v2384 = vpow.pop %v2383
      %v2385 = vmul.f32 %v2253, 1.442695
      %v2386 = vpow.pop %v2385
      %v2387 = vmul.f32 %v2254, 1.442695
      %v2388 = vpow.pop %v2387
      %v2389 = vmul.f32 %v2255, 1.442695
      %v2390 = vpow.pop %v2389
      %v2391 = vmul.f32 %v2256, 1.442695
      %v2392 = vpow.pop %v2391
      %v2393 = vmul.f32 %v2257, 1.442695
      %v2394 = vpow.pop %v2393
      %v2395 = vmul.f32 %v2258, 1.442695
      %v2396 = vpow.pop %v2395
      %v2397 = vmul.f32 %v2259, 1.442695
      %v2398 = vpow.pop %v2397
      %v2399 = vmul.f32 %v2260, 1.442695
      %v2400 = vpow.pop %v2399
      %v2401 = vmul.f32 %v2261, 1.442695
      %v2402 = vpow.pop %v2401
      %v2403 = vmul.f32 %v2262, 1.442695
      %v2404 = vpow.pop %v2403
      %v2405 = vmul.f32 %v2263, 1.442695
      %v2406 = vpow.pop %v2405
      %v2407 = vmul.f32 %v2264, 1.442695
      %v2408 = vpow.pop %v2407
      %v2409 = vmul.f32 %v2265, 1.442695
      %v2410 = vpow.pop %v2409
      %v2411 = vmul.f32 %v2266, 1.442695
      %v2412 = vpow.pop %v2411
      %v2413 = vmul.f32 %v2267, 1.442695
      %v2414 = vpow.pop %v2413
      %v2415 = vmul.f32 %v2268, 1.442695
      %v2416 = vpow.pop %v2415
      %v2417 = vmul.f32 %v2269, 1.442695
      %v2418 = vpow.pop %v2417
      %v2419 = vmul.f32 %v2270, 1.442695
      %v2420 = vpow.pop %v2419
      %v2421 = vmul.f32 %v2271, 1.442695
      %v2422 = vpow.pop %v2421
      %v2423 = vmul.f32 %v2272, 1.442695
      %v2424 = vpow.pop %v2423
      %v2425 = vmul.f32 %v2273, 1.442695
      %v2426 = vpow.pop %v2425
      %v2427 = vmul.f32 %v2274, 1.442695
      %v2428 = vpow.pop %v2427
      %v2429 = vmul.f32 %v2275, 1.442695
      %v2430 = vpow.pop %v2429
      %v2431 = vmul.f32 %v2276, 1.442695
      %v2432 = vpow.pop %v2431
      %v2433 = vmul.f32 %v2277, 1.442695
      %v2434 = vpow.pop %v2433
      %v2435 = vmul.f32 %v2278, 1.442695
      %v2436 = vpow.pop %v2435
      %v2437 = vmul.f32 %v2279, 1.442695
      %v2438 = vpow.pop %v2437
      %v2439 = vmul.f32 %v2280, 1.442695
      %v2440 = vpow.pop %v2439
      %v2441 = vmul.f32 %v2281, 1.442695
      %v2442 = vpow.pop %v2441
      %v2443 = vmul.f32 %v2282, 1.442695
      %v2444 = vpow.pop %v2443
      %v2445 = vmul.f32 %v2283, 1.442695
      %v2446 = vpow.pop %v2445
      %v2447 = vmul.f32 %v2284, 1.442695
      %v2448 = vpow.pop %v2447
      %v2449 = vmul.f32 %v2285, 1.442695
      %v2450 = vpow.pop %v2449
      %v2451 = vmul.f32 %v2286, 1.442695
      %v2452 = vpow.pop %v2451
      %v2453 = vmul.f32 %v2287, 1.442695
      %v2454 = vpow.pop %v2453
      %v2455 = vmul.f32 %v2288, 1.442695
      %v2456 = vpow.pop %v2455
      %v2457 = vmul.f32 %v2289, 1.442695
      %v2458 = vpow.pop %v2457
      %v2459 = vmul.f32 %v2290, 1.442695
      %v2460 = vpow.pop %v2459
      %v2461 = vmul.f32 %v2291, 1.442695
      %v2462 = vpow.pop %v2461
      %v2463 = vmul.f32 %v2292, 1.442695
      %v2464 = vpow.pop %v2463
      %v2465 = vmul.f32 %v2293, 1.442695
      %v2466 = vpow.pop %v2465
      %v2467 = vmul.f32 %v2294, 1.442695
      %v2468 = vpow.pop %v2467
      %v2469 = vmul.f32 %v2295, 1.442695
      %v2470 = vpow.pop %v2469
      %v2471 = vmul.f32 %v2296, 1.442695
      %v2472 = vpow.pop %v2471
      %v2473 = vmul.f32 %v2297, 1.442695
      %v2474 = vpow.pop %v2473
      %v2475 = vmul.f32 %v2298, 1.442695
      %v2476 = vpow.pop %v2475
      %v2477 = vmul.f32 %v2299, 1.442695
      %v2478 = vpow.pop %v2477
      %v2479 = vmul.f32 %v2300, 1.442695
      %v2480 = vpow.pop %v2479
      %v2481 = vmul.f32 %v2301, 1.442695
      %v2482 = vpow.pop %v2481
      %v2483 = vmul.f32 %v2302, 1.442695
      %v2484 = vpow.pop %v2483
      %v2485 = vmul.f32 %v2303, 1.442695
      %v2486 = vpow.pop %v2485
      %v2487 = vmul.f32 %v2304, 1.442695
      %v2488 = vpow.pop %v2487
      %v2489 = vmul.f32 %v2305, 1.442695
      %v2490 = vpow.pop %v2489
      %v2491 = vmul.f32 %v2306, 1.442695
      %v2492 = vpow.pop %v2491
      %v2493 = vmul.f32 %v2307, 1.442695
      %v2494 = vpow.pop %v2493
      %v2495 = vmul.f32 %v2308, 1.442695
      %v2496 = vpow.pop %v2495
      %v2497 = vmul.f32 %v2309, 1.442695
      %v2498 = vpow.pop %v2497
      %v2499 = vmul.f32 %v2310, 1.442695
      %v2500 = vpow.pop %v2499
      %v2501 = vmul.f32 %v2311, 1.442695
      %v2502 = vpow.pop %v2501
      %v2503 = vmul.f32 %v2312, 1.442695
      %v2504 = vpow.pop %v2503
      %v2505 = vmul.f32 %v2313, 1.442695
      %v2506 = vpow.pop %v2505
      %v2507 = vmul.f32 %v2314, 1.442695
      %v2508 = vpow.pop %v2507
      %v2509 = vmul.f32 %v2315, 1.442695
      %v2510 = vpow.pop %v2509
      %v2511 = vmul.f32 %v2316, 1.442695
      %v2512 = vpow.pop %v2511
      %v2513 = vmul.f32 %v2317, 1.442695
      %v2514 = vpow.pop %v2513
      %v2515 = vmul.f32 %v2318, 1.442695
      %v2516 = vpow.pop %v2515
      %v2517 = vmul.f32 %v2319, 1.442695
      %v2518 = vpow.pop %v2517
      %v2519 = vmul.f32 %v2320, 1.442695
      %v2520 = vpow.pop %v2519
      %v2521 = vmul.f32 %v2321, 1.442695
      %v2522 = vpow.pop %v2521
      %v2523 = vmul.f32 %v2322, 1.442695
      %v2524 = vpow.pop %v2523
      %v2525 = vmul.f32 %v2323, 1.442695
      %v2526 = vpow.pop %v2525
      %v2527 = vmul.f32 %v2324, 1.442695
      %v2528 = vpow.pop %v2527
      %v2529 = vmul.f32 %v2325, 1.442695
      %v2530 = vpow.pop %v2529
      %v2531 = vmul.f32 %v2326, 1.442695
      %v2532 = vpow.pop %v2531
      %v2533 = vmul.f32 %v2327, 1.442695
      %v2534 = vpow.pop %v2533
      %v2535 = vmul.f32 %v2328, 1.442695
      %v2536 = vpow.pop %v2535
      %v2537 = vsel %vm2019, %v2330, 0.0
      %v2538 = vsel %vm2019, %v2338, 0.0
      %v2539 = vadd.f32 %v2537, %v2538
      %v2540 = vsel %vm2019, %v2346, 0.0
      %v2541 = vadd.f32 %v2539, %v2540
      %v2542 = vsel %vm2019, %v2354, 0.0
      %v2543 = vadd.f32 %v2541, %v2542
      %v2544 = vsel %vm2019, %v2362, 0.0
      %v2545 = vadd.f32 %v2543, %v2544
      %v2546 = vsel %vm2019, %v2370, 0.0
      %v2547 = vadd.f32 %v2545, %v2546
      %v2548 = vsel %vm2019, %v2378, 0.0
      %v2549 = vadd.f32 %v2547, %v2548
      %v2550 = vsel %vm2019, %v2386, 0.0
      %v2551 = vadd.f32 %v2549, %v2550
      %v2552 = vsel %vm2019, %v2394, 0.0
      %v2553 = vadd.f32 %v2551, %v2552
      %v2554 = vsel %vm2019, %v2402, 0.0
      %v2555 = vadd.f32 %v2553, %v2554
      %v2556 = vsel %vm2019, %v2410, 0.0
      %v2557 = vadd.f32 %v2555, %v2556
      %v2558 = vsel %vm2019, %v2418, 0.0
      %v2559 = vadd.f32 %v2557, %v2558
      %v2560 = vsel %vm2019, %v2426, 0.0
      %v2561 = vadd.f32 %v2559, %v2560
      %v2562 = vsel %vm2019, %v2434, 0.0
      %v2563 = vadd.f32 %v2561, %v2562
      %v2564 = vsel %vm2019, %v2442, 0.0
      %v2565 = vadd.f32 %v2563, %v2564
      %v2566 = vsel %vm2019, %v2450, 0.0
      %v2567 = vadd.f32 %v2565, %v2566
      %v2568 = vsel %vm2019, %v2458, 0.0
      %v2569 = vadd.f32 %v2567, %v2568
      %v2570 = vsel %vm2019, %v2466, 0.0
      %v2571 = vadd.f32 %v2569, %v2570
      %v2572 = vsel %vm2019, %v2474, 0.0
      %v2573 = vadd.f32 %v2571, %v2572
      %v2574 = vsel %vm2019, %v2482, 0.0
      %v2575 = vadd.f32 %v2573, %v2574
      %v2576 = vsel %vm2019, %v2490, 0.0
      %v2577 = vadd.f32 %v2575, %v2576
      %v2578 = vsel %vm2019, %v2498, 0.0
      %v2579 = vadd.f32 %v2577, %v2578
      %v2580 = vsel %vm2019, %v2506, 0.0
      %v2581 = vadd.f32 %v2579, %v2580
      %v2582 = vsel %vm2019, %v2514, 0.0
      %v2583 = vadd.f32 %v2581, %v2582
      %v2584 = vsel %vm2019, %v2522, 0.0
      %v2585 = vadd.f32 %v2583, %v2584
      %v2586 = vsel %vm2019, %v2530, 0.0
      %v2587 = vadd.f32 %v2585, %v2586
      %v2588 = vsel %vm2019, %v2332, 0.0
      %v2589 = vsel %vm2019, %v2340, 0.0
      %v2590 = vadd.f32 %v2588, %v2589
      %v2591 = vsel %vm2019, %v2348, 0.0
      %v2592 = vadd.f32 %v2590, %v2591
      %v2593 = vsel %vm2019, %v2356, 0.0
      %v2594 = vadd.f32 %v2592, %v2593
      %v2595 = vsel %vm2019, %v2364, 0.0
      %v2596 = vadd.f32 %v2594, %v2595
      %v2597 = vsel %vm2019, %v2372, 0.0
      %v2598 = vadd.f32 %v2596, %v2597
      %v2599 = vsel %vm2019, %v2380, 0.0
      %v2600 = vadd.f32 %v2598, %v2599
      %v2601 = vsel %vm2019, %v2388, 0.0
      %v2602 = vadd.f32 %v2600, %v2601
      %v2603 = vsel %vm2019, %v2396, 0.0
      %v2604 = vadd.f32 %v2602, %v2603
      %v2605 = vsel %vm2019, %v2404, 0.0
      %v2606 = vadd.f32 %v2604, %v2605
      %v2607 = vsel %vm2019, %v2412, 0.0
      %v2608 = vadd.f32 %v2606, %v2607
      %v2609 = vsel %vm2019, %v2420, 0.0
      %v2610 = vadd.f32 %v2608, %v2609
      %v2611 = vsel %vm2019, %v2428, 0.0
      %v2612 = vadd.f32 %v2610, %v2611
      %v2613 = vsel %vm2019, %v2436, 0.0
      %v2614 = vadd.f32 %v2612, %v2613
      %v2615 = vsel %vm2019, %v2444, 0.0
      %v2616 = vadd.f32 %v2614, %v2615
      %v2617 = vsel %vm2019, %v2452, 0.0
      %v2618 = vadd.f32 %v2616, %v2617
      %v2619 = vsel %vm2019, %v2460, 0.0
      %v2620 = vadd.f32 %v2618, %v2619
      %v2621 = vsel %vm2019, %v2468, 0.0
      %v2622 = vadd.f32 %v2620, %v2621
      %v2623 = vsel %vm2019, %v2476, 0.0
      %v2624 = vadd.f32 %v2622, %v2623
      %v2625 = vsel %vm2019, %v2484, 0.0
      %v2626 = vadd.f32 %v2624, %v2625
      %v2627 = vsel %vm2019, %v2492, 0.0
      %v2628 = vadd.f32 %v2626, %v2627
      %v2629 = vsel %vm2019, %v2500, 0.0
      %v2630 = vadd.f32 %v2628, %v2629
      %v2631 = vsel %vm2019, %v2508, 0.0
      %v2632 = vadd.f32 %v2630, %v2631
      %v2633 = vsel %vm2019, %v2516, 0.0
      %v2634 = vadd.f32 %v2632, %v2633
      %v2635 = vsel %vm2019, %v2524, 0.0
      %v2636 = vadd.f32 %v2634, %v2635
      %v2637 = vsel %vm2019, %v2532, 0.0
      %v2638 = vadd.f32 %v2636, %v2637
      %v2639 = vsel %vm2019, %v2334, 0.0
      %v2640 = vsel %vm2019, %v2342, 0.0
      %v2641 = vadd.f32 %v2639, %v2640
      %v2642 = vsel %vm2019, %v2350, 0.0
      %v2643 = vadd.f32 %v2641, %v2642
      %v2644 = vsel %vm2019, %v2358, 0.0
      %v2645 = vadd.f32 %v2643, %v2644
      %v2646 = vsel %vm2019, %v2366, 0.0
      %v2647 = vadd.f32 %v2645, %v2646
      %v2648 = vsel %vm2019, %v2374, 0.0
      %v2649 = vadd.f32 %v2647, %v2648
      %v2650 = vsel %vm2019, %v2382, 0.0
      %v2651 = vadd.f32 %v2649, %v2650
      %v2652 = vsel %vm2019, %v2390, 0.0
      %v2653 = vadd.f32 %v2651, %v2652
      %v2654 = vsel %vm2019, %v2398, 0.0
      %v2655 = vadd.f32 %v2653, %v2654
      %v2656 = vsel %vm2019, %v2406, 0.0
      %v2657 = vadd.f32 %v2655, %v2656
      %v2658 = vsel %vm2019, %v2414, 0.0
      %v2659 = vadd.f32 %v2657, %v2658
      %v2660 = vsel %vm2019, %v2422, 0.0
      %v2661 = vadd.f32 %v2659, %v2660
      %v2662 = vsel %vm2019, %v2430, 0.0
      %v2663 = vadd.f32 %v2661, %v2662
      %v2664 = vsel %vm2019, %v2438, 0.0
      %v2665 = vadd.f32 %v2663, %v2664
      %v2666 = vsel %vm2019, %v2446, 0.0
      %v2667 = vadd.f32 %v2665, %v2666
      %v2668 = vsel %vm2019, %v2454, 0.0
      %v2669 = vadd.f32 %v2667, %v2668
      %v2670 = vsel %vm2019, %v2462, 0.0
      %v2671 = vadd.f32 %v2669, %v2670
      %v2672 = vsel %vm2019, %v2470, 0.0
      %v2673 = vadd.f32 %v2671, %v2672
      %v2674 = vsel %vm2019, %v2478, 0.0
      %v2675 = vadd.f32 %v2673, %v2674
      %v2676 = vsel %vm2019, %v2486, 0.0
      %v2677 = vadd.f32 %v2675, %v2676
      %v2678 = vsel %vm2019, %v2494, 0.0
      %v2679 = vadd.f32 %v2677, %v2678
      %v2680 = vsel %vm2019, %v2502, 0.0
      %v2681 = vadd.f32 %v2679, %v2680
      %v2682 = vsel %vm2019, %v2510, 0.0
      %v2683 = vadd.f32 %v2681, %v2682
      %v2684 = vsel %vm2019, %v2518, 0.0
      %v2685 = vadd.f32 %v2683, %v2684
      %v2686 = vsel %vm2019, %v2526, 0.0
      %v2687 = vadd.f32 %v2685, %v2686
      %v2688 = vsel %vm2019, %v2534, 0.0
      %v2689 = vadd.f32 %v2687, %v2688
      %v2690 = vsel %vm2173, %v2336, 0.0
      %v2691 = vsel %vm2173, %v2344, 0.0
      %v2692 = vadd.f32 %v2690, %v2691
      %v2693 = vsel %vm2173, %v2352, 0.0
      %v2694 = vadd.f32 %v2692, %v2693
      %v2695 = vsel %vm2173, %v2360, 0.0
      %v2696 = vadd.f32 %v2694, %v2695
      %v2697 = vsel %vm2173, %v2368, 0.0
      %v2698 = vadd.f32 %v2696, %v2697
      %v2699 = vsel %vm2173, %v2376, 0.0
      %v2700 = vadd.f32 %v2698, %v2699
      %v2701 = vsel %vm2173, %v2384, 0.0
      %v2702 = vadd.f32 %v2700, %v2701
      %v2703 = vsel %vm2173, %v2392, 0.0
      %v2704 = vadd.f32 %v2702, %v2703
      %v2705 = vsel %vm2173, %v2400, 0.0
      %v2706 = vadd.f32 %v2704, %v2705
      %v2707 = vsel %vm2173, %v2408, 0.0
      %v2708 = vadd.f32 %v2706, %v2707
      %v2709 = vsel %vm2173, %v2416, 0.0
      %v2710 = vadd.f32 %v2708, %v2709
      %v2711 = vsel %vm2173, %v2424, 0.0
      %v2712 = vadd.f32 %v2710, %v2711
      %v2713 = vsel %vm2173, %v2432, 0.0
      %v2714 = vadd.f32 %v2712, %v2713
      %v2715 = vsel %vm2173, %v2440, 0.0
      %v2716 = vadd.f32 %v2714, %v2715
      %v2717 = vsel %vm2173, %v2448, 0.0
      %v2718 = vadd.f32 %v2716, %v2717
      %v2719 = vsel %vm2173, %v2456, 0.0
      %v2720 = vadd.f32 %v2718, %v2719
      %v2721 = vsel %vm2173, %v2464, 0.0
      %v2722 = vadd.f32 %v2720, %v2721
      %v2723 = vsel %vm2173, %v2472, 0.0
      %v2724 = vadd.f32 %v2722, %v2723
      %v2725 = vsel %vm2173, %v2480, 0.0
      %v2726 = vadd.f32 %v2724, %v2725
      %v2727 = vsel %vm2173, %v2488, 0.0
      %v2728 = vadd.f32 %v2726, %v2727
      %v2729 = vsel %vm2173, %v2496, 0.0
      %v2730 = vadd.f32 %v2728, %v2729
      %v2731 = vsel %vm2173, %v2504, 0.0
      %v2732 = vadd.f32 %v2730, %v2731
      %v2733 = vsel %vm2173, %v2512, 0.0
      %v2734 = vadd.f32 %v2732, %v2733
      %v2735 = vsel %vm2173, %v2520, 0.0
      %v2736 = vadd.f32 %v2734, %v2735
      %v2737 = vsel %vm2173, %v2528, 0.0
      %v2738 = vadd.f32 %v2736, %v2737
      %v2739 = vsel %vm2173, %v2536, 0.0
      %v2740 = vadd.f32 %v2738, %v2739
      %v2741 = vrcp.pop %v2587
      %v2742 = vrcp.pop %v2638
      %v2743 = vrcp.pop %v2689
      %v2744 = vrcp.pop %v2740
      %v2745 = vmul.f32 %v2330, %v2741
      %v2746 = vmul.f32 %v2332, %v2742
      %v2747 = vmul.f32 %v2334, %v2743
      %v2748 = vmul.f32 %v2336, %v2744
      %v2749 = vmul.f32 %v2338, %v2741
      %v2750 = vmul.f32 %v2340, %v2742
      %v2751 = vmul.f32 %v2342, %v2743
      %v2752 = vmul.f32 %v2344, %v2744
      %v2753 = vmul.f32 %v2346, %v2741
      %v2754 = vmul.f32 %v2348, %v2742
      %v2755 = vmul.f32 %v2350, %v2743
      %v2756 = vmul.f32 %v2352, %v2744
      %v2757 = vmul.f32 %v2354, %v2741
      %v2758 = vmul.f32 %v2356, %v2742
      %v2759 = vmul.f32 %v2358, %v2743
      %v2760 = vmul.f32 %v2360, %v2744
      %v2761 = vmul.f32 %v2362, %v2741
      %v2762 = vmul.f32 %v2364, %v2742
      %v2763 = vmul.f32 %v2366, %v2743
      %v2764 = vmul.f32 %v2368, %v2744
      %v2765 = vmul.f32 %v2370, %v2741
      %v2766 = vmul.f32 %v2372, %v2742
      %v2767 = vmul.f32 %v2374, %v2743
      %v2768 = vmul.f32 %v2376, %v2744
      %v2769 = vmul.f32 %v2378, %v2741
      %v2770 = vmul.f32 %v2380, %v2742
      %v2771 = vmul.f32 %v2382, %v2743
      %v2772 = vmul.f32 %v2384, %v2744
      %v2773 = vmul.f32 %v2386, %v2741
      %v2774 = vmul.f32 %v2388, %v2742
      %v2775 = vmul.f32 %v2390, %v2743
      %v2776 = vmul.f32 %v2392, %v2744
      %v2777 = vmul.f32 %v2394, %v2741
      %v2778 = vmul.f32 %v2396, %v2742
      %v2779 = vmul.f32 %v2398, %v2743
      %v2780 = vmul.f32 %v2400, %v2744
      %v2781 = vmul.f32 %v2402, %v2741
      %v2782 = vmul.f32 %v2404, %v2742
      %v2783 = vmul.f32 %v2406, %v2743
      %v2784 = vmul.f32 %v2408, %v2744
      %v2785 = vmul.f32 %v2410, %v2741
      %v2786 = vmul.f32 %v2412, %v2742
      %v2787 = vmul.f32 %v2414, %v2743
      %v2788 = vmul.f32 %v2416, %v2744
      %v2789 = vmul.f32 %v2418, %v2741
      %v2790 = vmul.f32 %v2420, %v2742
      %v2791 = vmul.f32 %v2422, %v2743
      %v2792 = vmul.f32 %v2424, %v2744
      %v2793 = vmul.f32 %v2426, %v2741
      %v2794 = vmul.f32 %v2428, %v2742
      %v2795 = vmul.f32 %v2430, %v2743
      %v2796 = vmul.f32 %v2432, %v2744
      %v2797 = vmul.f32 %v2434, %v2741
      %v2798 = vmul.f32 %v2436, %v2742
      %v2799 = vmul.f32 %v2438, %v2743
      %v2800 = vmul.f32 %v2440, %v2744
      %v2801 = vmul.f32 %v2442, %v2741
      %v2802 = vmul.f32 %v2444, %v2742
      %v2803 = vmul.f32 %v2446, %v2743
      %v2804 = vmul.f32 %v2448, %v2744
      %v2805 = vmul.f32 %v2450, %v2741
      %v2806 = vmul.f32 %v2452, %v2742
      %v2807 = vmul.f32 %v2454, %v2743
      %v2808 = vmul.f32 %v2456, %v2744
      %v2809 = vmul.f32 %v2458, %v2741
      %v2810 = vmul.f32 %v2460, %v2742
      %v2811 = vmul.f32 %v2462, %v2743
      %v2812 = vmul.f32 %v2464, %v2744
      %v2813 = vmul.f32 %v2466, %v2741
      %v2814 = vmul.f32 %v2468, %v2742
      %v2815 = vmul.f32 %v2470, %v2743
      %v2816 = vmul.f32 %v2472, %v2744
      %v2817 = vmul.f32 %v2474, %v2741
      %v2818 = vmul.f32 %v2476, %v2742
      %v2819 = vmul.f32 %v2478, %v2743
      %v2820 = vmul.f32 %v2480, %v2744
      %v2821 = vmul.f32 %v2482, %v2741
      %v2822 = vmul.f32 %v2484, %v2742
      %v2823 = vmul.f32 %v2486, %v2743
      %v2824 = vmul.f32 %v2488, %v2744
      %v2825 = vmul.f32 %v2490, %v2741
      %v2826 = vmul.f32 %v2492, %v2742
      %v2827 = vmul.f32 %v2494, %v2743
      %v2828 = vmul.f32 %v2496, %v2744
      %v2829 = vmul.f32 %v2498, %v2741
      %v2830 = vmul.f32 %v2500, %v2742
      %v2831 = vmul.f32 %v2502, %v2743
      %v2832 = vmul.f32 %v2504, %v2744
      %v2833 = vmul.f32 %v2506, %v2741
      %v2834 = vmul.f32 %v2508, %v2742
      %v2835 = vmul.f32 %v2510, %v2743
      %v2836 = vmul.f32 %v2512, %v2744
      %v2837 = vmul.f32 %v2514, %v2741
      %v2838 = vmul.f32 %v2516, %v2742
      %v2839 = vmul.f32 %v2518, %v2743
      %v2840 = vmul.f32 %v2520, %v2744
      %v2841 = vmul.f32 %v2522, %v2741
      %v2842 = vmul.f32 %v2524, %v2742
      %v2843 = vmul.f32 %v2526, %v2743
      %v2844 = vmul.f32 %v2528, %v2744
      %v2845 = vmul.f32 %v2530, %v2741
      %v2846 = vmul.f32 %v2532, %v2742
      %v2847 = vmul.f32 %v2534, %v2743
      %v2848 = vmul.f32 %v2536, %v2744
      %v2853 = vcombine.high %v1020, %v1020
      %v2855 = vunpack.c.l.s4 1966171168
      %v2856 = vunpack.c.0.s8 %v2855
      %v2857 = vlaneseq
      %v2858 = vshrl.u32 %v2857, 7
      %v2859 = vsub.s32 %v2856, %v2858
      %v2860 = vrot.slane %v1020, %v2859
      %v2862 = vunpack.c.l.s4 1966171168
      %v2863 = vunpack.c.0.s8 %v2862
      %v2864 = vlaneseq
      %v2865 = vshrl.u32 %v2864, 7
      %v2866 = vsub.s32 %v2863, %v2865
      %v2867 = vrot.slane %v2853, %v2866
      %v2868 = vcombine.high %v2860, %v2860
      %v2869 = vcombine.high %v2867, %v2867
      %v2871 = vunpack.c.l.s4 1966171168
      %v2872 = vunpack.c.0.s8 %v2871
      %v2873 = vlaneseq
      %v2874 = vshrl.u32 %v2873, 7
      %v2875 = vsub.s32 %v2872, %v2874
      %v2876 = vrot.slane %v2860, %v2875
      %v2878 = vunpack.c.l.s4 1966171168
      %v2879 = vunpack.c.0.s8 %v2878
      %v2880 = vlaneseq
      %v2881 = vshrl.u32 %v2880, 7
      %v2882 = vsub.s32 %v2879, %v2881
      %v2883 = vrot.slane %v2867, %v2882
      %v2885 = vunpack.c.l.s4 1966171168
      %v2886 = vunpack.c.0.s8 %v2885
      %v2887 = vlaneseq
      %v2888 = vshrl.u32 %v2887, 7
      %v2889 = vsub.s32 %v2886, %v2888
      %v2890 = vrot.slane %v2868, %v2889
      %v2892 = vunpack.c.l.s4 1966171168
      %v2893 = vunpack.c.0.s8 %v2892
      %v2894 = vlaneseq
      %v2895 = vshrl.u32 %v2894, 7
      %v2896 = vsub.s32 %v2893, %v2895
      %v2897 = vrot.slane %v2869, %v2896
      %v2898 = vcombine.high %v2876, %v2876
      %v2899 = vcombine.high %v2883, %v2883
      %v2900 = vcombine.high %v2890, %v2890
      %v2901 = vcombine.high %v2897, %v2897
      %v2902 = vcombine.high %v1026, %v1026
      %v2904 = vunpack.c.l.s4 1966171168
      %v2905 = vunpack.c.0.s8 %v2904
      %v2906 = vlaneseq
      %v2907 = vshrl.u32 %v2906, 7
      %v2908 = vsub.s32 %v2905, %v2907
      %v2909 = vrot.slane %v1026, %v2908
      %v2911 = vunpack.c.l.s4 1966171168
      %v2912 = vunpack.c.0.s8 %v2911
      %v2913 = vlaneseq
      %v2914 = vshrl.u32 %v2913, 7
      %v2915 = vsub.s32 %v2912, %v2914
      %v2916 = vrot.slane %v2902, %v2915
      %v2917 = vcombine.high %v2909, %v2909
      %v2918 = vcombine.high %v2916, %v2916
      %v2920 = vunpack.c.l.s4 1966171168
      %v2921 = vunpack.c.0.s8 %v2920
      %v2922 = vlaneseq
      %v2923 = vshrl.u32 %v2922, 7
      %v2924 = vsub.s32 %v2921, %v2923
      %v2925 = vrot.slane %v2909, %v2924
      %v2927 = vunpack.c.l.s4 1966171168
      %v2928 = vunpack.c.0.s8 %v2927
      %v2929 = vlaneseq
      %v2930 = vshrl.u32 %v2929, 7
      %v2931 = vsub.s32 %v2928, %v2930
      %v2932 = vrot.slane %v2916, %v2931
      %v2934 = vunpack.c.l.s4 1966171168
      %v2935 = vunpack.c.0.s8 %v2934
      %v2936 = vlaneseq
      %v2937 = vshrl.u32 %v2936, 7
      %v2938 = vsub.s32 %v2935, %v2937
      %v2939 = vrot.slane %v2917, %v2938
      %v2941 = vunpack.c.l.s4 1966171168
      %v2942 = vunpack.c.0.s8 %v2941
      %v2943 = vlaneseq
      %v2944 = vshrl.u32 %v2943, 7
      %v2945 = vsub.s32 %v2942, %v2944
      %v2946 = vrot.slane %v2918, %v2945
      %v2947 = vcombine.high %v2925, %v2925
      %v2948 = vcombine.high %v2932, %v2932
      %v2949 = vcombine.high %v2939, %v2939
      %v2950 = vcombine.high %v2946, %v2946
      %v2951 = vcombine.high %v1032, %v1032
      %v2953 = vunpack.c.l.s4 1966171168
      %v2954 = vunpack.c.0.s8 %v2953
      %v2955 = vlaneseq
      %v2956 = vshrl.u32 %v2955, 7
      %v2957 = vsub.s32 %v2954, %v2956
      %v2958 = vrot.slane %v1032, %v2957
      %v2960 = vunpack.c.l.s4 1966171168
      %v2961 = vunpack.c.0.s8 %v2960
      %v2962 = vlaneseq
      %v2963 = vshrl.u32 %v2962, 7
      %v2964 = vsub.s32 %v2961, %v2963
      %v2965 = vrot.slane %v2951, %v2964
      %v2966 = vcombine.high %v2958, %v2958
      %v2967 = vcombine.high %v2965, %v2965
      %v2969 = vunpack.c.l.s4 1966171168
      %v2970 = vunpack.c.0.s8 %v2969
      %v2971 = vlaneseq
      %v2972 = vshrl.u32 %v2971, 7
      %v2973 = vsub.s32 %v2970, %v2972
      %v2974 = vrot.slane %v2958, %v2973
      %v2976 = vunpack.c.l.s4 1966171168
      %v2977 = vunpack.c.0.s8 %v2976
      %v2978 = vlaneseq
      %v2979 = vshrl.u32 %v2978, 7
      %v2980 = vsub.s32 %v2977, %v2979
      %v2981 = vrot.slane %v2965, %v2980
      %v2983 = vunpack.c.l.s4 1966171168
      %v2984 = vunpack.c.0.s8 %v2983
      %v2985 = vlaneseq
      %v2986 = vshrl.u32 %v2985, 7
      %v2987 = vsub.s32 %v2984, %v2986
      %v2988 = vrot.slane %v2966, %v2987
      %v2990 = vunpack.c.l.s4 1966171168
      %v2991 = vunpack.c.0.s8 %v2990
      %v2992 = vlaneseq
      %v2993 = vshrl.u32 %v2992, 7
      %v2994 = vsub.s32 %v2991, %v2993
      %v2995 = vrot.slane %v2967, %v2994
      %v2996 = vcombine.high %v2974, %v2974
      %v2997 = vcombine.high %v2981, %v2981
      %v2998 = vcombine.high %v2988, %v2988
      %v2999 = vcombine.high %v2995, %v2995
      %v3001 = vunpack.c.l.s4 1966171168
      %v3002 = vunpack.c.0.s8 %v3001
      %v3003 = vlaneseq
      %v3004 = vshrl.u32 %v3003, 7
      %v3005 = vsub.s32 %v3002, %v3004
      %v3006 = vrot.slane %v1038, %v3005
      %v3007 = vcombine.high %v3006, %v3006
      %v3009 = vunpack.c.l.s4 1966171168
      %v3010 = vunpack.c.0.s8 %v3009
      %v3011 = vlaneseq
      %v3012 = vshrl.u32 %v3011, 7
      %v3013 = vsub.s32 %v3010, %v3012
      %v3014 = vrot.slane %v3006, %v3013
      %v3016 = vunpack.c.l.s4 1966171168
      %v3017 = vunpack.c.0.s8 %v3016
      %v3018 = vlaneseq
      %v3019 = vshrl.u32 %v3018, 7
      %v3020 = vsub.s32 %v3017, %v3019
      %v3021 = vrot.slane %v3007, %v3020
      %v3022 = vlaneseq
      %v3023 = vshrl.u32 %v3022, 7
      %v3024 = vsub.s32 0, %v3023
      %v3025 = vrot.slane %v2876, %v3024
      %v3026 = vlaneseq
      %v3027 = vshrl.u32 %v3026, 7
      %v3028 = vsub.s32 0, %v3027
      %v3029 = vrot.slane %v2890, %v3028
      %v3030 = vlaneseq
      %v3031 = vshrl.u32 %v3030, 7
      %v3032 = vsub.s32 0, %v3031
      %v3033 = vrot.slane %v2898, %v3032
      %v3034 = vlaneseq
      %v3035 = vshrl.u32 %v3034, 7
      %v3036 = vsub.s32 0, %v3035
      %v3037 = vrot.slane %v2900, %v3036
      %v3038 = vlaneseq
      %v3039 = vshrl.u32 %v3038, 7
      %v3040 = vsub.s32 0, %v3039
      %v3041 = vrot.slane %v2883, %v3040
      %v3042 = vlaneseq
      %v3043 = vshrl.u32 %v3042, 7
      %v3044 = vsub.s32 0, %v3043
      %v3045 = vrot.slane %v2897, %v3044
      %v3046 = vlaneseq
      %v3047 = vshrl.u32 %v3046, 7
      %v3048 = vsub.s32 0, %v3047
      %v3049 = vrot.slane %v2899, %v3048
      %v3050 = vlaneseq
      %v3051 = vshrl.u32 %v3050, 7
      %v3052 = vsub.s32 0, %v3051
      %v3053 = vrot.slane %v2901, %v3052
      %v3054 = vlaneseq
      %v3055 = vshrl.u32 %v3054, 7
      %v3056 = vsub.s32 0, %v3055
      %v3057 = vrot.slane %v2925, %v3056
      %v3058 = vlaneseq
      %v3059 = vshrl.u32 %v3058, 7
      %v3060 = vsub.s32 0, %v3059
      %v3061 = vrot.slane %v2939, %v3060
      %v3062 = vlaneseq
      %v3063 = vshrl.u32 %v3062, 7
      %v3064 = vsub.s32 0, %v3063
      %v3065 = vrot.slane %v2947, %v3064
      %v3066 = vlaneseq
      %v3067 = vshrl.u32 %v3066, 7
      %v3068 = vsub.s32 0, %v3067
      %v3069 = vrot.slane %v2949, %v3068
      %v3070 = vlaneseq
      %v3071 = vshrl.u32 %v3070, 7
      %v3072 = vsub.s32 0, %v3071
      %v3073 = vrot.slane %v2932, %v3072
      %v3074 = vlaneseq
      %v3075 = vshrl.u32 %v3074, 7
      %v3076 = vsub.s32 0, %v3075
      %v3077 = vrot.slane %v2946, %v3076
      %v3078 = vlaneseq
      %v3079 = vshrl.u32 %v3078, 7
      %v3080 = vsub.s32 0, %v3079
      %v3081 = vrot.slane %v2948, %v3080
      %v3082 = vlaneseq
      %v3083 = vshrl.u32 %v3082, 7
      %v3084 = vsub.s32 0, %v3083
      %v3085 = vrot.slane %v2950, %v3084
      %v3086 = vlaneseq
      %v3087 = vshrl.u32 %v3086, 7
      %v3088 = vsub.s32 0, %v3087
      %v3089 = vrot.slane %v2974, %v3088
      %v3090 = vlaneseq
      %v3091 = vshrl.u32 %v3090, 7
      %v3092 = vsub.s32 0, %v3091
      %v3093 = vrot.slane %v2988, %v3092
      %v3094 = vlaneseq
      %v3095 = vshrl.u32 %v3094, 7
      %v3096 = vsub.s32 0, %v3095
      %v3097 = vrot.slane %v2996, %v3096
      %v3098 = vlaneseq
      %v3099 = vshrl.u32 %v3098, 7
      %v3100 = vsub.s32 0, %v3099
      %v3101 = vrot.slane %v2998, %v3100
      %v3102 = vlaneseq
      %v3103 = vshrl.u32 %v3102, 7
      %v3104 = vsub.s32 0, %v3103
      %v3105 = vrot.slane %v2981, %v3104
      %v3106 = vlaneseq
      %v3107 = vshrl.u32 %v3106, 7
      %v3108 = vsub.s32 0, %v3107
      %v3109 = vrot.slane %v2995, %v3108
      %v3110 = vlaneseq
      %v3111 = vshrl.u32 %v3110, 7
      %v3112 = vsub.s32 0, %v3111
      %v3113 = vrot.slane %v2997, %v3112
      %v3114 = vlaneseq
      %v3115 = vshrl.u32 %v3114, 7
      %v3116 = vsub.s32 0, %v3115
      %v3117 = vrot.slane %v2999, %v3116
      %v3118 = vlaneseq
      %v3119 = vshrl.u32 %v3118, 7
      %v3120 = vsub.s32 0, %v3119
      %v3121 = vrot.slane %v3014, %v3120
      %v3122 = vlaneseq
      %v3123 = vshrl.u32 %v3122, 7
      %v3124 = vsub.s32 0, %v3123
      %v3125 = vrot.slane %v3021, %v3124
      %v3152 = vmul.f32 %v2745, %v3025
      %v3153 = vmul.f32 %v2746, %v3025
      %v3154 = vmul.f32 %v2747, %v3025
      %v3155 = vmul.f32 %v2748, %v3025
      %v3156 = vmul.f32 %v2749, %v3029
      %v3157 = vmul.f32 %v2750, %v3029
      %v3158 = vmul.f32 %v2751, %v3029
      %v3159 = vmul.f32 %v2752, %v3029
      %v3160 = vmul.f32 %v2753, %v3033
      %v3161 = vmul.f32 %v2754, %v3033
      %v3162 = vmul.f32 %v2755, %v3033
      %v3163 = vmul.f32 %v2756, %v3033
      %v3164 = vmul.f32 %v2757, %v3037
      %v3165 = vmul.f32 %v2758, %v3037
      %v3166 = vmul.f32 %v2759, %v3037
      %v3167 = vmul.f32 %v2760, %v3037
      %v3168 = vmul.f32 %v2761, %v3041
      %v3169 = vmul.f32 %v2762, %v3041
      %v3170 = vmul.f32 %v2763, %v3041
      %v3171 = vmul.f32 %v2764, %v3041
      %v3172 = vmul.f32 %v2765, %v3045
      %v3173 = vmul.f32 %v2766, %v3045
      %v3174 = vmul.f32 %v2767, %v3045
      %v3175 = vmul.f32 %v2768, %v3045
      %v3176 = vmul.f32 %v2769, %v3049
      %v3177 = vmul.f32 %v2770, %v3049
      %v3178 = vmul.f32 %v2771, %v3049
      %v3179 = vmul.f32 %v2772, %v3049
      %v3180 = vmul.f32 %v2773, %v3053
      %v3181 = vmul.f32 %v2774, %v3053
      %v3182 = vmul.f32 %v2775, %v3053
      %v3183 = vmul.f32 %v2776, %v3053
      %v3184 = vmul.f32 %v2777, %v3057
      %v3185 = vmul.f32 %v2778, %v3057
      %v3186 = vmul.f32 %v2779, %v3057
      %v3187 = vmul.f32 %v2780, %v3057
      %v3188 = vmul.f32 %v2781, %v3061
      %v3189 = vmul.f32 %v2782, %v3061
      %v3190 = vmul.f32 %v2783, %v3061
      %v3191 = vmul.f32 %v2784, %v3061
      %v3192 = vmul.f32 %v2785, %v3065
      %v3193 = vmul.f32 %v2786, %v3065
      %v3194 = vmul.f32 %v2787, %v3065
      %v3195 = vmul.f32 %v2788, %v3065
      %v3196 = vmul.f32 %v2789, %v3069
      %v3197 = vmul.f32 %v2790, %v3069
      %v3198 = vmul.f32 %v2791, %v3069
      %v3199 = vmul.f32 %v2792, %v3069
      %v3200 = vmul.f32 %v2793, %v3073
      %v3201 = vmul.f32 %v2794, %v3073
      %v3202 = vmul.f32 %v2795, %v3073
      %v3203 = vmul.f32 %v2796, %v3073
      %v3204 = vmul.f32 %v2797, %v3077
      %v3205 = vmul.f32 %v2798, %v3077
      %v3206 = vmul.f32 %v2799, %v3077
      %v3207 = vmul.f32 %v2800, %v3077
      %v3208 = vmul.f32 %v2801, %v3081
      %v3209 = vmul.f32 %v2802, %v3081
      %v3210 = vmul.f32 %v2803, %v3081
      %v3211 = vmul.f32 %v2804, %v3081
      %v3212 = vmul.f32 %v2805, %v3085
      %v3213 = vmul.f32 %v2806, %v3085
      %v3214 = vmul.f32 %v2807, %v3085
      %v3215 = vmul.f32 %v2808, %v3085
      %v3216 = vmul.f32 %v2809, %v3089
      %v3217 = vmul.f32 %v2810, %v3089
      %v3218 = vmul.f32 %v2811, %v3089
      %v3219 = vmul.f32 %v2812, %v3089
      %v3220 = vmul.f32 %v2813, %v3093
      %v3221 = vmul.f32 %v2814, %v3093
      %v3222 = vmul.f32 %v2815, %v3093
      %v3223 = vmul.f32 %v2816, %v3093
      %v3224 = vmul.f32 %v2817, %v3097
      %v3225 = vmul.f32 %v2818, %v3097
      %v3226 = vmul.f32 %v2819, %v3097
      %v3227 = vmul.f32 %v2820, %v3097
      %v3228 = vmul.f32 %v2821, %v3101
      %v3229 = vmul.f32 %v2822, %v3101
      %v3230 = vmul.f32 %v2823, %v3101
      %v3231 = vmul.f32 %v2824, %v3101
      %v3232 = vmul.f32 %v2825, %v3105
      %v3233 = vmul.f32 %v2826, %v3105
      %v3234 = vmul.f32 %v2827, %v3105
      %v3235 = vmul.f32 %v2828, %v3105
      %v3236 = vmul.f32 %v2829, %v3109
      %v3237 = vmul.f32 %v2830, %v3109
      %v3238 = vmul.f32 %v2831, %v3109
      %v3239 = vmul.f32 %v2832, %v3109
      %v3240 = vmul.f32 %v2833, %v3113
      %v3241 = vmul.f32 %v2834, %v3113
      %v3242 = vmul.f32 %v2835, %v3113
      %v3243 = vmul.f32 %v2836, %v3113
      %v3244 = vmul.f32 %v2837, %v3117
      %v3245 = vmul.f32 %v2838, %v3117
      %v3246 = vmul.f32 %v2839, %v3117
      %v3247 = vmul.f32 %v2840, %v3117
      %v3248 = vmul.f32 %v2841, %v3121
      %v3249 = vmul.f32 %v2842, %v3121
      %v3250 = vmul.f32 %v2843, %v3121
      %v3251 = vmul.f32 %v2844, %v3121
      %v3252 = vmul.f32 %v2845, %v3125
      %v3253 = vmul.f32 %v2846, %v3125
      %v3254 = vmul.f32 %v2847, %v3125
      %v3255 = vmul.f32 %v2848, %v3125
      %v3256 = vsel %vm2019, %v3152, 0.0
      %v3257 = vsel %vm2019, %v3156, 0.0
      %v3258 = vadd.f32 %v3256, %v3257
      %v3259 = vsel %vm2019, %v3160, 0.0
      %v3260 = vadd.f32 %v3258, %v3259
      %v3261 = vsel %vm2019, %v3164, 0.0
      %v3262 = vadd.f32 %v3260, %v3261
      %v3263 = vsel %vm2019, %v3168, 0.0
      %v3264 = vadd.f32 %v3262, %v3263
      %v3265 = vsel %vm2019, %v3172, 0.0
      %v3266 = vadd.f32 %v3264, %v3265
      %v3267 = vsel %vm2019, %v3176, 0.0
      %v3268 = vadd.f32 %v3266, %v3267
      %v3269 = vsel %vm2019, %v3180, 0.0
      %v3270 = vadd.f32 %v3268, %v3269
      %v3271 = vsel %vm2019, %v3184, 0.0
      %v3272 = vadd.f32 %v3270, %v3271
      %v3273 = vsel %vm2019, %v3188, 0.0
      %v3274 = vadd.f32 %v3272, %v3273
      %v3275 = vsel %vm2019, %v3192, 0.0
      %v3276 = vadd.f32 %v3274, %v3275
      %v3277 = vsel %vm2019, %v3196, 0.0
      %v3278 = vadd.f32 %v3276, %v3277
      %v3279 = vsel %vm2019, %v3200, 0.0
      %v3280 = vadd.f32 %v3278, %v3279
      %v3281 = vsel %vm2019, %v3204, 0.0
      %v3282 = vadd.f32 %v3280, %v3281
      %v3283 = vsel %vm2019, %v3208, 0.0
      %v3284 = vadd.f32 %v3282, %v3283
      %v3285 = vsel %vm2019, %v3212, 0.0
      %v3286 = vadd.f32 %v3284, %v3285
      %v3287 = vsel %vm2019, %v3216, 0.0
      %v3288 = vadd.f32 %v3286, %v3287
      %v3289 = vsel %vm2019, %v3220, 0.0
      %v3290 = vadd.f32 %v3288, %v3289
      %v3291 = vsel %vm2019, %v3224, 0.0
      %v3292 = vadd.f32 %v3290, %v3291
      %v3293 = vsel %vm2019, %v3228, 0.0
      %v3294 = vadd.f32 %v3292, %v3293
      %v3295 = vsel %vm2019, %v3232, 0.0
      %v3296 = vadd.f32 %v3294, %v3295
      %v3297 = vsel %vm2019, %v3236, 0.0
      %v3298 = vadd.f32 %v3296, %v3297
      %v3299 = vsel %vm2019, %v3240, 0.0
      %v3300 = vadd.f32 %v3298, %v3299
      %v3301 = vsel %vm2019, %v3244, 0.0
      %v3302 = vadd.f32 %v3300, %v3301
      %v3303 = vsel %vm2019, %v3248, 0.0
      %v3304 = vadd.f32 %v3302, %v3303
      %v3305 = vsel %vm2019, %v3252, 0.0
      %v3306 = vadd.f32 %v3304, %v3305
      %v3307 = vsel %vm2019, %v3153, 0.0
      %v3308 = vsel %vm2019, %v3157, 0.0
      %v3309 = vadd.f32 %v3307, %v3308
      %v3310 = vsel %vm2019, %v3161, 0.0
      %v3311 = vadd.f32 %v3309, %v3310
      %v3312 = vsel %vm2019, %v3165, 0.0
      %v3313 = vadd.f32 %v3311, %v3312
      %v3314 = vsel %vm2019, %v3169, 0.0
      %v3315 = vadd.f32 %v3313, %v3314
      %v3316 = vsel %vm2019, %v3173, 0.0
      %v3317 = vadd.f32 %v3315, %v3316
      %v3318 = vsel %vm2019, %v3177, 0.0
      %v3319 = vadd.f32 %v3317, %v3318
      %v3320 = vsel %vm2019, %v3181, 0.0
      %v3321 = vadd.f32 %v3319, %v3320
      %v3322 = vsel %vm2019, %v3185, 0.0
      %v3323 = vadd.f32 %v3321, %v3322
      %v3324 = vsel %vm2019, %v3189, 0.0
      %v3325 = vadd.f32 %v3323, %v3324
      %v3326 = vsel %vm2019, %v3193, 0.0
      %v3327 = vadd.f32 %v3325, %v3326
      %v3328 = vsel %vm2019, %v3197, 0.0
      %v3329 = vadd.f32 %v3327, %v3328
      %v3330 = vsel %vm2019, %v3201, 0.0
      %v3331 = vadd.f32 %v3329, %v3330
      %v3332 = vsel %vm2019, %v3205, 0.0
      %v3333 = vadd.f32 %v3331, %v3332
      %v3334 = vsel %vm2019, %v3209, 0.0
      %v3335 = vadd.f32 %v3333, %v3334
      %v3336 = vsel %vm2019, %v3213, 0.0
      %v3337 = vadd.f32 %v3335, %v3336
      %v3338 = vsel %vm2019, %v3217, 0.0
      %v3339 = vadd.f32 %v3337, %v3338
      %v3340 = vsel %vm2019, %v3221, 0.0
      %v3341 = vadd.f32 %v3339, %v3340
      %v3342 = vsel %vm2019, %v3225, 0.0
      %v3343 = vadd.f32 %v3341, %v3342
      %v3344 = vsel %vm2019, %v3229, 0.0
      %v3345 = vadd.f32 %v3343, %v3344
      %v3346 = vsel %vm2019, %v3233, 0.0
      %v3347 = vadd.f32 %v3345, %v3346
      %v3348 = vsel %vm2019, %v3237, 0.0
      %v3349 = vadd.f32 %v3347, %v3348
      %v3350 = vsel %vm2019, %v3241, 0.0
      %v3351 = vadd.f32 %v3349, %v3350
      %v3352 = vsel %vm2019, %v3245, 0.0
      %v3353 = vadd.f32 %v3351, %v3352
      %v3354 = vsel %vm2019, %v3249, 0.0
      %v3355 = vadd.f32 %v3353, %v3354
      %v3356 = vsel %vm2019, %v3253, 0.0
      %v3357 = vadd.f32 %v3355, %v3356
      %v3358 = vsel %vm2019, %v3154, 0.0
      %v3359 = vsel %vm2019, %v3158, 0.0
      %v3360 = vadd.f32 %v3358, %v3359
      %v3361 = vsel %vm2019, %v3162, 0.0
      %v3362 = vadd.f32 %v3360, %v3361
      %v3363 = vsel %vm2019, %v3166, 0.0
      %v3364 = vadd.f32 %v3362, %v3363
      %v3365 = vsel %vm2019, %v3170, 0.0
      %v3366 = vadd.f32 %v3364, %v3365
      %v3367 = vsel %vm2019, %v3174, 0.0
      %v3368 = vadd.f32 %v3366, %v3367
      %v3369 = vsel %vm2019, %v3178, 0.0
      %v3370 = vadd.f32 %v3368, %v3369
      %v3371 = vsel %vm2019, %v3182, 0.0
      %v3372 = vadd.f32 %v3370, %v3371
      %v3373 = vsel %vm2019, %v3186, 0.0
      %v3374 = vadd.f32 %v3372, %v3373
      %v3375 = vsel %vm2019, %v3190, 0.0
      %v3376 = vadd.f32 %v3374, %v3375
      %v3377 = vsel %vm2019, %v3194, 0.0
      %v3378 = vadd.f32 %v3376, %v3377
      %v3379 = vsel %vm2019, %v3198, 0.0
      %v3380 = vadd.f32 %v3378, %v3379
      %v3381 = vsel %vm2019, %v3202, 0.0
      %v3382 = vadd.f32 %v3380, %v3381
      %v3383 = vsel %vm2019, %v3206, 0.0
      %v3384 = vadd.f32 %v3382, %v3383
      %v3385 = vsel %vm2019, %v3210, 0.0
      %v3386 = vadd.f32 %v3384, %v3385
      %v3387 = vsel %vm2019, %v3214, 0.0
      %v3388 = vadd.f32 %v3386, %v3387
      %v3389 = vsel %vm2019, %v3218, 0.0
      %v3390 = vadd.f32 %v3388, %v3389
      %v3391 = vsel %vm2019, %v3222, 0.0
      %v3392 = vadd.f32 %v3390, %v3391
      %v3393 = vsel %vm2019, %v3226, 0.0
      %v3394 = vadd.f32 %v3392, %v3393
      %v3395 = vsel %vm2019, %v3230, 0.0
      %v3396 = vadd.f32 %v3394, %v3395
      %v3397 = vsel %vm2019, %v3234, 0.0
      %v3398 = vadd.f32 %v3396, %v3397
      %v3399 = vsel %vm2019, %v3238, 0.0
      %v3400 = vadd.f32 %v3398, %v3399
      %v3401 = vsel %vm2019, %v3242, 0.0
      %v3402 = vadd.f32 %v3400, %v3401
      %v3403 = vsel %vm2019, %v3246, 0.0
      %v3404 = vadd.f32 %v3402, %v3403
      %v3405 = vsel %vm2019, %v3250, 0.0
      %v3406 = vadd.f32 %v3404, %v3405
      %v3407 = vsel %vm2019, %v3254, 0.0
      %v3408 = vadd.f32 %v3406, %v3407
      %v3409 = vsel %vm2173, %v3155, 0.0
      %v3410 = vsel %vm2173, %v3159, 0.0
      %v3411 = vadd.f32 %v3409, %v3410
      %v3412 = vsel %vm2173, %v3163, 0.0
      %v3413 = vadd.f32 %v3411, %v3412
      %v3414 = vsel %vm2173, %v3167, 0.0
      %v3415 = vadd.f32 %v3413, %v3414
      %v3416 = vsel %vm2173, %v3171, 0.0
      %v3417 = vadd.f32 %v3415, %v3416
      %v3418 = vsel %vm2173, %v3175, 0.0
      %v3419 = vadd.f32 %v3417, %v3418
      %v3420 = vsel %vm2173, %v3179, 0.0
      %v3421 = vadd.f32 %v3419, %v3420
      %v3422 = vsel %vm2173, %v3183, 0.0
      %v3423 = vadd.f32 %v3421, %v3422
      %v3424 = vsel %vm2173, %v3187, 0.0
      %v3425 = vadd.f32 %v3423, %v3424
      %v3426 = vsel %vm2173, %v3191, 0.0
      %v3427 = vadd.f32 %v3425, %v3426
      %v3428 = vsel %vm2173, %v3195, 0.0
      %v3429 = vadd.f32 %v3427, %v3428
      %v3430 = vsel %vm2173, %v3199, 0.0
      %v3431 = vadd.f32 %v3429, %v3430
      %v3432 = vsel %vm2173, %v3203, 0.0
      %v3433 = vadd.f32 %v3431, %v3432
      %v3434 = vsel %vm2173, %v3207, 0.0
      %v3435 = vadd.f32 %v3433, %v3434
      %v3436 = vsel %vm2173, %v3211, 0.0
      %v3437 = vadd.f32 %v3435, %v3436
      %v3438 = vsel %vm2173, %v3215, 0.0
      %v3439 = vadd.f32 %v3437, %v3438
      %v3440 = vsel %vm2173, %v3219, 0.0
      %v3441 = vadd.f32 %v3439, %v3440
      %v3442 = vsel %vm2173, %v3223, 0.0
      %v3443 = vadd.f32 %v3441, %v3442
      %v3444 = vsel %vm2173, %v3227, 0.0
      %v3445 = vadd.f32 %v3443, %v3444
      %v3446 = vsel %vm2173, %v3231, 0.0
      %v3447 = vadd.f32 %v3445, %v3446
      %v3448 = vsel %vm2173, %v3235, 0.0
      %v3449 = vadd.f32 %v3447, %v3448
      %v3450 = vsel %vm2173, %v3239, 0.0
      %v3451 = vadd.f32 %v3449, %v3450
      %v3452 = vsel %vm2173, %v3243, 0.0
      %v3453 = vadd.f32 %v3451, %v3452
      %v3454 = vsel %vm2173, %v3247, 0.0
      %v3455 = vadd.f32 %v3453, %v3454
      %v3456 = vsel %vm2173, %v3251, 0.0
      %v3457 = vadd.f32 %v3455, %v3456
      %v3458 = vsel %vm2173, %v3255, 0.0
      %v3459 = vadd.f32 %v3457, %v3458
      %3460 = vrot.lane.b32.xlu0 %v3025, 96
      %v3461 = vpop.permute.xlu0 %3460
      %3462 = vrot.lane.b32.xlu0 %v3029, 96
      %v3463 = vpop.permute.xlu0 %3462
      %3464 = vrot.lane.b32.xlu0 %v3033, 96
      %v3465 = vpop.permute.xlu0 %3464
      %3466 = vrot.lane.b32.xlu0 %v3037, 96
      %v3467 = vpop.permute.xlu0 %3466
      %3468 = vrot.lane.b32.xlu0 %v3041, 96
      %v3469 = vpop.permute.xlu0 %3468
      %3470 = vrot.lane.b32.xlu0 %v3045, 96
      %v3471 = vpop.permute.xlu0 %3470
      %3472 = vrot.lane.b32.xlu0 %v3049, 96
      %v3473 = vpop.permute.xlu0 %3472
      %3474 = vrot.lane.b32.xlu0 %v3053, 96
      %v3475 = vpop.permute.xlu0 %3474
      %3476 = vrot.lane.b32.xlu0 %v3057, 96
      %v3477 = vpop.permute.xlu0 %3476
      %3478 = vrot.lane.b32.xlu0 %v3061, 96
      %v3479 = vpop.permute.xlu0 %3478
      %3480 = vrot.lane.b32.xlu0 %v3065, 96
      %v3481 = vpop.permute.xlu0 %3480
      %3482 = vrot.lane.b32.xlu0 %v3069, 96
      %v3483 = vpop.permute.xlu0 %3482
      %3484 = vrot.lane.b32.xlu0 %v3073, 96
      %v3485 = vpop.permute.xlu0 %3484
      %3486 = vrot.lane.b32.xlu0 %v3077, 96
      %v3487 = vpop.permute.xlu0 %3486
      %3488 = vrot.lane.b32.xlu0 %v3081, 96
      %v3489 = vpop.permute.xlu0 %3488
      %3490 = vrot.lane.b32.xlu0 %v3085, 96
      %v3491 = vpop.permute.xlu0 %3490
      %3492 = vrot.lane.b32.xlu0 %v3089, 96
      %v3493 = vpop.permute.xlu0 %3492
      %3494 = vrot.lane.b32.xlu0 %v3093, 96
      %v3495 = vpop.permute.xlu0 %3494
      %3496 = vrot.lane.b32.xlu0 %v3097, 96
      %v3497 = vpop.permute.xlu0 %3496
      %3498 = vrot.lane.b32.xlu0 %v3101, 96
      %v3499 = vpop.permute.xlu0 %3498
      %3500 = vrot.lane.b32.xlu0 %v3105, 96
      %v3501 = vpop.permute.xlu0 %3500
      %3502 = vrot.lane.b32.xlu0 %v3109, 96
      %v3503 = vpop.permute.xlu0 %3502
      %3504 = vrot.lane.b32.xlu0 %v3113, 96
      %v3505 = vpop.permute.xlu0 %3504
      %3506 = vrot.lane.b32.xlu0 %v3117, 96
      %v3507 = vpop.permute.xlu0 %3506
      %3508 = vrot.lane.b32.xlu0 %v3121, 96
      %v3509 = vpop.permute.xlu0 %3508
      %3510 = vrot.lane.b32.xlu0 %v3125, 96
      %v3511 = vpop.permute.xlu0 %3510
      %v3538 = vmul.f32 %v2745, %v3461
      %v3539 = vmul.f32 %v2746, %v3461
      %v3540 = vmul.f32 %v2747, %v3461
      %v3541 = vmul.f32 %v2748, %v3461
      %v3542 = vmul.f32 %v2749, %v3463
      %v3543 = vmul.f32 %v2750, %v3463
      %v3544 = vmul.f32 %v2751, %v3463
      %v3545 = vmul.f32 %v2752, %v3463
      %v3546 = vmul.f32 %v2753, %v3465
      %v3547 = vmul.f32 %v2754, %v3465
      %v3548 = vmul.f32 %v2755, %v3465
      %v3549 = vmul.f32 %v2756, %v3465
      %v3550 = vmul.f32 %v2757, %v3467
      %v3551 = vmul.f32 %v2758, %v3467
      %v3552 = vmul.f32 %v2759, %v3467
      %v3553 = vmul.f32 %v2760, %v3467
      %v3554 = vmul.f32 %v2761, %v3469
      %v3555 = vmul.f32 %v2762, %v3469
      %v3556 = vmul.f32 %v2763, %v3469
      %v3557 = vmul.f32 %v2764, %v3469
      %v3558 = vmul.f32 %v2765, %v3471
      %v3559 = vmul.f32 %v2766, %v3471
      %v3560 = vmul.f32 %v2767, %v3471
      %v3561 = vmul.f32 %v2768, %v3471
      %v3562 = vmul.f32 %v2769, %v3473
      %v3563 = vmul.f32 %v2770, %v3473
      %v3564 = vmul.f32 %v2771, %v3473
      %v3565 = vmul.f32 %v2772, %v3473
      %v3566 = vmul.f32 %v2773, %v3475
      %v3567 = vmul.f32 %v2774, %v3475
      %v3568 = vmul.f32 %v2775, %v3475
      %v3569 = vmul.f32 %v2776, %v3475
      %v3570 = vmul.f32 %v2777, %v3477
      %v3571 = vmul.f32 %v2778, %v3477
      %v3572 = vmul.f32 %v2779, %v3477
      %v3573 = vmul.f32 %v2780, %v3477
      %v3574 = vmul.f32 %v2781, %v3479
      %v3575 = vmul.f32 %v2782, %v3479
      %v3576 = vmul.f32 %v2783, %v3479
      %v3577 = vmul.f32 %v2784, %v3479
      %v3578 = vmul.f32 %v2785, %v3481
      %v3579 = vmul.f32 %v2786, %v3481
      %v3580 = vmul.f32 %v2787, %v3481
      %v3581 = vmul.f32 %v2788, %v3481
      %v3582 = vmul.f32 %v2789, %v3483
      %v3583 = vmul.f32 %v2790, %v3483
      %v3584 = vmul.f32 %v2791, %v3483
      %v3585 = vmul.f32 %v2792, %v3483
      %v3586 = vmul.f32 %v2793, %v3485
      %v3587 = vmul.f32 %v2794, %v3485
      %v3588 = vmul.f32 %v2795, %v3485
      %v3589 = vmul.f32 %v2796, %v3485
      %v3590 = vmul.f32 %v2797, %v3487
      %v3591 = vmul.f32 %v2798, %v3487
      %v3592 = vmul.f32 %v2799, %v3487
      %v3593 = vmul.f32 %v2800, %v3487
      %v3594 = vmul.f32 %v2801, %v3489
      %v3595 = vmul.f32 %v2802, %v3489
      %v3596 = vmul.f32 %v2803, %v3489
      %v3597 = vmul.f32 %v2804, %v3489
      %v3598 = vmul.f32 %v2805, %v3491
      %v3599 = vmul.f32 %v2806, %v3491
      %v3600 = vmul.f32 %v2807, %v3491
      %v3601 = vmul.f32 %v2808, %v3491
      %v3602 = vmul.f32 %v2809, %v3493
      %v3603 = vmul.f32 %v2810, %v3493
      %v3604 = vmul.f32 %v2811, %v3493
      %v3605 = vmul.f32 %v2812, %v3493
      %v3606 = vmul.f32 %v2813, %v3495
      %v3607 = vmul.f32 %v2814, %v3495
      %v3608 = vmul.f32 %v2815, %v3495
      %v3609 = vmul.f32 %v2816, %v3495
      %v3610 = vmul.f32 %v2817, %v3497
      %v3611 = vmul.f32 %v2818, %v3497
      %v3612 = vmul.f32 %v2819, %v3497
      %v3613 = vmul.f32 %v2820, %v3497
      %v3614 = vmul.f32 %v2821, %v3499
      %v3615 = vmul.f32 %v2822, %v3499
      %v3616 = vmul.f32 %v2823, %v3499
      %v3617 = vmul.f32 %v2824, %v3499
      %v3618 = vmul.f32 %v2825, %v3501
      %v3619 = vmul.f32 %v2826, %v3501
      %v3620 = vmul.f32 %v2827, %v3501
      %v3621 = vmul.f32 %v2828, %v3501
      %v3622 = vmul.f32 %v2829, %v3503
      %v3623 = vmul.f32 %v2830, %v3503
      %v3624 = vmul.f32 %v2831, %v3503
      %v3625 = vmul.f32 %v2832, %v3503
      %v3626 = vmul.f32 %v2833, %v3505
      %v3627 = vmul.f32 %v2834, %v3505
      %v3628 = vmul.f32 %v2835, %v3505
      %v3629 = vmul.f32 %v2836, %v3505
      %v3630 = vmul.f32 %v2837, %v3507
      %v3631 = vmul.f32 %v2838, %v3507
      %v3632 = vmul.f32 %v2839, %v3507
      %v3633 = vmul.f32 %v2840, %v3507
      %v3634 = vmul.f32 %v2841, %v3509
      %v3635 = vmul.f32 %v2842, %v3509
      %v3636 = vmul.f32 %v2843, %v3509
      %v3637 = vmul.f32 %v2844, %v3509
      %v3638 = vmul.f32 %v2845, %v3511
      %v3639 = vmul.f32 %v2846, %v3511
      %v3640 = vmul.f32 %v2847, %v3511
      %v3641 = vmul.f32 %v2848, %v3511
      %v3642 = vsel %vm2019, %v3538, 0.0
      %v3643 = vsel %vm2019, %v3542, 0.0
      %v3644 = vadd.f32 %v3642, %v3643
      %v3645 = vsel %vm2019, %v3546, 0.0
      %v3646 = vadd.f32 %v3644, %v3645
      %v3647 = vsel %vm2019, %v3550, 0.0
      %v3648 = vadd.f32 %v3646, %v3647
      %v3649 = vsel %vm2019, %v3554, 0.0
      %v3650 = vadd.f32 %v3648, %v3649
      %v3651 = vsel %vm2019, %v3558, 0.0
      %v3652 = vadd.f32 %v3650, %v3651
      %v3653 = vsel %vm2019, %v3562, 0.0
      %v3654 = vadd.f32 %v3652, %v3653
      %v3655 = vsel %vm2019, %v3566, 0.0
      %v3656 = vadd.f32 %v3654, %v3655
      %v3657 = vsel %vm2019, %v3570, 0.0
      %v3658 = vadd.f32 %v3656, %v3657
      %v3659 = vsel %vm2019, %v3574, 0.0
      %v3660 = vadd.f32 %v3658, %v3659
      %v3661 = vsel %vm2019, %v3578, 0.0
      %v3662 = vadd.f32 %v3660, %v3661
      %v3663 = vsel %vm2019, %v3582, 0.0
      %v3664 = vadd.f32 %v3662, %v3663
      %v3665 = vsel %vm2019, %v3586, 0.0
      %v3666 = vadd.f32 %v3664, %v3665
      %v3667 = vsel %vm2019, %v3590, 0.0
      %v3668 = vadd.f32 %v3666, %v3667
      %v3669 = vsel %vm2019, %v3594, 0.0
      %v3670 = vadd.f32 %v3668, %v3669
      %v3671 = vsel %vm2019, %v3598, 0.0
      %v3672 = vadd.f32 %v3670, %v3671
      %v3673 = vsel %vm2019, %v3602, 0.0
      %v3674 = vadd.f32 %v3672, %v3673
      %v3675 = vsel %vm2019, %v3606, 0.0
      %v3676 = vadd.f32 %v3674, %v3675
      %v3677 = vsel %vm2019, %v3610, 0.0
      %v3678 = vadd.f32 %v3676, %v3677
      %v3679 = vsel %vm2019, %v3614, 0.0
      %v3680 = vadd.f32 %v3678, %v3679
      %v3681 = vsel %vm2019, %v3618, 0.0
      %v3682 = vadd.f32 %v3680, %v3681
      %v3683 = vsel %vm2019, %v3622, 0.0
      %v3684 = vadd.f32 %v3682, %v3683
      %v3685 = vsel %vm2019, %v3626, 0.0
      %v3686 = vadd.f32 %v3684, %v3685
      %v3687 = vsel %vm2019, %v3630, 0.0
      %v3688 = vadd.f32 %v3686, %v3687
      %v3689 = vsel %vm2019, %v3634, 0.0
      %v3690 = vadd.f32 %v3688, %v3689
      %v3691 = vsel %vm2019, %v3638, 0.0
      %v3692 = vadd.f32 %v3690, %v3691
      %v3693 = vsel %vm2019, %v3539, 0.0
      %v3694 = vsel %vm2019, %v3543, 0.0
      %v3695 = vadd.f32 %v3693, %v3694
      %v3696 = vsel %vm2019, %v3547, 0.0
      %v3697 = vadd.f32 %v3695, %v3696
      %v3698 = vsel %vm2019, %v3551, 0.0
      %v3699 = vadd.f32 %v3697, %v3698
      %v3700 = vsel %vm2019, %v3555, 0.0
      %v3701 = vadd.f32 %v3699, %v3700
      %v3702 = vsel %vm2019, %v3559, 0.0
      %v3703 = vadd.f32 %v3701, %v3702
      %v3704 = vsel %vm2019, %v3563, 0.0
      %v3705 = vadd.f32 %v3703, %v3704
      %v3706 = vsel %vm2019, %v3567, 0.0
      %v3707 = vadd.f32 %v3705, %v3706
      %v3708 = vsel %vm2019, %v3571, 0.0
      %v3709 = vadd.f32 %v3707, %v3708
      %v3710 = vsel %vm2019, %v3575, 0.0
      %v3711 = vadd.f32 %v3709, %v3710
      %v3712 = vsel %vm2019, %v3579, 0.0
      %v3713 = vadd.f32 %v3711, %v3712
      %v3714 = vsel %vm2019, %v3583, 0.0
      %v3715 = vadd.f32 %v3713, %v3714
      %v3716 = vsel %vm2019, %v3587, 0.0
      %v3717 = vadd.f32 %v3715, %v3716
      %v3718 = vsel %vm2019, %v3591, 0.0
      %v3719 = vadd.f32 %v3717, %v3718
      %v3720 = vsel %vm2019, %v3595, 0.0
      %v3721 = vadd.f32 %v3719, %v3720
      %v3722 = vsel %vm2019, %v3599, 0.0
      %v3723 = vadd.f32 %v3721, %v3722
      %v3724 = vsel %vm2019, %v3603, 0.0
      %v3725 = vadd.f32 %v3723, %v3724
      %v3726 = vsel %vm2019, %v3607, 0.0
      %v3727 = vadd.f32 %v3725, %v3726
      %v3728 = vsel %vm2019, %v3611, 0.0
      %v3729 = vadd.f32 %v3727, %v3728
      %v3730 = vsel %vm2019, %v3615, 0.0
      %v3731 = vadd.f32 %v3729, %v3730
      %v3732 = vsel %vm2019, %v3619, 0.0
      %v3733 = vadd.f32 %v3731, %v3732
      %v3734 = vsel %vm2019, %v3623, 0.0
      %v3735 = vadd.f32 %v3733, %v3734
      %v3736 = vsel %vm2019, %v3627, 0.0
      %v3737 = vadd.f32 %v3735, %v3736
      %v3738 = vsel %vm2019, %v3631, 0.0
      %v3739 = vadd.f32 %v3737, %v3738
      %v3740 = vsel %vm2019, %v3635, 0.0
      %v3741 = vadd.f32 %v3739, %v3740
      %v3742 = vsel %vm2019, %v3639, 0.0
      %v3743 = vadd.f32 %v3741, %v3742
      %v3744 = vsel %vm2019, %v3540, 0.0
      %v3745 = vsel %vm2019, %v3544, 0.0
      %v3746 = vadd.f32 %v3744, %v3745
      %v3747 = vsel %vm2019, %v3548, 0.0
      %v3748 = vadd.f32 %v3746, %v3747
      %v3749 = vsel %vm2019, %v3552, 0.0
      %v3750 = vadd.f32 %v3748, %v3749
      %v3751 = vsel %vm2019, %v3556, 0.0
      %v3752 = vadd.f32 %v3750, %v3751
      %v3753 = vsel %vm2019, %v3560, 0.0
      %v3754 = vadd.f32 %v3752, %v3753
      %v3755 = vsel %vm2019, %v3564, 0.0
      %v3756 = vadd.f32 %v3754, %v3755
      %v3757 = vsel %vm2019, %v3568, 0.0
      %v3758 = vadd.f32 %v3756, %v3757
      %v3759 = vsel %vm2019, %v3572, 0.0
      %v3760 = vadd.f32 %v3758, %v3759
      %v3761 = vsel %vm2019, %v3576, 0.0
      %v3762 = vadd.f32 %v3760, %v3761
      %v3763 = vsel %vm2019, %v3580, 0.0
      %v3764 = vadd.f32 %v3762, %v3763
      %v3765 = vsel %vm2019, %v3584, 0.0
      %v3766 = vadd.f32 %v3764, %v3765
      %v3767 = vsel %vm2019, %v3588, 0.0
      %v3768 = vadd.f32 %v3766, %v3767
      %v3769 = vsel %vm2019, %v3592, 0.0
      %v3770 = vadd.f32 %v3768, %v3769
      %v3771 = vsel %vm2019, %v3596, 0.0
      %v3772 = vadd.f32 %v3770, %v3771
      %v3773 = vsel %vm2019, %v3600, 0.0
      %v3774 = vadd.f32 %v3772, %v3773
      %v3775 = vsel %vm2019, %v3604, 0.0
      %v3776 = vadd.f32 %v3774, %v3775
      %v3777 = vsel %vm2019, %v3608, 0.0
      %v3778 = vadd.f32 %v3776, %v3777
      %v3779 = vsel %vm2019, %v3612, 0.0
      %v3780 = vadd.f32 %v3778, %v3779
      %v3781 = vsel %vm2019, %v3616, 0.0
      %v3782 = vadd.f32 %v3780, %v3781
      %v3783 = vsel %vm2019, %v3620, 0.0
      %v3784 = vadd.f32 %v3782, %v3783
      %v3785 = vsel %vm2019, %v3624, 0.0
      %v3786 = vadd.f32 %v3784, %v3785
      %v3787 = vsel %vm2019, %v3628, 0.0
      %v3788 = vadd.f32 %v3786, %v3787
      %v3789 = vsel %vm2019, %v3632, 0.0
      %v3790 = vadd.f32 %v3788, %v3789
      %v3791 = vsel %vm2019, %v3636, 0.0
      %v3792 = vadd.f32 %v3790, %v3791
      %v3793 = vsel %vm2019, %v3640, 0.0
      %v3794 = vadd.f32 %v3792, %v3793
      %v3795 = vsel %vm2173, %v3541, 0.0
      %v3796 = vsel %vm2173, %v3545, 0.0
      %v3797 = vadd.f32 %v3795, %v3796
      %v3798 = vsel %vm2173, %v3549, 0.0
      %v3799 = vadd.f32 %v3797, %v3798
      %v3800 = vsel %vm2173, %v3553, 0.0
      %v3801 = vadd.f32 %v3799, %v3800
      %v3802 = vsel %vm2173, %v3557, 0.0
      %v3803 = vadd.f32 %v3801, %v3802
      %v3804 = vsel %vm2173, %v3561, 0.0
      %v3805 = vadd.f32 %v3803, %v3804
      %v3806 = vsel %vm2173, %v3565, 0.0
      %v3807 = vadd.f32 %v3805, %v3806
      %v3808 = vsel %vm2173, %v3569, 0.0
      %v3809 = vadd.f32 %v3807, %v3808
      %v3810 = vsel %vm2173, %v3573, 0.0
      %v3811 = vadd.f32 %v3809, %v3810
      %v3812 = vsel %vm2173, %v3577, 0.0
      %v3813 = vadd.f32 %v3811, %v3812
      %v3814 = vsel %vm2173, %v3581, 0.0
      %v3815 = vadd.f32 %v3813, %v3814
      %v3816 = vsel %vm2173, %v3585, 0.0
      %v3817 = vadd.f32 %v3815, %v3816
      %v3818 = vsel %vm2173, %v3589, 0.0
      %v3819 = vadd.f32 %v3817, %v3818
      %v3820 = vsel %vm2173, %v3593, 0.0
      %v3821 = vadd.f32 %v3819, %v3820
      %v3822 = vsel %vm2173, %v3597, 0.0
      %v3823 = vadd.f32 %v3821, %v3822
      %v3824 = vsel %vm2173, %v3601, 0.0
      %v3825 = vadd.f32 %v3823, %v3824
      %v3826 = vsel %vm2173, %v3605, 0.0
      %v3827 = vadd.f32 %v3825, %v3826
      %v3828 = vsel %vm2173, %v3609, 0.0
      %v3829 = vadd.f32 %v3827, %v3828
      %v3830 = vsel %vm2173, %v3613, 0.0
      %v3831 = vadd.f32 %v3829, %v3830
      %v3832 = vsel %vm2173, %v3617, 0.0
      %v3833 = vadd.f32 %v3831, %v3832
      %v3834 = vsel %vm2173, %v3621, 0.0
      %v3835 = vadd.f32 %v3833, %v3834
      %v3836 = vsel %vm2173, %v3625, 0.0
      %v3837 = vadd.f32 %v3835, %v3836
      %v3838 = vsel %vm2173, %v3629, 0.0
      %v3839 = vadd.f32 %v3837, %v3838
      %v3840 = vsel %vm2173, %v3633, 0.0
      %v3841 = vadd.f32 %v3839, %v3840
      %v3842 = vsel %vm2173, %v3637, 0.0
      %v3843 = vadd.f32 %v3841, %v3842
      %v3844 = vsel %vm2173, %v3641, 0.0
      %v3845 = vadd.f32 %v3843, %v3844
      %3850 = vrot.lane.b32.xlu0 %v3692, 32
      %v3851 = vpop.permute.xlu0 %3850
      %3852 = vrot.lane.b32.xlu0 %v3743, 32
      %v3853 = vpop.permute.xlu0 %3852
      %3854 = vrot.lane.b32.xlu0 %v3794, 32
      %v3855 = vpop.permute.xlu0 %3854
      %3856 = vrot.lane.b32.xlu0 %v3845, 32
      %v3857 = vpop.permute.xlu0 %3856
      %v3862 = vsel %vm2019, %v3306, %v3851
      %v3863 = vsel %vm2019, %v3357, %v3853
      %v3864 = vsel %vm2019, %v3408, %v3855
      %v3865 = vsel %vm2019, %v3459, %v3857
      %v3866 = vld [vmem:[%s9] sm:$0xff]
      %v3867 = vld [vmem:[%s9 + $0x8] sm:$0xff]
      %v3868 = vld [vmem:[%s9 + $0x10] sm:$0xff]
      %v3869 = vld [vmem:[%s9 + $0x18] sm:$0xff]
      %v3870 = vld [vmem:[%s9 + $0x20] sm:$0xff]
      %v3871 = vld [vmem:[%s9 + $0x28] sm:$0xff]
      %v3872 = vld [vmem:[%s9 + $0x30] sm:$0xff]
      %v3873 = vld [vmem:[%s9 + $0x38] sm:$0xff]
      %v3874 = vld [vmem:[%s10] sm:$0x1]
      %v3876 = vlaneseq
      %v3877 = vshrl.u32 %v3876, 7
      %v3878 = vsub.s32 0, %v3877
      %v3879 = vrot.slane %v3874, %v3878
      %v3882 = vsel %vm638, %v3862, 0
      %v3885 = vsel %vm638, %v3863, 0
      %v3888 = vsel %vm638, %v3864, 0
      %v3891 = vsel %vm638, %v3865, 0
      %3893 = vmatprep.subr.mxu0 0.0
      %3894 = vmatpush1.msra.mxu0 %v3866
      %3895 = vmatprep.subr.mxu0 0.0
      %3896 = vmatpush1.msra.mxu0 %v3867
      %3897 = vmatprep.subr.mxu0 0.0
      %3898 = vmatpush1.msra.mxu0 %v3868
      %3899 = vmatprep.subr.mxu0 0.0
      %3900 = vmatpush1.msra.mxu0 %v3869
      %3901 = vmatprep.subr.mxu0 0.0
      %3902 = vmatpush1.msra.mxu0 %v3870
      %3903 = vmatprep.subr.mxu0 0.0
      %3904 = vmatpush1.msra.mxu0 %v3871
      %3905 = vmatprep.subr.mxu0 0.0
      %3906 = vmatpush1.msra.mxu0 %v3872
      %3907 = vmatprep.subr.mxu0 0.0
      %3908 = vmatpush1.msra.mxu0 %v3873
      %3909 = vmatprep.subr.mxu0 0.0
      %3910 = vmatpush1.msra.mxu0 0.0
      %3911 = vmatprep.subr.mxu0 0.0
      %3912 = vmatpush1.msra.mxu0 0.0
      %3913 = vmatprep.subr.mxu0 0.0
      %3914 = vmatpush1.msra.mxu0 0.0
      %3915 = vmatprep.subr.mxu0 0.0
      %3916 = vmatpush1.msra.mxu0 0.0
      %3917 = vmatprep.subr.mxu0 0.0
      %3918 = vmatpush1.msra.mxu0 0.0
      %3919 = vmatprep.subr.mxu0 0.0
      %3920 = vmatpush1.msra.mxu0 0.0
      %3921 = vmatprep.subr.mxu0 0.0
      %3922 = vmatpush1.msra.mxu0 0.0
      %3923 = vmatprep.subr.mxu0 0.0
      %3924 = vmatpush1.msra.mxu0 0.0
      %3925 = vmatprep.subr.mxu0 0.0
      %3926 = vmatpush1.msra.mxu0 0.0
      %3927 = vmatprep.subr.mxu0 0.0
      %3928 = vmatpush1.msra.mxu0 0.0
      %3929 = vmatprep.subr.mxu0 0.0
      %3930 = vmatpush1.msra.mxu0 0.0
      %3931 = vmatprep.subr.mxu0 0.0
      %3932 = vmatpush1.msra.mxu0 0.0
      %3933 = vmatprep.subr.mxu0 0.0
      %3934 = vmatpush1.msra.mxu0 0.0
      %3935 = vmatprep.subr.mxu0 0.0
      %3936 = vmatpush1.msra.mxu0 0.0
      %3937 = vmatprep.subr.mxu0 0.0
      %3938 = vmatpush1.msra.mxu0 0.0
      %3939 = vmatprep.subr.mxu0 0.0
      %3940 = vmatpush1.msra.mxu0 0.0
      %3941 = vmatprep.subr.mxu0 0.0
      %3942 = vmatpush1.msra.mxu0 0.0
      %3943 = vmatprep.subr.mxu0 0.0
      %3944 = vmatpush1.msra.mxu0 0.0
      %3945 = vmatprep.subr.mxu0 0.0
      %3946 = vmatpush1.msra.mxu0 0.0
      %3947 = vmatprep.subr.mxu0 0.0
      %3948 = vmatpush1.msra.mxu0 0.0
      %3949 = vmatprep.subr.mxu0 0.0
      %3950 = vmatpush1.msra.mxu0 0.0
      %3951 = vmatprep.subr.mxu0 0.0
      %3952 = vmatpush1.msra.mxu0 0.0
      %3953 = vmatprep.subr.mxu0 0.0
      %3954 = vmatpush1.msra.mxu0 0.0
      %3955 = vmatprep.subr.mxu0 0.0
      %3956 = vmatpush1.msra.mxu0 0.0
      %3957 = vmatprep.mubr.f32.mxu0 0.0
      %3958 = vmatmul.mubr.f32.gmra.mrb[0].mxu0 %v3882
      %v3959 = vpop.f32.mrb[0].mxu0
      %v3960 = vadd.f32 %v3879, %v3959
      %v3961 = vpop.f32.mrb[0].mxu0
      %3962 = vmatprep.mubr.f32.mxu0 0.0
      %3963 = vmatmul.mubr.f32.gmra.mrb[0].mxu0 %v3885
      %v3964 = vpop.f32.mrb[0].mxu0
      %v3965 = vadd.f32 %v3879, %v3964
      %v3966 = vpop.f32.mrb[0].mxu0
      %3967 = vmatprep.mubr.f32.mxu0 0.0
      %3968 = vmatmul.mubr.f32.gmra.mrb[0].mxu0 %v3888
      %v3969 = vpop.f32.mrb[0].mxu0
      %v3970 = vadd.f32 %v3879, %v3969
      %v3971 = vpop.f32.mrb[0].mxu0
      %3972 = vmatprep.mubr.f32.mxu0 0.0
      %3973 = vmatmul.mubr.f32.gmra.mrb[0].mxu0 %v3891
      %v3974 = vpop.f32.mrb[0].mxu0
      %v3975 = vadd.f32 %v3879, %v3974
      %v3976 = vpop.f32.mrb[0].mxu0
      %3977 = vdwg.mxu0
      %v3978 = vadd.f32 %v833, %v3960
      %v3979 = vadd.f32 %v834, %v3965
      %v3980 = vadd.f32 %v835, %v3970
      %v3981 = vadd.f32 %v836, %v3975
      %v3982 = vld [vmem:[%s11] sm:$0x1]
      %v3983 = vld [vmem:[%s12] sm:$0x1]
      %v3984 = vsel %vm638, %v3978, 0.0
      %3985 = vadd.xlane.f32.xlu0 %v3984
      %v3986 = vpop.xlane.xlu0 %3985
      %v3987 = vsel %vm638, %v3979, 0.0
      %3988 = vadd.xlane.f32.xlu0 %v3987
      %v3989 = vpop.xlane.xlu0 %3988
      %v3990 = vsel %vm638, %v3980, 0.0
      %3991 = vadd.xlane.f32.xlu0 %v3990
      %v3992 = vpop.xlane.xlu0 %3991
      %v3993 = vsel %vm772, %v3981, 0.0
      %3994 = vadd.xlane.f32.xlu0 %v3993
      %v3995 = vpop.xlane.xlu0 %3994
      %v3996 = vmul.f32 %v3986, %v776
      %v3997 = vmul.f32 %v3989, %v776
      %v3998 = vmul.f32 %v3992, %v776
      %v3999 = vmul.f32 %v3995, %v776
      %v4000 = vsub.f32 %v3978, %v3996
      %v4001 = vsub.f32 %v3979, %v3997
      %v4002 = vsub.f32 %v3980, %v3998
      %v4003 = vsub.f32 %v3981, %v3999
      %v4004 = vmul.f32 %v4000, %v4000
      %v4005 = vmul.f32 %v4001, %v4001
      %v4006 = vmul.f32 %v4002, %v4002
      %v4007 = vmul.f32 %v4003, %v4003
      %v4008 = vsel %vm638, %v4004, 0.0
      %4009 = vadd.xlane.f32.xlu0 %v4008
      %v4010 = vpop.xlane.xlu0 %4009
      %v4011 = vsel %vm638, %v4005, 0.0
      %4012 = vadd.xlane.f32.xlu0 %v4011
      %v4013 = vpop.xlane.xlu0 %4012
      %v4014 = vsel %vm638, %v4006, 0.0
      %4015 = vadd.xlane.f32.xlu0 %v4014
      %v4016 = vpop.xlane.xlu0 %4015
      %v4017 = vsel %vm772, %v4007, 0.0
      %4018 = vadd.xlane.f32.xlu0 %v4017
      %v4019 = vpop.xlane.xlu0 %4018
      %v4020 = vmul.f32 %v4010, %v776
      %v4021 = vmul.f32 %v4013, %v776
      %v4022 = vmul.f32 %v4016, %v776
      %v4023 = vmul.f32 %v4019, %v776
      %v4024 = vadd.f32 %v4020, 1e-05
      %v4025 = vadd.f32 %v4021, 1e-05
      %v4026 = vadd.f32 %v4022, 1e-05
      %v4027 = vadd.f32 %v4023, 1e-05
      %v4028 = vrsqrt.pop %v4024
      %v4029 = vrsqrt.pop %v4025
      %v4030 = vrsqrt.pop %v4026
      %v4031 = vrsqrt.pop %v4027
      %v4032 = vmul.f32 %v4000, %v4028
      %v4033 = vmul.f32 %v4001, %v4029
      %v4034 = vmul.f32 %v4002, %v4030
      %v4035 = vmul.f32 %v4003, %v4031
      %v4037 = vlaneseq
      %v4038 = vshrl.u32 %v4037, 7
      %v4039 = vsub.s32 0, %v4038
      %v4040 = vrot.slane %v3982, %v4039
      %v4042 = vmul.f32 %v4032, %v4040
      %v4043 = vmul.f32 %v4033, %v4040
      %v4044 = vmul.f32 %v4034, %v4040
      %v4045 = vmul.f32 %v4035, %v4040
      %v4047 = vlaneseq
      %v4048 = vshrl.u32 %v4047, 7
      %v4049 = vsub.s32 0, %v4048
      %v4050 = vrot.slane %v3983, %v4049
      %v4052 = vadd.f32 %v4042, %v4050
      %v4053 = vadd.f32 %v4043, %v4050
      %v4054 = vadd.f32 %v4044, %v4050
      %v4055 = vadd.f32 %v4045, %v4050
      %v4056 = vld [vmem:[%s13] sm:$0xff]
      %v4057 = vld [vmem:[%s13 + $0x8] sm:$0xff]
      %v4058 = vld [vmem:[%s13 + $0x10] sm:$0xff]
      %v4059 = vld [vmem:[%s13 + $0x18] sm:$0xff]
      %v4060 = vld [vmem:[%s13 + $0x20] sm:$0xff]
      %v4061 = vld [vmem:[%s13 + $0x28] sm:$0xff]
      %v4062 = vld [vmem:[%s13 + $0x30] sm:$0xff]
      %v4063 = vld [vmem:[%s13 + $0x38] sm:$0xff]
      %v4064 = vld [vmem:[%s13 + $0x40] sm:$0xff]
      %v4065 = vld [vmem:[%s13 + $0x48] sm:$0xff]
      %v4066 = vld [vmem:[%s13 + $0x50] sm:$0xff]
      %v4067 = vld [vmem:[%s13 + $0x58] sm:$0xff]
      %v4068 = vld [vmem:[%s13 + $0x60] sm:$0xff]
      %v4069 = vld [vmem:[%s13 + $0x68] sm:$0xff]
      %v4070 = vld [vmem:[%s13 + $0x70] sm:$0xff]
      %v4071 = vld [vmem:[%s13 + $0x78] sm:$0xff]
      %v4072 = vld [vmem:[%s14] sm:$0x3]
      %v4074 = vlaneseq
      %v4075 = vshrl.u32 %v4074, 7
      %v4076 = vsub.s32 0, %v4075
      %v4077 = vrot.slane %v4072, %v4076
      %v4078 = vlaneseq
      %v4079 = vshrl.u32 %v4078, 7
      %v4080 = vsub.s32 1, %v4079
      %v4081 = vrot.slane %v4072, %v4080
      %v4085 = vsel %vm638, %v4052, 0
      %v4088 = vsel %vm638, %v4053, 0
      %v4091 = vsel %vm638, %v4054, 0
      %v4094 = vsel %vm638, %v4055, 0
      %4096 = vmatprep.subr.mxu0 %v4057
      %4097 = vmatpush1.msra.mxu0 %v4056
      %4098 = vmatprep.subr.mxu0 %v4059
      %4099 = vmatpush1.msra.mxu0 %v4058
      %4100 = vmatprep.subr.mxu0 %v4061
      %4101 = vmatpush1.msra.mxu0 %v4060
      %4102 = vmatprep.subr.mxu0 %v4063
      %4103 = vmatpush1.msra.mxu0 %v4062
      %4104 = vmatprep.subr.mxu0 %v4065
      %4105 = vmatpush1.msra.mxu0 %v4064
      %4106 = vmatprep.subr.mxu0 %v4067
      %4107 = vmatpush1.msra.mxu0 %v4066
      %4108 = vmatprep.subr.mxu0 %v4069
      %4109 = vmatpush1.msra.mxu0 %v4068
      %4110 = vmatprep.subr.mxu0 %v4071
      %4111 = vmatpush1.msra.mxu0 %v4070
      %4112 = vmatprep.subr.mxu0 0.0
      %4113 = vmatpush1.msra.mxu0 0.0
      %4114 = vmatprep.subr.mxu0 0.0
      %4115 = vmatpush1.msra.mxu0 0.0
      %4116 = vmatprep.subr.mxu0 0.0
      %4117 = vmatpush1.msra.mxu0 0.0
      %4118 = vmatprep.subr.mxu0 0.0
      %4119 = vmatpush1.msra.mxu0 0.0
      %4120 = vmatprep.subr.mxu0 0.0
      %4121 = vmatpush1.msra.mxu0 0.0
      %4122 = vmatprep.subr.mxu0 0.0
      %4123 = vmatpush1.msra.mxu0 0.0
      %4124 = vmatprep.subr.mxu0 0.0
      %4125 = vmatpush1.msra.mxu0 0.0
      %4126 = vmatprep.subr.mxu0 0.0
      %4127 = vmatpush1.msra.mxu0 0.0
      %4128 = vmatprep.subr.mxu0 0.0
      %4129 = vmatpush1.msra.mxu0 0.0
      %4130 = vmatprep.subr.mxu0 0.0
      %4131 = vmatpush1.msra.mxu0 0.0
      %4132 = vmatprep.subr.mxu0 0.0
      %4133 = vmatpush1.msra.mxu0 0.0
      %4134 = vmatprep.subr.mxu0 0.0
      %4135 = vmatpush1.msra.mxu0 0.0
      %4136 = vmatprep.subr.mxu0 0.0
      %4137 = vmatpush1.msra.mxu0 0.0
      %4138 = vmatprep.subr.mxu0 0.0
      %4139 = vmatpush1.msra.mxu0 0.0
      %4140 = vmatprep.subr.mxu0 0.0
      %4141 = vmatpush1.msra.mxu0 0.0
      %4142 = vmatprep.subr.mxu0 0.0
      %4143 = vmatpush1.msra.mxu0 0.0
      %4144 = vmatprep.subr.mxu0 0.0
      %4145 = vmatpush1.msra.mxu0 0.0
      %4146 = vmatprep.subr.mxu0 0.0
      %4147 = vmatpush1.msra.mxu0 0.0
      %4148 = vmatprep.subr.mxu0 0.0
      %4149 = vmatpush1.msra.mxu0 0.0
      %4150 = vmatprep.subr.mxu0 0.0
      %4151 = vmatpush1.msra.mxu0 0.0
      %4152 = vmatprep.subr.mxu0 0.0
      %4153 = vmatpush1.msra.mxu0 0.0
      %4154 = vmatprep.subr.mxu0 0.0
      %4155 = vmatpush1.msra.mxu0 0.0
      %4156 = vmatprep.subr.mxu0 0.0
      %4157 = vmatpush1.msra.mxu0 0.0
      %4158 = vmatprep.subr.mxu0 0.0
      %4159 = vmatpush1.msra.mxu0 0.0
      %4160 = vmatprep.mubr.f32.mxu0 0.0
      %4161 = vmatmul.mubr.f32.gmra.mrb[0].mxu0 %v4085
      %v4162 = vpop.f32.mrb[0].mxu0
      %v4163 = vadd.f32 %v4077, %v4162
      %v4164 = vpop.f32.mrb[0].mxu0
      %v4165 = vadd.f32 %v4081, %v4164
      %4166 = vmatprep.mubr.f32.mxu0 0.0
      %4167 = vmatmul.mubr.f32.gmra.mrb[0].mxu0 %v4088
      %v4168 = vpop.f32.mrb[0].mxu0
      %v4169 = vadd.f32 %v4077, %v4168
      %v4170 = vpop.f32.mrb[0].mxu0
      %v4171 = vadd.f32 %v4081, %v4170
      %4172 = vmatprep.mubr.f32.mxu0 0.0
      %4173 = vmatmul.mubr.f32.gmra.mrb[0].mxu0 %v4091
      %v4174 = vpop.f32.mrb[0].mxu0
      %v4175 = vadd.f32 %v4077, %v4174
      %v4176 = vpop.f32.mrb[0].mxu0
      %v4177 = vadd.f32 %v4081, %v4176
      %4178 = vmatprep.mubr.f32.mxu0 0.0
      %4179 = vmatmul.mubr.f32.gmra.mrb[0].mxu0 %v4094
      %v4180 = vpop.f32.mrb[0].mxu0
      %v4181 = vadd.f32 %v4077, %v4180
      %v4182 = vpop.f32.mrb[0].mxu0
      %v4183 = vadd.f32 %v4081, %v4182
      %4184 = vdwg.mxu0
      %v4185 = vmul.f32 %v4163, -1.702
      %v4186 = vmul.f32 %v4165, -1.702
      %v4187 = vmul.f32 %v4169, -1.702
      %v4188 = vmul.f32 %v4171, -1.702
      %v4189 = vmul.f32 %v4175, -1.702
      %v4190 = vmul.f32 %v4177, -1.702
      %v4191 = vmul.f32 %v4181, -1.702
      %v4192 = vmul.f32 %v4183, -1.702
      %v4193 = vmul.f32 %v4185, 1.442695
      %v4194 = vpow.pop %v4193
      %v4195 = vmul.f32 %v4186, 1.442695
      %v4196 = vpow.pop %v4195
      %v4197 = vmul.f32 %v4187, 1.442695
      %v4198 = vpow.pop %v4197
      %v4199 = vmul.f32 %v4188, 1.442695
      %v4200 = vpow.pop %v4199
      %v4201 = vmul.f32 %v4189, 1.442695
      %v4202 = vpow.pop %v4201
      %v4203 = vmul.f32 %v4190, 1.442695
      %v4204 = vpow.pop %v4203
      %v4205 = vmul.f32 %v4191, 1.442695
      %v4206 = vpow.pop %v4205
      %v4207 = vmul.f32 %v4192, 1.442695
      %v4208 = vpow.pop %v4207
      %v4209 = vadd.f32 %v4194, 1.0
      %v4210 = vadd.f32 %v4196, 1.0
      %v4211 = vadd.f32 %v4198, 1.0
      %v4212 = vadd.f32 %v4200, 1.0
      %v4213 = vadd.f32 %v4202, 1.0
      %v4214 = vadd.f32 %v4204, 1.0
      %v4215 = vadd.f32 %v4206, 1.0
      %v4216 = vadd.f32 %v4208, 1.0
      %v4217 = vrcp.pop %v4209
      %v4218 = vrcp.pop %v4210
      %v4219 = vrcp.pop %v4211
      %v4220 = vrcp.pop %v4212
      %v4221 = vrcp.pop %v4213
      %v4222 = vrcp.pop %v4214
      %v4223 = vrcp.pop %v4215
      %v4224 = vrcp.pop %v4216
      %v4225 = vmul.f32 %v4163, %v4217
      %v4226 = vmul.f32 %v4165, %v4218
      %v4227 = vmul.f32 %v4169, %v4219
      %v4228 = vmul.f32 %v4171, %v4220
      %v4229 = vmul.f32 %v4175, %v4221
      %v4230 = vmul.f32 %v4177, %v4222
      %v4231 = vmul.f32 %v4181, %v4223
      %v4232 = vmul.f32 %v4183, %v4224
      %v4233 = vld [vmem:[%s15] sm:$0xff]
      %v4234 = vld [vmem:[%s15 + $0x8] sm:$0xff]
      %v4235 = vld [vmem:[%s15 + $0x10] sm:$0xff]
      %v4236 = vld [vmem:[%s15 + $0x18] sm:$0xff]
      %v4237 = vld [vmem:[%s15 + $0x20] sm:$0xff]
      %v4238 = vld [vmem:[%s15 + $0x28] sm:$0xff]
      %v4239 = vld [vmem:[%s15 + $0x30] sm:$0xff]
      %v4240 = vld [vmem:[%s15 + $0x38] sm:$0xff]
      %v4241 = vld [vmem:[%s15 + $0x40] sm:$0xff]
      %v4242 = vld [vmem:[%s15 + $0x48] sm:$0xff]
      %v4243 = vld [vmem:[%s15 + $0x50] sm:$0xff]
      %v4244 = vld [vmem:[%s15 + $0x58] sm:$0xff]
      %v4245 = vld [vmem:[%s15 + $0x60] sm:$0xff]
      %v4246 = vld [vmem:[%s15 + $0x68] sm:$0xff]
      %v4247 = vld [vmem:[%s15 + $0x70] sm:$0xff]
      %v4248 = vld [vmem:[%s15 + $0x78] sm:$0xff]
      %v4249 = vld [vmem:[%s15 + $0x80] sm:$0xff]
      %v4250 = vld [vmem:[%s15 + $0x88] sm:$0xff]
      %v4251 = vld [vmem:[%s15 + $0x90] sm:$0xff]
      %v4252 = vld [vmem:[%s15 + $0x98] sm:$0xff]
      %v4253 = vld [vmem:[%s15 + $0xa0] sm:$0xff]
      %v4254 = vld [vmem:[%s15 + $0xa8] sm:$0xff]
      %v4255 = vld [vmem:[%s15 + $0xb0] sm:$0xff]
      %v4256 = vld [vmem:[%s15 + $0xb8] sm:$0xff]
      %v4257 = vld [vmem:[%s15 + $0xc0] sm:$0xff]
      %v4258 = vld [vmem:[%s15 + $0xc8] sm:$0xff]
      %v4259 = vld [vmem:[%s15 + $0xd0] sm:$0xff]
      %v4260 = vld [vmem:[%s15 + $0xd8] sm:$0xff]
      %v4261 = vld [vmem:[%s15 + $0xe0] sm:$0xff]
      %v4262 = vld [vmem:[%s15 + $0xe8] sm:$0xff]
      %v4263 = vld [vmem:[%s15 + $0xf0] sm:$0xff]
      %v4264 = vld [vmem:[%s15 + $0xf8] sm:$0xff]
      %v4265 = vld [vmem:[%s16] sm:$0x1]
      %v4267 = vlaneseq
      %v4268 = vshrl.u32 %v4267, 7
      %v4269 = vsub.s32 0, %v4268
      %v4270 = vrot.slane %v4265, %v4269
      %4272 = vmatprep.subr.mxu0 0.0
      %4273 = vmatpush1.msra.mxu0 %v4233
      %4274 = vmatprep.subr.mxu0 0.0
      %4275 = vmatpush1.msra.mxu0 %v4234
      %4276 = vmatprep.subr.mxu0 0.0
      %4277 = vmatpush1.msra.mxu0 %v4235
      %4278 = vmatprep.subr.mxu0 0.0
      %4279 = vmatpush1.msra.mxu0 %v4236
      %4280 = vmatprep.subr.mxu0 0.0
      %4281 = vmatpush1.msra.mxu0 %v4237
      %4282 = vmatprep.subr.mxu0 0.0
      %4283 = vmatpush1.msra.mxu0 %v4238
      %4284 = vmatprep.subr.mxu0 0.0
      %4285 = vmatpush1.msra.mxu0 %v4239
      %4286 = vmatprep.subr.mxu0 0.0
      %4287 = vmatpush1.msra.mxu0 %v4240
      %4288 = vmatprep.subr.mxu0 0.0
      %4289 = vmatpush1.msra.mxu0 %v4241
      %4290 = vmatprep.subr.mxu0 0.0
      %4291 = vmatpush1.msra.mxu0 %v4242
      %4292 = vmatprep.subr.mxu0 0.0
      %4293 = vmatpush1.msra.mxu0 %v4243
      %4294 = vmatprep.subr.mxu0 0.0
      %4295 = vmatpush1.msra.mxu0 %v4244
      %4296 = vmatprep.subr.mxu0 0.0
      %4297 = vmatpush1.msra.mxu0 %v4245
      %4298 = vmatprep.subr.mxu0 0.0
      %4299 = vmatpush1.msra.mxu0 %v4246
      %4300 = vmatprep.subr.mxu0 0.0
      %4301 = vmatpush1.msra.mxu0 %v4247
      %4302 = vmatprep.subr.mxu0 0.0
      %4303 = vmatpush1.msra.mxu0 %v4248
      %4304 = vmatprep.subr.mxu0 0.0
      %4305 = vmatpush1.msra.mxu0 %v4249
      %4306 = vmatprep.subr.mxu0 0.0
      %4307 = vmatpush1.msra.mxu0 %v4250
      %4308 = vmatprep.subr.mxu0 0.0
      %4309 = vmatpush1.msra.mxu0 %v4251
      %4310 = vmatprep.subr.mxu0 0.0
      %4311 = vmatpush1.msra.mxu0 %v4252
      %4312 = vmatprep.subr.mxu0 0.0
      %4313 = vmatpush1.msra.mxu0 %v4253
      %4314 = vmatprep.subr.mxu0 0.0
      %4315 = vmatpush1.msra.mxu0 %v4254
      %4316 = vmatprep.subr.mxu0 0.0
      %4317 = vmatpush1.msra.mxu0 %v4255
      %4318 = vmatprep.subr.mxu0 0.0
      %4319 = vmatpush1.msra.mxu0 %v4256
      %4320 = vmatprep.subr.mxu0 0.0
      %4321 = vmatpush1.msra.mxu0 %v4257
      %4322 = vmatprep.subr.mxu0 0.0
      %4323 = vmatpush1.msra.mxu0 %v4258
      %4324 = vmatprep.subr.mxu0 0.0
      %4325 = vmatpush1.msra.mxu0 %v4259
      %4326 = vmatprep.subr.mxu0 0.0
      %4327 = vmatpush1.msra.mxu0 %v4260
      %4328 = vmatprep.subr.mxu0 0.0
      %4329 = vmatpush1.msra.mxu0 %v4261
      %4330 = vmatprep.subr.mxu0 0.0
      %4331 = vmatpush1.msra.mxu0 %v4262
      %4332 = vmatprep.subr.mxu0 0.0
      %4333 = vmatpush1.msra.mxu0 %v4263
      %4334 = vmatprep.subr.mxu0 0.0
      %4335 = vmatpush1.msra.mxu0 %v4264
      %4336 = vmatprep.mubr.f32.mxu0 %v4226
      %4337 = vmatmul.mubr.f32.gmra.mrb[0].mxu0 %v4225
      %v4338 = vpop.f32.mrb[0].mxu0
      %v4339 = vadd.f32 %v4270, %v4338
      %v4340 = vpop.f32.mrb[0].mxu0
      %4341 = vmatprep.mubr.f32.mxu0 %v4228
      %4342 = vmatmul.mubr.f32.gmra.mrb[0].mxu0 %v4227
      %v4343 = vpop.f32.mrb[0].mxu0
      %v4344 = vpop.f32.mrb[0].mxu0
      %4345 = vmatprep.mubr.f32.mxu0 %v4230
      %4346 = vmatmul.mubr.f32.gmra.mrb[0].mxu0 %v4229
      %v4347 = vpop.f32.mrb[0].mxu0
      %v4348 = vpop.f32.mrb[0].mxu0
      %4349 = vmatprep.mubr.f32.mxu0 %v4232
      %4350 = vmatmul.mubr.f32.gmra.mrb[0].mxu0 %v4231
      %v4351 = vpop.f32.mrb[0].mxu0
      %v4352 = vpop.f32.mrb[0].mxu0
      %4353 = vdwg.mxu0
      %v4354 = vadd.f32 %v3978, %v4339
      %v4355 = vld [vmem:[%s17] sm:$0x1]
      %v4356 = vld [vmem:[%s18] sm:$0x1]
      %vm4357 = vcmask 516096
      %v4358 = vsel %vm4357, %v4354, 0.0
      %4359 = vadd.xlane.f32.xlu0 %v4358
      %v4360 = vpop.xlane.xlu0 %4359
      %v4361 = vmul.f32 %v4360, %v776
      %v4362 = vsub.f32 %v4354, %v4361
      %v4363 = vmul.f32 %v4362, %v4362
      %v4364 = vsel %vm4357, %v4363, 0.0
      %4365 = vadd.xlane.f32.xlu0 %v4364
      %v4366 = vpop.xlane.xlu0 %4365
      %v4367 = vmul.f32 %v4366, %v776
      %v4368 = vadd.f32 %v4367, 1e-05
      %v4369 = vrsqrt.pop %v4368
      %v4370 = vmul.f32 %v4362, %v4369
      %v4371 = vmul.f32 %v4370, %v4355
      %v4372 = vadd.f32 %v4371, %v4356
      %v4373 = vld [vmem:[%s19] sm:$0xff]
      %v4374 = vld [vmem:[%s19 + $0x8] sm:$0xff]
      %v4375 = vld [vmem:[%s19 + $0x10] sm:$0xff]
      %v4376 = vld [vmem:[%s19 + $0x18] sm:$0xff]
      %v4377 = vld [vmem:[%s19 + $0x20] sm:$0xff]
      %v4378 = vld [vmem:[%s19 + $0x28] sm:$0xff]
      %v4379 = vld [vmem:[%s19 + $0x30] sm:$0xff]
      %v4380 = vld [vmem:[%s19 + $0x38] sm:$0xff]
      %v4382 = vsel %vm638, %v4372, 0
      %4384 = vmatprep.subr.mxu0 0.0
      %4385 = vmatpush1.msra.mxu0 %v4373
      %4386 = vmatprep.subr.mxu0 0.0
      %4387 = vmatpush1.msra.mxu0 %v4374
      %4388 = vmatprep.subr.mxu0 0.0
      %4389 = vmatpush1.msra.mxu0 %v4375
      %4390 = vmatprep.subr.mxu0 0.0
      %4391 = vmatpush1.msra.mxu0 %v4376
      %4392 = vmatprep.subr.mxu0 0.0
      %4393 = vmatpush1.msra.mxu0 %v4377
      %4394 = vmatprep.subr.mxu0 0.0
      %4395 = vmatpush1.msra.mxu0 %v4378
      %4396 = vmatprep.subr.mxu0 0.0
      %4397 = vmatpush1.msra.mxu0 %v4379
      %4398 = vmatprep.subr.mxu0 0.0
      %4399 = vmatpush1.msra.mxu0 %v4380
      %4400 = vmatprep.subr.mxu0 0.0
      %4401 = vmatpush1.msra.mxu0 0.0
      %4402 = vmatprep.subr.mxu0 0.0
      %4403 = vmatpush1.msra.mxu0 0.0
      %4404 = vmatprep.subr.mxu0 0.0
      %4405 = vmatpush1.msra.mxu0 0.0
      %4406 = vmatprep.subr.mxu0 0.0
      %4407 = vmatpush1.msra.mxu0 0.0
      %4408 = vmatprep.subr.mxu0 0.0
      %4409 = vmatpush1.msra.mxu0 0.0
      %4410 = vmatprep.subr.mxu0 0.0
      %4411 = vmatpush1.msra.mxu0 0.0
      %4412 = vmatprep.subr.mxu0 0.0
      %4413 = vmatpush1.msra.mxu0 0.0
      %4414 = vmatprep.subr.mxu0 0.0
      %4415 = vmatpush1.msra.mxu0 0.0
      %4416 = vmatprep.subr.mxu0 0.0
      %4417 = vmatpush1.msra.mxu0 0.0
      %4418 = vmatprep.subr.mxu0 0.0
      %4419 = vmatpush1.msra.mxu0 0.0
      %4420 = vmatprep.subr.mxu0 0.0
      %4421 = vmatpush1.msra.mxu0 0.0
      %4422 = vmatprep.subr.mxu0 0.0
      %4423 = vmatpush1.msra.mxu0 0.0
      %4424 = vmatprep.subr.mxu0 0.0
      %4425 = vmatpush1.msra.mxu0 0.0
      %4426 = vmatprep.subr.mxu0 0.0
      %4427 = vmatpush1.msra.mxu0 0.0
      %4428 = vmatprep.subr.mxu0 0.0
      %4429 = vmatpush1.msra.mxu0 0.0
      %4430 = vmatprep.subr.mxu0 0.0
      %4431 = vmatpush1.msra.mxu0 0.0
      %4432 = vmatprep.subr.mxu0 0.0
      %4433 = vmatpush1.msra.mxu0 0.0
      %4434 = vmatprep.subr.mxu0 0.0
      %4435 = vmatpush1.msra.mxu0 0.0
      %4436 = vmatprep.subr.mxu0 0.0
      %4437 = vmatpush1.msra.mxu0 0.0
      %4438 = vmatprep.subr.mxu0 0.0
      %4439 = vmatpush1.msra.mxu0 0.0
      %4440 = vmatprep.subr.mxu0 0.0
      %4441 = vmatpush1.msra.mxu0 0.0
      %4442 = vmatprep.subr.mxu0 0.0
      %4443 = vmatpush1.msra.mxu0 0.0
      %4444 = vmatprep.subr.mxu0 0.0
      %4445 = vmatpush1.msra.mxu0 0.0
      %4446 = vmatprep.subr.mxu0 0.0
      %4447 = vmatpush1.msra.mxu0 0.0
      %4448 = vmatprep.mubr.f32.mxu0 0.0
      %4449 = vmatmul.mubr.f32.gmra.mrb[0].mxu0 %v4382
      %v4450 = vpop.f32.mrb[0].mxu0
      %v4451 = vadd.f32 0.0, %v4450
      %v4452 = vpop.f32.mrb[0].mxu0
      %4453 = vdwg.mxu0
      %vm4454 = vcmp.gt.f32.partialorder %v4451, 20.0
      %v4455 = vmin.f32 %v4451, 20.0
      %v4456 = vmul.f32 %v4455, 1.442695
      %v4457 = vpow.pop %v4456
      %v4458 = vadd.f32 %v4457, 1.0
      %v4459 = vlog2.pop %v4458
      %v4460 = vmul.f32 %v4459, 0.6931472
      %v4461 = vsel %vm4454, %v4451, %v4460
      %vm4462 = vcmask 73728
      %4463 = vst.msk [vmem:[%s625] sm:$0x1] %vm4462, %v4461
      %p4464 = scmp.lt.s32.totalorder %s31, 1
      %s4465 = scalar_select %p4464, %s31, 1
      %s4466 = scalar_lea.vmem %s20, %s4465
      // Predicated region
      $region101: #{vc_ensemble_forward.2} parent=99 // pred_check
        %p4467 = pneg %p474
      $region102: #{vc_ensemble_forward.2} parent=99 // pred_check_branch
        %4469 = sbr.rel (%p4467) target = $region104
      $region103: #{vc_ensemble_forward.2} parent=99 // pred_region
        _
      $region104: #{vc_ensemble_forward.2} parent=99 // pred_fallthru
        _
    $region100: #{vc_ensemble_forward.2} parent=5 // pred_fallthru
      _
    %p4470 = scmp.le.s32.totalorder 2, %s26
    // Predicated region
    $region105: #{vc_ensemble_forward.2} parent=5 // pred_check
      %p4471 = pneg %p4470
    $region106: #{vc_ensemble_forward.2} parent=5 // pred_check_branch
      %4473 = sbr.rel (%p4471) target = $region108
    $region107: #{vc_ensemble_forward.2} parent=5 // pred_region
      %s4474 = ssub.s32 %s26, 2
      // Predicated region
      $region109: #{vc_ensemble_forward.2} parent=107 // pred_check
        %p4475 = pneg %p480
      $region110: #{vc_ensemble_forward.2} parent=107 // pred_check_branch
        %4477 = sbr.rel (%p4475) target = $region112
      $region111: #{vc_ensemble_forward.2} parent=107 // pred_region
        %p4478 = scmp.lt.s32.totalorder %s32, 1
        %s4479 = scalar_select %p4478, %s32, 1
        %s4480 = scalar_lea.vmem %s20, %s4479
      $region112: #{vc_ensemble_forward.2} parent=107 // pred_fallthru
        _
    $region108: #{vc_ensemble_forward.2} parent=5 // pred_fallthru
      _
  $region6: #{vc_ensemble_forward.2} parent=0 // loop_footer
    %s30 = sadd.s32 1, %s26
  $region7: #{vc_ensemble_forward.2} parent=0 // loop_footer_branch
    %25 = sbr.rel target = $region3
  $region8: #{vc_ensemble_forward.2} parent=0 // loop_exit
    _

</llo_original>
